<compile_context>
chip_gen: v7x
topology: tpu7x:2x2x1
jax: 0.10.0
libtpu: 0.0.40
codegen_flags: <defaults>
</compile_context>

<pallas_src>
import jax
import jax.numpy as jnp
from jax.experimental import pallas as pl
from jax.experimental.pallas import tpu as pltpu

# Small demo stand-in for the homework's BIGNET_DIM (1024) and lora_dim (32).
BIGNET_DIM = 128
LORA_DIM = 32
N_BLOCKS = 6                   # Block, LN, Block, LN, ..., Block  (6 blocks, 5 LNs)
N_LN = 5
N_LAYERS = N_BLOCKS * 3        # 18 LoRALinear layers total
EPS = 1e-5                     # torch.nn.LayerNorm default
TILE_N = 256                   # rows per grid step (128 on v5e, 256 on v7x, up to 512 on v6e)


def _layernorm(x, g, be):
    mu = jnp.mean(x, axis=-1, keepdims=True)
    xc = x - mu
    var = jnp.mean(xc * xc, axis=-1, keepdims=True)   # biased var (torch LN)
    inv = jax.lax.rsqrt(var + EPS)
    return xc * inv * g + be


def lora_bignet_kernel(x_ref, wt_ref, bb_ref, g_ref, be_ref, o_ref):
    # f32 residual stream; bf16 carry between the three layers inside a block.
    h = x_ref[...].astype(jnp.float32)
    for blk in range(N_BLOCKS):
        resid = h
        yb = h.astype(jnp.bfloat16)                    # one cast per block
        y = None
        for j in range(3):
            l = blk * 3 + j
            # Folded (base + lora) weight: single bf16 MXU matmul, f32 accumulate.
            y = jnp.dot(yb, wt_ref[l], preferred_element_type=jnp.float32) + bb_ref[l]
            if j < 2:                                  # ReLU after first two layers only
                yb = jnp.maximum(y, 0.0).astype(jnp.bfloat16)
        h = y + resid                                  # Block residual (f32)
        if blk < N_LN:                                 # LayerNorm between blocks
            h = _layernorm(h, g_ref[blk], be_ref[blk])
    o_ref[...] = h.astype(o_ref.dtype)


def lora_bignet(x, w_fp16, b_fp16, lora_a_t, lora_b_t, g, be, *,
                tile_n=TILE_N, vmem_limit_bytes=56 << 20):
    # ---- one-time wrapper-side weight prep (amortized over all row tiles) ----
    # Fold LoRA into the base weight (inference-only; see header note).
    w_f32 = w_fp16.astype(jnp.float32)                             # (L, C, C) = weight.T
    delta = jnp.einsum('lcr,lrk->lck',
                       lora_a_t.astype(jnp.float32),
                       lora_b_t.astype(jnp.float32))               # (L, C, C)
    wt = (w_f32 + delta).astype(jnp.bfloat16)                      # bf16 is MXU-native
    bb = b_fp16.astype(jnp.float32)                                # pre-cast bias once
    g = g.astype(jnp.float32)
    be = be.astype(jnp.float32)

    n, c = x.shape
    n_pad = pl.cdiv(n, tile_n) * tile_n
    xp = x if n_pad == n else jnp.pad(x, ((0, n_pad - n), (0, 0)))

    # Whole-array, single-buffered VMEM residency for the grid-invariant weights.
    def resident():
        return pl.BlockSpec(memory_space=pltpu.MemorySpace.VMEM)

    out = pl.pallas_call(
        lora_bignet_kernel,
        out_shape=jax.ShapeDtypeStruct((n_pad, c), jnp.float32),
        grid_spec=pltpu.PrefetchScalarGridSpec(
            num_scalar_prefetch=0,
            grid=(n_pad // tile_n,),
            in_specs=[
                pl.BlockSpec((tile_n, c), lambda i: (i, 0)),   # activations: pipelined
                resident(),   # folded base+lora weight.T  (L, C, C) bf16
                resident(),   # bias                        (L, 1, C) f32
                resident(),   # LN gamma                    (5, 1, C) f32
                resident(),   # LN beta                     (5, 1, C) f32
            ],
            out_specs=pl.BlockSpec((tile_n, c), lambda i: (i, 0)),
        ),
        compiler_params=pltpu.CompilerParams(
            # "parallel" shards rows across TCs (v7x); fine for throughput.
            dimension_semantics=("parallel",),
            # 56 MiB fits v7x's 64 MiB physical VMEM; raise toward ~100 MiB and
            # sweep tile_n to 512 on v5e/v6e (128 MiB physical).
            vmem_limit_bytes=vmem_limit_bytes,
        ),
    )(xp, wt, bb, g, be)
    return out[:n]


def reference(x, w_fp16, b_fp16, lora_a_t, lora_b_t, g, be):
    # Pure-JAX replica of the wrapper+kernel math (same fold + bf16/f32 policy),
    # used as the correctness oracle for the Pallas plumbing.
    w_f32 = w_fp16.astype(jnp.float32)
    delta = jnp.einsum('lcr,lrk->lck',
                       lora_a_t.astype(jnp.float32),
                       lora_b_t.astype(jnp.float32))
    wt = (w_f32 + delta).astype(jnp.bfloat16)
    bb = b_fp16.astype(jnp.float32)
    h = x.astype(jnp.float32)
    for blk in range(N_BLOCKS):
        resid = h
        yb = h.astype(jnp.bfloat16)
        y = None
        for j in range(3):
            l = blk * 3 + j
            y = jnp.dot(yb, wt[l], preferred_element_type=jnp.float32) + bb[l]
            if j < 2:
                yb = jnp.maximum(y, 0.0).astype(jnp.bfloat16)
        h = y + resid
        if blk < N_LN:
            mu = jnp.mean(h, axis=-1, keepdims=True)
            xc = h - mu
            var = jnp.mean(xc * xc, axis=-1, keepdims=True)
            h = xc * jax.lax.rsqrt(var + EPS) * g[blk] + be[blk]
    return h


if __name__ == "__main__":
    key = jax.random.PRNGKey(0)
    kx, kw, kb, ka, kbt, kg, kbe = jax.random.split(key, 7)

    N = 300            # deliberately not a multiple of TILE_N (exercises row padding)
    C = BIGNET_DIM
    R = LORA_DIM

    x = jax.random.normal(kx, (N, C), dtype=jnp.float32)

    # Base HalfLinear params stored as the torch module stores them: fp16,
    # pre-transposed (weight.T).
    w_fp16 = (jax.random.normal(kw, (N_LAYERS, C, C), dtype=jnp.float32) * 0.05
              ).astype(jnp.float16)
    b_fp16 = (jax.random.normal(kb, (N_LAYERS, 1, C), dtype=jnp.float32) * 0.05
              ).astype(jnp.float16)

    # LoRA params (f32 in torch).  torch init: lora_a ~ N(0, 0.02), lora_b = 0;
    # use small non-zero lora_b here so the folded LoRA path is exercised
    # (as it would be after training / with loaded adapters).
    lora_a_t = jax.random.normal(ka, (N_LAYERS, C, R), dtype=jnp.float32) * 0.02
    lora_b_t = jax.random.normal(kbt, (N_LAYERS, R, C), dtype=jnp.float32) * 0.02

    # LayerNorm affine params (torch default gamma=1, beta=0; perturbed slightly
    # so the kernel actually exercises the scale/shift).
    g = 1.0 + 0.01 * jax.random.normal(kg, (N_LN, 1, C), dtype=jnp.float32)
    be = 0.01 * jax.random.normal(kbe, (N_LN, 1, C), dtype=jnp.float32)

    out = lora_bignet(x, w_fp16, b_fp16, lora_a_t, lora_b_t, g, be)
    out = jax.block_until_ready(out)

    ref = reference(x, w_fp16, b_fp16, lora_a_t, lora_b_t, g, be)
    assert out.shape == (N, C) and out.dtype == jnp.float32
    assert jnp.allclose(out, ref, rtol=2e-2, atol=2e-2), "mismatch vs JAX reference"

    print("KERNEL_OK")
</pallas_src>

<mosaic_0001>
module attributes {stable_mosaic.version = 11 : i64} {
  func.func @lora_bignet_kernel(%arg0: i32, %arg1: memref<256x128xf32, #tpu.memory_space<vmem>>, %arg2: memref<18x128x128xbf16, #tpu.memory_space<vmem>>, %arg3: memref<18x1x128xf32, #tpu.memory_space<vmem>>, %arg4: memref<5x1x128xf32, #tpu.memory_space<vmem>>, %arg5: memref<5x1x128xf32, #tpu.memory_space<vmem>>, %arg6: memref<256x128xf32, #tpu.memory_space<vmem>>) attributes {dimension_semantics = [#tpu.dimension_semantics<parallel>], iteration_bounds = array<i64: 2>, scalar_prefetch = 0 : i64, scratch_operands = 0 : i64, tpu.core_type = #tpu.core_type<tc>, window_params = [{transform_indices = @transform_0, window_bounds = array<i64: 256, 128>}, {pipeline_mode = #tpu.pipeline_mode<synchronous>, transform_indices = @transform_1, window_bounds = array<i64: 18, 128, 128>}, {pipeline_mode = #tpu.pipeline_mode<synchronous>, transform_indices = @transform_2, window_bounds = array<i64: 18, 1, 128>}, {pipeline_mode = #tpu.pipeline_mode<synchronous>, transform_indices = @transform_3, window_bounds = array<i64: 5, 1, 128>}, {pipeline_mode = #tpu.pipeline_mode<synchronous>, transform_indices = @transform_4, window_bounds = array<i64: 5, 1, 128>}, {transform_indices = @transform_5, window_bounds = array<i64: 256, 128>}]} {
    %c0 = arith.constant 0 : index
    %c0_0 = arith.constant 0 : index
    %0 = vector.load %arg1[%c0, %c0_0] : memref<256x128xf32, #tpu.memory_space<vmem>>, vector<256x128xf32>
    %1 = arith.truncf %0 : vector<256x128xf32> to vector<256x128xbf16>
    %c0_1 = arith.constant 0 : index
    %c0_2 = arith.constant 0 : index
    %c0_3 = arith.constant 0 : index
    %2 = vector.load %arg2[%c0_1, %c0_2, %c0_3] : memref<18x128x128xbf16, #tpu.memory_space<vmem>>, vector<1x128x128xbf16>
    %3 = vector.shape_cast %2 : vector<1x128x128xbf16> to vector<128x128xbf16>
    %cst = arith.constant dense<0.000000e+00> : vector<256x128xf32>
    %4 = tpu.matmul %1, %3, %cst {dimension_numbers = #tpu.dot_dimension_numbers<[1], [0], [0], [1], [0, 0, 1, 1], [], []>} : vector<256x128xbf16>, vector<128x128xbf16>, vector<256x128xf32> -> vector<256x128xf32>
    %c0_4 = arith.constant 0 : index
    %c0_5 = arith.constant 0 : index
    %c0_6 = arith.constant 0 : index
    %5 = vector.load %arg3[%c0_4, %c0_5, %c0_6] : memref<18x1x128xf32, #tpu.memory_space<vmem>>, vector<1x1x128xf32>
    %6 = vector.shape_cast %5 : vector<1x1x128xf32> to vector<1x128xf32>
    %7 = vector.broadcast %6 : vector<1x128xf32> to vector<256x128xf32>
    %8 = arith.addf %4, %7 : vector<256x128xf32>
    %cst_7 = arith.constant 0.000000e+00 : f32
    %9 = vector.broadcast %cst_7 : f32 to vector<256x128xf32>
    %10 = arith.maximumf %8, %9 : vector<256x128xf32>
    %11 = arith.truncf %10 : vector<256x128xf32> to vector<256x128xbf16>
    %c1 = arith.constant 1 : index
    %c0_8 = arith.constant 0 : index
    %c0_9 = arith.constant 0 : index
    %12 = vector.load %arg2[%c1, %c0_8, %c0_9] : memref<18x128x128xbf16, #tpu.memory_space<vmem>>, vector<1x128x128xbf16>
    %13 = vector.shape_cast %12 : vector<1x128x128xbf16> to vector<128x128xbf16>
    %cst_10 = arith.constant dense<0.000000e+00> : vector<256x128xf32>
    %14 = tpu.matmul %11, %13, %cst_10 {dimension_numbers = #tpu.dot_dimension_numbers<[1], [0], [0], [1], [0, 0, 1, 1], [], []>} : vector<256x128xbf16>, vector<128x128xbf16>, vector<256x128xf32> -> vector<256x128xf32>
    %c1_11 = arith.constant 1 : index
    %c0_12 = arith.constant 0 : index
    %c0_13 = arith.constant 0 : index
    %15 = vector.load %arg3[%c1_11, %c0_12, %c0_13] : memref<18x1x128xf32, #tpu.memory_space<vmem>>, vector<1x1x128xf32>
    %16 = vector.shape_cast %15 : vector<1x1x128xf32> to vector<1x128xf32>
    %17 = vector.broadcast %16 : vector<1x128xf32> to vector<256x128xf32>
    %18 = arith.addf %14, %17 : vector<256x128xf32>
    %cst_14 = arith.constant 0.000000e+00 : f32
    %19 = vector.broadcast %cst_14 : f32 to vector<256x128xf32>
    %20 = arith.maximumf %18, %19 : vector<256x128xf32>
    %21 = arith.truncf %20 : vector<256x128xf32> to vector<256x128xbf16>
    %c2 = arith.constant 2 : index
    %c0_15 = arith.constant 0 : index
    %c0_16 = arith.constant 0 : index
    %22 = vector.load %arg2[%c2, %c0_15, %c0_16] : memref<18x128x128xbf16, #tpu.memory_space<vmem>>, vector<1x128x128xbf16>
    %23 = vector.shape_cast %22 : vector<1x128x128xbf16> to vector<128x128xbf16>
    %cst_17 = arith.constant dense<0.000000e+00> : vector<256x128xf32>
    %24 = tpu.matmul %21, %23, %cst_17 {dimension_numbers = #tpu.dot_dimension_numbers<[1], [0], [0], [1], [0, 0, 1, 1], [], []>} : vector<256x128xbf16>, vector<128x128xbf16>, vector<256x128xf32> -> vector<256x128xf32>
    %c2_18 = arith.constant 2 : index
    %c0_19 = arith.constant 0 : index
    %c0_20 = arith.constant 0 : index
    %25 = vector.load %arg3[%c2_18, %c0_19, %c0_20] : memref<18x1x128xf32, #tpu.memory_space<vmem>>, vector<1x1x128xf32>
    %26 = vector.shape_cast %25 : vector<1x1x128xf32> to vector<1x128xf32>
    %27 = vector.broadcast %26 : vector<1x128xf32> to vector<256x128xf32>
    %28 = arith.addf %24, %27 : vector<256x128xf32>
    %29 = arith.addf %28, %0 : vector<256x128xf32>
    %c0_21 = arith.constant 0 : index
    %c0_22 = arith.constant 0 : index
    %c0_23 = arith.constant 0 : index
    %30 = vector.load %arg4[%c0_21, %c0_22, %c0_23] : memref<5x1x128xf32, #tpu.memory_space<vmem>>, vector<1x1x128xf32>
    %31 = vector.shape_cast %30 : vector<1x1x128xf32> to vector<1x128xf32>
    %c0_24 = arith.constant 0 : index
    %c0_25 = arith.constant 0 : index
    %c0_26 = arith.constant 0 : index
    %32 = vector.load %arg5[%c0_24, %c0_25, %c0_26] : memref<5x1x128xf32, #tpu.memory_space<vmem>>, vector<1x1x128xf32>
    %33 = vector.shape_cast %32 : vector<1x1x128xf32> to vector<1x128xf32>
    %cst_27 = arith.constant dense<0.000000e+00> : vector<256xf32>
    %34 = vector.multi_reduction <add>, %29, %cst_27 [1] : vector<256x128xf32> to vector<256xf32>
    %35 = vector.shape_cast %34 : vector<256xf32> to vector<256x1xf32>
    %cst_28 = arith.constant 1.280000e+02 : f32
    %36 = vector.broadcast %cst_28 : f32 to vector<256x1xf32>
    %37 = arith.divf %35, %36 : vector<256x1xf32>
    %38 = vector.broadcast %37 : vector<256x1xf32> to vector<256x128xf32>
    %39 = arith.subf %29, %38 : vector<256x128xf32>
    %40 = arith.mulf %39, %39 : vector<256x128xf32>
    %cst_29 = arith.constant dense<0.000000e+00> : vector<256xf32>
    %41 = vector.multi_reduction <add>, %40, %cst_29 [1] : vector<256x128xf32> to vector<256xf32>
    %42 = vector.shape_cast %41 : vector<256xf32> to vector<256x1xf32>
    %cst_30 = arith.constant 1.280000e+02 : f32
    %43 = vector.broadcast %cst_30 : f32 to vector<256x1xf32>
    %44 = arith.divf %42, %43 : vector<256x1xf32>
    %cst_31 = arith.constant 9.99999974E-6 : f32
    %45 = vector.broadcast %cst_31 : f32 to vector<256x1xf32>
    %46 = arith.addf %44, %45 : vector<256x1xf32>
    %47 = math.rsqrt %46 : vector<256x1xf32>
    %48 = vector.broadcast %47 : vector<256x1xf32> to vector<256x128xf32>
    %49 = arith.mulf %39, %48 : vector<256x128xf32>
    %50 = vector.broadcast %31 : vector<1x128xf32> to vector<256x128xf32>
    %51 = arith.mulf %49, %50 : vector<256x128xf32>
    %52 = vector.broadcast %33 : vector<1x128xf32> to vector<256x128xf32>
    %53 = arith.addf %51, %52 : vector<256x128xf32>
    %54 = arith.truncf %53 : vector<256x128xf32> to vector<256x128xbf16>
    %c3 = arith.constant 3 : index
    %c0_32 = arith.constant 0 : index
    %c0_33 = arith.constant 0 : index
    %55 = vector.load %arg2[%c3, %c0_32, %c0_33] : memref<18x128x128xbf16, #tpu.memory_space<vmem>>, vector<1x128x128xbf16>
    %56 = vector.shape_cast %55 : vector<1x128x128xbf16> to vector<128x128xbf16>
    %cst_34 = arith.constant dense<0.000000e+00> : vector<256x128xf32>
    %57 = tpu.matmul %54, %56, %cst_34 {dimension_numbers = #tpu.dot_dimension_numbers<[1], [0], [0], [1], [0, 0, 1, 1], [], []>} : vector<256x128xbf16>, vector<128x128xbf16>, vector<256x128xf32> -> vector<256x128xf32>
    %c3_35 = arith.constant 3 : index
    %c0_36 = arith.constant 0 : index
    %c0_37 = arith.constant 0 : index
    %58 = vector.load %arg3[%c3_35, %c0_36, %c0_37] : memref<18x1x128xf32, #tpu.memory_space<vmem>>, vector<1x1x128xf32>
    %59 = vector.shape_cast %58 : vector<1x1x128xf32> to vector<1x128xf32>
    %60 = vector.broadcast %59 : vector<1x128xf32> to vector<256x128xf32>
    %61 = arith.addf %57, %60 : vector<256x128xf32>
    %cst_38 = arith.constant 0.000000e+00 : f32
    %62 = vector.broadcast %cst_38 : f32 to vector<256x128xf32>
    %63 = arith.maximumf %61, %62 : vector<256x128xf32>
    %64 = arith.truncf %63 : vector<256x128xf32> to vector<256x128xbf16>
    %c4 = arith.constant 4 : index
    %c0_39 = arith.constant 0 : index
    %c0_40 = arith.constant 0 : index
    %65 = vector.load %arg2[%c4, %c0_39, %c0_40] : memref<18x128x128xbf16, #tpu.memory_space<vmem>>, vector<1x128x128xbf16>
    %66 = vector.shape_cast %65 : vector<1x128x128xbf16> to vector<128x128xbf16>
    %cst_41 = arith.constant dense<0.000000e+00> : vector<256x128xf32>
    %67 = tpu.matmul %64, %66, %cst_41 {dimension_numbers = #tpu.dot_dimension_numbers<[1], [0], [0], [1], [0, 0, 1, 1], [], []>} : vector<256x128xbf16>, vector<128x128xbf16>, vector<256x128xf32> -> vector<256x128xf32>
    %c4_42 = arith.constant 4 : index
    %c0_43 = arith.constant 0 : index
    %c0_44 = arith.constant 0 : index
    %68 = vector.load %arg3[%c4_42, %c0_43, %c0_44] : memref<18x1x128xf32, #tpu.memory_space<vmem>>, vector<1x1x128xf32>
    %69 = vector.shape_cast %68 : vector<1x1x128xf32> to vector<1x128xf32>
    %70 = vector.broadcast %69 : vector<1x128xf32> to vector<256x128xf32>
    %71 = arith.addf %67, %70 : vector<256x128xf32>
    %cst_45 = arith.constant 0.000000e+00 : f32
    %72 = vector.broadcast %cst_45 : f32 to vector<256x128xf32>
    %73 = arith.maximumf %71, %72 : vector<256x128xf32>
    %74 = arith.truncf %73 : vector<256x128xf32> to vector<256x128xbf16>
    %c5 = arith.constant 5 : index
    %c0_46 = arith.constant 0 : index
    %c0_47 = arith.constant 0 : index
    %75 = vector.load %arg2[%c5, %c0_46, %c0_47] : memref<18x128x128xbf16, #tpu.memory_space<vmem>>, vector<1x128x128xbf16>
    %76 = vector.shape_cast %75 : vector<1x128x128xbf16> to vector<128x128xbf16>
    %cst_48 = arith.constant dense<0.000000e+00> : vector<256x128xf32>
    %77 = tpu.matmul %74, %76, %cst_48 {dimension_numbers = #tpu.dot_dimension_numbers<[1], [0], [0], [1], [0, 0, 1, 1], [], []>} : vector<256x128xbf16>, vector<128x128xbf16>, vector<256x128xf32> -> vector<256x128xf32>
    %c5_49 = arith.constant 5 : index
    %c0_50 = arith.constant 0 : index
    %c0_51 = arith.constant 0 : index
    %78 = vector.load %arg3[%c5_49, %c0_50, %c0_51] : memref<18x1x128xf32, #tpu.memory_space<vmem>>, vector<1x1x128xf32>
    %79 = vector.shape_cast %78 : vector<1x1x128xf32> to vector<1x128xf32>
    %80 = vector.broadcast %79 : vector<1x128xf32> to vector<256x128xf32>
    %81 = arith.addf %77, %80 : vector<256x128xf32>
    %82 = arith.addf %81, %53 : vector<256x128xf32>
    %c1_52 = arith.constant 1 : index
    %c0_53 = arith.constant 0 : index
    %c0_54 = arith.constant 0 : index
    %83 = vector.load %arg4[%c1_52, %c0_53, %c0_54] : memref<5x1x128xf32, #tpu.memory_space<vmem>>, vector<1x1x128xf32>
    %84 = vector.shape_cast %83 : vector<1x1x128xf32> to vector<1x128xf32>
    %c1_55 = arith.constant 1 : index
    %c0_56 = arith.constant 0 : index
    %c0_57 = arith.constant 0 : index
    %85 = vector.load %arg5[%c1_55, %c0_56, %c0_57] : memref<5x1x128xf32, #tpu.memory_space<vmem>>, vector<1x1x128xf32>
    %86 = vector.shape_cast %85 : vector<1x1x128xf32> to vector<1x128xf32>
    %cst_58 = arith.constant dense<0.000000e+00> : vector<256xf32>
    %87 = vector.multi_reduction <add>, %82, %cst_58 [1] : vector<256x128xf32> to vector<256xf32>
    %88 = vector.shape_cast %87 : vector<256xf32> to vector<256x1xf32>
    %cst_59 = arith.constant 1.280000e+02 : f32
    %89 = vector.broadcast %cst_59 : f32 to vector<256x1xf32>
    %90 = arith.divf %88, %89 : vector<256x1xf32>
    %91 = vector.broadcast %90 : vector<256x1xf32> to vector<256x128xf32>
    %92 = arith.subf %82, %91 : vector<256x128xf32>
    %93 = arith.mulf %92, %92 : vector<256x128xf32>
    %cst_60 = arith.constant dense<0.000000e+00> : vector<256xf32>
    %94 = vector.multi_reduction <add>, %93, %cst_60 [1] : vector<256x128xf32> to vector<256xf32>
    %95 = vector.shape_cast %94 : vector<256xf32> to vector<256x1xf32>
    %cst_61 = arith.constant 1.280000e+02 : f32
    %96 = vector.broadcast %cst_61 : f32 to vector<256x1xf32>
    %97 = arith.divf %95, %96 : vector<256x1xf32>
    %cst_62 = arith.constant 9.99999974E-6 : f32
    %98 = vector.broadcast %cst_62 : f32 to vector<256x1xf32>
    %99 = arith.addf %97, %98 : vector<256x1xf32>
    %100 = math.rsqrt %99 : vector<256x1xf32>
    %101 = vector.broadcast %100 : vector<256x1xf32> to vector<256x128xf32>
    %102 = arith.mulf %92, %101 : vector<256x128xf32>
    %103 = vector.broadcast %84 : vector<1x128xf32> to vector<256x128xf32>
    %104 = arith.mulf %102, %103 : vector<256x128xf32>
    %105 = vector.broadcast %86 : vector<1x128xf32> to vector<256x128xf32>
    %106 = arith.addf %104, %105 : vector<256x128xf32>
    %107 = arith.truncf %106 : vector<256x128xf32> to vector<256x128xbf16>
    %c6 = arith.constant 6 : index
    %c0_63 = arith.constant 0 : index
    %c0_64 = arith.constant 0 : index
    %108 = vector.load %arg2[%c6, %c0_63, %c0_64] : memref<18x128x128xbf16, #tpu.memory_space<vmem>>, vector<1x128x128xbf16>
    %109 = vector.shape_cast %108 : vector<1x128x128xbf16> to vector<128x128xbf16>
    %cst_65 = arith.constant dense<0.000000e+00> : vector<256x128xf32>
    %110 = tpu.matmul %107, %109, %cst_65 {dimension_numbers = #tpu.dot_dimension_numbers<[1], [0], [0], [1], [0, 0, 1, 1], [], []>} : vector<256x128xbf16>, vector<128x128xbf16>, vector<256x128xf32> -> vector<256x128xf32>
    %c6_66 = arith.constant 6 : index
    %c0_67 = arith.constant 0 : index
    %c0_68 = arith.constant 0 : index
    %111 = vector.load %arg3[%c6_66, %c0_67, %c0_68] : memref<18x1x128xf32, #tpu.memory_space<vmem>>, vector<1x1x128xf32>
    %112 = vector.shape_cast %111 : vector<1x1x128xf32> to vector<1x128xf32>
    %113 = vector.broadcast %112 : vector<1x128xf32> to vector<256x128xf32>
    %114 = arith.addf %110, %113 : vector<256x128xf32>
    %cst_69 = arith.constant 0.000000e+00 : f32
    %115 = vector.broadcast %cst_69 : f32 to vector<256x128xf32>
    %116 = arith.maximumf %114, %115 : vector<256x128xf32>
    %117 = arith.truncf %116 : vector<256x128xf32> to vector<256x128xbf16>
    %c7 = arith.constant 7 : index
    %c0_70 = arith.constant 0 : index
    %c0_71 = arith.constant 0 : index
    %118 = vector.load %arg2[%c7, %c0_70, %c0_71] : memref<18x128x128xbf16, #tpu.memory_space<vmem>>, vector<1x128x128xbf16>
    %119 = vector.shape_cast %118 : vector<1x128x128xbf16> to vector<128x128xbf16>
    %cst_72 = arith.constant dense<0.000000e+00> : vector<256x128xf32>
    %120 = tpu.matmul %117, %119, %cst_72 {dimension_numbers = #tpu.dot_dimension_numbers<[1], [0], [0], [1], [0, 0, 1, 1], [], []>} : vector<256x128xbf16>, vector<128x128xbf16>, vector<256x128xf32> -> vector<256x128xf32>
    %c7_73 = arith.constant 7 : index
    %c0_74 = arith.constant 0 : index
    %c0_75 = arith.constant 0 : index
    %121 = vector.load %arg3[%c7_73, %c0_74, %c0_75] : memref<18x1x128xf32, #tpu.memory_space<vmem>>, vector<1x1x128xf32>
    %122 = vector.shape_cast %121 : vector<1x1x128xf32> to vector<1x128xf32>
    %123 = vector.broadcast %122 : vector<1x128xf32> to vector<256x128xf32>
    %124 = arith.addf %120, %123 : vector<256x128xf32>
    %cst_76 = arith.constant 0.000000e+00 : f32
    %125 = vector.broadcast %cst_76 : f32 to vector<256x128xf32>
    %126 = arith.maximumf %124, %125 : vector<256x128xf32>
    %127 = arith.truncf %126 : vector<256x128xf32> to vector<256x128xbf16>
    %c8 = arith.constant 8 : index
    %c0_77 = arith.constant 0 : index
    %c0_78 = arith.constant 0 : index
    %128 = vector.load %arg2[%c8, %c0_77, %c0_78] : memref<18x128x128xbf16, #tpu.memory_space<vmem>>, vector<1x128x128xbf16>
    %129 = vector.shape_cast %128 : vector<1x128x128xbf16> to vector<128x128xbf16>
    %cst_79 = arith.constant dense<0.000000e+00> : vector<256x128xf32>
    %130 = tpu.matmul %127, %129, %cst_79 {dimension_numbers = #tpu.dot_dimension_numbers<[1], [0], [0], [1], [0, 0, 1, 1], [], []>} : vector<256x128xbf16>, vector<128x128xbf16>, vector<256x128xf32> -> vector<256x128xf32>
    %c8_80 = arith.constant 8 : index
    %c0_81 = arith.constant 0 : index
    %c0_82 = arith.constant 0 : index
    %131 = vector.load %arg3[%c8_80, %c0_81, %c0_82] : memref<18x1x128xf32, #tpu.memory_space<vmem>>, vector<1x1x128xf32>
    %132 = vector.shape_cast %131 : vector<1x1x128xf32> to vector<1x128xf32>
    %133 = vector.broadcast %132 : vector<1x128xf32> to vector<256x128xf32>
    %134 = arith.addf %130, %133 : vector<256x128xf32>
    %135 = arith.addf %134, %106 : vector<256x128xf32>
    %c2_83 = arith.constant 2 : index
    %c0_84 = arith.constant 0 : index
    %c0_85 = arith.constant 0 : index
    %136 = vector.load %arg4[%c2_83, %c0_84, %c0_85] : memref<5x1x128xf32, #tpu.memory_space<vmem>>, vector<1x1x128xf32>
    %137 = vector.shape_cast %136 : vector<1x1x128xf32> to vector<1x128xf32>
    %c2_86 = arith.constant 2 : index
    %c0_87 = arith.constant 0 : index
    %c0_88 = arith.constant 0 : index
    %138 = vector.load %arg5[%c2_86, %c0_87, %c0_88] : memref<5x1x128xf32, #tpu.memory_space<vmem>>, vector<1x1x128xf32>
    %139 = vector.shape_cast %138 : vector<1x1x128xf32> to vector<1x128xf32>
    %cst_89 = arith.constant dense<0.000000e+00> : vector<256xf32>
    %140 = vector.multi_reduction <add>, %135, %cst_89 [1] : vector<256x128xf32> to vector<256xf32>
    %141 = vector.shape_cast %140 : vector<256xf32> to vector<256x1xf32>
    %cst_90 = arith.constant 1.280000e+02 : f32
    %142 = vector.broadcast %cst_90 : f32 to vector<256x1xf32>
    %143 = arith.divf %141, %142 : vector<256x1xf32>
    %144 = vector.broadcast %143 : vector<256x1xf32> to vector<256x128xf32>
    %145 = arith.subf %135, %144 : vector<256x128xf32>
    %146 = arith.mulf %145, %145 : vector<256x128xf32>
    %cst_91 = arith.constant dense<0.000000e+00> : vector<256xf32>
    %147 = vector.multi_reduction <add>, %146, %cst_91 [1] : vector<256x128xf32> to vector<256xf32>
    %148 = vector.shape_cast %147 : vector<256xf32> to vector<256x1xf32>
    %cst_92 = arith.constant 1.280000e+02 : f32
    %149 = vector.broadcast %cst_92 : f32 to vector<256x1xf32>
    %150 = arith.divf %148, %149 : vector<256x1xf32>
    %cst_93 = arith.constant 9.99999974E-6 : f32
    %151 = vector.broadcast %cst_93 : f32 to vector<256x1xf32>
    %152 = arith.addf %150, %151 : vector<256x1xf32>
    %153 = math.rsqrt %152 : vector<256x1xf32>
    %154 = vector.broadcast %153 : vector<256x1xf32> to vector<256x128xf32>
    %155 = arith.mulf %145, %154 : vector<256x128xf32>
    %156 = vector.broadcast %137 : vector<1x128xf32> to vector<256x128xf32>
    %157 = arith.mulf %155, %156 : vector<256x128xf32>
    %158 = vector.broadcast %139 : vector<1x128xf32> to vector<256x128xf32>
    %159 = arith.addf %157, %158 : vector<256x128xf32>
    %160 = arith.truncf %159 : vector<256x128xf32> to vector<256x128xbf16>
    %c9 = arith.constant 9 : index
    %c0_94 = arith.constant 0 : index
    %c0_95 = arith.constant 0 : index
    %161 = vector.load %arg2[%c9, %c0_94, %c0_95] : memref<18x128x128xbf16, #tpu.memory_space<vmem>>, vector<1x128x128xbf16>
    %162 = vector.shape_cast %161 : vector<1x128x128xbf16> to vector<128x128xbf16>
    %cst_96 = arith.constant dense<0.000000e+00> : vector<256x128xf32>
    %163 = tpu.matmul %160, %162, %cst_96 {dimension_numbers = #tpu.dot_dimension_numbers<[1], [0], [0], [1], [0, 0, 1, 1], [], []>} : vector<256x128xbf16>, vector<128x128xbf16>, vector<256x128xf32> -> vector<256x128xf32>
    %c9_97 = arith.constant 9 : index
    %c0_98 = arith.constant 0 : index
    %c0_99 = arith.constant 0 : index
    %164 = vector.load %arg3[%c9_97, %c0_98, %c0_99] : memref<18x1x128xf32, #tpu.memory_space<vmem>>, vector<1x1x128xf32>
    %165 = vector.shape_cast %164 : vector<1x1x128xf32> to vector<1x128xf32>
    %166 = vector.broadcast %165 : vector<1x128xf32> to vector<256x128xf32>
    %167 = arith.addf %163, %166 : vector<256x128xf32>
    %cst_100 = arith.constant 0.000000e+00 : f32
    %168 = vector.broadcast %cst_100 : f32 to vector<256x128xf32>
    %169 = arith.maximumf %167, %168 : vector<256x128xf32>
    %170 = arith.truncf %169 : vector<256x128xf32> to vector<256x128xbf16>
    %c10 = arith.constant 10 : index
    %c0_101 = arith.constant 0 : index
    %c0_102 = arith.constant 0 : index
    %171 = vector.load %arg2[%c10, %c0_101, %c0_102] : memref<18x128x128xbf16, #tpu.memory_space<vmem>>, vector<1x128x128xbf16>
    %172 = vector.shape_cast %171 : vector<1x128x128xbf16> to vector<128x128xbf16>
    %cst_103 = arith.constant dense<0.000000e+00> : vector<256x128xf32>
    %173 = tpu.matmul %170, %172, %cst_103 {dimension_numbers = #tpu.dot_dimension_numbers<[1], [0], [0], [1], [0, 0, 1, 1], [], []>} : vector<256x128xbf16>, vector<128x128xbf16>, vector<256x128xf32> -> vector<256x128xf32>
    %c10_104 = arith.constant 10 : index
    %c0_105 = arith.constant 0 : index
    %c0_106 = arith.constant 0 : index
    %174 = vector.load %arg3[%c10_104, %c0_105, %c0_106] : memref<18x1x128xf32, #tpu.memory_space<vmem>>, vector<1x1x128xf32>
    %175 = vector.shape_cast %174 : vector<1x1x128xf32> to vector<1x128xf32>
    %176 = vector.broadcast %175 : vector<1x128xf32> to vector<256x128xf32>
    %177 = arith.addf %173, %176 : vector<256x128xf32>
    %cst_107 = arith.constant 0.000000e+00 : f32
    %178 = vector.broadcast %cst_107 : f32 to vector<256x128xf32>
    %179 = arith.maximumf %177, %178 : vector<256x128xf32>
    %180 = arith.truncf %179 : vector<256x128xf32> to vector<256x128xbf16>
    %c11 = arith.constant 11 : index
    %c0_108 = arith.constant 0 : index
    %c0_109 = arith.constant 0 : index
    %181 = vector.load %arg2[%c11, %c0_108, %c0_109] : memref<18x128x128xbf16, #tpu.memory_space<vmem>>, vector<1x128x128xbf16>
    %182 = vector.shape_cast %181 : vector<1x128x128xbf16> to vector<128x128xbf16>
    %cst_110 = arith.constant dense<0.000000e+00> : vector<256x128xf32>
    %183 = tpu.matmul %180, %182, %cst_110 {dimension_numbers = #tpu.dot_dimension_numbers<[1], [0], [0], [1], [0, 0, 1, 1], [], []>} : vector<256x128xbf16>, vector<128x128xbf16>, vector<256x128xf32> -> vector<256x128xf32>
    %c11_111 = arith.constant 11 : index
    %c0_112 = arith.constant 0 : index
    %c0_113 = arith.constant 0 : index
    %184 = vector.load %arg3[%c11_111, %c0_112, %c0_113] : memref<18x1x128xf32, #tpu.memory_space<vmem>>, vector<1x1x128xf32>
    %185 = vector.shape_cast %184 : vector<1x1x128xf32> to vector<1x128xf32>
    %186 = vector.broadcast %185 : vector<1x128xf32> to vector<256x128xf32>
    %187 = arith.addf %183, %186 : vector<256x128xf32>
    %188 = arith.addf %187, %159 : vector<256x128xf32>
    %c3_114 = arith.constant 3 : index
    %c0_115 = arith.constant 0 : index
    %c0_116 = arith.constant 0 : index
    %189 = vector.load %arg4[%c3_114, %c0_115, %c0_116] : memref<5x1x128xf32, #tpu.memory_space<vmem>>, vector<1x1x128xf32>
    %190 = vector.shape_cast %189 : vector<1x1x128xf32> to vector<1x128xf32>
    %c3_117 = arith.constant 3 : index
    %c0_118 = arith.constant 0 : index
    %c0_119 = arith.constant 0 : index
    %191 = vector.load %arg5[%c3_117, %c0_118, %c0_119] : memref<5x1x128xf32, #tpu.memory_space<vmem>>, vector<1x1x128xf32>
    %192 = vector.shape_cast %191 : vector<1x1x128xf32> to vector<1x128xf32>
    %cst_120 = arith.constant dense<0.000000e+00> : vector<256xf32>
    %193 = vector.multi_reduction <add>, %188, %cst_120 [1] : vector<256x128xf32> to vector<256xf32>
    %194 = vector.shape_cast %193 : vector<256xf32> to vector<256x1xf32>
    %cst_121 = arith.constant 1.280000e+02 : f32
    %195 = vector.broadcast %cst_121 : f32 to vector<256x1xf32>
    %196 = arith.divf %194, %195 : vector<256x1xf32>
    %197 = vector.broadcast %196 : vector<256x1xf32> to vector<256x128xf32>
    %198 = arith.subf %188, %197 : vector<256x128xf32>
    %199 = arith.mulf %198, %198 : vector<256x128xf32>
    %cst_122 = arith.constant dense<0.000000e+00> : vector<256xf32>
    %200 = vector.multi_reduction <add>, %199, %cst_122 [1] : vector<256x128xf32> to vector<256xf32>
    %201 = vector.shape_cast %200 : vector<256xf32> to vector<256x1xf32>
    %cst_123 = arith.constant 1.280000e+02 : f32
    %202 = vector.broadcast %cst_123 : f32 to vector<256x1xf32>
    %203 = arith.divf %201, %202 : vector<256x1xf32>
    %cst_124 = arith.constant 9.99999974E-6 : f32
    %204 = vector.broadcast %cst_124 : f32 to vector<256x1xf32>
    %205 = arith.addf %203, %204 : vector<256x1xf32>
    %206 = math.rsqrt %205 : vector<256x1xf32>
    %207 = vector.broadcast %206 : vector<256x1xf32> to vector<256x128xf32>
    %208 = arith.mulf %198, %207 : vector<256x128xf32>
    %209 = vector.broadcast %190 : vector<1x128xf32> to vector<256x128xf32>
    %210 = arith.mulf %208, %209 : vector<256x128xf32>
    %211 = vector.broadcast %192 : vector<1x128xf32> to vector<256x128xf32>
    %212 = arith.addf %210, %211 : vector<256x128xf32>
    %213 = arith.truncf %212 : vector<256x128xf32> to vector<256x128xbf16>
    %c12 = arith.constant 12 : index
    %c0_125 = arith.constant 0 : index
    %c0_126 = arith.constant 0 : index
    %214 = vector.load %arg2[%c12, %c0_125, %c0_126] : memref<18x128x128xbf16, #tpu.memory_space<vmem>>, vector<1x128x128xbf16>
    %215 = vector.shape_cast %214 : vector<1x128x128xbf16> to vector<128x128xbf16>
    %cst_127 = arith.constant dense<0.000000e+00> : vector<256x128xf32>
    %216 = tpu.matmul %213, %215, %cst_127 {dimension_numbers = #tpu.dot_dimension_numbers<[1], [0], [0], [1], [0, 0, 1, 1], [], []>} : vector<256x128xbf16>, vector<128x128xbf16>, vector<256x128xf32> -> vector<256x128xf32>
    %c12_128 = arith.constant 12 : index
    %c0_129 = arith.constant 0 : index
    %c0_130 = arith.constant 0 : index
    %217 = vector.load %arg3[%c12_128, %c0_129, %c0_130] : memref<18x1x128xf32, #tpu.memory_space<vmem>>, vector<1x1x128xf32>
    %218 = vector.shape_cast %217 : vector<1x1x128xf32> to vector<1x128xf32>
    %219 = vector.broadcast %218 : vector<1x128xf32> to vector<256x128xf32>
    %220 = arith.addf %216, %219 : vector<256x128xf32>
    %cst_131 = arith.constant 0.000000e+00 : f32
    %221 = vector.broadcast %cst_131 : f32 to vector<256x128xf32>
    %222 = arith.maximumf %220, %221 : vector<256x128xf32>
    %223 = arith.truncf %222 : vector<256x128xf32> to vector<256x128xbf16>
    %c13 = arith.constant 13 : index
    %c0_132 = arith.constant 0 : index
    %c0_133 = arith.constant 0 : index
    %224 = vector.load %arg2[%c13, %c0_132, %c0_133] : memref<18x128x128xbf16, #tpu.memory_space<vmem>>, vector<1x128x128xbf16>
    %225 = vector.shape_cast %224 : vector<1x128x128xbf16> to vector<128x128xbf16>
    %cst_134 = arith.constant dense<0.000000e+00> : vector<256x128xf32>
    %226 = tpu.matmul %223, %225, %cst_134 {dimension_numbers = #tpu.dot_dimension_numbers<[1], [0], [0], [1], [0, 0, 1, 1], [], []>} : vector<256x128xbf16>, vector<128x128xbf16>, vector<256x128xf32> -> vector<256x128xf32>
    %c13_135 = arith.constant 13 : index
    %c0_136 = arith.constant 0 : index
    %c0_137 = arith.constant 0 : index
    %227 = vector.load %arg3[%c13_135, %c0_136, %c0_137] : memref<18x1x128xf32, #tpu.memory_space<vmem>>, vector<1x1x128xf32>
    %228 = vector.shape_cast %227 : vector<1x1x128xf32> to vector<1x128xf32>
    %229 = vector.broadcast %228 : vector<1x128xf32> to vector<256x128xf32>
    %230 = arith.addf %226, %229 : vector<256x128xf32>
    %cst_138 = arith.constant 0.000000e+00 : f32
    %231 = vector.broadcast %cst_138 : f32 to vector<256x128xf32>
    %232 = arith.maximumf %230, %231 : vector<256x128xf32>
    %233 = arith.truncf %232 : vector<256x128xf32> to vector<256x128xbf16>
    %c14 = arith.constant 14 : index
    %c0_139 = arith.constant 0 : index
    %c0_140 = arith.constant 0 : index
    %234 = vector.load %arg2[%c14, %c0_139, %c0_140] : memref<18x128x128xbf16, #tpu.memory_space<vmem>>, vector<1x128x128xbf16>
    %235 = vector.shape_cast %234 : vector<1x128x128xbf16> to vector<128x128xbf16>
    %cst_141 = arith.constant dense<0.000000e+00> : vector<256x128xf32>
    %236 = tpu.matmul %233, %235, %cst_141 {dimension_numbers = #tpu.dot_dimension_numbers<[1], [0], [0], [1], [0, 0, 1, 1], [], []>} : vector<256x128xbf16>, vector<128x128xbf16>, vector<256x128xf32> -> vector<256x128xf32>
    %c14_142 = arith.constant 14 : index
    %c0_143 = arith.constant 0 : index
    %c0_144 = arith.constant 0 : index
    %237 = vector.load %arg3[%c14_142, %c0_143, %c0_144] : memref<18x1x128xf32, #tpu.memory_space<vmem>>, vector<1x1x128xf32>
    %238 = vector.shape_cast %237 : vector<1x1x128xf32> to vector<1x128xf32>
    %239 = vector.broadcast %238 : vector<1x128xf32> to vector<256x128xf32>
    %240 = arith.addf %236, %239 : vector<256x128xf32>
    %241 = arith.addf %240, %212 : vector<256x128xf32>
    %c4_145 = arith.constant 4 : index
    %c0_146 = arith.constant 0 : index
    %c0_147 = arith.constant 0 : index
    %242 = vector.load %arg4[%c4_145, %c0_146, %c0_147] : memref<5x1x128xf32, #tpu.memory_space<vmem>>, vector<1x1x128xf32>
    %243 = vector.shape_cast %242 : vector<1x1x128xf32> to vector<1x128xf32>
    %c4_148 = arith.constant 4 : index
    %c0_149 = arith.constant 0 : index
    %c0_150 = arith.constant 0 : index
    %244 = vector.load %arg5[%c4_148, %c0_149, %c0_150] : memref<5x1x128xf32, #tpu.memory_space<vmem>>, vector<1x1x128xf32>
    %245 = vector.shape_cast %244 : vector<1x1x128xf32> to vector<1x128xf32>
    %cst_151 = arith.constant dense<0.000000e+00> : vector<256xf32>
    %246 = vector.multi_reduction <add>, %241, %cst_151 [1] : vector<256x128xf32> to vector<256xf32>
    %247 = vector.shape_cast %246 : vector<256xf32> to vector<256x1xf32>
    %cst_152 = arith.constant 1.280000e+02 : f32
    %248 = vector.broadcast %cst_152 : f32 to vector<256x1xf32>
    %249 = arith.divf %247, %248 : vector<256x1xf32>
    %250 = vector.broadcast %249 : vector<256x1xf32> to vector<256x128xf32>
    %251 = arith.subf %241, %250 : vector<256x128xf32>
    %252 = arith.mulf %251, %251 : vector<256x128xf32>
    %cst_153 = arith.constant dense<0.000000e+00> : vector<256xf32>
    %253 = vector.multi_reduction <add>, %252, %cst_153 [1] : vector<256x128xf32> to vector<256xf32>
    %254 = vector.shape_cast %253 : vector<256xf32> to vector<256x1xf32>
    %cst_154 = arith.constant 1.280000e+02 : f32
    %255 = vector.broadcast %cst_154 : f32 to vector<256x1xf32>
    %256 = arith.divf %254, %255 : vector<256x1xf32>
    %cst_155 = arith.constant 9.99999974E-6 : f32
    %257 = vector.broadcast %cst_155 : f32 to vector<256x1xf32>
    %258 = arith.addf %256, %257 : vector<256x1xf32>
    %259 = math.rsqrt %258 : vector<256x1xf32>
    %260 = vector.broadcast %259 : vector<256x1xf32> to vector<256x128xf32>
    %261 = arith.mulf %251, %260 : vector<256x128xf32>
    %262 = vector.broadcast %243 : vector<1x128xf32> to vector<256x128xf32>
    %263 = arith.mulf %261, %262 : vector<256x128xf32>
    %264 = vector.broadcast %245 : vector<1x128xf32> to vector<256x128xf32>
    %265 = arith.addf %263, %264 : vector<256x128xf32>
    %266 = arith.truncf %265 : vector<256x128xf32> to vector<256x128xbf16>
    %c15 = arith.constant 15 : index
    %c0_156 = arith.constant 0 : index
    %c0_157 = arith.constant 0 : index
    %267 = vector.load %arg2[%c15, %c0_156, %c0_157] : memref<18x128x128xbf16, #tpu.memory_space<vmem>>, vector<1x128x128xbf16>
    %268 = vector.shape_cast %267 : vector<1x128x128xbf16> to vector<128x128xbf16>
    %cst_158 = arith.constant dense<0.000000e+00> : vector<256x128xf32>
    %269 = tpu.matmul %266, %268, %cst_158 {dimension_numbers = #tpu.dot_dimension_numbers<[1], [0], [0], [1], [0, 0, 1, 1], [], []>} : vector<256x128xbf16>, vector<128x128xbf16>, vector<256x128xf32> -> vector<256x128xf32>
    %c15_159 = arith.constant 15 : index
    %c0_160 = arith.constant 0 : index
    %c0_161 = arith.constant 0 : index
    %270 = vector.load %arg3[%c15_159, %c0_160, %c0_161] : memref<18x1x128xf32, #tpu.memory_space<vmem>>, vector<1x1x128xf32>
    %271 = vector.shape_cast %270 : vector<1x1x128xf32> to vector<1x128xf32>
    %272 = vector.broadcast %271 : vector<1x128xf32> to vector<256x128xf32>
    %273 = arith.addf %269, %272 : vector<256x128xf32>
    %cst_162 = arith.constant 0.000000e+00 : f32
    %274 = vector.broadcast %cst_162 : f32 to vector<256x128xf32>
    %275 = arith.maximumf %273, %274 : vector<256x128xf32>
    %276 = arith.truncf %275 : vector<256x128xf32> to vector<256x128xbf16>
    %c16 = arith.constant 16 : index
    %c0_163 = arith.constant 0 : index
    %c0_164 = arith.constant 0 : index
    %277 = vector.load %arg2[%c16, %c0_163, %c0_164] : memref<18x128x128xbf16, #tpu.memory_space<vmem>>, vector<1x128x128xbf16>
    %278 = vector.shape_cast %277 : vector<1x128x128xbf16> to vector<128x128xbf16>
    %cst_165 = arith.constant dense<0.000000e+00> : vector<256x128xf32>
    %279 = tpu.matmul %276, %278, %cst_165 {dimension_numbers = #tpu.dot_dimension_numbers<[1], [0], [0], [1], [0, 0, 1, 1], [], []>} : vector<256x128xbf16>, vector<128x128xbf16>, vector<256x128xf32> -> vector<256x128xf32>
    %c16_166 = arith.constant 16 : index
    %c0_167 = arith.constant 0 : index
    %c0_168 = arith.constant 0 : index
    %280 = vector.load %arg3[%c16_166, %c0_167, %c0_168] : memref<18x1x128xf32, #tpu.memory_space<vmem>>, vector<1x1x128xf32>
    %281 = vector.shape_cast %280 : vector<1x1x128xf32> to vector<1x128xf32>
    %282 = vector.broadcast %281 : vector<1x128xf32> to vector<256x128xf32>
    %283 = arith.addf %279, %282 : vector<256x128xf32>
    %cst_169 = arith.constant 0.000000e+00 : f32
    %284 = vector.broadcast %cst_169 : f32 to vector<256x128xf32>
    %285 = arith.maximumf %283, %284 : vector<256x128xf32>
    %286 = arith.truncf %285 : vector<256x128xf32> to vector<256x128xbf16>
    %c17 = arith.constant 17 : index
    %c0_170 = arith.constant 0 : index
    %c0_171 = arith.constant 0 : index
    %287 = vector.load %arg2[%c17, %c0_170, %c0_171] : memref<18x128x128xbf16, #tpu.memory_space<vmem>>, vector<1x128x128xbf16>
    %288 = vector.shape_cast %287 : vector<1x128x128xbf16> to vector<128x128xbf16>
    %cst_172 = arith.constant dense<0.000000e+00> : vector<256x128xf32>
    %289 = tpu.matmul %286, %288, %cst_172 {dimension_numbers = #tpu.dot_dimension_numbers<[1], [0], [0], [1], [0, 0, 1, 1], [], []>} : vector<256x128xbf16>, vector<128x128xbf16>, vector<256x128xf32> -> vector<256x128xf32>
    %c17_173 = arith.constant 17 : index
    %c0_174 = arith.constant 0 : index
    %c0_175 = arith.constant 0 : index
    %290 = vector.load %arg3[%c17_173, %c0_174, %c0_175] : memref<18x1x128xf32, #tpu.memory_space<vmem>>, vector<1x1x128xf32>
    %291 = vector.shape_cast %290 : vector<1x1x128xf32> to vector<1x128xf32>
    %292 = vector.broadcast %291 : vector<1x128xf32> to vector<256x128xf32>
    %293 = arith.addf %289, %292 : vector<256x128xf32>
    %294 = arith.addf %293, %265 : vector<256x128xf32>
    %c0_176 = arith.constant 0 : index
    %c0_177 = arith.constant 0 : index
    %295 = vector.load %arg6[%c0_176, %c0_177] : memref<256x128xf32, #tpu.memory_space<vmem>>, vector<256x128xf32>
    tpu.vector_store %arg6[%c0_176, %c0_177], %294 {strides = array<i32>} : memref<256x128xf32, #tpu.memory_space<vmem>>, vector<256x128xf32>,
    return
  }
  func.func @transform_0(%arg0: i32) -> (i32, i32) {
    %c0_i32 = arith.constant 0 : i32
    %c0_i32_0 = arith.constant 0 : i32
    return %arg0, %c0_i32 : i32, i32
  }
  func.func @transform_1(%arg0: i32) -> (i32, i32, i32) {
    %c0_i32 = arith.constant 0 : i32
    %c0_i32_0 = arith.constant 0 : i32
    %c0_i32_1 = arith.constant 0 : i32
    %c0_i32_2 = arith.constant 0 : i32
    return %c0_i32, %c0_i32_0, %c0_i32_1 : i32, i32, i32
  }
  func.func @transform_2(%arg0: i32) -> (i32, i32, i32) {
    %c0_i32 = arith.constant 0 : i32
    %c0_i32_0 = arith.constant 0 : i32
    %c0_i32_1 = arith.constant 0 : i32
    %c0_i32_2 = arith.constant 0 : i32
    return %c0_i32, %c0_i32_0, %c0_i32_1 : i32, i32, i32
  }
  func.func @transform_3(%arg0: i32) -> (i32, i32, i32) {
    %c0_i32 = arith.constant 0 : i32
    %c0_i32_0 = arith.constant 0 : i32
    %c0_i32_1 = arith.constant 0 : i32
    %c0_i32_2 = arith.constant 0 : i32
    return %c0_i32, %c0_i32_0, %c0_i32_1 : i32, i32, i32
  }
  func.func @transform_4(%arg0: i32) -> (i32, i32, i32) {
    %c0_i32 = arith.constant 0 : i32
    %c0_i32_0 = arith.constant 0 : i32
    %c0_i32_1 = arith.constant 0 : i32
    %c0_i32_2 = arith.constant 0 : i32
    return %c0_i32, %c0_i32_0, %c0_i32_1 : i32, i32, i32
  }
  func.func @transform_5(%arg0: i32) -> (i32, i32) {
    %c0_i32 = arith.constant 0 : i32
    %c0_i32_0 = arith.constant 0 : i32
    return %arg0, %c0_i32 : i32, i32
  }
}

</mosaic_0001>

<llo_original>
// kernel: tpu_custom_call.1
$region0: #{tpu_custom_call.1}
  #allocation0 [shape = 'u32[]', space=smem, size = 0x4, offset = 0x4, fixed_abs, tag = 'smem constant byte address 0x4 - core index']
  #allocation1 [shape = 'u32[144,128]{1,0:T(1,128)}', space=vmem, size = 0x12000, scoped, tag = 'internal scratch']
  %s0 = inlined_call_operand.hbm [shape: f32[512,128], index: 0, kind: input, shape index: {}]
  %s1 = inlined_call_operand.hbm [shape: bf16[18,128,128], index: 1, kind: input, shape index: {}]
  %s2 = inlined_call_operand.hbm [shape: f32[18,1,128], index: 2, kind: input, shape index: {}]
  %s3 = inlined_call_operand.vmem [shape: f32[5,1,128], index: 3, kind: input, shape index: {}]
  %s4 = inlined_call_operand.vmem [shape: f32[5,1,128], index: 4, kind: input, shape index: {}]
  %s5 = inlined_call_operand.hbm [shape: f32[512,128], index: 5, kind: output, shape index: {}]
  %s6 = sld [smem:[#allocation0]]
  $region65: #{tpu_custom_call.1} parent=0
    _
  %s8 = ssub.s32 1, %s6
  %s9 = scalar_select 0, %s8, %s6
  $region1: #{tpu_custom_call.1} parent=0
    #allocation2 [shape = 'u8[262144]{0}', space=vmem, size = 0x40000, scoped, tag = 'input window, operand 0']
    #allocation3 [shape = 's32[2]{0}', space=sflag, size = 0x8, scoped, tag = 'scoped memory for tpu_custom_call.1']
    #allocation4 [shape = 's32[2]{0}', space=sflag, size = 0x8, scoped, tag = 'scoped memory for tpu_custom_call.1']
    #allocation5 [shape = 'u8[589824]{0}', space=vmem, size = 0x90000, scoped, tag = 'input window, operand 1, single buffered']
    #allocation6 [shape = 's32[1]{0}', space=sflag, size = 0x4, scoped, tag = 'scoped memory for tpu_custom_call.1']
    #allocation7 [shape = 'u8[9216]{0}', space=vmem, size = 0x2400, scoped, tag = 'input window, operand 2, single buffered']
    #allocation8 [shape = 'u8[262144]{0}', space=vmem, size = 0x40000, scoped, tag = 'output window, operand 0']
    %10 = vsyncpa [#allocation3], 0
    %s11 = scalar_lea.sflag [#allocation3], 1
    %12 = vsyncpa %s11, 0
    %13 = vsyncpa [#allocation6], 0
    %14 = vsyncpa [#allocation4], 0
    %s15 = scalar_lea.sflag [#allocation4], 1
    %16 = vsyncpa %s15, 0
    loop: start=0, step=1, limit=4
    $region2: #{tpu_custom_call.1} parent=1 // loop_pre_header
      _
    $region3: #{tpu_custom_call.1} parent=1 // loop_header
      %s18 = sphi 0, %s22
      %p19 = scmp.ge.s32.totalorder %s18, 4
      %s28 = sphi 0, %s30
      %s31 = sphi 0, %s28
      %s32 = sphi 0, %s31
      %s48 = sphi 0, %s32
      %s52 = sphi 0, %s52
      %s54 = sphi 0, %s52
      %s55 = sphi 0, %s54
      %s69 = sphi 0, %s55
      %s73 = sphi 0, %s73
      %s75 = sphi 0, %s73
      %s76 = sphi 0, %s75
      %s90 = sphi 0, %s76
      %s94 = sphi 0, %s94
      %s96 = sphi 0, %s94
      %s97 = sphi 0, %s96
      %s111 = sphi 0, %s97
      %s115 = sphi 0, %s115
      %s117 = sphi 0, %s115
      %s118 = sphi 0, %s117
      %s132 = sphi 0, %s118
      %s138 = sphi 0, %s140
      %s141 = sphi 0, %s138
      %s142 = sphi 0, %s141
      %s158 = sphi 0, %s142
    $region4: #{tpu_custom_call.1} parent=1 // loop_header_branch
      %21 = sbr.rel (%p19) target = $region8
    $region5: #{tpu_custom_call.1} parent=1 // loop_body
      %s23 = ssub.s32 %s18, 1
      %s24 = ssub.s32 %s18, 2
      %s25 = sadd.s32 %s18, 1
      %s26 = ssub.s32 %s18, %s25
      %p27 = scmp.eq.s32.totalorder %s26, 0
      %s29 = sadd.s32 %s28, 1
      %s30 = scalar_select %p27, %s28, %s29
      %p33 = pneg %p27
      %p34 = scmp.eq.s32.totalorder %s18, 1
      %p35 = por %p33, %p34
      %p36 = scmp.ne.s32.totalorder %s28, %s31
      %p37 = scmp.eq.s32.totalorder %s18, 0
      %p38 = por %p36, %p37
      %p39 = scmp.ne.s32.totalorder %s28, %s31
      %p40 = scmp.eq.s32.totalorder %s23, 1
      %p41 = por %p39, %p40
      %p42 = scmp.ne.s32.totalorder %s31, %s32
      %p43 = scmp.eq.s32.totalorder %s23, 0
      %p44 = por %p42, %p43
      %p45 = scmp.ne.s32.totalorder %s31, %s32
      %p46 = scmp.eq.s32.totalorder %s24, 1
      %p47 = por %p45, %p46
      %p49 = scmp.ne.s32.totalorder %s32, %s48
      %p50 = scmp.eq.s32.totalorder %s24, 0
      %p51 = por %p49, %p50
      %s53 = sadd.s32 %s52, 1
      %p56 = scmp.eq.s32.totalorder %s18, 1
      %p57 = scmp.ne.s32.totalorder %s52, %s54
      %p58 = scmp.eq.s32.totalorder %s18, 0
      %p59 = por %p57, %p58
      %p60 = scmp.ne.s32.totalorder %s52, %s54
      %p61 = scmp.eq.s32.totalorder %s23, 1
      %p62 = por %p60, %p61
      %p63 = scmp.ne.s32.totalorder %s54, %s55
      %p64 = scmp.eq.s32.totalorder %s23, 0
      %p65 = por %p63, %p64
      %p66 = scmp.ne.s32.totalorder %s54, %s55
      %p67 = scmp.eq.s32.totalorder %s24, 1
      %p68 = por %p66, %p67
      %p70 = scmp.ne.s32.totalorder %s55, %s69
      %p71 = scmp.eq.s32.totalorder %s24, 0
      %p72 = por %p70, %p71
      %s74 = sadd.s32 %s73, 1
      %p77 = scmp.eq.s32.totalorder %s18, 1
      %p78 = scmp.ne.s32.totalorder %s73, %s75
      %p79 = scmp.eq.s32.totalorder %s18, 0
      %p80 = por %p78, %p79
      %p81 = scmp.ne.s32.totalorder %s73, %s75
      %p82 = scmp.eq.s32.totalorder %s23, 1
      %p83 = por %p81, %p82
      %p84 = scmp.ne.s32.totalorder %s75, %s76
      %p85 = scmp.eq.s32.totalorder %s23, 0
      %p86 = por %p84, %p85
      %p87 = scmp.ne.s32.totalorder %s75, %s76
      %p88 = scmp.eq.s32.totalorder %s24, 1
      %p89 = por %p87, %p88
      %p91 = scmp.ne.s32.totalorder %s76, %s90
      %p92 = scmp.eq.s32.totalorder %s24, 0
      %p93 = por %p91, %p92
      %s95 = sadd.s32 %s94, 1
      %p98 = scmp.eq.s32.totalorder %s18, 1
      %p99 = scmp.ne.s32.totalorder %s94, %s96
      %p100 = scmp.eq.s32.totalorder %s18, 0
      %p101 = por %p99, %p100
      %p102 = scmp.ne.s32.totalorder %s94, %s96
      %p103 = scmp.eq.s32.totalorder %s23, 1
      %p104 = por %p102, %p103
      %p105 = scmp.ne.s32.totalorder %s96, %s97
      %p106 = scmp.eq.s32.totalorder %s23, 0
      %p107 = por %p105, %p106
      %p108 = scmp.ne.s32.totalorder %s96, %s97
      %p109 = scmp.eq.s32.totalorder %s24, 1
      %p110 = por %p108, %p109
      %p112 = scmp.ne.s32.totalorder %s97, %s111
      %p113 = scmp.eq.s32.totalorder %s24, 0
      %p114 = por %p112, %p113
      %s116 = sadd.s32 %s115, 1
      %p119 = scmp.eq.s32.totalorder %s18, 1
      %p120 = scmp.ne.s32.totalorder %s115, %s117
      %p121 = scmp.eq.s32.totalorder %s18, 0
      %p122 = por %p120, %p121
      %p123 = scmp.ne.s32.totalorder %s115, %s117
      %p124 = scmp.eq.s32.totalorder %s23, 1
      %p125 = por %p123, %p124
      %p126 = scmp.ne.s32.totalorder %s117, %s118
      %p127 = scmp.eq.s32.totalorder %s23, 0
      %p128 = por %p126, %p127
      %p129 = scmp.ne.s32.totalorder %s117, %s118
      %p130 = scmp.eq.s32.totalorder %s24, 1
      %p131 = por %p129, %p130
      %p133 = scmp.ne.s32.totalorder %s118, %s132
      %p134 = scmp.eq.s32.totalorder %s24, 0
      %p135 = por %p133, %p134
      %s136 = ssub.s32 %s18, %s25
      %p137 = scmp.eq.s32.totalorder %s136, 0
      %s139 = sadd.s32 %s138, 1
      %s140 = scalar_select %p137, %s138, %s139
      %p143 = pneg %p137
      %p144 = scmp.eq.s32.totalorder %s18, 1
      %p145 = por %p143, %p144
      %p146 = scmp.ne.s32.totalorder %s138, %s141
      %p147 = scmp.eq.s32.totalorder %s18, 0
      %p148 = por %p146, %p147
      %p149 = scmp.ne.s32.totalorder %s138, %s141
      %p150 = scmp.eq.s32.totalorder %s23, 1
      %p151 = por %p149, %p150
      %p152 = scmp.ne.s32.totalorder %s141, %s142
      %p153 = scmp.eq.s32.totalorder %s23, 0
      %p154 = por %p152, %p153
      %p155 = scmp.ne.s32.totalorder %s141, %s142
      %p156 = scmp.eq.s32.totalorder %s24, 1
      %p157 = por %p155, %p156
      %p159 = scmp.ne.s32.totalorder %s142, %s158
      %p160 = scmp.eq.s32.totalorder %s24, 0
      %p161 = por %p159, %p160
      %p162 = scmp.le.s32.totalorder 1, %s18
      %p163 = scmp.lt.s32.totalorder %s18, 3
      %p164 = pnand %p162, %p163
      %p165 = pneg %p164
      // Predicated region
      $region9: #{tpu_custom_call.1} parent=5 // pred_check
        _
      $region10: #{tpu_custom_call.1} parent=5 // pred_check_branch
        %167 = sbr.rel (%p164) target = $region12
      $region11: #{tpu_custom_call.1} parent=5 // pred_region
        %s168 = ssub.s32 %s18, 1
        // Predicated region
        $region13: #{tpu_custom_call.1} parent=11 // pred_check
          %p169 = pneg %p65
        $region14: #{tpu_custom_call.1} parent=11 // pred_check_branch
          %171 = sbr.rel (%p169) target = $region16
        $region15: #{tpu_custom_call.1} parent=11 // pred_region
          %s173 = ssub.s32 18432, 18432
          %174 = vsyncadd [#allocation6], %s173
          %s175 = sshll.u32 [#allocation5], 4
          %s176 = int_to_ptr.vmem [resolvable:$true] %s175
          %181 = dma.hbm_to_vmem [thread:$0]  %s1, 18432, %s176, [#allocation6], 64, 64, 4
        $region16: #{tpu_custom_call.1} parent=11 // pred_fallthru
          _
        // Predicated region
        $region17: #{tpu_custom_call.1} parent=11 // pred_check
          %p182 = pneg %p86
        $region18: #{tpu_custom_call.1} parent=11 // pred_check_branch
          %184 = sbr.rel (%p182) target = $region20
        $region19: #{tpu_custom_call.1} parent=11 // pred_region
          %s186 = ssub.s32 288, 288
          %187 = vsyncadd [#allocation6], %s186
          %s188 = sshll.u32 [#allocation7], 4
          %s189 = int_to_ptr.vmem [resolvable:$true] %s188
          %194 = dma.hbm_to_vmem [thread:$0]  %s2, 288, %s189, [#allocation6], 16, 16, 1
        $region20: #{tpu_custom_call.1} parent=11 // pred_fallthru
          _
        // Predicated region
        $region21: #{tpu_custom_call.1} parent=11 // pred_check
          %p195 = pneg %p107
        $region22: #{tpu_custom_call.1} parent=11 // pred_check_branch
          %197 = sbr.rel (%p195) target = $region24
        $region23: #{tpu_custom_call.1} parent=11 // pred_region
          _
        $region24: #{tpu_custom_call.1} parent=11 // pred_fallthru
          _
        // Predicated region
        $region25: #{tpu_custom_call.1} parent=11 // pred_check
          %p198 = pneg %p128
        $region26: #{tpu_custom_call.1} parent=11 // pred_check_branch
          %200 = sbr.rel (%p198) target = $region28
        $region27: #{tpu_custom_call.1} parent=11 // pred_region
          _
        $region28: #{tpu_custom_call.1} parent=11 // pred_fallthru
          _
      $region12: #{tpu_custom_call.1} parent=5 // pred_fallthru
        _
      %p201 = scmp.lt.s32.totalorder %s18, 2
      // Predicated region
      $region29: #{tpu_custom_call.1} parent=5 // pred_check
        %p202 = pneg %p201
      $region30: #{tpu_custom_call.1} parent=5 // pred_check_branch
        %204 = sbr.rel (%p202) target = $region32
      $region31: #{tpu_custom_call.1} parent=5 // pred_region
        // Predicated region
        $region33: #{tpu_custom_call.1} parent=31 // pred_check
          %p205 = pneg %p38
        $region34: #{tpu_custom_call.1} parent=31 // pred_check_branch
          %207 = sbr.rel (%p205) target = $region36
        $region35: #{tpu_custom_call.1} parent=31 // pred_region
          %s208 = sand.u32 %s28, 1
          %s209 = scalar_lea.sflag [#allocation3], %s208
          %s210 = sand.u32 %s28, 1
          %s211 = smul.addr %s210, 256
          %s212 = scalar_lea.vmem [#allocation2], %s211
          %s213 = smul.u32 32, %s18
          %s215 = ssub.s32 4096, 4096
          %216 = vsyncadd %s209, %s215
          %s217 = smul.addr %s213, 128
          %s218 = scalar_lea.hbm %s0, %s217
          %s219 = sshll.u32 %s212, 4
          %s220 = int_to_ptr.vmem [resolvable:$true] %s219
          %225 = dma.hbm_to_vmem [thread:$0]  %s218, 4096, %s220, %s209, 128, 128, 8
        $region36: #{tpu_custom_call.1} parent=31 // pred_fallthru
          _
      $region32: #{tpu_custom_call.1} parent=5 // pred_fallthru
        _
      %p226 = scmp.le.s32.totalorder 1, %s18
      %p227 = scmp.lt.s32.totalorder %s18, 3
      %p228 = pnand %p226, %p227
      %p229 = pneg %p228
      // Predicated region
      $region37: #{tpu_custom_call.1} parent=5 // pred_check
        _
      $region38: #{tpu_custom_call.1} parent=5 // pred_check_branch
        %231 = sbr.rel (%p228) target = $region40
      $region39: #{tpu_custom_call.1} parent=5 // pred_region
        %s232 = ssub.s32 %s18, 1
        %s233 = sand.u32 %s31, 1
        %s234 = scalar_lea.sflag [#allocation3], %s233
        %s235 = sand.u32 %s31, 1
        %s236 = smul.addr %s235, 256
        %s237 = scalar_lea.vmem [#allocation2], %s236
        // Predicated region
        $region41: #{tpu_custom_call.1} parent=39 // pred_check
          %p238 = pneg %p44
        $region42: #{tpu_custom_call.1} parent=39 // pred_check_branch
          %240 = sbr.rel (%p238) target = $region44
        $region43: #{tpu_custom_call.1} parent=39 // pred_region
          %241 = dma.done %s234, 4096
        $region44: #{tpu_custom_call.1} parent=39 // pred_fallthru
          _
        // Predicated region
        $region45: #{tpu_custom_call.1} parent=39 // pred_check
          %p242 = pneg %p65
        $region46: #{tpu_custom_call.1} parent=39 // pred_check_branch
          %244 = sbr.rel (%p242) target = $region48
        $region47: #{tpu_custom_call.1} parent=39 // pred_region
          %245 = dma.done [#allocation6], 18432
        $region48: #{tpu_custom_call.1} parent=39 // pred_fallthru
          _
        // Predicated region
        $region49: #{tpu_custom_call.1} parent=39 // pred_check
          %p246 = pneg %p86
        $region50: #{tpu_custom_call.1} parent=39 // pred_check_branch
          %248 = sbr.rel (%p246) target = $region52
        $region51: #{tpu_custom_call.1} parent=39 // pred_region
          %249 = dma.done [#allocation6], 288
        $region52: #{tpu_custom_call.1} parent=39 // pred_fallthru
          _
        %s250 = sand.u32 %s31, 1
        %s251 = scalar_lea.sflag [#allocation3], %s250
        %s252 = sand.u32 %s31, 1
        %s253 = smul.addr %s252, 256
        %s254 = scalar_lea.vmem [#allocation2], %s253
        %p255 = pneg %p44
        %p256 = pneg %p41
        %p257 = pneg %p65
        %p258 = pneg %p62
        %p259 = pneg %p86
        %p260 = pneg %p83
        %p261 = pneg %p107
        %p262 = pneg %p104
        %p263 = pneg %p128
        %p264 = pneg %p125
        %p265 = pneg %p154
        %p266 = pneg %p151
        %s267 = sand.u32 %s141, 1
        %s268 = scalar_lea.sflag [#allocation4], %s267
        %s269 = sand.u32 %s141, 1
        %s270 = smul.addr %s269, 256
        %s271 = scalar_lea.vmem [#allocation8], %s270
        %s272 = smul.u32 32, %s23
        %s273 = smul.u32 32, %s23
        %v275 = vld [vmem:[%s237] sm:$0xff]
        %v276 = vld [vmem:[%s237 + $0x8] sm:$0xff]
        %v277 = vld [vmem:[%s237 + $0x10] sm:$0xff]
        %v278 = vld [vmem:[%s237 + $0x18] sm:$0xff]
        %v279 = vld [vmem:[%s237 + $0x20] sm:$0xff]
        %v280 = vld [vmem:[%s237 + $0x28] sm:$0xff]
        %v281 = vld [vmem:[%s237 + $0x30] sm:$0xff]
        %v282 = vld [vmem:[%s237 + $0x38] sm:$0xff]
        %v283 = vld [vmem:[%s237 + $0x40] sm:$0xff]
        %v284 = vld [vmem:[%s237 + $0x48] sm:$0xff]
        %v285 = vld [vmem:[%s237 + $0x50] sm:$0xff]
        %v286 = vld [vmem:[%s237 + $0x58] sm:$0xff]
        %v287 = vld [vmem:[%s237 + $0x60] sm:$0xff]
        %v288 = vld [vmem:[%s237 + $0x68] sm:$0xff]
        %v289 = vld [vmem:[%s237 + $0x70] sm:$0xff]
        %v290 = vld [vmem:[%s237 + $0x78] sm:$0xff]
        %v291 = vld [vmem:[%s237 + $0x80] sm:$0xff]
        %v292 = vld [vmem:[%s237 + $0x88] sm:$0xff]
        %v293 = vld [vmem:[%s237 + $0x90] sm:$0xff]
        %v294 = vld [vmem:[%s237 + $0x98] sm:$0xff]
        %v295 = vld [vmem:[%s237 + $0xa0] sm:$0xff]
        %v296 = vld [vmem:[%s237 + $0xa8] sm:$0xff]
        %v297 = vld [vmem:[%s237 + $0xb0] sm:$0xff]
        %v298 = vld [vmem:[%s237 + $0xb8] sm:$0xff]
        %v299 = vld [vmem:[%s237 + $0xc0] sm:$0xff]
        %v300 = vld [vmem:[%s237 + $0xc8] sm:$0xff]
        %v301 = vld [vmem:[%s237 + $0xd0] sm:$0xff]
        %v302 = vld [vmem:[%s237 + $0xd8] sm:$0xff]
        %v303 = vld [vmem:[%s237 + $0xe0] sm:$0xff]
        %v304 = vld [vmem:[%s237 + $0xe8] sm:$0xff]
        %v305 = vld [vmem:[%s237 + $0xf0] sm:$0xff]
        %v306 = vld [vmem:[%s237 + $0xf8] sm:$0xff]
        %v307 = vpack.c.bf16 %v276, %v275
        %v308 = vpack.c.bf16 %v278, %v277
        %v309 = vpack.c.bf16 %v280, %v279
        %v310 = vpack.c.bf16 %v282, %v281
        %v311 = vpack.c.bf16 %v284, %v283
        %v312 = vpack.c.bf16 %v286, %v285
        %v313 = vpack.c.bf16 %v288, %v287
        %v314 = vpack.c.bf16 %v290, %v289
        %v315 = vpack.c.bf16 %v292, %v291
        %v316 = vpack.c.bf16 %v294, %v293
        %v317 = vpack.c.bf16 %v296, %v295
        %v318 = vpack.c.bf16 %v298, %v297
        %v319 = vpack.c.bf16 %v300, %v299
        %v320 = vpack.c.bf16 %v302, %v301
        %v321 = vpack.c.bf16 %v304, %v303
        %v322 = vpack.c.bf16 %v306, %v305
        %v323 = vld [vmem:[#allocation5] sm:$0xf]
        %v324 = vld [vmem:[#allocation5 + $0x4] sm:$0xf]
        %v325 = vld [vmem:[#allocation5 + $0x8] sm:$0xf]
        %v326 = vld [vmem:[#allocation5 + $0xc] sm:$0xf]
        %v327 = vld [vmem:[#allocation5 + $0x10] sm:$0xf]
        %v328 = vld [vmem:[#allocation5 + $0x14] sm:$0xf]
        %v329 = vld [vmem:[#allocation5 + $0x18] sm:$0xf]
        %v330 = vld [vmem:[#allocation5 + $0x1c] sm:$0xf]
        %v331 = vld [vmem:[#allocation5 + $0x20] sm:$0xf]
        %v332 = vld [vmem:[#allocation5 + $0x24] sm:$0xf]
        %v333 = vld [vmem:[#allocation5 + $0x28] sm:$0xf]
        %v334 = vld [vmem:[#allocation5 + $0x2c] sm:$0xf]
        %v335 = vld [vmem:[#allocation5 + $0x30] sm:$0xf]
        %v336 = vld [vmem:[#allocation5 + $0x34] sm:$0xf]
        %v337 = vld [vmem:[#allocation5 + $0x38] sm:$0xf]
        %v338 = vld [vmem:[#allocation5 + $0x3c] sm:$0xf]
        %v339 = vld [vmem:[#allocation7] sm:$0x1]
        %v341 = vlaneseq
        %v342 = vshrl.u32 %v341, 7
        %v343 = vsub.s32 0, %v342
        %v344 = vrot.slane %v339, %v343
        %v362 = vunpack.c.l.b16 %v323
        %v363 = vunpack.c.l.b16 %v324
        %v364 = vunpack.c.l.b16 %v325
        %v365 = vunpack.c.l.b16 %v326
        %v366 = vunpack.c.l.b16 %v327
        %v367 = vunpack.c.l.b16 %v328
        %v368 = vunpack.c.l.b16 %v329
        %v369 = vunpack.c.l.b16 %v330
        %v370 = vunpack.c.l.b16 %v331
        %v371 = vunpack.c.l.b16 %v332
        %v372 = vunpack.c.l.b16 %v333
        %v373 = vunpack.c.l.b16 %v334
        %v374 = vunpack.c.l.b16 %v335
        %v375 = vunpack.c.l.b16 %v336
        %v376 = vunpack.c.l.b16 %v337
        %v377 = vunpack.c.l.b16 %v338
        %v378 = vpack.c.b16 %v363, %v362
        %v379 = vpack.c.b16 %v365, %v364
        %v380 = vpack.c.b16 %v367, %v366
        %v381 = vpack.c.b16 %v369, %v368
        %v382 = vpack.c.b16 %v371, %v370
        %v383 = vpack.c.b16 %v373, %v372
        %v384 = vpack.c.b16 %v375, %v374
        %v385 = vpack.c.b16 %v377, %v376
        %394 = vmatprep.subr.bf16.mxu0 0
        %395 = vmatpush1.bf16.msra.mxu0 %v378
        %396 = vmatprep.subr.bf16.mxu0 0
        %397 = vmatpush1.bf16.msra.mxu0 %v379
        %398 = vmatprep.subr.bf16.mxu0 0
        %399 = vmatpush1.bf16.msra.mxu0 %v380
        %400 = vmatprep.subr.bf16.mxu0 0
        %401 = vmatpush1.bf16.msra.mxu0 %v381
        %402 = vmatprep.subr.bf16.mxu0 0
        %403 = vmatpush1.bf16.msra.mxu0 %v382
        %404 = vmatprep.subr.bf16.mxu0 0
        %405 = vmatpush1.bf16.msra.mxu0 %v383
        %406 = vmatprep.subr.bf16.mxu0 0
        %407 = vmatpush1.bf16.msra.mxu0 %v384
        %408 = vmatprep.subr.bf16.mxu0 0
        %409 = vmatpush1.bf16.msra.mxu0 %v385
        %410 = vmatprep.subr.bf16.mxu0 0
        %411 = vmatpush1.bf16.msra.mxu0 0
        %412 = vmatprep.subr.bf16.mxu0 0
        %413 = vmatpush1.bf16.msra.mxu0 0
        %414 = vmatprep.subr.bf16.mxu0 0
        %415 = vmatpush1.bf16.msra.mxu0 0
        %416 = vmatprep.subr.bf16.mxu0 0
        %417 = vmatpush1.bf16.msra.mxu0 0
        %418 = vmatprep.subr.bf16.mxu0 0
        %419 = vmatpush1.bf16.msra.mxu0 0
        %420 = vmatprep.subr.bf16.mxu0 0
        %421 = vmatpush1.bf16.msra.mxu0 0
        %422 = vmatprep.subr.bf16.mxu0 0
        %423 = vmatpush1.bf16.msra.mxu0 0
        %424 = vmatprep.subr.bf16.mxu0 0
        %425 = vmatpush1.bf16.msra.mxu0 0
        %426 = vmatprep.mubr.bf16.mxu0 0
        %427 = vmatmul.mubr.bf16.gmra.mrb[0].mxu0 %v307
        %v428 = vpop.f32.mrb[0].mxu0
        %v429 = vadd.f32 %v344, %v428
        %v430 = vpop.f32.mrb[0].mxu0
        %v431 = vpop.f32.mrb[0].mxu0
        %v432 = vadd.f32 %v344, %v431
        %v433 = vpop.f32.mrb[0].mxu0
        %434 = vmatprep.mubr.bf16.mxu0 0
        %435 = vmatmul.mubr.bf16.gmra.mrb[0].mxu0 %v308
        %v436 = vpop.f32.mrb[0].mxu0
        %v437 = vadd.f32 %v344, %v436
        %v438 = vpop.f32.mrb[0].mxu0
        %v439 = vpop.f32.mrb[0].mxu0
        %v440 = vadd.f32 %v344, %v439
        %v441 = vpop.f32.mrb[0].mxu0
        %442 = vmatprep.mubr.bf16.mxu0 0
        %443 = vmatmul.mubr.bf16.gmra.mrb[0].mxu0 %v309
        %v444 = vpop.f32.mrb[0].mxu0
        %v445 = vadd.f32 %v344, %v444
        %v446 = vpop.f32.mrb[0].mxu0
        %v447 = vpop.f32.mrb[0].mxu0
        %v448 = vadd.f32 %v344, %v447
        %v449 = vpop.f32.mrb[0].mxu0
        %450 = vmatprep.mubr.bf16.mxu0 0
        %451 = vmatmul.mubr.bf16.gmra.mrb[0].mxu0 %v310
        %v452 = vpop.f32.mrb[0].mxu0
        %v453 = vadd.f32 %v344, %v452
        %v454 = vpop.f32.mrb[0].mxu0
        %v455 = vpop.f32.mrb[0].mxu0
        %v456 = vadd.f32 %v344, %v455
        %v457 = vpop.f32.mrb[0].mxu0
        %458 = vmatprep.mubr.bf16.mxu0 0
        %459 = vmatmul.mubr.bf16.gmra.mrb[0].mxu0 %v311
        %v460 = vpop.f32.mrb[0].mxu0
        %v461 = vadd.f32 %v344, %v460
        %v462 = vpop.f32.mrb[0].mxu0
        %v463 = vpop.f32.mrb[0].mxu0
        %v464 = vadd.f32 %v344, %v463
        %v465 = vpop.f32.mrb[0].mxu0
        %466 = vmatprep.mubr.bf16.mxu0 0
        %467 = vmatmul.mubr.bf16.gmra.mrb[0].mxu0 %v312
        %v468 = vpop.f32.mrb[0].mxu0
        %v469 = vadd.f32 %v344, %v468
        %v470 = vpop.f32.mrb[0].mxu0
        %v471 = vpop.f32.mrb[0].mxu0
        %v472 = vadd.f32 %v344, %v471
        %v473 = vpop.f32.mrb[0].mxu0
        %474 = vmatprep.mubr.bf16.mxu0 0
        %475 = vmatmul.mubr.bf16.gmra.mrb[0].mxu0 %v313
        %v476 = vpop.f32.mrb[0].mxu0
        %v477 = vadd.f32 %v344, %v476
        %v478 = vpop.f32.mrb[0].mxu0
        %v479 = vpop.f32.mrb[0].mxu0
        %v480 = vadd.f32 %v344, %v479
        %v481 = vpop.f32.mrb[0].mxu0
        %482 = vmatprep.mubr.bf16.mxu0 0
        %483 = vmatmul.mubr.bf16.gmra.mrb[0].mxu0 %v314
        %v484 = vpop.f32.mrb[0].mxu0
        %v485 = vadd.f32 %v344, %v484
        %v486 = vpop.f32.mrb[0].mxu0
        %v487 = vpop.f32.mrb[0].mxu0
        %v488 = vadd.f32 %v344, %v487
        %v489 = vpop.f32.mrb[0].mxu0
        %490 = vmatprep.mubr.bf16.mxu0 0
        %491 = vmatmul.mubr.bf16.gmra.mrb[0].mxu0 %v315
        %v492 = vpop.f32.mrb[0].mxu0
        %v493 = vadd.f32 %v344, %v492
        %v494 = vpop.f32.mrb[0].mxu0
        %v495 = vpop.f32.mrb[0].mxu0
        %v496 = vadd.f32 %v344, %v495
        %v497 = vpop.f32.mrb[0].mxu0
        %498 = vmatprep.mubr.bf16.mxu0 0
        %499 = vmatmul.mubr.bf16.gmra.mrb[0].mxu0 %v316
        %v500 = vpop.f32.mrb[0].mxu0
        %v501 = vadd.f32 %v344, %v500
        %v502 = vpop.f32.mrb[0].mxu0
        %v503 = vpop.f32.mrb[0].mxu0
        %v504 = vadd.f32 %v344, %v503
        %v505 = vpop.f32.mrb[0].mxu0
        %506 = vmatprep.mubr.bf16.mxu0 0
        %507 = vmatmul.mubr.bf16.gmra.mrb[0].mxu0 %v317
        %v508 = vpop.f32.mrb[0].mxu0
        %v509 = vadd.f32 %v344, %v508
        %v510 = vpop.f32.mrb[0].mxu0
        %v511 = vpop.f32.mrb[0].mxu0
        %v512 = vadd.f32 %v344, %v511
        %v513 = vpop.f32.mrb[0].mxu0
        %514 = vmatprep.mubr.bf16.mxu0 0
        %515 = vmatmul.mubr.bf16.gmra.mrb[0].mxu0 %v318
        %v516 = vpop.f32.mrb[0].mxu0
        %v517 = vadd.f32 %v344, %v516
        %v518 = vpop.f32.mrb[0].mxu0
        %v519 = vpop.f32.mrb[0].mxu0
        %v520 = vadd.f32 %v344, %v519
        %v521 = vpop.f32.mrb[0].mxu0
        %522 = vmatprep.mubr.bf16.mxu0 0
        %523 = vmatmul.mubr.bf16.gmra.mrb[0].mxu0 %v319
        %v524 = vpop.f32.mrb[0].mxu0
        %v525 = vadd.f32 %v344, %v524
        %v526 = vpop.f32.mrb[0].mxu0
        %v527 = vpop.f32.mrb[0].mxu0
        %v528 = vadd.f32 %v344, %v527
        %v529 = vpop.f32.mrb[0].mxu0
        %530 = vmatprep.mubr.bf16.mxu0 0
        %531 = vmatmul.mubr.bf16.gmra.mrb[0].mxu0 %v320
        %v532 = vpop.f32.mrb[0].mxu0
        %v533 = vadd.f32 %v344, %v532
        %v534 = vpop.f32.mrb[0].mxu0
        %v535 = vpop.f32.mrb[0].mxu0
        %v536 = vadd.f32 %v344, %v535
        %v537 = vpop.f32.mrb[0].mxu0
        %538 = vmatprep.mubr.bf16.mxu0 0
        %539 = vmatmul.mubr.bf16.gmra.mrb[0].mxu0 %v321
        %v540 = vpop.f32.mrb[0].mxu0
        %v541 = vadd.f32 %v344, %v540
        %v542 = vpop.f32.mrb[0].mxu0
        %v543 = vpop.f32.mrb[0].mxu0
        %v544 = vadd.f32 %v344, %v543
        %v545 = vpop.f32.mrb[0].mxu0
        %546 = vmatprep.mubr.bf16.mxu0 0
        %547 = vmatmul.mubr.bf16.gmra.mrb[0].mxu0 %v322
        %v548 = vpop.f32.mrb[0].mxu0
        %v549 = vadd.f32 %v344, %v548
        %v550 = vpop.f32.mrb[0].mxu0
        %v551 = vpop.f32.mrb[0].mxu0
        %v552 = vadd.f32 %v344, %v551
        %v553 = vpop.f32.mrb[0].mxu0
        %554 = vdwg.mxu0
        %v555 = vmax.f32 %v429, 0.0
        %v556 = vmax.f32 %v432, 0.0
        %v557 = vmax.f32 %v437, 0.0
        %v558 = vmax.f32 %v440, 0.0
        %v559 = vmax.f32 %v445, 0.0
        %v560 = vmax.f32 %v448, 0.0
        %v561 = vmax.f32 %v453, 0.0
        %v562 = vmax.f32 %v456, 0.0
        %v563 = vmax.f32 %v461, 0.0
        %v564 = vmax.f32 %v464, 0.0
        %v565 = vmax.f32 %v469, 0.0
        %v566 = vmax.f32 %v472, 0.0
        %v567 = vmax.f32 %v477, 0.0
        %v568 = vmax.f32 %v480, 0.0
        %v569 = vmax.f32 %v485, 0.0
        %v570 = vmax.f32 %v488, 0.0
        %v571 = vmax.f32 %v493, 0.0
        %v572 = vmax.f32 %v496, 0.0
        %v573 = vmax.f32 %v501, 0.0
        %v574 = vmax.f32 %v504, 0.0
        %v575 = vmax.f32 %v509, 0.0
        %v576 = vmax.f32 %v512, 0.0
        %v577 = vmax.f32 %v517, 0.0
        %v578 = vmax.f32 %v520, 0.0
        %v579 = vmax.f32 %v525, 0.0
        %v580 = vmax.f32 %v528, 0.0
        %v581 = vmax.f32 %v533, 0.0
        %v582 = vmax.f32 %v536, 0.0
        %v583 = vmax.f32 %v541, 0.0
        %v584 = vmax.f32 %v544, 0.0
        %v585 = vmax.f32 %v549, 0.0
        %v586 = vmax.f32 %v552, 0.0
        %v587 = vpack.c.bf16 %v556, %v555
        %v588 = vpack.c.bf16 %v558, %v557
        %v589 = vpack.c.bf16 %v560, %v559
        %v590 = vpack.c.bf16 %v562, %v561
        %v591 = vpack.c.bf16 %v564, %v563
        %v592 = vpack.c.bf16 %v566, %v565
        %v593 = vpack.c.bf16 %v568, %v567
        %v594 = vpack.c.bf16 %v570, %v569
        %v595 = vpack.c.bf16 %v572, %v571
        %v596 = vpack.c.bf16 %v574, %v573
        %v597 = vpack.c.bf16 %v576, %v575
        %v598 = vpack.c.bf16 %v578, %v577
        %v599 = vpack.c.bf16 %v580, %v579
        %v600 = vpack.c.bf16 %v582, %v581
        %v601 = vpack.c.bf16 %v584, %v583
        %v602 = vpack.c.bf16 %v586, %v585
        %s603 = scalar_lea.vmem [#allocation5], 64
        %v604 = vld [vmem:[%s603] sm:$0xf]
        %v605 = vld [vmem:[%s603 + $0x4] sm:$0xf]
        %v606 = vld [vmem:[%s603 + $0x8] sm:$0xf]
        %v607 = vld [vmem:[%s603 + $0xc] sm:$0xf]
        %v608 = vld [vmem:[%s603 + $0x10] sm:$0xf]
        %v609 = vld [vmem:[%s603 + $0x14] sm:$0xf]
        %v610 = vld [vmem:[%s603 + $0x18] sm:$0xf]
        %v611 = vld [vmem:[%s603 + $0x1c] sm:$0xf]
        %v612 = vld [vmem:[%s603 + $0x20] sm:$0xf]
        %v613 = vld [vmem:[%s603 + $0x24] sm:$0xf]
        %v614 = vld [vmem:[%s603 + $0x28] sm:$0xf]
        %v615 = vld [vmem:[%s603 + $0x2c] sm:$0xf]
        %v616 = vld [vmem:[%s603 + $0x30] sm:$0xf]
        %v617 = vld [vmem:[%s603 + $0x34] sm:$0xf]
        %v618 = vld [vmem:[%s603 + $0x38] sm:$0xf]
        %v619 = vld [vmem:[%s603 + $0x3c] sm:$0xf]
        %s620 = scalar_lea.vmem [#allocation7], 1
        %v621 = vld [vmem:[%s620] sm:$0x1]
        %v623 = vlaneseq
        %v624 = vshrl.u32 %v623, 7
        %v625 = vsub.s32 0, %v624
        %v626 = vrot.slane %v621, %v625
        %v644 = vunpack.c.l.b16 %v604
        %v645 = vunpack.c.l.b16 %v605
        %v646 = vunpack.c.l.b16 %v606
        %v647 = vunpack.c.l.b16 %v607
        %v648 = vunpack.c.l.b16 %v608
        %v649 = vunpack.c.l.b16 %v609
        %v650 = vunpack.c.l.b16 %v610
        %v651 = vunpack.c.l.b16 %v611
        %v652 = vunpack.c.l.b16 %v612
        %v653 = vunpack.c.l.b16 %v613
        %v654 = vunpack.c.l.b16 %v614
        %v655 = vunpack.c.l.b16 %v615
        %v656 = vunpack.c.l.b16 %v616
        %v657 = vunpack.c.l.b16 %v617
        %v658 = vunpack.c.l.b16 %v618
        %v659 = vunpack.c.l.b16 %v619
        %v660 = vpack.c.b16 %v645, %v644
        %v661 = vpack.c.b16 %v647, %v646
        %v662 = vpack.c.b16 %v649, %v648
        %v663 = vpack.c.b16 %v651, %v650
        %v664 = vpack.c.b16 %v653, %v652
        %v665 = vpack.c.b16 %v655, %v654
        %v666 = vpack.c.b16 %v657, %v656
        %v667 = vpack.c.b16 %v659, %v658
        %676 = vmatprep.subr.bf16.mxu0 0
        %677 = vmatpush1.bf16.msra.mxu0 %v660
        %678 = vmatprep.subr.bf16.mxu0 0
        %679 = vmatpush1.bf16.msra.mxu0 %v661
        %680 = vmatprep.subr.bf16.mxu0 0
        %681 = vmatpush1.bf16.msra.mxu0 %v662
        %682 = vmatprep.subr.bf16.mxu0 0
        %683 = vmatpush1.bf16.msra.mxu0 %v663
        %684 = vmatprep.subr.bf16.mxu0 0
        %685 = vmatpush1.bf16.msra.mxu0 %v664
        %686 = vmatprep.subr.bf16.mxu0 0
        %687 = vmatpush1.bf16.msra.mxu0 %v665
        %688 = vmatprep.subr.bf16.mxu0 0
        %689 = vmatpush1.bf16.msra.mxu0 %v666
        %690 = vmatprep.subr.bf16.mxu0 0
        %691 = vmatpush1.bf16.msra.mxu0 %v667
        %692 = vmatprep.subr.bf16.mxu0 0
        %693 = vmatpush1.bf16.msra.mxu0 0
        %694 = vmatprep.subr.bf16.mxu0 0
        %695 = vmatpush1.bf16.msra.mxu0 0
        %696 = vmatprep.subr.bf16.mxu0 0
        %697 = vmatpush1.bf16.msra.mxu0 0
        %698 = vmatprep.subr.bf16.mxu0 0
        %699 = vmatpush1.bf16.msra.mxu0 0
        %700 = vmatprep.subr.bf16.mxu0 0
        %701 = vmatpush1.bf16.msra.mxu0 0
        %702 = vmatprep.subr.bf16.mxu0 0
        %703 = vmatpush1.bf16.msra.mxu0 0
        %704 = vmatprep.subr.bf16.mxu0 0
        %705 = vmatpush1.bf16.msra.mxu0 0
        %706 = vmatprep.subr.bf16.mxu0 0
        %707 = vmatpush1.bf16.msra.mxu0 0
        %708 = vmatprep.mubr.bf16.mxu0 0
        %709 = vmatmul.mubr.bf16.gmra.mrb[0].mxu0 %v587
        %v710 = vpop.f32.mrb[0].mxu0
        %v711 = vadd.f32 %v626, %v710
        %v712 = vpop.f32.mrb[0].mxu0
        %v713 = vpop.f32.mrb[0].mxu0
        %v714 = vadd.f32 %v626, %v713
        %v715 = vpop.f32.mrb[0].mxu0
        %716 = vmatprep.mubr.bf16.mxu0 0
        %717 = vmatmul.mubr.bf16.gmra.mrb[0].mxu0 %v588
        %v718 = vpop.f32.mrb[0].mxu0
        %v719 = vadd.f32 %v626, %v718
        %v720 = vpop.f32.mrb[0].mxu0
        %v721 = vpop.f32.mrb[0].mxu0
        %v722 = vadd.f32 %v626, %v721
        %v723 = vpop.f32.mrb[0].mxu0
        %724 = vmatprep.mubr.bf16.mxu0 0
        %725 = vmatmul.mubr.bf16.gmra.mrb[0].mxu0 %v589
        %v726 = vpop.f32.mrb[0].mxu0
        %v727 = vadd.f32 %v626, %v726
        %v728 = vpop.f32.mrb[0].mxu0
        %v729 = vpop.f32.mrb[0].mxu0
        %v730 = vadd.f32 %v626, %v729
        %v731 = vpop.f32.mrb[0].mxu0
        %732 = vmatprep.mubr.bf16.mxu0 0
        %733 = vmatmul.mubr.bf16.gmra.mrb[0].mxu0 %v590
        %v734 = vpop.f32.mrb[0].mxu0
        %v735 = vadd.f32 %v626, %v734
        %v736 = vpop.f32.mrb[0].mxu0
        %v737 = vpop.f32.mrb[0].mxu0
        %v738 = vadd.f32 %v626, %v737
        %v739 = vpop.f32.mrb[0].mxu0
        %740 = vmatprep.mubr.bf16.mxu0 0
        %741 = vmatmul.mubr.bf16.gmra.mrb[0].mxu0 %v591
        %v742 = vpop.f32.mrb[0].mxu0
        %v743 = vadd.f32 %v626, %v742
        %v744 = vpop.f32.mrb[0].mxu0
        %v745 = vpop.f32.mrb[0].mxu0
        %v746 = vadd.f32 %v626, %v745
        %v747 = vpop.f32.mrb[0].mxu0
        %748 = vmatprep.mubr.bf16.mxu0 0
        %749 = vmatmul.mubr.bf16.gmra.mrb[0].mxu0 %v592
        %v750 = vpop.f32.mrb[0].mxu0
        %v751 = vadd.f32 %v626, %v750
        %v752 = vpop.f32.mrb[0].mxu0
        %v753 = vpop.f32.mrb[0].mxu0
        %v754 = vadd.f32 %v626, %v753
        %v755 = vpop.f32.mrb[0].mxu0
        %756 = vmatprep.mubr.bf16.mxu0 0
        %757 = vmatmul.mubr.bf16.gmra.mrb[0].mxu0 %v593
        %v758 = vpop.f32.mrb[0].mxu0
        %v759 = vadd.f32 %v626, %v758
        %v760 = vpop.f32.mrb[0].mxu0
        %v761 = vpop.f32.mrb[0].mxu0
        %v762 = vadd.f32 %v626, %v761
        %v763 = vpop.f32.mrb[0].mxu0
        %764 = vmatprep.mubr.bf16.mxu0 0
        %765 = vmatmul.mubr.bf16.gmra.mrb[0].mxu0 %v594
        %v766 = vpop.f32.mrb[0].mxu0
        %v767 = vadd.f32 %v626, %v766
        %v768 = vpop.f32.mrb[0].mxu0
        %v769 = vpop.f32.mrb[0].mxu0
        %v770 = vadd.f32 %v626, %v769
        %v771 = vpop.f32.mrb[0].mxu0
        %772 = vmatprep.mubr.bf16.mxu0 0
        %773 = vmatmul.mubr.bf16.gmra.mrb[0].mxu0 %v595
        %v774 = vpop.f32.mrb[0].mxu0
        %v775 = vadd.f32 %v626, %v774
        %v776 = vpop.f32.mrb[0].mxu0
        %v777 = vpop.f32.mrb[0].mxu0
        %v778 = vadd.f32 %v626, %v777
        %v779 = vpop.f32.mrb[0].mxu0
        %780 = vmatprep.mubr.bf16.mxu0 0
        %781 = vmatmul.mubr.bf16.gmra.mrb[0].mxu0 %v596
        %v782 = vpop.f32.mrb[0].mxu0
        %v783 = vadd.f32 %v626, %v782
        %v784 = vpop.f32.mrb[0].mxu0
        %v785 = vpop.f32.mrb[0].mxu0
        %v786 = vadd.f32 %v626, %v785
        %v787 = vpop.f32.mrb[0].mxu0
        %788 = vmatprep.mubr.bf16.mxu0 0
        %789 = vmatmul.mubr.bf16.gmra.mrb[0].mxu0 %v597
        %v790 = vpop.f32.mrb[0].mxu0
        %v791 = vadd.f32 %v626, %v790
        %v792 = vpop.f32.mrb[0].mxu0
        %v793 = vpop.f32.mrb[0].mxu0
        %v794 = vadd.f32 %v626, %v793
        %v795 = vpop.f32.mrb[0].mxu0
        %796 = vmatprep.mubr.bf16.mxu0 0
        %797 = vmatmul.mubr.bf16.gmra.mrb[0].mxu0 %v598
        %v798 = vpop.f32.mrb[0].mxu0
        %v799 = vadd.f32 %v626, %v798
        %v800 = vpop.f32.mrb[0].mxu0
        %v801 = vpop.f32.mrb[0].mxu0
        %v802 = vadd.f32 %v626, %v801
        %v803 = vpop.f32.mrb[0].mxu0
        %804 = vmatprep.mubr.bf16.mxu0 0
        %805 = vmatmul.mubr.bf16.gmra.mrb[0].mxu0 %v599
        %v806 = vpop.f32.mrb[0].mxu0
        %v807 = vadd.f32 %v626, %v806
        %v808 = vpop.f32.mrb[0].mxu0
        %v809 = vpop.f32.mrb[0].mxu0
        %v810 = vadd.f32 %v626, %v809
        %v811 = vpop.f32.mrb[0].mxu0
        %812 = vmatprep.mubr.bf16.mxu0 0
        %813 = vmatmul.mubr.bf16.gmra.mrb[0].mxu0 %v600
        %v814 = vpop.f32.mrb[0].mxu0
        %v815 = vadd.f32 %v626, %v814
        %v816 = vpop.f32.mrb[0].mxu0
        %v817 = vpop.f32.mrb[0].mxu0
        %v818 = vadd.f32 %v626, %v817
        %v819 = vpop.f32.mrb[0].mxu0
        %820 = vmatprep.mubr.bf16.mxu0 0
        %821 = vmatmul.mubr.bf16.gmra.mrb[0].mxu0 %v601
        %v822 = vpop.f32.mrb[0].mxu0
        %v823 = vadd.f32 %v626, %v822
        %v824 = vpop.f32.mrb[0].mxu0
        %v825 = vpop.f32.mrb[0].mxu0
        %v826 = vadd.f32 %v626, %v825
        %v827 = vpop.f32.mrb[0].mxu0
        %828 = vmatprep.mubr.bf16.mxu0 0
        %829 = vmatmul.mubr.bf16.gmra.mrb[0].mxu0 %v602
        %v830 = vpop.f32.mrb[0].mxu0
        %v831 = vadd.f32 %v626, %v830
        %v832 = vpop.f32.mrb[0].mxu0
        %v833 = vpop.f32.mrb[0].mxu0
        %v834 = vadd.f32 %v626, %v833
        %v835 = vpop.f32.mrb[0].mxu0
        %836 = vdwg.mxu0
        %v837 = vmax.f32 %v711, 0.0
        %v838 = vmax.f32 %v714, 0.0
        %v839 = vmax.f32 %v719, 0.0
        %v840 = vmax.f32 %v722, 0.0
        %v841 = vmax.f32 %v727, 0.0
        %v842 = vmax.f32 %v730, 0.0
        %v843 = vmax.f32 %v735, 0.0
        %v844 = vmax.f32 %v738, 0.0
        %v845 = vmax.f32 %v743, 0.0
        %v846 = vmax.f32 %v746, 0.0
        %v847 = vmax.f32 %v751, 0.0
        %v848 = vmax.f32 %v754, 0.0
        %v849 = vmax.f32 %v759, 0.0
        %v850 = vmax.f32 %v762, 0.0
        %v851 = vmax.f32 %v767, 0.0
        %v852 = vmax.f32 %v770, 0.0
        %v853 = vmax.f32 %v775, 0.0
        %v854 = vmax.f32 %v778, 0.0
        %v855 = vmax.f32 %v783, 0.0
        %v856 = vmax.f32 %v786, 0.0
        %v857 = vmax.f32 %v791, 0.0
        %v858 = vmax.f32 %v794, 0.0
        %v859 = vmax.f32 %v799, 0.0
        %v860 = vmax.f32 %v802, 0.0
        %v861 = vmax.f32 %v807, 0.0
        %v862 = vmax.f32 %v810, 0.0
        %v863 = vmax.f32 %v815, 0.0
        %v864 = vmax.f32 %v818, 0.0
        %v865 = vmax.f32 %v823, 0.0
        %v866 = vmax.f32 %v826, 0.0
        %v867 = vmax.f32 %v831, 0.0
        %v868 = vmax.f32 %v834, 0.0
        %v869 = vpack.c.bf16 %v838, %v837
        %v870 = vpack.c.bf16 %v840, %v839
        %v871 = vpack.c.bf16 %v842, %v841
        %v872 = vpack.c.bf16 %v844, %v843
        %v873 = vpack.c.bf16 %v846, %v845
        %v874 = vpack.c.bf16 %v848, %v847
        %v875 = vpack.c.bf16 %v850, %v849
        %v876 = vpack.c.bf16 %v852, %v851
        %v877 = vpack.c.bf16 %v854, %v853
        %v878 = vpack.c.bf16 %v856, %v855
        %v879 = vpack.c.bf16 %v858, %v857
        %v880 = vpack.c.bf16 %v860, %v859
        %v881 = vpack.c.bf16 %v862, %v861
        %v882 = vpack.c.bf16 %v864, %v863
        %v883 = vpack.c.bf16 %v866, %v865
        %v884 = vpack.c.bf16 %v868, %v867
        %s885 = scalar_lea.vmem [#allocation5], 128
        %v886 = vld [vmem:[%s885] sm:$0xf]
        %v887 = vld [vmem:[%s885 + $0x4] sm:$0xf]
        %v888 = vld [vmem:[%s885 + $0x8] sm:$0xf]
        %v889 = vld [vmem:[%s885 + $0xc] sm:$0xf]
        %v890 = vld [vmem:[%s885 + $0x10] sm:$0xf]
        %v891 = vld [vmem:[%s885 + $0x14] sm:$0xf]
        %v892 = vld [vmem:[%s885 + $0x18] sm:$0xf]
        %v893 = vld [vmem:[%s885 + $0x1c] sm:$0xf]
        %v894 = vld [vmem:[%s885 + $0x20] sm:$0xf]
        %v895 = vld [vmem:[%s885 + $0x24] sm:$0xf]
        %v896 = vld [vmem:[%s885 + $0x28] sm:$0xf]
        %v897 = vld [vmem:[%s885 + $0x2c] sm:$0xf]
        %v898 = vld [vmem:[%s885 + $0x30] sm:$0xf]
        %v899 = vld [vmem:[%s885 + $0x34] sm:$0xf]
        %v900 = vld [vmem:[%s885 + $0x38] sm:$0xf]
        %v901 = vld [vmem:[%s885 + $0x3c] sm:$0xf]
        %s902 = scalar_lea.vmem [#allocation7], 2
        %v903 = vld [vmem:[%s902] sm:$0x1]
        %v905 = vlaneseq
        %v906 = vshrl.u32 %v905, 7
        %v907 = vsub.s32 0, %v906
        %v908 = vrot.slane %v903, %v907
        %v926 = vunpack.c.l.b16 %v886
        %v927 = vunpack.c.l.b16 %v887
        %v928 = vunpack.c.l.b16 %v888
        %v929 = vunpack.c.l.b16 %v889
        %v930 = vunpack.c.l.b16 %v890
        %v931 = vunpack.c.l.b16 %v891
        %v932 = vunpack.c.l.b16 %v892
        %v933 = vunpack.c.l.b16 %v893
        %v934 = vunpack.c.l.b16 %v894
        %v935 = vunpack.c.l.b16 %v895
        %v936 = vunpack.c.l.b16 %v896
        %v937 = vunpack.c.l.b16 %v897
        %v938 = vunpack.c.l.b16 %v898
        %v939 = vunpack.c.l.b16 %v899
        %v940 = vunpack.c.l.b16 %v900
        %v941 = vunpack.c.l.b16 %v901
        %v942 = vpack.c.b16 %v927, %v926
        %v943 = vpack.c.b16 %v929, %v928
        %v944 = vpack.c.b16 %v931, %v930
        %v945 = vpack.c.b16 %v933, %v932
        %v946 = vpack.c.b16 %v935, %v934
        %v947 = vpack.c.b16 %v937, %v936
        %v948 = vpack.c.b16 %v939, %v938
        %v949 = vpack.c.b16 %v941, %v940
        %958 = vmatprep.subr.bf16.mxu0 0
        %959 = vmatpush1.bf16.msra.mxu0 %v942
        %960 = vmatprep.subr.bf16.mxu0 0
        %961 = vmatpush1.bf16.msra.mxu0 %v943
        %962 = vmatprep.subr.bf16.mxu0 0
        %963 = vmatpush1.bf16.msra.mxu0 %v944
        %964 = vmatprep.subr.bf16.mxu0 0
        %965 = vmatpush1.bf16.msra.mxu0 %v945
        %966 = vmatprep.subr.bf16.mxu0 0
        %967 = vmatpush1.bf16.msra.mxu0 %v946
        %968 = vmatprep.subr.bf16.mxu0 0
        %969 = vmatpush1.bf16.msra.mxu0 %v947
        %970 = vmatprep.subr.bf16.mxu0 0
        %971 = vmatpush1.bf16.msra.mxu0 %v948
        %972 = vmatprep.subr.bf16.mxu0 0
        %973 = vmatpush1.bf16.msra.mxu0 %v949
        %974 = vmatprep.subr.bf16.mxu0 0
        %975 = vmatpush1.bf16.msra.mxu0 0
        %976 = vmatprep.subr.bf16.mxu0 0
        %977 = vmatpush1.bf16.msra.mxu0 0
        %978 = vmatprep.subr.bf16.mxu0 0
        %979 = vmatpush1.bf16.msra.mxu0 0
        %980 = vmatprep.subr.bf16.mxu0 0
        %981 = vmatpush1.bf16.msra.mxu0 0
        %982 = vmatprep.subr.bf16.mxu0 0
        %983 = vmatpush1.bf16.msra.mxu0 0
        %984 = vmatprep.subr.bf16.mxu0 0
        %985 = vmatpush1.bf16.msra.mxu0 0
        %986 = vmatprep.subr.bf16.mxu0 0
        %987 = vmatpush1.bf16.msra.mxu0 0
        %988 = vmatprep.subr.bf16.mxu0 0
        %989 = vmatpush1.bf16.msra.mxu0 0
        %990 = vmatprep.mubr.bf16.mxu0 0
        %991 = vmatmul.mubr.bf16.gmra.mrb[0].mxu0 %v869
        %v992 = vpop.f32.mrb[0].mxu0
        %v993 = vadd.f32 %v908, %v992
        %v994 = vpop.f32.mrb[0].mxu0
        %v995 = vpop.f32.mrb[0].mxu0
        %v996 = vadd.f32 %v908, %v995
        %v997 = vpop.f32.mrb[0].mxu0
        %998 = vmatprep.mubr.bf16.mxu0 0
        %999 = vmatmul.mubr.bf16.gmra.mrb[0].mxu0 %v870
        %v1000 = vpop.f32.mrb[0].mxu0
        %v1001 = vadd.f32 %v908, %v1000
        %v1002 = vpop.f32.mrb[0].mxu0
        %v1003 = vpop.f32.mrb[0].mxu0
        %v1004 = vadd.f32 %v908, %v1003
        %v1005 = vpop.f32.mrb[0].mxu0
        %1006 = vmatprep.mubr.bf16.mxu0 0
        %1007 = vmatmul.mubr.bf16.gmra.mrb[0].mxu0 %v871
        %v1008 = vpop.f32.mrb[0].mxu0
        %v1009 = vadd.f32 %v908, %v1008
        %v1010 = vpop.f32.mrb[0].mxu0
        %v1011 = vpop.f32.mrb[0].mxu0
        %v1012 = vadd.f32 %v908, %v1011
        %v1013 = vpop.f32.mrb[0].mxu0
        %1014 = vmatprep.mubr.bf16.mxu0 0
        %1015 = vmatmul.mubr.bf16.gmra.mrb[0].mxu0 %v872
        %v1016 = vpop.f32.mrb[0].mxu0
        %v1017 = vadd.f32 %v908, %v1016
        %v1018 = vpop.f32.mrb[0].mxu0
        %v1019 = vpop.f32.mrb[0].mxu0
        %v1020 = vadd.f32 %v908, %v1019
        %v1021 = vpop.f32.mrb[0].mxu0
        %1022 = vmatprep.mubr.bf16.mxu0 0
        %1023 = vmatmul.mubr.bf16.gmra.mrb[0].mxu0 %v873
        %v1024 = vpop.f32.mrb[0].mxu0
        %v1025 = vadd.f32 %v908, %v1024
        %v1026 = vpop.f32.mrb[0].mxu0
        %v1027 = vpop.f32.mrb[0].mxu0
        %v1028 = vadd.f32 %v908, %v1027
        %v1029 = vpop.f32.mrb[0].mxu0
        %1030 = vmatprep.mubr.bf16.mxu0 0
        %1031 = vmatmul.mubr.bf16.gmra.mrb[0].mxu0 %v874
        %v1032 = vpop.f32.mrb[0].mxu0
        %v1033 = vadd.f32 %v908, %v1032
        %v1034 = vpop.f32.mrb[0].mxu0
        %v1035 = vpop.f32.mrb[0].mxu0
        %v1036 = vadd.f32 %v908, %v1035
        %v1037 = vpop.f32.mrb[0].mxu0
        %1038 = vmatprep.mubr.bf16.mxu0 0
        %1039 = vmatmul.mubr.bf16.gmra.mrb[0].mxu0 %v875
        %v1040 = vpop.f32.mrb[0].mxu0
        %v1041 = vadd.f32 %v908, %v1040
        %v1042 = vpop.f32.mrb[0].mxu0
        %v1043 = vpop.f32.mrb[0].mxu0
        %v1044 = vadd.f32 %v908, %v1043
        %v1045 = vpop.f32.mrb[0].mxu0
        %1046 = vmatprep.mubr.bf16.mxu0 0
        %1047 = vmatmul.mubr.bf16.gmra.mrb[0].mxu0 %v876
        %v1048 = vpop.f32.mrb[0].mxu0
        %v1049 = vadd.f32 %v908, %v1048
        %v1050 = vpop.f32.mrb[0].mxu0
        %v1051 = vpop.f32.mrb[0].mxu0
        %v1052 = vadd.f32 %v908, %v1051
        %v1053 = vpop.f32.mrb[0].mxu0
        %1054 = vmatprep.mubr.bf16.mxu0 0
        %1055 = vmatmul.mubr.bf16.gmra.mrb[0].mxu0 %v877
        %v1056 = vpop.f32.mrb[0].mxu0
        %v1057 = vadd.f32 %v908, %v1056
        %v1058 = vpop.f32.mrb[0].mxu0
        %v1059 = vpop.f32.mrb[0].mxu0
        %v1060 = vadd.f32 %v908, %v1059
        %v1061 = vpop.f32.mrb[0].mxu0
        %1062 = vmatprep.mubr.bf16.mxu0 0
        %1063 = vmatmul.mubr.bf16.gmra.mrb[0].mxu0 %v878
        %v1064 = vpop.f32.mrb[0].mxu0
        %v1065 = vadd.f32 %v908, %v1064
        %v1066 = vpop.f32.mrb[0].mxu0
        %v1067 = vpop.f32.mrb[0].mxu0
        %v1068 = vadd.f32 %v908, %v1067
        %v1069 = vpop.f32.mrb[0].mxu0
        %1070 = vmatprep.mubr.bf16.mxu0 0
        %1071 = vmatmul.mubr.bf16.gmra.mrb[0].mxu0 %v879
        %v1072 = vpop.f32.mrb[0].mxu0
        %v1073 = vadd.f32 %v908, %v1072
        %v1074 = vpop.f32.mrb[0].mxu0
        %v1075 = vpop.f32.mrb[0].mxu0
        %v1076 = vadd.f32 %v908, %v1075
        %v1077 = vpop.f32.mrb[0].mxu0
        %1078 = vmatprep.mubr.bf16.mxu0 0
        %1079 = vmatmul.mubr.bf16.gmra.mrb[0].mxu0 %v880
        %v1080 = vpop.f32.mrb[0].mxu0
        %v1081 = vadd.f32 %v908, %v1080
        %v1082 = vpop.f32.mrb[0].mxu0
        %v1083 = vpop.f32.mrb[0].mxu0
        %v1084 = vadd.f32 %v908, %v1083
        %v1085 = vpop.f32.mrb[0].mxu0
        %1086 = vmatprep.mubr.bf16.mxu0 0
        %1087 = vmatmul.mubr.bf16.gmra.mrb[0].mxu0 %v881
        %v1088 = vpop.f32.mrb[0].mxu0
        %v1089 = vadd.f32 %v908, %v1088
        %v1090 = vpop.f32.mrb[0].mxu0
        %v1091 = vpop.f32.mrb[0].mxu0
        %v1092 = vadd.f32 %v908, %v1091
        %v1093 = vpop.f32.mrb[0].mxu0
        %1094 = vmatprep.mubr.bf16.mxu0 0
        %1095 = vmatmul.mubr.bf16.gmra.mrb[0].mxu0 %v882
        %v1096 = vpop.f32.mrb[0].mxu0
        %v1097 = vadd.f32 %v908, %v1096
        %v1098 = vpop.f32.mrb[0].mxu0
        %v1099 = vpop.f32.mrb[0].mxu0
        %v1100 = vadd.f32 %v908, %v1099
        %v1101 = vpop.f32.mrb[0].mxu0
        %1102 = vmatprep.mubr.bf16.mxu0 0
        %1103 = vmatmul.mubr.bf16.gmra.mrb[0].mxu0 %v883
        %v1104 = vpop.f32.mrb[0].mxu0
        %v1105 = vadd.f32 %v908, %v1104
        %v1106 = vpop.f32.mrb[0].mxu0
        %v1107 = vpop.f32.mrb[0].mxu0
        %v1108 = vadd.f32 %v908, %v1107
        %v1109 = vpop.f32.mrb[0].mxu0
        %1110 = vmatprep.mubr.bf16.mxu0 0
        %1111 = vmatmul.mubr.bf16.gmra.mrb[0].mxu0 %v884
        %v1112 = vpop.f32.mrb[0].mxu0
        %v1113 = vadd.f32 %v908, %v1112
        %v1114 = vpop.f32.mrb[0].mxu0
        %v1115 = vpop.f32.mrb[0].mxu0
        %v1116 = vadd.f32 %v908, %v1115
        %v1117 = vpop.f32.mrb[0].mxu0
        %1118 = vdwg.mxu0
        %v1119 = vadd.f32 %v993, %v275
        %v1120 = vadd.f32 %v996, %v276
        %v1121 = vadd.f32 %v1001, %v277
        %v1122 = vadd.f32 %v1004, %v278
        %v1123 = vadd.f32 %v1009, %v279
        %v1124 = vadd.f32 %v1012, %v280
        %v1125 = vadd.f32 %v1017, %v281
        %v1126 = vadd.f32 %v1020, %v282
        %v1127 = vadd.f32 %v1025, %v283
        %v1128 = vadd.f32 %v1028, %v284
        %v1129 = vadd.f32 %v1033, %v285
        %v1130 = vadd.f32 %v1036, %v286
        %v1131 = vadd.f32 %v1041, %v287
        %v1132 = vadd.f32 %v1044, %v288
        %v1133 = vadd.f32 %v1049, %v289
        %v1134 = vadd.f32 %v1052, %v290
        %v1135 = vadd.f32 %v1057, %v291
        %v1136 = vadd.f32 %v1060, %v292
        %v1137 = vadd.f32 %v1065, %v293
        %v1138 = vadd.f32 %v1068, %v294
        %v1139 = vadd.f32 %v1073, %v295
        %v1140 = vadd.f32 %v1076, %v296
        %v1141 = vadd.f32 %v1081, %v297
        %v1142 = vadd.f32 %v1084, %v298
        %v1143 = vadd.f32 %v1089, %v299
        %v1144 = vadd.f32 %v1092, %v300
        %v1145 = vadd.f32 %v1097, %v301
        %v1146 = vadd.f32 %v1100, %v302
        %v1147 = vadd.f32 %v1105, %v303
        %v1148 = vadd.f32 %v1108, %v304
        %v1149 = vadd.f32 %v1113, %v305
        %v1150 = vadd.f32 %v1116, %v306
        %v1151 = vld [vmem:[%s3] sm:$0x1]
        %v1152 = vld [vmem:[%s4] sm:$0x1]
        %1153 = vadd.xlane.f32.xlu0 %v1119
        %v1154 = vpop.xlane.xlu0 %1153
        %1155 = vadd.xlane.f32.xlu0 %v1120
        %v1156 = vpop.xlane.xlu0 %1155
        %1157 = vadd.xlane.f32.xlu0 %v1121
        %v1158 = vpop.xlane.xlu0 %1157
        %1159 = vadd.xlane.f32.xlu0 %v1122
        %v1160 = vpop.xlane.xlu0 %1159
        %1161 = vadd.xlane.f32.xlu0 %v1123
        %v1162 = vpop.xlane.xlu0 %1161
        %1163 = vadd.xlane.f32.xlu0 %v1124
        %v1164 = vpop.xlane.xlu0 %1163
        %1165 = vadd.xlane.f32.xlu0 %v1125
        %v1166 = vpop.xlane.xlu0 %1165
        %1167 = vadd.xlane.f32.xlu0 %v1126
        %v1168 = vpop.xlane.xlu0 %1167
        %1169 = vadd.xlane.f32.xlu0 %v1127
        %v1170 = vpop.xlane.xlu0 %1169
        %1171 = vadd.xlane.f32.xlu0 %v1128
        %v1172 = vpop.xlane.xlu0 %1171
        %1173 = vadd.xlane.f32.xlu0 %v1129
        %v1174 = vpop.xlane.xlu0 %1173
        %1175 = vadd.xlane.f32.xlu0 %v1130
        %v1176 = vpop.xlane.xlu0 %1175
        %1177 = vadd.xlane.f32.xlu0 %v1131
        %v1178 = vpop.xlane.xlu0 %1177
        %1179 = vadd.xlane.f32.xlu0 %v1132
        %v1180 = vpop.xlane.xlu0 %1179
        %1181 = vadd.xlane.f32.xlu0 %v1133
        %v1182 = vpop.xlane.xlu0 %1181
        %1183 = vadd.xlane.f32.xlu0 %v1134
        %v1184 = vpop.xlane.xlu0 %1183
        %1185 = vadd.xlane.f32.xlu0 %v1135
        %v1186 = vpop.xlane.xlu0 %1185
        %1187 = vadd.xlane.f32.xlu0 %v1136
        %v1188 = vpop.xlane.xlu0 %1187
        %1189 = vadd.xlane.f32.xlu0 %v1137
        %v1190 = vpop.xlane.xlu0 %1189
        %1191 = vadd.xlane.f32.xlu0 %v1138
        %v1192 = vpop.xlane.xlu0 %1191
        %1193 = vadd.xlane.f32.xlu0 %v1139
        %v1194 = vpop.xlane.xlu0 %1193
        %1195 = vadd.xlane.f32.xlu0 %v1140
        %v1196 = vpop.xlane.xlu0 %1195
        %1197 = vadd.xlane.f32.xlu0 %v1141
        %v1198 = vpop.xlane.xlu0 %1197
        %1199 = vadd.xlane.f32.xlu0 %v1142
        %v1200 = vpop.xlane.xlu0 %1199
        %1201 = vadd.xlane.f32.xlu0 %v1143
        %v1202 = vpop.xlane.xlu0 %1201
        %1203 = vadd.xlane.f32.xlu0 %v1144
        %v1204 = vpop.xlane.xlu0 %1203
        %1205 = vadd.xlane.f32.xlu0 %v1145
        %v1206 = vpop.xlane.xlu0 %1205
        %1207 = vadd.xlane.f32.xlu0 %v1146
        %v1208 = vpop.xlane.xlu0 %1207
        %1209 = vadd.xlane.f32.xlu0 %v1147
        %v1210 = vpop.xlane.xlu0 %1209
        %1211 = vadd.xlane.f32.xlu0 %v1148
        %v1212 = vpop.xlane.xlu0 %1211
        %1213 = vadd.xlane.f32.xlu0 %v1149
        %v1214 = vpop.xlane.xlu0 %1213
        %1215 = vadd.xlane.f32.xlu0 %v1150
        %v1216 = vpop.xlane.xlu0 %1215
        %v1217 = vrcp.pop 128.0
        %v1218 = vmul.f32 %v1154, %v1217
        %v1219 = vmul.f32 %v1156, %v1217
        %v1220 = vmul.f32 %v1158, %v1217
        %v1221 = vmul.f32 %v1160, %v1217
        %v1222 = vmul.f32 %v1162, %v1217
        %v1223 = vmul.f32 %v1164, %v1217
        %v1224 = vmul.f32 %v1166, %v1217
        %v1225 = vmul.f32 %v1168, %v1217
        %v1226 = vmul.f32 %v1170, %v1217
        %v1227 = vmul.f32 %v1172, %v1217
        %v1228 = vmul.f32 %v1174, %v1217
        %v1229 = vmul.f32 %v1176, %v1217
        %v1230 = vmul.f32 %v1178, %v1217
        %v1231 = vmul.f32 %v1180, %v1217
        %v1232 = vmul.f32 %v1182, %v1217
        %v1233 = vmul.f32 %v1184, %v1217
        %v1234 = vmul.f32 %v1186, %v1217
        %v1235 = vmul.f32 %v1188, %v1217
        %v1236 = vmul.f32 %v1190, %v1217
        %v1237 = vmul.f32 %v1192, %v1217
        %v1238 = vmul.f32 %v1194, %v1217
        %v1239 = vmul.f32 %v1196, %v1217
        %v1240 = vmul.f32 %v1198, %v1217
        %v1241 = vmul.f32 %v1200, %v1217
        %v1242 = vmul.f32 %v1202, %v1217
        %v1243 = vmul.f32 %v1204, %v1217
        %v1244 = vmul.f32 %v1206, %v1217
        %v1245 = vmul.f32 %v1208, %v1217
        %v1246 = vmul.f32 %v1210, %v1217
        %v1247 = vmul.f32 %v1212, %v1217
        %v1248 = vmul.f32 %v1214, %v1217
        %v1249 = vmul.f32 %v1216, %v1217
        %v1250 = vsub.f32 %v1119, %v1218
        %v1251 = vsub.f32 %v1120, %v1219
        %v1252 = vsub.f32 %v1121, %v1220
        %v1253 = vsub.f32 %v1122, %v1221
        %v1254 = vsub.f32 %v1123, %v1222
        %v1255 = vsub.f32 %v1124, %v1223
        %v1256 = vsub.f32 %v1125, %v1224
        %v1257 = vsub.f32 %v1126, %v1225
        %v1258 = vsub.f32 %v1127, %v1226
        %v1259 = vsub.f32 %v1128, %v1227
        %v1260 = vsub.f32 %v1129, %v1228
        %v1261 = vsub.f32 %v1130, %v1229
        %v1262 = vsub.f32 %v1131, %v1230
        %v1263 = vsub.f32 %v1132, %v1231
        %v1264 = vsub.f32 %v1133, %v1232
        %v1265 = vsub.f32 %v1134, %v1233
        %v1266 = vsub.f32 %v1135, %v1234
        %v1267 = vsub.f32 %v1136, %v1235
        %v1268 = vsub.f32 %v1137, %v1236
        %v1269 = vsub.f32 %v1138, %v1237
        %v1270 = vsub.f32 %v1139, %v1238
        %v1271 = vsub.f32 %v1140, %v1239
        %v1272 = vsub.f32 %v1141, %v1240
        %v1273 = vsub.f32 %v1142, %v1241
        %v1274 = vsub.f32 %v1143, %v1242
        %v1275 = vsub.f32 %v1144, %v1243
        %v1276 = vsub.f32 %v1145, %v1244
        %v1277 = vsub.f32 %v1146, %v1245
        %v1278 = vsub.f32 %v1147, %v1246
        %v1279 = vsub.f32 %v1148, %v1247
        %v1280 = vsub.f32 %v1149, %v1248
        %v1281 = vsub.f32 %v1150, %v1249
        %v1282 = vmul.f32 %v1250, %v1250
        %v1283 = vmul.f32 %v1251, %v1251
        %v1284 = vmul.f32 %v1252, %v1252
        %v1285 = vmul.f32 %v1253, %v1253
        %v1286 = vmul.f32 %v1254, %v1254
        %v1287 = vmul.f32 %v1255, %v1255
        %v1288 = vmul.f32 %v1256, %v1256
        %v1289 = vmul.f32 %v1257, %v1257
        %v1290 = vmul.f32 %v1258, %v1258
        %v1291 = vmul.f32 %v1259, %v1259
        %v1292 = vmul.f32 %v1260, %v1260
        %v1293 = vmul.f32 %v1261, %v1261
        %v1294 = vmul.f32 %v1262, %v1262
        %v1295 = vmul.f32 %v1263, %v1263
        %v1296 = vmul.f32 %v1264, %v1264
        %v1297 = vmul.f32 %v1265, %v1265
        %v1298 = vmul.f32 %v1266, %v1266
        %v1299 = vmul.f32 %v1267, %v1267
        %v1300 = vmul.f32 %v1268, %v1268
        %v1301 = vmul.f32 %v1269, %v1269
        %v1302 = vmul.f32 %v1270, %v1270
        %v1303 = vmul.f32 %v1271, %v1271
        %v1304 = vmul.f32 %v1272, %v1272
        %v1305 = vmul.f32 %v1273, %v1273
        %v1306 = vmul.f32 %v1274, %v1274
        %v1307 = vmul.f32 %v1275, %v1275
        %v1308 = vmul.f32 %v1276, %v1276
        %v1309 = vmul.f32 %v1277, %v1277
        %v1310 = vmul.f32 %v1278, %v1278
        %v1311 = vmul.f32 %v1279, %v1279
        %v1312 = vmul.f32 %v1280, %v1280
        %v1313 = vmul.f32 %v1281, %v1281
        %1314 = vadd.xlane.f32.xlu0 %v1282
        %v1315 = vpop.xlane.xlu0 %1314
        %1316 = vadd.xlane.f32.xlu0 %v1283
        %v1317 = vpop.xlane.xlu0 %1316
        %1318 = vadd.xlane.f32.xlu0 %v1284
        %v1319 = vpop.xlane.xlu0 %1318
        %1320 = vadd.xlane.f32.xlu0 %v1285
        %v1321 = vpop.xlane.xlu0 %1320
        %1322 = vadd.xlane.f32.xlu0 %v1286
        %v1323 = vpop.xlane.xlu0 %1322
        %1324 = vadd.xlane.f32.xlu0 %v1287
        %v1325 = vpop.xlane.xlu0 %1324
        %1326 = vadd.xlane.f32.xlu0 %v1288
        %v1327 = vpop.xlane.xlu0 %1326
        %1328 = vadd.xlane.f32.xlu0 %v1289
        %v1329 = vpop.xlane.xlu0 %1328
        %1330 = vadd.xlane.f32.xlu0 %v1290
        %v1331 = vpop.xlane.xlu0 %1330
        %1332 = vadd.xlane.f32.xlu0 %v1291
        %v1333 = vpop.xlane.xlu0 %1332
        %1334 = vadd.xlane.f32.xlu0 %v1292
        %v1335 = vpop.xlane.xlu0 %1334
        %1336 = vadd.xlane.f32.xlu0 %v1293
        %v1337 = vpop.xlane.xlu0 %1336
        %1338 = vadd.xlane.f32.xlu0 %v1294
        %v1339 = vpop.xlane.xlu0 %1338
        %1340 = vadd.xlane.f32.xlu0 %v1295
        %v1341 = vpop.xlane.xlu0 %1340
        %1342 = vadd.xlane.f32.xlu0 %v1296
        %v1343 = vpop.xlane.xlu0 %1342
        %1344 = vadd.xlane.f32.xlu0 %v1297
        %v1345 = vpop.xlane.xlu0 %1344
        %1346 = vadd.xlane.f32.xlu0 %v1298
        %v1347 = vpop.xlane.xlu0 %1346
        %1348 = vadd.xlane.f32.xlu0 %v1299
        %v1349 = vpop.xlane.xlu0 %1348
        %1350 = vadd.xlane.f32.xlu0 %v1300
        %v1351 = vpop.xlane.xlu0 %1350
        %1352 = vadd.xlane.f32.xlu0 %v1301
        %v1353 = vpop.xlane.xlu0 %1352
        %1354 = vadd.xlane.f32.xlu0 %v1302
        %v1355 = vpop.xlane.xlu0 %1354
        %1356 = vadd.xlane.f32.xlu0 %v1303
        %v1357 = vpop.xlane.xlu0 %1356
        %1358 = vadd.xlane.f32.xlu0 %v1304
        %v1359 = vpop.xlane.xlu0 %1358
        %1360 = vadd.xlane.f32.xlu0 %v1305
        %v1361 = vpop.xlane.xlu0 %1360
        %1362 = vadd.xlane.f32.xlu0 %v1306
        %v1363 = vpop.xlane.xlu0 %1362
        %1364 = vadd.xlane.f32.xlu0 %v1307
        %v1365 = vpop.xlane.xlu0 %1364
        %1366 = vadd.xlane.f32.xlu0 %v1308
        %v1367 = vpop.xlane.xlu0 %1366
        %1368 = vadd.xlane.f32.xlu0 %v1309
        %v1369 = vpop.xlane.xlu0 %1368
        %1370 = vadd.xlane.f32.xlu0 %v1310
        %v1371 = vpop.xlane.xlu0 %1370
        %1372 = vadd.xlane.f32.xlu0 %v1311
        %v1373 = vpop.xlane.xlu0 %1372
        %1374 = vadd.xlane.f32.xlu0 %v1312
        %v1375 = vpop.xlane.xlu0 %1374
        %1376 = vadd.xlane.f32.xlu0 %v1313
        %v1377 = vpop.xlane.xlu0 %1376
        %v1378 = vmul.f32 %v1315, %v1217
        %v1379 = vmul.f32 %v1317, %v1217
        %v1380 = vmul.f32 %v1319, %v1217
        %v1381 = vmul.f32 %v1321, %v1217
        %v1382 = vmul.f32 %v1323, %v1217
        %v1383 = vmul.f32 %v1325, %v1217
        %v1384 = vmul.f32 %v1327, %v1217
        %v1385 = vmul.f32 %v1329, %v1217
        %v1386 = vmul.f32 %v1331, %v1217
        %v1387 = vmul.f32 %v1333, %v1217
        %v1388 = vmul.f32 %v1335, %v1217
        %v1389 = vmul.f32 %v1337, %v1217
        %v1390 = vmul.f32 %v1339, %v1217
        %v1391 = vmul.f32 %v1341, %v1217
        %v1392 = vmul.f32 %v1343, %v1217
        %v1393 = vmul.f32 %v1345, %v1217
        %v1394 = vmul.f32 %v1347, %v1217
        %v1395 = vmul.f32 %v1349, %v1217
        %v1396 = vmul.f32 %v1351, %v1217
        %v1397 = vmul.f32 %v1353, %v1217
        %v1398 = vmul.f32 %v1355, %v1217
        %v1399 = vmul.f32 %v1357, %v1217
        %v1400 = vmul.f32 %v1359, %v1217
        %v1401 = vmul.f32 %v1361, %v1217
        %v1402 = vmul.f32 %v1363, %v1217
        %v1403 = vmul.f32 %v1365, %v1217
        %v1404 = vmul.f32 %v1367, %v1217
        %v1405 = vmul.f32 %v1369, %v1217
        %v1406 = vmul.f32 %v1371, %v1217
        %v1407 = vmul.f32 %v1373, %v1217
        %v1408 = vmul.f32 %v1375, %v1217
        %v1409 = vmul.f32 %v1377, %v1217
        %v1410 = vadd.f32 %v1378, 1e-05
        %v1411 = vadd.f32 %v1379, 1e-05
        %v1412 = vadd.f32 %v1380, 1e-05
        %v1413 = vadd.f32 %v1381, 1e-05
        %v1414 = vadd.f32 %v1382, 1e-05
        %v1415 = vadd.f32 %v1383, 1e-05
        %v1416 = vadd.f32 %v1384, 1e-05
        %v1417 = vadd.f32 %v1385, 1e-05
        %v1418 = vadd.f32 %v1386, 1e-05
        %v1419 = vadd.f32 %v1387, 1e-05
        %v1420 = vadd.f32 %v1388, 1e-05
        %v1421 = vadd.f32 %v1389, 1e-05
        %v1422 = vadd.f32 %v1390, 1e-05
        %v1423 = vadd.f32 %v1391, 1e-05
        %v1424 = vadd.f32 %v1392, 1e-05
        %v1425 = vadd.f32 %v1393, 1e-05
        %v1426 = vadd.f32 %v1394, 1e-05
        %v1427 = vadd.f32 %v1395, 1e-05
        %v1428 = vadd.f32 %v1396, 1e-05
        %v1429 = vadd.f32 %v1397, 1e-05
        %v1430 = vadd.f32 %v1398, 1e-05
        %v1431 = vadd.f32 %v1399, 1e-05
        %v1432 = vadd.f32 %v1400, 1e-05
        %v1433 = vadd.f32 %v1401, 1e-05
        %v1434 = vadd.f32 %v1402, 1e-05
        %v1435 = vadd.f32 %v1403, 1e-05
        %v1436 = vadd.f32 %v1404, 1e-05
        %v1437 = vadd.f32 %v1405, 1e-05
        %v1438 = vadd.f32 %v1406, 1e-05
        %v1439 = vadd.f32 %v1407, 1e-05
        %v1440 = vadd.f32 %v1408, 1e-05
        %v1441 = vadd.f32 %v1409, 1e-05
        %v1442 = vrsqrt.pop %v1410
        %v1443 = vrsqrt.pop %v1411
        %v1444 = vrsqrt.pop %v1412
        %v1445 = vrsqrt.pop %v1413
        %v1446 = vrsqrt.pop %v1414
        %v1447 = vrsqrt.pop %v1415
        %v1448 = vrsqrt.pop %v1416
        %v1449 = vrsqrt.pop %v1417
        %v1450 = vrsqrt.pop %v1418
        %v1451 = vrsqrt.pop %v1419
        %v1452 = vrsqrt.pop %v1420
        %v1453 = vrsqrt.pop %v1421
        %v1454 = vrsqrt.pop %v1422
        %v1455 = vrsqrt.pop %v1423
        %v1456 = vrsqrt.pop %v1424
        %v1457 = vrsqrt.pop %v1425
        %v1458 = vrsqrt.pop %v1426
        %v1459 = vrsqrt.pop %v1427
        %v1460 = vrsqrt.pop %v1428
        %v1461 = vrsqrt.pop %v1429
        %v1462 = vrsqrt.pop %v1430
        %v1463 = vrsqrt.pop %v1431
        %v1464 = vrsqrt.pop %v1432
        %v1465 = vrsqrt.pop %v1433
        %v1466 = vrsqrt.pop %v1434
        %v1467 = vrsqrt.pop %v1435
        %v1468 = vrsqrt.pop %v1436
        %v1469 = vrsqrt.pop %v1437
        %v1470 = vrsqrt.pop %v1438
        %v1471 = vrsqrt.pop %v1439
        %v1472 = vrsqrt.pop %v1440
        %v1473 = vrsqrt.pop %v1441
        %v1474 = vmul.f32 %v1250, %v1442
        %v1475 = vmul.f32 %v1251, %v1443
        %v1476 = vmul.f32 %v1252, %v1444
        %v1477 = vmul.f32 %v1253, %v1445
        %v1478 = vmul.f32 %v1254, %v1446
        %v1479 = vmul.f32 %v1255, %v1447
        %v1480 = vmul.f32 %v1256, %v1448
        %v1481 = vmul.f32 %v1257, %v1449
        %v1482 = vmul.f32 %v1258, %v1450
        %v1483 = vmul.f32 %v1259, %v1451
        %v1484 = vmul.f32 %v1260, %v1452
        %v1485 = vmul.f32 %v1261, %v1453
        %v1486 = vmul.f32 %v1262, %v1454
        %v1487 = vmul.f32 %v1263, %v1455
        %v1488 = vmul.f32 %v1264, %v1456
        %v1489 = vmul.f32 %v1265, %v1457
        %v1490 = vmul.f32 %v1266, %v1458
        %v1491 = vmul.f32 %v1267, %v1459
        %v1492 = vmul.f32 %v1268, %v1460
        %v1493 = vmul.f32 %v1269, %v1461
        %v1494 = vmul.f32 %v1270, %v1462
        %v1495 = vmul.f32 %v1271, %v1463
        %v1496 = vmul.f32 %v1272, %v1464
        %v1497 = vmul.f32 %v1273, %v1465
        %v1498 = vmul.f32 %v1274, %v1466
        %v1499 = vmul.f32 %v1275, %v1467
        %v1500 = vmul.f32 %v1276, %v1468
        %v1501 = vmul.f32 %v1277, %v1469
        %v1502 = vmul.f32 %v1278, %v1470
        %v1503 = vmul.f32 %v1279, %v1471
        %v1504 = vmul.f32 %v1280, %v1472
        %v1505 = vmul.f32 %v1281, %v1473
        %v1507 = vlaneseq
        %v1508 = vshrl.u32 %v1507, 7
        %v1509 = vsub.s32 0, %v1508
        %v1510 = vrot.slane %v1151, %v1509
        %v1512 = vmul.f32 %v1474, %v1510
        %v1513 = vmul.f32 %v1475, %v1510
        %v1514 = vmul.f32 %v1476, %v1510
        %v1515 = vmul.f32 %v1477, %v1510
        %v1516 = vmul.f32 %v1478, %v1510
        %v1517 = vmul.f32 %v1479, %v1510
        %v1518 = vmul.f32 %v1480, %v1510
        %v1519 = vmul.f32 %v1481, %v1510
        %v1520 = vmul.f32 %v1482, %v1510
        %v1521 = vmul.f32 %v1483, %v1510
        %v1522 = vmul.f32 %v1484, %v1510
        %v1523 = vmul.f32 %v1485, %v1510
        %v1524 = vmul.f32 %v1486, %v1510
        %v1525 = vmul.f32 %v1487, %v1510
        %v1526 = vmul.f32 %v1488, %v1510
        %v1527 = vmul.f32 %v1489, %v1510
        %v1528 = vmul.f32 %v1490, %v1510
        %v1529 = vmul.f32 %v1491, %v1510
        %v1530 = vmul.f32 %v1492, %v1510
        %v1531 = vmul.f32 %v1493, %v1510
        %v1532 = vmul.f32 %v1494, %v1510
        %v1533 = vmul.f32 %v1495, %v1510
        %v1534 = vmul.f32 %v1496, %v1510
        %v1535 = vmul.f32 %v1497, %v1510
        %v1536 = vmul.f32 %v1498, %v1510
        %v1537 = vmul.f32 %v1499, %v1510
        %v1538 = vmul.f32 %v1500, %v1510
        %v1539 = vmul.f32 %v1501, %v1510
        %v1540 = vmul.f32 %v1502, %v1510
        %v1541 = vmul.f32 %v1503, %v1510
        %v1542 = vmul.f32 %v1504, %v1510
        %v1543 = vmul.f32 %v1505, %v1510
        %v1545 = vlaneseq
        %v1546 = vshrl.u32 %v1545, 7
        %v1547 = vsub.s32 0, %v1546
        %v1548 = vrot.slane %v1152, %v1547
        %v1550 = vadd.f32 %v1512, %v1548
        %v1551 = vadd.f32 %v1513, %v1548
        %v1552 = vadd.f32 %v1514, %v1548
        %v1553 = vadd.f32 %v1515, %v1548
        %v1554 = vadd.f32 %v1516, %v1548
        %v1555 = vadd.f32 %v1517, %v1548
        %v1556 = vadd.f32 %v1518, %v1548
        %v1557 = vadd.f32 %v1519, %v1548
        %v1558 = vadd.f32 %v1520, %v1548
        %v1559 = vadd.f32 %v1521, %v1548
        %v1560 = vadd.f32 %v1522, %v1548
        %v1561 = vadd.f32 %v1523, %v1548
        %v1562 = vadd.f32 %v1524, %v1548
        %v1563 = vadd.f32 %v1525, %v1548
        %v1564 = vadd.f32 %v1526, %v1548
        %v1565 = vadd.f32 %v1527, %v1548
        %v1566 = vadd.f32 %v1528, %v1548
        %v1567 = vadd.f32 %v1529, %v1548
        %v1568 = vadd.f32 %v1530, %v1548
        %v1569 = vadd.f32 %v1531, %v1548
        %v1570 = vadd.f32 %v1532, %v1548
        %v1571 = vadd.f32 %v1533, %v1548
        %v1572 = vadd.f32 %v1534, %v1548
        %v1573 = vadd.f32 %v1535, %v1548
        %v1574 = vadd.f32 %v1536, %v1548
        %v1575 = vadd.f32 %v1537, %v1548
        %v1576 = vadd.f32 %v1538, %v1548
        %v1577 = vadd.f32 %v1539, %v1548
        %v1578 = vadd.f32 %v1540, %v1548
        %v1579 = vadd.f32 %v1541, %v1548
        %v1580 = vadd.f32 %v1542, %v1548
        %v1581 = vadd.f32 %v1543, %v1548
        %v1582 = vpack.c.bf16 %v1551, %v1550
        %v1583 = vpack.c.bf16 %v1553, %v1552
        %v1584 = vpack.c.bf16 %v1555, %v1554
        %v1585 = vpack.c.bf16 %v1557, %v1556
        %v1586 = vpack.c.bf16 %v1559, %v1558
        %v1587 = vpack.c.bf16 %v1561, %v1560
        %v1588 = vpack.c.bf16 %v1563, %v1562
        %v1589 = vpack.c.bf16 %v1565, %v1564
        %v1590 = vpack.c.bf16 %v1567, %v1566
        %v1591 = vpack.c.bf16 %v1569, %v1568
        %v1592 = vpack.c.bf16 %v1571, %v1570
        %v1593 = vpack.c.bf16 %v1573, %v1572
        %v1594 = vpack.c.bf16 %v1575, %v1574
        %v1595 = vpack.c.bf16 %v1577, %v1576
        %v1596 = vpack.c.bf16 %v1579, %v1578
        %v1597 = vpack.c.bf16 %v1581, %v1580
        %s1598 = scalar_lea.vmem [#allocation5], 192
        %v1599 = vld [vmem:[%s1598] sm:$0xf]
        %v1600 = vld [vmem:[%s1598 + $0x4] sm:$0xf]
        %v1601 = vld [vmem:[%s1598 + $0x8] sm:$0xf]
        %v1602 = vld [vmem:[%s1598 + $0xc] sm:$0xf]
        %v1603 = vld [vmem:[%s1598 + $0x10] sm:$0xf]
        %v1604 = vld [vmem:[%s1598 + $0x14] sm:$0xf]
        %v1605 = vld [vmem:[%s1598 + $0x18] sm:$0xf]
        %v1606 = vld [vmem:[%s1598 + $0x1c] sm:$0xf]
        %v1607 = vld [vmem:[%s1598 + $0x20] sm:$0xf]
        %v1608 = vld [vmem:[%s1598 + $0x24] sm:$0xf]
        %v1609 = vld [vmem:[%s1598 + $0x28] sm:$0xf]
        %v1610 = vld [vmem:[%s1598 + $0x2c] sm:$0xf]
        %v1611 = vld [vmem:[%s1598 + $0x30] sm:$0xf]
        %v1612 = vld [vmem:[%s1598 + $0x34] sm:$0xf]
        %v1613 = vld [vmem:[%s1598 + $0x38] sm:$0xf]
        %v1614 = vld [vmem:[%s1598 + $0x3c] sm:$0xf]
        %s1615 = scalar_lea.vmem [#allocation7], 3
        %v1616 = vld [vmem:[%s1615] sm:$0x1]
        %v1618 = vlaneseq
        %v1619 = vshrl.u32 %v1618, 7
        %v1620 = vsub.s32 0, %v1619
        %v1621 = vrot.slane %v1616, %v1620
        %v1639 = vunpack.c.l.b16 %v1599
        %v1640 = vunpack.c.l.b16 %v1600
        %v1641 = vunpack.c.l.b16 %v1601
        %v1642 = vunpack.c.l.b16 %v1602
        %v1643 = vunpack.c.l.b16 %v1603
        %v1644 = vunpack.c.l.b16 %v1604
        %v1645 = vunpack.c.l.b16 %v1605
        %v1646 = vunpack.c.l.b16 %v1606
        %v1647 = vunpack.c.l.b16 %v1607
        %v1648 = vunpack.c.l.b16 %v1608
        %v1649 = vunpack.c.l.b16 %v1609
        %v1650 = vunpack.c.l.b16 %v1610
        %v1651 = vunpack.c.l.b16 %v1611
        %v1652 = vunpack.c.l.b16 %v1612
        %v1653 = vunpack.c.l.b16 %v1613
        %v1654 = vunpack.c.l.b16 %v1614
        %v1655 = vpack.c.b16 %v1640, %v1639
        %v1656 = vpack.c.b16 %v1642, %v1641
        %v1657 = vpack.c.b16 %v1644, %v1643
        %v1658 = vpack.c.b16 %v1646, %v1645
        %v1659 = vpack.c.b16 %v1648, %v1647
        %v1660 = vpack.c.b16 %v1650, %v1649
        %v1661 = vpack.c.b16 %v1652, %v1651
        %v1662 = vpack.c.b16 %v1654, %v1653
        %1671 = vmatprep.subr.bf16.mxu0 0
        %1672 = vmatpush1.bf16.msra.mxu0 %v1655
        %1673 = vmatprep.subr.bf16.mxu0 0
        %1674 = vmatpush1.bf16.msra.mxu0 %v1656
        %1675 = vmatprep.subr.bf16.mxu0 0
        %1676 = vmatpush1.bf16.msra.mxu0 %v1657
        %1677 = vmatprep.subr.bf16.mxu0 0
        %1678 = vmatpush1.bf16.msra.mxu0 %v1658
        %1679 = vmatprep.subr.bf16.mxu0 0
        %1680 = vmatpush1.bf16.msra.mxu0 %v1659
        %1681 = vmatprep.subr.bf16.mxu0 0
        %1682 = vmatpush1.bf16.msra.mxu0 %v1660
        %1683 = vmatprep.subr.bf16.mxu0 0
        %1684 = vmatpush1.bf16.msra.mxu0 %v1661
        %1685 = vmatprep.subr.bf16.mxu0 0
        %1686 = vmatpush1.bf16.msra.mxu0 %v1662
        %1687 = vmatprep.subr.bf16.mxu0 0
        %1688 = vmatpush1.bf16.msra.mxu0 0
        %1689 = vmatprep.subr.bf16.mxu0 0
        %1690 = vmatpush1.bf16.msra.mxu0 0
        %1691 = vmatprep.subr.bf16.mxu0 0
        %1692 = vmatpush1.bf16.msra.mxu0 0
        %1693 = vmatprep.subr.bf16.mxu0 0
        %1694 = vmatpush1.bf16.msra.mxu0 0
        %1695 = vmatprep.subr.bf16.mxu0 0
        %1696 = vmatpush1.bf16.msra.mxu0 0
        %1697 = vmatprep.subr.bf16.mxu0 0
        %1698 = vmatpush1.bf16.msra.mxu0 0
        %1699 = vmatprep.subr.bf16.mxu0 0
        %1700 = vmatpush1.bf16.msra.mxu0 0
        %1701 = vmatprep.subr.bf16.mxu0 0
        %1702 = vmatpush1.bf16.msra.mxu0 0
        %1703 = vmatprep.mubr.bf16.mxu0 0
        %1704 = vmatmul.mubr.bf16.gmra.mrb[0].mxu0 %v1582
        %v1705 = vpop.f32.mrb[0].mxu0
        %v1706 = vadd.f32 %v1621, %v1705
        %v1707 = vpop.f32.mrb[0].mxu0
        %v1708 = vpop.f32.mrb[0].mxu0
        %v1709 = vadd.f32 %v1621, %v1708
        %v1710 = vpop.f32.mrb[0].mxu0
        %1711 = vmatprep.mubr.bf16.mxu0 0
        %1712 = vmatmul.mubr.bf16.gmra.mrb[0].mxu0 %v1583
        %v1713 = vpop.f32.mrb[0].mxu0
        %v1714 = vadd.f32 %v1621, %v1713
        %v1715 = vpop.f32.mrb[0].mxu0
        %v1716 = vpop.f32.mrb[0].mxu0
        %v1717 = vadd.f32 %v1621, %v1716
        %v1718 = vpop.f32.mrb[0].mxu0
        %1719 = vmatprep.mubr.bf16.mxu0 0
        %1720 = vmatmul.mubr.bf16.gmra.mrb[0].mxu0 %v1584
        %v1721 = vpop.f32.mrb[0].mxu0
        %v1722 = vadd.f32 %v1621, %v1721
        %v1723 = vpop.f32.mrb[0].mxu0
        %v1724 = vpop.f32.mrb[0].mxu0
        %v1725 = vadd.f32 %v1621, %v1724
        %v1726 = vpop.f32.mrb[0].mxu0
        %1727 = vmatprep.mubr.bf16.mxu0 0
        %1728 = vmatmul.mubr.bf16.gmra.mrb[0].mxu0 %v1585
        %v1729 = vpop.f32.mrb[0].mxu0
        %v1730 = vadd.f32 %v1621, %v1729
        %v1731 = vpop.f32.mrb[0].mxu0
        %v1732 = vpop.f32.mrb[0].mxu0
        %v1733 = vadd.f32 %v1621, %v1732
        %v1734 = vpop.f32.mrb[0].mxu0
        %1735 = vmatprep.mubr.bf16.mxu0 0
        %1736 = vmatmul.mubr.bf16.gmra.mrb[0].mxu0 %v1586
        %v1737 = vpop.f32.mrb[0].mxu0
        %v1738 = vadd.f32 %v1621, %v1737
        %v1739 = vpop.f32.mrb[0].mxu0
        %v1740 = vpop.f32.mrb[0].mxu0
        %v1741 = vadd.f32 %v1621, %v1740
        %v1742 = vpop.f32.mrb[0].mxu0
        %1743 = vmatprep.mubr.bf16.mxu0 0
        %1744 = vmatmul.mubr.bf16.gmra.mrb[0].mxu0 %v1587
        %v1745 = vpop.f32.mrb[0].mxu0
        %v1746 = vadd.f32 %v1621, %v1745
        %v1747 = vpop.f32.mrb[0].mxu0
        %v1748 = vpop.f32.mrb[0].mxu0
        %v1749 = vadd.f32 %v1621, %v1748
        %v1750 = vpop.f32.mrb[0].mxu0
        %1751 = vmatprep.mubr.bf16.mxu0 0
        %1752 = vmatmul.mubr.bf16.gmra.mrb[0].mxu0 %v1588
        %v1753 = vpop.f32.mrb[0].mxu0
        %v1754 = vadd.f32 %v1621, %v1753
        %v1755 = vpop.f32.mrb[0].mxu0
        %v1756 = vpop.f32.mrb[0].mxu0
        %v1757 = vadd.f32 %v1621, %v1756
        %v1758 = vpop.f32.mrb[0].mxu0
        %1759 = vmatprep.mubr.bf16.mxu0 0
        %1760 = vmatmul.mubr.bf16.gmra.mrb[0].mxu0 %v1589
        %v1761 = vpop.f32.mrb[0].mxu0
        %v1762 = vadd.f32 %v1621, %v1761
        %v1763 = vpop.f32.mrb[0].mxu0
        %v1764 = vpop.f32.mrb[0].mxu0
        %v1765 = vadd.f32 %v1621, %v1764
        %v1766 = vpop.f32.mrb[0].mxu0
        %1767 = vmatprep.mubr.bf16.mxu0 0
        %1768 = vmatmul.mubr.bf16.gmra.mrb[0].mxu0 %v1590
        %v1769 = vpop.f32.mrb[0].mxu0
        %v1770 = vadd.f32 %v1621, %v1769
        %v1771 = vpop.f32.mrb[0].mxu0
        %v1772 = vpop.f32.mrb[0].mxu0
        %v1773 = vadd.f32 %v1621, %v1772
        %v1774 = vpop.f32.mrb[0].mxu0
        %1775 = vmatprep.mubr.bf16.mxu0 0
        %1776 = vmatmul.mubr.bf16.gmra.mrb[0].mxu0 %v1591
        %v1777 = vpop.f32.mrb[0].mxu0
        %v1778 = vadd.f32 %v1621, %v1777
        %v1779 = vpop.f32.mrb[0].mxu0
        %v1780 = vpop.f32.mrb[0].mxu0
        %v1781 = vadd.f32 %v1621, %v1780
        %v1782 = vpop.f32.mrb[0].mxu0
        %1783 = vmatprep.mubr.bf16.mxu0 0
        %1784 = vmatmul.mubr.bf16.gmra.mrb[0].mxu0 %v1592
        %v1785 = vpop.f32.mrb[0].mxu0
        %v1786 = vadd.f32 %v1621, %v1785
        %v1787 = vpop.f32.mrb[0].mxu0
        %v1788 = vpop.f32.mrb[0].mxu0
        %v1789 = vadd.f32 %v1621, %v1788
        %v1790 = vpop.f32.mrb[0].mxu0
        %1791 = vmatprep.mubr.bf16.mxu0 0
        %1792 = vmatmul.mubr.bf16.gmra.mrb[0].mxu0 %v1593
        %v1793 = vpop.f32.mrb[0].mxu0
        %v1794 = vadd.f32 %v1621, %v1793
        %v1795 = vpop.f32.mrb[0].mxu0
        %v1796 = vpop.f32.mrb[0].mxu0
        %v1797 = vadd.f32 %v1621, %v1796
        %v1798 = vpop.f32.mrb[0].mxu0
        %1799 = vmatprep.mubr.bf16.mxu0 0
        %1800 = vmatmul.mubr.bf16.gmra.mrb[0].mxu0 %v1594
        %v1801 = vpop.f32.mrb[0].mxu0
        %v1802 = vadd.f32 %v1621, %v1801
        %v1803 = vpop.f32.mrb[0].mxu0
        %v1804 = vpop.f32.mrb[0].mxu0
        %v1805 = vadd.f32 %v1621, %v1804
        %v1806 = vpop.f32.mrb[0].mxu0
        %1807 = vmatprep.mubr.bf16.mxu0 0
        %1808 = vmatmul.mubr.bf16.gmra.mrb[0].mxu0 %v1595
        %v1809 = vpop.f32.mrb[0].mxu0
        %v1810 = vadd.f32 %v1621, %v1809
        %v1811 = vpop.f32.mrb[0].mxu0
        %v1812 = vpop.f32.mrb[0].mxu0
        %v1813 = vadd.f32 %v1621, %v1812
        %v1814 = vpop.f32.mrb[0].mxu0
        %1815 = vmatprep.mubr.bf16.mxu0 0
        %1816 = vmatmul.mubr.bf16.gmra.mrb[0].mxu0 %v1596
        %v1817 = vpop.f32.mrb[0].mxu0
        %v1818 = vadd.f32 %v1621, %v1817
        %v1819 = vpop.f32.mrb[0].mxu0
        %v1820 = vpop.f32.mrb[0].mxu0
        %v1821 = vadd.f32 %v1621, %v1820
        %v1822 = vpop.f32.mrb[0].mxu0
        %1823 = vmatprep.mubr.bf16.mxu0 0
        %1824 = vmatmul.mubr.bf16.gmra.mrb[0].mxu0 %v1597
        %v1825 = vpop.f32.mrb[0].mxu0
        %v1826 = vadd.f32 %v1621, %v1825
        %v1827 = vpop.f32.mrb[0].mxu0
        %v1828 = vpop.f32.mrb[0].mxu0
        %v1829 = vadd.f32 %v1621, %v1828
        %v1830 = vpop.f32.mrb[0].mxu0
        %1831 = vdwg.mxu0
        %v1832 = vmax.f32 %v1706, 0.0
        %v1833 = vmax.f32 %v1709, 0.0
        %v1834 = vmax.f32 %v1714, 0.0
        %v1835 = vmax.f32 %v1717, 0.0
        %v1836 = vmax.f32 %v1722, 0.0
        %v1837 = vmax.f32 %v1725, 0.0
        %v1838 = vmax.f32 %v1730, 0.0
        %v1839 = vmax.f32 %v1733, 0.0
        %v1840 = vmax.f32 %v1738, 0.0
        %v1841 = vmax.f32 %v1741, 0.0
        %v1842 = vmax.f32 %v1746, 0.0
        %v1843 = vmax.f32 %v1749, 0.0
        %v1844 = vmax.f32 %v1754, 0.0
        %v1845 = vmax.f32 %v1757, 0.0
        %v1846 = vmax.f32 %v1762, 0.0
        %v1847 = vmax.f32 %v1765, 0.0
        %v1848 = vmax.f32 %v1770, 0.0
        %v1849 = vmax.f32 %v1773, 0.0
        %v1850 = vmax.f32 %v1778, 0.0
        %v1851 = vmax.f32 %v1781, 0.0
        %v1852 = vmax.f32 %v1786, 0.0
        %v1853 = vmax.f32 %v1789, 0.0
        %v1854 = vmax.f32 %v1794, 0.0
        %v1855 = vmax.f32 %v1797, 0.0
        %v1856 = vmax.f32 %v1802, 0.0
        %v1857 = vmax.f32 %v1805, 0.0
        %v1858 = vmax.f32 %v1810, 0.0
        %v1859 = vmax.f32 %v1813, 0.0
        %v1860 = vmax.f32 %v1818, 0.0
        %v1861 = vmax.f32 %v1821, 0.0
        %v1862 = vmax.f32 %v1826, 0.0
        %v1863 = vmax.f32 %v1829, 0.0
        %v1864 = vpack.c.bf16 %v1833, %v1832
        %v1865 = vpack.c.bf16 %v1835, %v1834
        %v1866 = vpack.c.bf16 %v1837, %v1836
        %v1867 = vpack.c.bf16 %v1839, %v1838
        %v1868 = vpack.c.bf16 %v1841, %v1840
        %v1869 = vpack.c.bf16 %v1843, %v1842
        %v1870 = vpack.c.bf16 %v1845, %v1844
        %v1871 = vpack.c.bf16 %v1847, %v1846
        %v1872 = vpack.c.bf16 %v1849, %v1848
        %v1873 = vpack.c.bf16 %v1851, %v1850
        %v1874 = vpack.c.bf16 %v1853, %v1852
        %v1875 = vpack.c.bf16 %v1855, %v1854
        %v1876 = vpack.c.bf16 %v1857, %v1856
        %v1877 = vpack.c.bf16 %v1859, %v1858
        %v1878 = vpack.c.bf16 %v1861, %v1860
        %v1879 = vpack.c.bf16 %v1863, %v1862
        %s1880 = scalar_lea.vmem [#allocation5], 256
        %v1881 = vld [vmem:[%s1880] sm:$0xf]
        %v1882 = vld [vmem:[%s1880 + $0x4] sm:$0xf]
        %v1883 = vld [vmem:[%s1880 + $0x8] sm:$0xf]
        %v1884 = vld [vmem:[%s1880 + $0xc] sm:$0xf]
        %v1885 = vld [vmem:[%s1880 + $0x10] sm:$0xf]
        %v1886 = vld [vmem:[%s1880 + $0x14] sm:$0xf]
        %v1887 = vld [vmem:[%s1880 + $0x18] sm:$0xf]
        %v1888 = vld [vmem:[%s1880 + $0x1c] sm:$0xf]
        %v1889 = vld [vmem:[%s1880 + $0x20] sm:$0xf]
        %v1890 = vld [vmem:[%s1880 + $0x24] sm:$0xf]
        %v1891 = vld [vmem:[%s1880 + $0x28] sm:$0xf]
        %v1892 = vld [vmem:[%s1880 + $0x2c] sm:$0xf]
        %v1893 = vld [vmem:[%s1880 + $0x30] sm:$0xf]
        %v1894 = vld [vmem:[%s1880 + $0x34] sm:$0xf]
        %v1895 = vld [vmem:[%s1880 + $0x38] sm:$0xf]
        %v1896 = vld [vmem:[%s1880 + $0x3c] sm:$0xf]
        %s1897 = scalar_lea.vmem [#allocation7], 4
        %v1898 = vld [vmem:[%s1897] sm:$0x1]
        %v1900 = vlaneseq
        %v1901 = vshrl.u32 %v1900, 7
        %v1902 = vsub.s32 0, %v1901
        %v1903 = vrot.slane %v1898, %v1902
        %v1921 = vunpack.c.l.b16 %v1881
        %v1922 = vunpack.c.l.b16 %v1882
        %v1923 = vunpack.c.l.b16 %v1883
        %v1924 = vunpack.c.l.b16 %v1884
        %v1925 = vunpack.c.l.b16 %v1885
        %v1926 = vunpack.c.l.b16 %v1886
        %v1927 = vunpack.c.l.b16 %v1887
        %v1928 = vunpack.c.l.b16 %v1888
        %v1929 = vunpack.c.l.b16 %v1889
        %v1930 = vunpack.c.l.b16 %v1890
        %v1931 = vunpack.c.l.b16 %v1891
        %v1932 = vunpack.c.l.b16 %v1892
        %v1933 = vunpack.c.l.b16 %v1893
        %v1934 = vunpack.c.l.b16 %v1894
        %v1935 = vunpack.c.l.b16 %v1895
        %v1936 = vunpack.c.l.b16 %v1896
        %v1937 = vpack.c.b16 %v1922, %v1921
        %v1938 = vpack.c.b16 %v1924, %v1923
        %v1939 = vpack.c.b16 %v1926, %v1925
        %v1940 = vpack.c.b16 %v1928, %v1927
        %v1941 = vpack.c.b16 %v1930, %v1929
        %v1942 = vpack.c.b16 %v1932, %v1931
        %v1943 = vpack.c.b16 %v1934, %v1933
        %v1944 = vpack.c.b16 %v1936, %v1935
        %1953 = vmatprep.subr.bf16.mxu0 0
        %1954 = vmatpush1.bf16.msra.mxu0 %v1937
        %1955 = vmatprep.subr.bf16.mxu0 0
        %1956 = vmatpush1.bf16.msra.mxu0 %v1938
        %1957 = vmatprep.subr.bf16.mxu0 0
        %1958 = vmatpush1.bf16.msra.mxu0 %v1939
        %1959 = vmatprep.subr.bf16.mxu0 0
        %1960 = vmatpush1.bf16.msra.mxu0 %v1940
        %1961 = vmatprep.subr.bf16.mxu0 0
        %1962 = vmatpush1.bf16.msra.mxu0 %v1941
        %1963 = vmatprep.subr.bf16.mxu0 0
        %1964 = vmatpush1.bf16.msra.mxu0 %v1942
        %1965 = vmatprep.subr.bf16.mxu0 0
        %1966 = vmatpush1.bf16.msra.mxu0 %v1943
        %1967 = vmatprep.subr.bf16.mxu0 0
        %1968 = vmatpush1.bf16.msra.mxu0 %v1944
        %1969 = vmatprep.subr.bf16.mxu0 0
        %1970 = vmatpush1.bf16.msra.mxu0 0
        %1971 = vmatprep.subr.bf16.mxu0 0
        %1972 = vmatpush1.bf16.msra.mxu0 0
        %1973 = vmatprep.subr.bf16.mxu0 0
        %1974 = vmatpush1.bf16.msra.mxu0 0
        %1975 = vmatprep.subr.bf16.mxu0 0
        %1976 = vmatpush1.bf16.msra.mxu0 0
        %1977 = vmatprep.subr.bf16.mxu0 0
        %1978 = vmatpush1.bf16.msra.mxu0 0
        %1979 = vmatprep.subr.bf16.mxu0 0
        %1980 = vmatpush1.bf16.msra.mxu0 0
        %1981 = vmatprep.subr.bf16.mxu0 0
        %1982 = vmatpush1.bf16.msra.mxu0 0
        %1983 = vmatprep.subr.bf16.mxu0 0
        %1984 = vmatpush1.bf16.msra.mxu0 0
        %1985 = vmatprep.mubr.bf16.mxu0 0
        %1986 = vmatmul.mubr.bf16.gmra.mrb[0].mxu0 %v1864
        %v1987 = vpop.f32.mrb[0].mxu0
        %v1988 = vadd.f32 %v1903, %v1987
        %v1989 = vpop.f32.mrb[0].mxu0
        %v1990 = vpop.f32.mrb[0].mxu0
        %v1991 = vadd.f32 %v1903, %v1990
        %v1992 = vpop.f32.mrb[0].mxu0
        %1993 = vmatprep.mubr.bf16.mxu0 0
        %1994 = vmatmul.mubr.bf16.gmra.mrb[0].mxu0 %v1865
        %v1995 = vpop.f32.mrb[0].mxu0
        %v1996 = vadd.f32 %v1903, %v1995
        %v1997 = vpop.f32.mrb[0].mxu0
        %v1998 = vpop.f32.mrb[0].mxu0
        %v1999 = vadd.f32 %v1903, %v1998
        %v2000 = vpop.f32.mrb[0].mxu0
        %2001 = vmatprep.mubr.bf16.mxu0 0
        %2002 = vmatmul.mubr.bf16.gmra.mrb[0].mxu0 %v1866
        %v2003 = vpop.f32.mrb[0].mxu0
        %v2004 = vadd.f32 %v1903, %v2003
        %v2005 = vpop.f32.mrb[0].mxu0
        %v2006 = vpop.f32.mrb[0].mxu0
        %v2007 = vadd.f32 %v1903, %v2006
        %v2008 = vpop.f32.mrb[0].mxu0
        %2009 = vmatprep.mubr.bf16.mxu0 0
        %2010 = vmatmul.mubr.bf16.gmra.mrb[0].mxu0 %v1867
        %v2011 = vpop.f32.mrb[0].mxu0
        %v2012 = vadd.f32 %v1903, %v2011
        %v2013 = vpop.f32.mrb[0].mxu0
        %v2014 = vpop.f32.mrb[0].mxu0
        %v2015 = vadd.f32 %v1903, %v2014
        %v2016 = vpop.f32.mrb[0].mxu0
        %2017 = vmatprep.mubr.bf16.mxu0 0
        %2018 = vmatmul.mubr.bf16.gmra.mrb[0].mxu0 %v1868
        %v2019 = vpop.f32.mrb[0].mxu0
        %v2020 = vadd.f32 %v1903, %v2019
        %v2021 = vpop.f32.mrb[0].mxu0
        %v2022 = vpop.f32.mrb[0].mxu0
        %v2023 = vadd.f32 %v1903, %v2022
        %v2024 = vpop.f32.mrb[0].mxu0
        %2025 = vmatprep.mubr.bf16.mxu0 0
        %2026 = vmatmul.mubr.bf16.gmra.mrb[0].mxu0 %v1869
        %v2027 = vpop.f32.mrb[0].mxu0
        %v2028 = vadd.f32 %v1903, %v2027
        %v2029 = vpop.f32.mrb[0].mxu0
        %v2030 = vpop.f32.mrb[0].mxu0
        %v2031 = vadd.f32 %v1903, %v2030
        %v2032 = vpop.f32.mrb[0].mxu0
        %2033 = vmatprep.mubr.bf16.mxu0 0
        %2034 = vmatmul.mubr.bf16.gmra.mrb[0].mxu0 %v1870
        %v2035 = vpop.f32.mrb[0].mxu0
        %v2036 = vadd.f32 %v1903, %v2035
        %v2037 = vpop.f32.mrb[0].mxu0
        %v2038 = vpop.f32.mrb[0].mxu0
        %v2039 = vadd.f32 %v1903, %v2038
        %v2040 = vpop.f32.mrb[0].mxu0
        %2041 = vmatprep.mubr.bf16.mxu0 0
        %2042 = vmatmul.mubr.bf16.gmra.mrb[0].mxu0 %v1871
        %v2043 = vpop.f32.mrb[0].mxu0
        %v2044 = vadd.f32 %v1903, %v2043
        %v2045 = vpop.f32.mrb[0].mxu0
        %v2046 = vpop.f32.mrb[0].mxu0
        %v2047 = vadd.f32 %v1903, %v2046
        %v2048 = vpop.f32.mrb[0].mxu0
        %2049 = vmatprep.mubr.bf16.mxu0 0
        %2050 = vmatmul.mubr.bf16.gmra.mrb[0].mxu0 %v1872
        %v2051 = vpop.f32.mrb[0].mxu0
        %v2052 = vadd.f32 %v1903, %v2051
        %v2053 = vpop.f32.mrb[0].mxu0
        %v2054 = vpop.f32.mrb[0].mxu0
        %v2055 = vadd.f32 %v1903, %v2054
        %v2056 = vpop.f32.mrb[0].mxu0
        %2057 = vmatprep.mubr.bf16.mxu0 0
        %2058 = vmatmul.mubr.bf16.gmra.mrb[0].mxu0 %v1873
        %v2059 = vpop.f32.mrb[0].mxu0
        %v2060 = vadd.f32 %v1903, %v2059
        %v2061 = vpop.f32.mrb[0].mxu0
        %v2062 = vpop.f32.mrb[0].mxu0
        %v2063 = vadd.f32 %v1903, %v2062
        %v2064 = vpop.f32.mrb[0].mxu0
        %2065 = vmatprep.mubr.bf16.mxu0 0
        %2066 = vmatmul.mubr.bf16.gmra.mrb[0].mxu0 %v1874
        %v2067 = vpop.f32.mrb[0].mxu0
        %v2068 = vadd.f32 %v1903, %v2067
        %v2069 = vpop.f32.mrb[0].mxu0
        %v2070 = vpop.f32.mrb[0].mxu0
        %v2071 = vadd.f32 %v1903, %v2070
        %v2072 = vpop.f32.mrb[0].mxu0
        %2073 = vmatprep.mubr.bf16.mxu0 0
        %2074 = vmatmul.mubr.bf16.gmra.mrb[0].mxu0 %v1875
        %v2075 = vpop.f32.mrb[0].mxu0
        %v2076 = vadd.f32 %v1903, %v2075
        %v2077 = vpop.f32.mrb[0].mxu0
        %v2078 = vpop.f32.mrb[0].mxu0
        %v2079 = vadd.f32 %v1903, %v2078
        %v2080 = vpop.f32.mrb[0].mxu0
        %2081 = vmatprep.mubr.bf16.mxu0 0
        %2082 = vmatmul.mubr.bf16.gmra.mrb[0].mxu0 %v1876
        %v2083 = vpop.f32.mrb[0].mxu0
        %v2084 = vadd.f32 %v1903, %v2083
        %v2085 = vpop.f32.mrb[0].mxu0
        %v2086 = vpop.f32.mrb[0].mxu0
        %v2087 = vadd.f32 %v1903, %v2086
        %v2088 = vpop.f32.mrb[0].mxu0
        %2089 = vmatprep.mubr.bf16.mxu0 0
        %2090 = vmatmul.mubr.bf16.gmra.mrb[0].mxu0 %v1877
        %v2091 = vpop.f32.mrb[0].mxu0
        %v2092 = vadd.f32 %v1903, %v2091
        %v2093 = vpop.f32.mrb[0].mxu0
        %v2094 = vpop.f32.mrb[0].mxu0
        %v2095 = vadd.f32 %v1903, %v2094
        %v2096 = vpop.f32.mrb[0].mxu0
        %2097 = vmatprep.mubr.bf16.mxu0 0
        %2098 = vmatmul.mubr.bf16.gmra.mrb[0].mxu0 %v1878
        %v2099 = vpop.f32.mrb[0].mxu0
        %v2100 = vadd.f32 %v1903, %v2099
        %v2101 = vpop.f32.mrb[0].mxu0
        %v2102 = vpop.f32.mrb[0].mxu0
        %v2103 = vadd.f32 %v1903, %v2102
        %v2104 = vpop.f32.mrb[0].mxu0
        %2105 = vmatprep.mubr.bf16.mxu0 0
        %2106 = vmatmul.mubr.bf16.gmra.mrb[0].mxu0 %v1879
        %v2107 = vpop.f32.mrb[0].mxu0
        %v2108 = vadd.f32 %v1903, %v2107
        %v2109 = vpop.f32.mrb[0].mxu0
        %v2110 = vpop.f32.mrb[0].mxu0
        %v2111 = vadd.f32 %v1903, %v2110
        %v2112 = vpop.f32.mrb[0].mxu0
        %2113 = vdwg.mxu0
        %v2114 = vmax.f32 %v1988, 0.0
        %v2115 = vmax.f32 %v1991, 0.0
        %v2116 = vmax.f32 %v1996, 0.0
        %v2117 = vmax.f32 %v1999, 0.0
        %v2118 = vmax.f32 %v2004, 0.0
        %v2119 = vmax.f32 %v2007, 0.0
        %v2120 = vmax.f32 %v2012, 0.0
        %v2121 = vmax.f32 %v2015, 0.0
        %v2122 = vmax.f32 %v2020, 0.0
        %v2123 = vmax.f32 %v2023, 0.0
        %v2124 = vmax.f32 %v2028, 0.0
        %v2125 = vmax.f32 %v2031, 0.0
        %v2126 = vmax.f32 %v2036, 0.0
        %v2127 = vmax.f32 %v2039, 0.0
        %v2128 = vmax.f32 %v2044, 0.0
        %v2129 = vmax.f32 %v2047, 0.0
        %v2130 = vmax.f32 %v2052, 0.0
        %v2131 = vmax.f32 %v2055, 0.0
        %v2132 = vmax.f32 %v2060, 0.0
        %v2133 = vmax.f32 %v2063, 0.0
        %v2134 = vmax.f32 %v2068, 0.0
        %v2135 = vmax.f32 %v2071, 0.0
        %v2136 = vmax.f32 %v2076, 0.0
        %v2137 = vmax.f32 %v2079, 0.0
        %v2138 = vmax.f32 %v2084, 0.0
        %v2139 = vmax.f32 %v2087, 0.0
        %v2140 = vmax.f32 %v2092, 0.0
        %v2141 = vmax.f32 %v2095, 0.0
        %v2142 = vmax.f32 %v2100, 0.0
        %v2143 = vmax.f32 %v2103, 0.0
        %v2144 = vmax.f32 %v2108, 0.0
        %v2145 = vmax.f32 %v2111, 0.0
        %v2146 = vpack.c.bf16 %v2115, %v2114
        %v2147 = vpack.c.bf16 %v2117, %v2116
        %v2148 = vpack.c.bf16 %v2119, %v2118
        %v2149 = vpack.c.bf16 %v2121, %v2120
        %v2150 = vpack.c.bf16 %v2123, %v2122
        %v2151 = vpack.c.bf16 %v2125, %v2124
        %v2152 = vpack.c.bf16 %v2127, %v2126
        %v2153 = vpack.c.bf16 %v2129, %v2128
        %v2154 = vpack.c.bf16 %v2131, %v2130
        %v2155 = vpack.c.bf16 %v2133, %v2132
        %v2156 = vpack.c.bf16 %v2135, %v2134
        %v2157 = vpack.c.bf16 %v2137, %v2136
        %v2158 = vpack.c.bf16 %v2139, %v2138
        %v2159 = vpack.c.bf16 %v2141, %v2140
        %v2160 = vpack.c.bf16 %v2143, %v2142
        %v2161 = vpack.c.bf16 %v2145, %v2144
        %s2162 = scalar_lea.vmem [#allocation5], 320
        %v2163 = vld [vmem:[%s2162] sm:$0xf]
        %v2164 = vld [vmem:[%s2162 + $0x4] sm:$0xf]
        %v2165 = vld [vmem:[%s2162 + $0x8] sm:$0xf]
        %v2166 = vld [vmem:[%s2162 + $0xc] sm:$0xf]
        %v2167 = vld [vmem:[%s2162 + $0x10] sm:$0xf]
        %v2168 = vld [vmem:[%s2162 + $0x14] sm:$0xf]
        %v2169 = vld [vmem:[%s2162 + $0x18] sm:$0xf]
        %v2170 = vld [vmem:[%s2162 + $0x1c] sm:$0xf]
        %v2171 = vld [vmem:[%s2162 + $0x20] sm:$0xf]
        %v2172 = vld [vmem:[%s2162 + $0x24] sm:$0xf]
        %v2173 = vld [vmem:[%s2162 + $0x28] sm:$0xf]
        %v2174 = vld [vmem:[%s2162 + $0x2c] sm:$0xf]
        %v2175 = vld [vmem:[%s2162 + $0x30] sm:$0xf]
        %v2176 = vld [vmem:[%s2162 + $0x34] sm:$0xf]
        %v2177 = vld [vmem:[%s2162 + $0x38] sm:$0xf]
        %v2178 = vld [vmem:[%s2162 + $0x3c] sm:$0xf]
        %s2179 = scalar_lea.vmem [#allocation7], 5
        %v2180 = vld [vmem:[%s2179] sm:$0x1]
        %v2182 = vlaneseq
        %v2183 = vshrl.u32 %v2182, 7
        %v2184 = vsub.s32 0, %v2183
        %v2185 = vrot.slane %v2180, %v2184
        %v2203 = vunpack.c.l.b16 %v2163
        %v2204 = vunpack.c.l.b16 %v2164
        %v2205 = vunpack.c.l.b16 %v2165
        %v2206 = vunpack.c.l.b16 %v2166
        %v2207 = vunpack.c.l.b16 %v2167
        %v2208 = vunpack.c.l.b16 %v2168
        %v2209 = vunpack.c.l.b16 %v2169
        %v2210 = vunpack.c.l.b16 %v2170
        %v2211 = vunpack.c.l.b16 %v2171
        %v2212 = vunpack.c.l.b16 %v2172
        %v2213 = vunpack.c.l.b16 %v2173
        %v2214 = vunpack.c.l.b16 %v2174
        %v2215 = vunpack.c.l.b16 %v2175
        %v2216 = vunpack.c.l.b16 %v2176
        %v2217 = vunpack.c.l.b16 %v2177
        %v2218 = vunpack.c.l.b16 %v2178
        %v2219 = vpack.c.b16 %v2204, %v2203
        %v2220 = vpack.c.b16 %v2206, %v2205
        %v2221 = vpack.c.b16 %v2208, %v2207
        %v2222 = vpack.c.b16 %v2210, %v2209
        %v2223 = vpack.c.b16 %v2212, %v2211
        %v2224 = vpack.c.b16 %v2214, %v2213
        %v2225 = vpack.c.b16 %v2216, %v2215
        %v2226 = vpack.c.b16 %v2218, %v2217
        %2235 = vmatprep.subr.bf16.mxu0 0
        %2236 = vmatpush1.bf16.msra.mxu0 %v2219
        %2237 = vmatprep.subr.bf16.mxu0 0
        %2238 = vmatpush1.bf16.msra.mxu0 %v2220
        %2239 = vmatprep.subr.bf16.mxu0 0
        %2240 = vmatpush1.bf16.msra.mxu0 %v2221
        %2241 = vmatprep.subr.bf16.mxu0 0
        %2242 = vmatpush1.bf16.msra.mxu0 %v2222
        %2243 = vmatprep.subr.bf16.mxu0 0
        %2244 = vmatpush1.bf16.msra.mxu0 %v2223
        %2245 = vmatprep.subr.bf16.mxu0 0
        %2246 = vmatpush1.bf16.msra.mxu0 %v2224
        %2247 = vmatprep.subr.bf16.mxu0 0
        %2248 = vmatpush1.bf16.msra.mxu0 %v2225
        %2249 = vmatprep.subr.bf16.mxu0 0
        %2250 = vmatpush1.bf16.msra.mxu0 %v2226
        %2251 = vmatprep.subr.bf16.mxu0 0
        %2252 = vmatpush1.bf16.msra.mxu0 0
        %2253 = vmatprep.subr.bf16.mxu0 0
        %2254 = vmatpush1.bf16.msra.mxu0 0
        %2255 = vmatprep.subr.bf16.mxu0 0
        %2256 = vmatpush1.bf16.msra.mxu0 0
        %2257 = vmatprep.subr.bf16.mxu0 0
        %2258 = vmatpush1.bf16.msra.mxu0 0
        %2259 = vmatprep.subr.bf16.mxu0 0
        %2260 = vmatpush1.bf16.msra.mxu0 0
        %2261 = vmatprep.subr.bf16.mxu0 0
        %2262 = vmatpush1.bf16.msra.mxu0 0
        %2263 = vmatprep.subr.bf16.mxu0 0
        %2264 = vmatpush1.bf16.msra.mxu0 0
        %2265 = vmatprep.subr.bf16.mxu0 0
        %2266 = vmatpush1.bf16.msra.mxu0 0
        %2267 = vmatprep.mubr.bf16.mxu0 0
        %2268 = vmatmul.mubr.bf16.gmra.mrb[0].mxu0 %v2146
        %v2269 = vpop.f32.mrb[0].mxu0
        %v2270 = vadd.f32 %v2185, %v2269
        %v2271 = vpop.f32.mrb[0].mxu0
        %v2272 = vpop.f32.mrb[0].mxu0
        %v2273 = vadd.f32 %v2185, %v2272
        %v2274 = vpop.f32.mrb[0].mxu0
        %2275 = vmatprep.mubr.bf16.mxu0 0
        %2276 = vmatmul.mubr.bf16.gmra.mrb[0].mxu0 %v2147
        %v2277 = vpop.f32.mrb[0].mxu0
        %v2278 = vadd.f32 %v2185, %v2277
        %v2279 = vpop.f32.mrb[0].mxu0
        %v2280 = vpop.f32.mrb[0].mxu0
        %v2281 = vadd.f32 %v2185, %v2280
        %v2282 = vpop.f32.mrb[0].mxu0
        %2283 = vmatprep.mubr.bf16.mxu0 0
        %2284 = vmatmul.mubr.bf16.gmra.mrb[0].mxu0 %v2148
        %v2285 = vpop.f32.mrb[0].mxu0
        %v2286 = vadd.f32 %v2185, %v2285
        %v2287 = vpop.f32.mrb[0].mxu0
        %v2288 = vpop.f32.mrb[0].mxu0
        %v2289 = vadd.f32 %v2185, %v2288
        %v2290 = vpop.f32.mrb[0].mxu0
        %2291 = vmatprep.mubr.bf16.mxu0 0
        %2292 = vmatmul.mubr.bf16.gmra.mrb[0].mxu0 %v2149
        %v2293 = vpop.f32.mrb[0].mxu0
        %v2294 = vadd.f32 %v2185, %v2293
        %v2295 = vpop.f32.mrb[0].mxu0
        %v2296 = vpop.f32.mrb[0].mxu0
        %v2297 = vadd.f32 %v2185, %v2296
        %v2298 = vpop.f32.mrb[0].mxu0
        %2299 = vmatprep.mubr.bf16.mxu0 0
        %2300 = vmatmul.mubr.bf16.gmra.mrb[0].mxu0 %v2150
        %v2301 = vpop.f32.mrb[0].mxu0
        %v2302 = vadd.f32 %v2185, %v2301
        %v2303 = vpop.f32.mrb[0].mxu0
        %v2304 = vpop.f32.mrb[0].mxu0
        %v2305 = vadd.f32 %v2185, %v2304
        %v2306 = vpop.f32.mrb[0].mxu0
        %2307 = vmatprep.mubr.bf16.mxu0 0
        %2308 = vmatmul.mubr.bf16.gmra.mrb[0].mxu0 %v2151
        %v2309 = vpop.f32.mrb[0].mxu0
        %v2310 = vadd.f32 %v2185, %v2309
        %v2311 = vpop.f32.mrb[0].mxu0
        %v2312 = vpop.f32.mrb[0].mxu0
        %v2313 = vadd.f32 %v2185, %v2312
        %v2314 = vpop.f32.mrb[0].mxu0
        %2315 = vmatprep.mubr.bf16.mxu0 0
        %2316 = vmatmul.mubr.bf16.gmra.mrb[0].mxu0 %v2152
        %v2317 = vpop.f32.mrb[0].mxu0
        %v2318 = vadd.f32 %v2185, %v2317
        %v2319 = vpop.f32.mrb[0].mxu0
        %v2320 = vpop.f32.mrb[0].mxu0
        %v2321 = vadd.f32 %v2185, %v2320
        %v2322 = vpop.f32.mrb[0].mxu0
        %2323 = vmatprep.mubr.bf16.mxu0 0
        %2324 = vmatmul.mubr.bf16.gmra.mrb[0].mxu0 %v2153
        %v2325 = vpop.f32.mrb[0].mxu0
        %v2326 = vadd.f32 %v2185, %v2325
        %v2327 = vpop.f32.mrb[0].mxu0
        %v2328 = vpop.f32.mrb[0].mxu0
        %v2329 = vadd.f32 %v2185, %v2328
        %v2330 = vpop.f32.mrb[0].mxu0
        %2331 = vmatprep.mubr.bf16.mxu0 0
        %2332 = vmatmul.mubr.bf16.gmra.mrb[0].mxu0 %v2154
        %v2333 = vpop.f32.mrb[0].mxu0
        %v2334 = vadd.f32 %v2185, %v2333
        %v2335 = vpop.f32.mrb[0].mxu0
        %v2336 = vpop.f32.mrb[0].mxu0
        %v2337 = vadd.f32 %v2185, %v2336
        %v2338 = vpop.f32.mrb[0].mxu0
        %2339 = vmatprep.mubr.bf16.mxu0 0
        %2340 = vmatmul.mubr.bf16.gmra.mrb[0].mxu0 %v2155
        %v2341 = vpop.f32.mrb[0].mxu0
        %v2342 = vadd.f32 %v2185, %v2341
        %v2343 = vpop.f32.mrb[0].mxu0
        %v2344 = vpop.f32.mrb[0].mxu0
        %v2345 = vadd.f32 %v2185, %v2344
        %v2346 = vpop.f32.mrb[0].mxu0
        %2347 = vmatprep.mubr.bf16.mxu0 0
        %2348 = vmatmul.mubr.bf16.gmra.mrb[0].mxu0 %v2156
        %v2349 = vpop.f32.mrb[0].mxu0
        %v2350 = vadd.f32 %v2185, %v2349
        %v2351 = vpop.f32.mrb[0].mxu0
        %v2352 = vpop.f32.mrb[0].mxu0
        %v2353 = vadd.f32 %v2185, %v2352
        %v2354 = vpop.f32.mrb[0].mxu0
        %2355 = vmatprep.mubr.bf16.mxu0 0
        %2356 = vmatmul.mubr.bf16.gmra.mrb[0].mxu0 %v2157
        %v2357 = vpop.f32.mrb[0].mxu0
        %v2358 = vadd.f32 %v2185, %v2357
        %v2359 = vpop.f32.mrb[0].mxu0
        %v2360 = vpop.f32.mrb[0].mxu0
        %v2361 = vadd.f32 %v2185, %v2360
        %v2362 = vpop.f32.mrb[0].mxu0
        %2363 = vmatprep.mubr.bf16.mxu0 0
        %2364 = vmatmul.mubr.bf16.gmra.mrb[0].mxu0 %v2158
        %v2365 = vpop.f32.mrb[0].mxu0
        %v2366 = vadd.f32 %v2185, %v2365
        %v2367 = vpop.f32.mrb[0].mxu0
        %v2368 = vpop.f32.mrb[0].mxu0
        %v2369 = vadd.f32 %v2185, %v2368
        %v2370 = vpop.f32.mrb[0].mxu0
        %2371 = vmatprep.mubr.bf16.mxu0 0
        %2372 = vmatmul.mubr.bf16.gmra.mrb[0].mxu0 %v2159
        %v2373 = vpop.f32.mrb[0].mxu0
        %v2374 = vadd.f32 %v2185, %v2373
        %v2375 = vpop.f32.mrb[0].mxu0
        %v2376 = vpop.f32.mrb[0].mxu0
        %v2377 = vadd.f32 %v2185, %v2376
        %v2378 = vpop.f32.mrb[0].mxu0
        %2379 = vmatprep.mubr.bf16.mxu0 0
        %2380 = vmatmul.mubr.bf16.gmra.mrb[0].mxu0 %v2160
        %v2381 = vpop.f32.mrb[0].mxu0
        %v2382 = vadd.f32 %v2185, %v2381
        %v2383 = vpop.f32.mrb[0].mxu0
        %v2384 = vpop.f32.mrb[0].mxu0
        %v2385 = vadd.f32 %v2185, %v2384
        %v2386 = vpop.f32.mrb[0].mxu0
        %2387 = vmatprep.mubr.bf16.mxu0 0
        %2388 = vmatmul.mubr.bf16.gmra.mrb[0].mxu0 %v2161
        %v2389 = vpop.f32.mrb[0].mxu0
        %v2390 = vadd.f32 %v2185, %v2389
        %v2391 = vpop.f32.mrb[0].mxu0
        %v2392 = vpop.f32.mrb[0].mxu0
        %v2393 = vadd.f32 %v2185, %v2392
        %v2394 = vpop.f32.mrb[0].mxu0
        %2395 = vdwg.mxu0
        %v2396 = vadd.f32 %v2270, %v1550
        %v2397 = vadd.f32 %v2273, %v1551
        %v2398 = vadd.f32 %v2278, %v1552
        %v2399 = vadd.f32 %v2281, %v1553
        %v2400 = vadd.f32 %v2286, %v1554
        %v2401 = vadd.f32 %v2289, %v1555
        %v2402 = vadd.f32 %v2294, %v1556
        %v2403 = vadd.f32 %v2297, %v1557
        %v2404 = vadd.f32 %v2302, %v1558
        %v2405 = vadd.f32 %v2305, %v1559
        %v2406 = vadd.f32 %v2310, %v1560
        %v2407 = vadd.f32 %v2313, %v1561
        %v2408 = vadd.f32 %v2318, %v1562
        %v2409 = vadd.f32 %v2321, %v1563
        %v2410 = vadd.f32 %v2326, %v1564
        %v2411 = vadd.f32 %v2329, %v1565
        %v2412 = vadd.f32 %v2334, %v1566
        %v2413 = vadd.f32 %v2337, %v1567
        %v2414 = vadd.f32 %v2342, %v1568
        %v2415 = vadd.f32 %v2345, %v1569
        %v2416 = vadd.f32 %v2350, %v1570
        %v2417 = vadd.f32 %v2353, %v1571
        %v2418 = vadd.f32 %v2358, %v1572
        %v2419 = vadd.f32 %v2361, %v1573
        %v2420 = vadd.f32 %v2366, %v1574
        %v2421 = vadd.f32 %v2369, %v1575
        %v2422 = vadd.f32 %v2374, %v1576
        %v2423 = vadd.f32 %v2377, %v1577
        %v2424 = vadd.f32 %v2382, %v1578
        %v2425 = vadd.f32 %v2385, %v1579
        %v2426 = vadd.f32 %v2390, %v1580
        %v2427 = vadd.f32 %v2393, %v1581
        %s2428 = scalar_lea.vmem %s3, 1
        %v2429 = vld [vmem:[%s2428] sm:$0x1]
        %s2430 = scalar_lea.vmem %s4, 1
        %v2431 = vld [vmem:[%s2430] sm:$0x1]
        %2432 = vadd.xlane.f32.xlu0 %v2396
        %v2433 = vpop.xlane.xlu0 %2432
        %2434 = vadd.xlane.f32.xlu0 %v2397
        %v2435 = vpop.xlane.xlu0 %2434
        %2436 = vadd.xlane.f32.xlu0 %v2398
        %v2437 = vpop.xlane.xlu0 %2436
        %2438 = vadd.xlane.f32.xlu0 %v2399
        %v2439 = vpop.xlane.xlu0 %2438
        %2440 = vadd.xlane.f32.xlu0 %v2400
        %v2441 = vpop.xlane.xlu0 %2440
        %2442 = vadd.xlane.f32.xlu0 %v2401
        %v2443 = vpop.xlane.xlu0 %2442
        %2444 = vadd.xlane.f32.xlu0 %v2402
        %v2445 = vpop.xlane.xlu0 %2444
        %2446 = vadd.xlane.f32.xlu0 %v2403
        %v2447 = vpop.xlane.xlu0 %2446
        %2448 = vadd.xlane.f32.xlu0 %v2404
        %v2449 = vpop.xlane.xlu0 %2448
        %2450 = vadd.xlane.f32.xlu0 %v2405
        %v2451 = vpop.xlane.xlu0 %2450
        %2452 = vadd.xlane.f32.xlu0 %v2406
        %v2453 = vpop.xlane.xlu0 %2452
        %2454 = vadd.xlane.f32.xlu0 %v2407
        %v2455 = vpop.xlane.xlu0 %2454
        %2456 = vadd.xlane.f32.xlu0 %v2408
        %v2457 = vpop.xlane.xlu0 %2456
        %2458 = vadd.xlane.f32.xlu0 %v2409
        %v2459 = vpop.xlane.xlu0 %2458
        %2460 = vadd.xlane.f32.xlu0 %v2410
        %v2461 = vpop.xlane.xlu0 %2460
        %2462 = vadd.xlane.f32.xlu0 %v2411
        %v2463 = vpop.xlane.xlu0 %2462
        %2464 = vadd.xlane.f32.xlu0 %v2412
        %v2465 = vpop.xlane.xlu0 %2464
        %2466 = vadd.xlane.f32.xlu0 %v2413
        %v2467 = vpop.xlane.xlu0 %2466
        %2468 = vadd.xlane.f32.xlu0 %v2414
        %v2469 = vpop.xlane.xlu0 %2468
        %2470 = vadd.xlane.f32.xlu0 %v2415
        %v2471 = vpop.xlane.xlu0 %2470
        %2472 = vadd.xlane.f32.xlu0 %v2416
        %v2473 = vpop.xlane.xlu0 %2472
        %2474 = vadd.xlane.f32.xlu0 %v2417
        %v2475 = vpop.xlane.xlu0 %2474
        %2476 = vadd.xlane.f32.xlu0 %v2418
        %v2477 = vpop.xlane.xlu0 %2476
        %2478 = vadd.xlane.f32.xlu0 %v2419
        %v2479 = vpop.xlane.xlu0 %2478
        %2480 = vadd.xlane.f32.xlu0 %v2420
        %v2481 = vpop.xlane.xlu0 %2480
        %2482 = vadd.xlane.f32.xlu0 %v2421
        %v2483 = vpop.xlane.xlu0 %2482
        %2484 = vadd.xlane.f32.xlu0 %v2422
        %v2485 = vpop.xlane.xlu0 %2484
        %2486 = vadd.xlane.f32.xlu0 %v2423
        %v2487 = vpop.xlane.xlu0 %2486
        %2488 = vadd.xlane.f32.xlu0 %v2424
        %v2489 = vpop.xlane.xlu0 %2488
        %2490 = vadd.xlane.f32.xlu0 %v2425
        %v2491 = vpop.xlane.xlu0 %2490
        %2492 = vadd.xlane.f32.xlu0 %v2426
        %v2493 = vpop.xlane.xlu0 %2492
        %2494 = vadd.xlane.f32.xlu0 %v2427
        %v2495 = vpop.xlane.xlu0 %2494
        %v2496 = vmul.f32 %v2433, %v1217
        %v2497 = vmul.f32 %v2435, %v1217
        %v2498 = vmul.f32 %v2437, %v1217
        %v2499 = vmul.f32 %v2439, %v1217
        %v2500 = vmul.f32 %v2441, %v1217
        %v2501 = vmul.f32 %v2443, %v1217
        %v2502 = vmul.f32 %v2445, %v1217
        %v2503 = vmul.f32 %v2447, %v1217
        %v2504 = vmul.f32 %v2449, %v1217
        %v2505 = vmul.f32 %v2451, %v1217
        %v2506 = vmul.f32 %v2453, %v1217
        %v2507 = vmul.f32 %v2455, %v1217
        %v2508 = vmul.f32 %v2457, %v1217
        %v2509 = vmul.f32 %v2459, %v1217
        %v2510 = vmul.f32 %v2461, %v1217
        %v2511 = vmul.f32 %v2463, %v1217
        %v2512 = vmul.f32 %v2465, %v1217
        %v2513 = vmul.f32 %v2467, %v1217
        %v2514 = vmul.f32 %v2469, %v1217
        %v2515 = vmul.f32 %v2471, %v1217
        %v2516 = vmul.f32 %v2473, %v1217
        %v2517 = vmul.f32 %v2475, %v1217
        %v2518 = vmul.f32 %v2477, %v1217
        %v2519 = vmul.f32 %v2479, %v1217
        %v2520 = vmul.f32 %v2481, %v1217
        %v2521 = vmul.f32 %v2483, %v1217
        %v2522 = vmul.f32 %v2485, %v1217
        %v2523 = vmul.f32 %v2487, %v1217
        %v2524 = vmul.f32 %v2489, %v1217
        %v2525 = vmul.f32 %v2491, %v1217
        %v2526 = vmul.f32 %v2493, %v1217
        %v2527 = vmul.f32 %v2495, %v1217
        %v2528 = vsub.f32 %v2396, %v2496
        %v2529 = vsub.f32 %v2397, %v2497
        %v2530 = vsub.f32 %v2398, %v2498
        %v2531 = vsub.f32 %v2399, %v2499
        %v2532 = vsub.f32 %v2400, %v2500
        %v2533 = vsub.f32 %v2401, %v2501
        %v2534 = vsub.f32 %v2402, %v2502
        %v2535 = vsub.f32 %v2403, %v2503
        %v2536 = vsub.f32 %v2404, %v2504
        %v2537 = vsub.f32 %v2405, %v2505
        %v2538 = vsub.f32 %v2406, %v2506
        %v2539 = vsub.f32 %v2407, %v2507
        %v2540 = vsub.f32 %v2408, %v2508
        %v2541 = vsub.f32 %v2409, %v2509
        %v2542 = vsub.f32 %v2410, %v2510
        %v2543 = vsub.f32 %v2411, %v2511
        %v2544 = vsub.f32 %v2412, %v2512
        %v2545 = vsub.f32 %v2413, %v2513
        %v2546 = vsub.f32 %v2414, %v2514
        %v2547 = vsub.f32 %v2415, %v2515
        %v2548 = vsub.f32 %v2416, %v2516
        %v2549 = vsub.f32 %v2417, %v2517
        %v2550 = vsub.f32 %v2418, %v2518
        %v2551 = vsub.f32 %v2419, %v2519
        %v2552 = vsub.f32 %v2420, %v2520
        %v2553 = vsub.f32 %v2421, %v2521
        %v2554 = vsub.f32 %v2422, %v2522
        %v2555 = vsub.f32 %v2423, %v2523
        %v2556 = vsub.f32 %v2424, %v2524
        %v2557 = vsub.f32 %v2425, %v2525
        %v2558 = vsub.f32 %v2426, %v2526
        %v2559 = vsub.f32 %v2427, %v2527
        %v2560 = vmul.f32 %v2528, %v2528
        %v2561 = vmul.f32 %v2529, %v2529
        %v2562 = vmul.f32 %v2530, %v2530
        %v2563 = vmul.f32 %v2531, %v2531
        %v2564 = vmul.f32 %v2532, %v2532
        %v2565 = vmul.f32 %v2533, %v2533
        %v2566 = vmul.f32 %v2534, %v2534
        %v2567 = vmul.f32 %v2535, %v2535
        %v2568 = vmul.f32 %v2536, %v2536
        %v2569 = vmul.f32 %v2537, %v2537
        %v2570 = vmul.f32 %v2538, %v2538
        %v2571 = vmul.f32 %v2539, %v2539
        %v2572 = vmul.f32 %v2540, %v2540
        %v2573 = vmul.f32 %v2541, %v2541
        %v2574 = vmul.f32 %v2542, %v2542
        %v2575 = vmul.f32 %v2543, %v2543
        %v2576 = vmul.f32 %v2544, %v2544
        %v2577 = vmul.f32 %v2545, %v2545
        %v2578 = vmul.f32 %v2546, %v2546
        %v2579 = vmul.f32 %v2547, %v2547
        %v2580 = vmul.f32 %v2548, %v2548
        %v2581 = vmul.f32 %v2549, %v2549
        %v2582 = vmul.f32 %v2550, %v2550
        %v2583 = vmul.f32 %v2551, %v2551
        %v2584 = vmul.f32 %v2552, %v2552
        %v2585 = vmul.f32 %v2553, %v2553
        %v2586 = vmul.f32 %v2554, %v2554
        %v2587 = vmul.f32 %v2555, %v2555
        %v2588 = vmul.f32 %v2556, %v2556
        %v2589 = vmul.f32 %v2557, %v2557
        %v2590 = vmul.f32 %v2558, %v2558
        %v2591 = vmul.f32 %v2559, %v2559
        %2592 = vadd.xlane.f32.xlu0 %v2560
        %v2593 = vpop.xlane.xlu0 %2592
        %2594 = vadd.xlane.f32.xlu0 %v2561
        %v2595 = vpop.xlane.xlu0 %2594
        %2596 = vadd.xlane.f32.xlu0 %v2562
        %v2597 = vpop.xlane.xlu0 %2596
        %2598 = vadd.xlane.f32.xlu0 %v2563
        %v2599 = vpop.xlane.xlu0 %2598
        %2600 = vadd.xlane.f32.xlu0 %v2564
        %v2601 = vpop.xlane.xlu0 %2600
        %2602 = vadd.xlane.f32.xlu0 %v2565
        %v2603 = vpop.xlane.xlu0 %2602
        %2604 = vadd.xlane.f32.xlu0 %v2566
        %v2605 = vpop.xlane.xlu0 %2604
        %2606 = vadd.xlane.f32.xlu0 %v2567
        %v2607 = vpop.xlane.xlu0 %2606
        %2608 = vadd.xlane.f32.xlu0 %v2568
        %v2609 = vpop.xlane.xlu0 %2608
        %2610 = vadd.xlane.f32.xlu0 %v2569
        %v2611 = vpop.xlane.xlu0 %2610
        %2612 = vadd.xlane.f32.xlu0 %v2570
        %v2613 = vpop.xlane.xlu0 %2612
        %2614 = vadd.xlane.f32.xlu0 %v2571
        %v2615 = vpop.xlane.xlu0 %2614
        %2616 = vadd.xlane.f32.xlu0 %v2572
        %v2617 = vpop.xlane.xlu0 %2616
        %2618 = vadd.xlane.f32.xlu0 %v2573
        %v2619 = vpop.xlane.xlu0 %2618
        %2620 = vadd.xlane.f32.xlu0 %v2574
        %v2621 = vpop.xlane.xlu0 %2620
        %2622 = vadd.xlane.f32.xlu0 %v2575
        %v2623 = vpop.xlane.xlu0 %2622
        %2624 = vadd.xlane.f32.xlu0 %v2576
        %v2625 = vpop.xlane.xlu0 %2624
        %2626 = vadd.xlane.f32.xlu0 %v2577
        %v2627 = vpop.xlane.xlu0 %2626
        %2628 = vadd.xlane.f32.xlu0 %v2578
        %v2629 = vpop.xlane.xlu0 %2628
        %2630 = vadd.xlane.f32.xlu0 %v2579
        %v2631 = vpop.xlane.xlu0 %2630
        %2632 = vadd.xlane.f32.xlu0 %v2580
        %v2633 = vpop.xlane.xlu0 %2632
        %2634 = vadd.xlane.f32.xlu0 %v2581
        %v2635 = vpop.xlane.xlu0 %2634
        %2636 = vadd.xlane.f32.xlu0 %v2582
        %v2637 = vpop.xlane.xlu0 %2636
        %2638 = vadd.xlane.f32.xlu0 %v2583
        %v2639 = vpop.xlane.xlu0 %2638
        %2640 = vadd.xlane.f32.xlu0 %v2584
        %v2641 = vpop.xlane.xlu0 %2640
        %2642 = vadd.xlane.f32.xlu0 %v2585
        %v2643 = vpop.xlane.xlu0 %2642
        %2644 = vadd.xlane.f32.xlu0 %v2586
        %v2645 = vpop.xlane.xlu0 %2644
        %2646 = vadd.xlane.f32.xlu0 %v2587
        %v2647 = vpop.xlane.xlu0 %2646
        %2648 = vadd.xlane.f32.xlu0 %v2588
        %v2649 = vpop.xlane.xlu0 %2648
        %2650 = vadd.xlane.f32.xlu0 %v2589
        %v2651 = vpop.xlane.xlu0 %2650
        %2652 = vadd.xlane.f32.xlu0 %v2590
        %v2653 = vpop.xlane.xlu0 %2652
        %2654 = vadd.xlane.f32.xlu0 %v2591
        %v2655 = vpop.xlane.xlu0 %2654
        %v2656 = vmul.f32 %v2593, %v1217
        %v2657 = vmul.f32 %v2595, %v1217
        %v2658 = vmul.f32 %v2597, %v1217
        %v2659 = vmul.f32 %v2599, %v1217
        %v2660 = vmul.f32 %v2601, %v1217
        %v2661 = vmul.f32 %v2603, %v1217
        %v2662 = vmul.f32 %v2605, %v1217
        %v2663 = vmul.f32 %v2607, %v1217
        %v2664 = vmul.f32 %v2609, %v1217
        %v2665 = vmul.f32 %v2611, %v1217
        %v2666 = vmul.f32 %v2613, %v1217
        %v2667 = vmul.f32 %v2615, %v1217
        %v2668 = vmul.f32 %v2617, %v1217
        %v2669 = vmul.f32 %v2619, %v1217
        %v2670 = vmul.f32 %v2621, %v1217
        %v2671 = vmul.f32 %v2623, %v1217
        %v2672 = vmul.f32 %v2625, %v1217
        %v2673 = vmul.f32 %v2627, %v1217
        %v2674 = vmul.f32 %v2629, %v1217
        %v2675 = vmul.f32 %v2631, %v1217
        %v2676 = vmul.f32 %v2633, %v1217
        %v2677 = vmul.f32 %v2635, %v1217
        %v2678 = vmul.f32 %v2637, %v1217
        %v2679 = vmul.f32 %v2639, %v1217
        %v2680 = vmul.f32 %v2641, %v1217
        %v2681 = vmul.f32 %v2643, %v1217
        %v2682 = vmul.f32 %v2645, %v1217
        %v2683 = vmul.f32 %v2647, %v1217
        %v2684 = vmul.f32 %v2649, %v1217
        %v2685 = vmul.f32 %v2651, %v1217
        %v2686 = vmul.f32 %v2653, %v1217
        %v2687 = vmul.f32 %v2655, %v1217
        %v2688 = vadd.f32 %v2656, 1e-05
        %v2689 = vadd.f32 %v2657, 1e-05
        %v2690 = vadd.f32 %v2658, 1e-05
        %v2691 = vadd.f32 %v2659, 1e-05
        %v2692 = vadd.f32 %v2660, 1e-05
        %v2693 = vadd.f32 %v2661, 1e-05
        %v2694 = vadd.f32 %v2662, 1e-05
        %v2695 = vadd.f32 %v2663, 1e-05
        %v2696 = vadd.f32 %v2664, 1e-05
        %v2697 = vadd.f32 %v2665, 1e-05
        %v2698 = vadd.f32 %v2666, 1e-05
        %v2699 = vadd.f32 %v2667, 1e-05
        %v2700 = vadd.f32 %v2668, 1e-05
        %v2701 = vadd.f32 %v2669, 1e-05
        %v2702 = vadd.f32 %v2670, 1e-05
        %v2703 = vadd.f32 %v2671, 1e-05
        %v2704 = vadd.f32 %v2672, 1e-05
        %v2705 = vadd.f32 %v2673, 1e-05
        %v2706 = vadd.f32 %v2674, 1e-05
        %v2707 = vadd.f32 %v2675, 1e-05
        %v2708 = vadd.f32 %v2676, 1e-05
        %v2709 = vadd.f32 %v2677, 1e-05
        %v2710 = vadd.f32 %v2678, 1e-05
        %v2711 = vadd.f32 %v2679, 1e-05
        %v2712 = vadd.f32 %v2680, 1e-05
        %v2713 = vadd.f32 %v2681, 1e-05
        %v2714 = vadd.f32 %v2682, 1e-05
        %v2715 = vadd.f32 %v2683, 1e-05
        %v2716 = vadd.f32 %v2684, 1e-05
        %v2717 = vadd.f32 %v2685, 1e-05
        %v2718 = vadd.f32 %v2686, 1e-05
        %v2719 = vadd.f32 %v2687, 1e-05
        %v2720 = vrsqrt.pop %v2688
        %v2721 = vrsqrt.pop %v2689
        %v2722 = vrsqrt.pop %v2690
        %v2723 = vrsqrt.pop %v2691
        %v2724 = vrsqrt.pop %v2692
        %v2725 = vrsqrt.pop %v2693
        %v2726 = vrsqrt.pop %v2694
        %v2727 = vrsqrt.pop %v2695
        %v2728 = vrsqrt.pop %v2696
        %v2729 = vrsqrt.pop %v2697
        %v2730 = vrsqrt.pop %v2698
        %v2731 = vrsqrt.pop %v2699
        %v2732 = vrsqrt.pop %v2700
        %v2733 = vrsqrt.pop %v2701
        %v2734 = vrsqrt.pop %v2702
        %v2735 = vrsqrt.pop %v2703
        %v2736 = vrsqrt.pop %v2704
        %v2737 = vrsqrt.pop %v2705
        %v2738 = vrsqrt.pop %v2706
        %v2739 = vrsqrt.pop %v2707
        %v2740 = vrsqrt.pop %v2708
        %v2741 = vrsqrt.pop %v2709
        %v2742 = vrsqrt.pop %v2710
        %v2743 = vrsqrt.pop %v2711
        %v2744 = vrsqrt.pop %v2712
        %v2745 = vrsqrt.pop %v2713
        %v2746 = vrsqrt.pop %v2714
        %v2747 = vrsqrt.pop %v2715
        %v2748 = vrsqrt.pop %v2716
        %v2749 = vrsqrt.pop %v2717
        %v2750 = vrsqrt.pop %v2718
        %v2751 = vrsqrt.pop %v2719
        %v2752 = vmul.f32 %v2528, %v2720
        %v2753 = vmul.f32 %v2529, %v2721
        %v2754 = vmul.f32 %v2530, %v2722
        %v2755 = vmul.f32 %v2531, %v2723
        %v2756 = vmul.f32 %v2532, %v2724
        %v2757 = vmul.f32 %v2533, %v2725
        %v2758 = vmul.f32 %v2534, %v2726
        %v2759 = vmul.f32 %v2535, %v2727
        %v2760 = vmul.f32 %v2536, %v2728
        %v2761 = vmul.f32 %v2537, %v2729
        %v2762 = vmul.f32 %v2538, %v2730
        %v2763 = vmul.f32 %v2539, %v2731
        %v2764 = vmul.f32 %v2540, %v2732
        %v2765 = vmul.f32 %v2541, %v2733
        %v2766 = vmul.f32 %v2542, %v2734
        %v2767 = vmul.f32 %v2543, %v2735
        %v2768 = vmul.f32 %v2544, %v2736
        %v2769 = vmul.f32 %v2545, %v2737
        %v2770 = vmul.f32 %v2546, %v2738
        %v2771 = vmul.f32 %v2547, %v2739
        %v2772 = vmul.f32 %v2548, %v2740
        %v2773 = vmul.f32 %v2549, %v2741
        %v2774 = vmul.f32 %v2550, %v2742
        %v2775 = vmul.f32 %v2551, %v2743
        %v2776 = vmul.f32 %v2552, %v2744
        %v2777 = vmul.f32 %v2553, %v2745
        %v2778 = vmul.f32 %v2554, %v2746
        %v2779 = vmul.f32 %v2555, %v2747
        %v2780 = vmul.f32 %v2556, %v2748
        %v2781 = vmul.f32 %v2557, %v2749
        %v2782 = vmul.f32 %v2558, %v2750
        %v2783 = vmul.f32 %v2559, %v2751
        %v2785 = vlaneseq
        %v2786 = vshrl.u32 %v2785, 7
        %v2787 = vsub.s32 0, %v2786
        %v2788 = vrot.slane %v2429, %v2787
        %v2790 = vmul.f32 %v2752, %v2788
        %v2791 = vmul.f32 %v2753, %v2788
        %v2792 = vmul.f32 %v2754, %v2788
        %v2793 = vmul.f32 %v2755, %v2788
        %v2794 = vmul.f32 %v2756, %v2788
        %v2795 = vmul.f32 %v2757, %v2788
        %v2796 = vmul.f32 %v2758, %v2788
        %v2797 = vmul.f32 %v2759, %v2788
        %v2798 = vmul.f32 %v2760, %v2788
        %v2799 = vmul.f32 %v2761, %v2788
        %v2800 = vmul.f32 %v2762, %v2788
        %v2801 = vmul.f32 %v2763, %v2788
        %v2802 = vmul.f32 %v2764, %v2788
        %v2803 = vmul.f32 %v2765, %v2788
        %v2804 = vmul.f32 %v2766, %v2788
        %v2805 = vmul.f32 %v2767, %v2788
        %v2806 = vmul.f32 %v2768, %v2788
        %v2807 = vmul.f32 %v2769, %v2788
        %v2808 = vmul.f32 %v2770, %v2788
        %v2809 = vmul.f32 %v2771, %v2788
        %v2810 = vmul.f32 %v2772, %v2788
        %v2811 = vmul.f32 %v2773, %v2788
        %v2812 = vmul.f32 %v2774, %v2788
        %v2813 = vmul.f32 %v2775, %v2788
        %v2814 = vmul.f32 %v2776, %v2788
        %v2815 = vmul.f32 %v2777, %v2788
        %v2816 = vmul.f32 %v2778, %v2788
        %v2817 = vmul.f32 %v2779, %v2788
        %v2818 = vmul.f32 %v2780, %v2788
        %v2819 = vmul.f32 %v2781, %v2788
        %v2820 = vmul.f32 %v2782, %v2788
        %v2821 = vmul.f32 %v2783, %v2788
        %v2823 = vlaneseq
        %v2824 = vshrl.u32 %v2823, 7
        %v2825 = vsub.s32 0, %v2824
        %v2826 = vrot.slane %v2431, %v2825
        %v2828 = vadd.f32 %v2790, %v2826
        %v2829 = vadd.f32 %v2791, %v2826
        %v2830 = vadd.f32 %v2792, %v2826
        %v2831 = vadd.f32 %v2793, %v2826
        %v2832 = vadd.f32 %v2794, %v2826
        %v2833 = vadd.f32 %v2795, %v2826
        %v2834 = vadd.f32 %v2796, %v2826
        %v2835 = vadd.f32 %v2797, %v2826
        %v2836 = vadd.f32 %v2798, %v2826
        %v2837 = vadd.f32 %v2799, %v2826
        %v2838 = vadd.f32 %v2800, %v2826
        %v2839 = vadd.f32 %v2801, %v2826
        %v2840 = vadd.f32 %v2802, %v2826
        %v2841 = vadd.f32 %v2803, %v2826
        %v2842 = vadd.f32 %v2804, %v2826
        %v2843 = vadd.f32 %v2805, %v2826
        %v2844 = vadd.f32 %v2806, %v2826
        %v2845 = vadd.f32 %v2807, %v2826
        %v2846 = vadd.f32 %v2808, %v2826
        %v2847 = vadd.f32 %v2809, %v2826
        %v2848 = vadd.f32 %v2810, %v2826
        %v2849 = vadd.f32 %v2811, %v2826
        %v2850 = vadd.f32 %v2812, %v2826
        %v2851 = vadd.f32 %v2813, %v2826
        %v2852 = vadd.f32 %v2814, %v2826
        %v2853 = vadd.f32 %v2815, %v2826
        %v2854 = vadd.f32 %v2816, %v2826
        %v2855 = vadd.f32 %v2817, %v2826
        %v2856 = vadd.f32 %v2818, %v2826
        %v2857 = vadd.f32 %v2819, %v2826
        %v2858 = vadd.f32 %v2820, %v2826
        %v2859 = vadd.f32 %v2821, %v2826
        %v2860 = vpack.c.bf16 %v2829, %v2828
        %v2861 = vpack.c.bf16 %v2831, %v2830
        %v2862 = vpack.c.bf16 %v2833, %v2832
        %v2863 = vpack.c.bf16 %v2835, %v2834
        %v2864 = vpack.c.bf16 %v2837, %v2836
        %v2865 = vpack.c.bf16 %v2839, %v2838
        %v2866 = vpack.c.bf16 %v2841, %v2840
        %v2867 = vpack.c.bf16 %v2843, %v2842
        %v2868 = vpack.c.bf16 %v2845, %v2844
        %v2869 = vpack.c.bf16 %v2847, %v2846
        %v2870 = vpack.c.bf16 %v2849, %v2848
        %v2871 = vpack.c.bf16 %v2851, %v2850
        %v2872 = vpack.c.bf16 %v2853, %v2852
        %v2873 = vpack.c.bf16 %v2855, %v2854
        %v2874 = vpack.c.bf16 %v2857, %v2856
        %v2875 = vpack.c.bf16 %v2859, %v2858
        %s2876 = scalar_lea.vmem [#allocation5], 384
        %v2877 = vld [vmem:[%s2876] sm:$0xf]
        %v2878 = vld [vmem:[%s2876 + $0x4] sm:$0xf]
        %v2879 = vld [vmem:[%s2876 + $0x8] sm:$0xf]
        %v2880 = vld [vmem:[%s2876 + $0xc] sm:$0xf]
        %v2881 = vld [vmem:[%s2876 + $0x10] sm:$0xf]
        %v2882 = vld [vmem:[%s2876 + $0x14] sm:$0xf]
        %v2883 = vld [vmem:[%s2876 + $0x18] sm:$0xf]
        %v2884 = vld [vmem:[%s2876 + $0x1c] sm:$0xf]
        %v2885 = vld [vmem:[%s2876 + $0x20] sm:$0xf]
        %v2886 = vld [vmem:[%s2876 + $0x24] sm:$0xf]
        %v2887 = vld [vmem:[%s2876 + $0x28] sm:$0xf]
        %v2888 = vld [vmem:[%s2876 + $0x2c] sm:$0xf]
        %v2889 = vld [vmem:[%s2876 + $0x30] sm:$0xf]
        %v2890 = vld [vmem:[%s2876 + $0x34] sm:$0xf]
        %v2891 = vld [vmem:[%s2876 + $0x38] sm:$0xf]
        %v2892 = vld [vmem:[%s2876 + $0x3c] sm:$0xf]
        %s2893 = scalar_lea.vmem [#allocation7], 6
        %v2894 = vld [vmem:[%s2893] sm:$0x1]
        %v2896 = vlaneseq
        %v2897 = vshrl.u32 %v2896, 7
        %v2898 = vsub.s32 0, %v2897
        %v2899 = vrot.slane %v2894, %v2898
        %v2917 = vunpack.c.l.b16 %v2877
        %v2918 = vunpack.c.l.b16 %v2878
        %v2919 = vunpack.c.l.b16 %v2879
        %v2920 = vunpack.c.l.b16 %v2880
        %v2921 = vunpack.c.l.b16 %v2881
        %v2922 = vunpack.c.l.b16 %v2882
        %v2923 = vunpack.c.l.b16 %v2883
        %v2924 = vunpack.c.l.b16 %v2884
        %v2925 = vunpack.c.l.b16 %v2885
        %v2926 = vunpack.c.l.b16 %v2886
        %v2927 = vunpack.c.l.b16 %v2887
        %v2928 = vunpack.c.l.b16 %v2888
        %v2929 = vunpack.c.l.b16 %v2889
        %v2930 = vunpack.c.l.b16 %v2890
        %v2931 = vunpack.c.l.b16 %v2891
        %v2932 = vunpack.c.l.b16 %v2892
        %v2933 = vpack.c.b16 %v2918, %v2917
        %v2934 = vpack.c.b16 %v2920, %v2919
        %v2935 = vpack.c.b16 %v2922, %v2921
        %v2936 = vpack.c.b16 %v2924, %v2923
        %v2937 = vpack.c.b16 %v2926, %v2925
        %v2938 = vpack.c.b16 %v2928, %v2927
        %v2939 = vpack.c.b16 %v2930, %v2929
        %v2940 = vpack.c.b16 %v2932, %v2931
        %2949 = vmatprep.subr.bf16.mxu0 0
        %2950 = vmatpush1.bf16.msra.mxu0 %v2933
        %2951 = vmatprep.subr.bf16.mxu0 0
        %2952 = vmatpush1.bf16.msra.mxu0 %v2934
        %2953 = vmatprep.subr.bf16.mxu0 0
        %2954 = vmatpush1.bf16.msra.mxu0 %v2935
        %2955 = vmatprep.subr.bf16.mxu0 0
        %2956 = vmatpush1.bf16.msra.mxu0 %v2936
        %2957 = vmatprep.subr.bf16.mxu0 0
        %2958 = vmatpush1.bf16.msra.mxu0 %v2937
        %2959 = vmatprep.subr.bf16.mxu0 0
        %2960 = vmatpush1.bf16.msra.mxu0 %v2938
        %2961 = vmatprep.subr.bf16.mxu0 0
        %2962 = vmatpush1.bf16.msra.mxu0 %v2939
        %2963 = vmatprep.subr.bf16.mxu0 0
        %2964 = vmatpush1.bf16.msra.mxu0 %v2940
        %2965 = vmatprep.subr.bf16.mxu0 0
        %2966 = vmatpush1.bf16.msra.mxu0 0
        %2967 = vmatprep.subr.bf16.mxu0 0
        %2968 = vmatpush1.bf16.msra.mxu0 0
        %2969 = vmatprep.subr.bf16.mxu0 0
        %2970 = vmatpush1.bf16.msra.mxu0 0
        %2971 = vmatprep.subr.bf16.mxu0 0
        %2972 = vmatpush1.bf16.msra.mxu0 0
        %2973 = vmatprep.subr.bf16.mxu0 0
        %2974 = vmatpush1.bf16.msra.mxu0 0
        %2975 = vmatprep.subr.bf16.mxu0 0
        %2976 = vmatpush1.bf16.msra.mxu0 0
        %2977 = vmatprep.subr.bf16.mxu0 0
        %2978 = vmatpush1.bf16.msra.mxu0 0
        %2979 = vmatprep.subr.bf16.mxu0 0
        %2980 = vmatpush1.bf16.msra.mxu0 0
        %2981 = vmatprep.mubr.bf16.mxu0 0
        %2982 = vmatmul.mubr.bf16.gmra.mrb[0].mxu0 %v2860
        %v2983 = vpop.f32.mrb[0].mxu0
        %v2984 = vadd.f32 %v2899, %v2983
        %v2985 = vpop.f32.mrb[0].mxu0
        %v2986 = vpop.f32.mrb[0].mxu0
        %v2987 = vadd.f32 %v2899, %v2986
        %v2988 = vpop.f32.mrb[0].mxu0
        %2989 = vmatprep.mubr.bf16.mxu0 0
        %2990 = vmatmul.mubr.bf16.gmra.mrb[0].mxu0 %v2861
        %v2991 = vpop.f32.mrb[0].mxu0
        %v2992 = vadd.f32 %v2899, %v2991
        %v2993 = vpop.f32.mrb[0].mxu0
        %v2994 = vpop.f32.mrb[0].mxu0
        %v2995 = vadd.f32 %v2899, %v2994
        %v2996 = vpop.f32.mrb[0].mxu0
        %2997 = vmatprep.mubr.bf16.mxu0 0
        %2998 = vmatmul.mubr.bf16.gmra.mrb[0].mxu0 %v2862
        %v2999 = vpop.f32.mrb[0].mxu0
        %v3000 = vadd.f32 %v2899, %v2999
        %v3001 = vpop.f32.mrb[0].mxu0
        %v3002 = vpop.f32.mrb[0].mxu0
        %v3003 = vadd.f32 %v2899, %v3002
        %v3004 = vpop.f32.mrb[0].mxu0
        %3005 = vmatprep.mubr.bf16.mxu0 0
        %3006 = vmatmul.mubr.bf16.gmra.mrb[0].mxu0 %v2863
        %v3007 = vpop.f32.mrb[0].mxu0
        %v3008 = vadd.f32 %v2899, %v3007
        %v3009 = vpop.f32.mrb[0].mxu0
        %v3010 = vpop.f32.mrb[0].mxu0
        %v3011 = vadd.f32 %v2899, %v3010
        %v3012 = vpop.f32.mrb[0].mxu0
        %3013 = vmatprep.mubr.bf16.mxu0 0
        %3014 = vmatmul.mubr.bf16.gmra.mrb[0].mxu0 %v2864
        %v3015 = vpop.f32.mrb[0].mxu0
        %v3016 = vadd.f32 %v2899, %v3015
        %v3017 = vpop.f32.mrb[0].mxu0
        %v3018 = vpop.f32.mrb[0].mxu0
        %v3019 = vadd.f32 %v2899, %v3018
        %v3020 = vpop.f32.mrb[0].mxu0
        %3021 = vmatprep.mubr.bf16.mxu0 0
        %3022 = vmatmul.mubr.bf16.gmra.mrb[0].mxu0 %v2865
        %v3023 = vpop.f32.mrb[0].mxu0
        %v3024 = vadd.f32 %v2899, %v3023
        %v3025 = vpop.f32.mrb[0].mxu0
        %v3026 = vpop.f32.mrb[0].mxu0
        %v3027 = vadd.f32 %v2899, %v3026
        %v3028 = vpop.f32.mrb[0].mxu0
        %3029 = vmatprep.mubr.bf16.mxu0 0
        %3030 = vmatmul.mubr.bf16.gmra.mrb[0].mxu0 %v2866
        %v3031 = vpop.f32.mrb[0].mxu0
        %v3032 = vadd.f32 %v2899, %v3031
        %v3033 = vpop.f32.mrb[0].mxu0
        %v3034 = vpop.f32.mrb[0].mxu0
        %v3035 = vadd.f32 %v2899, %v3034
        %v3036 = vpop.f32.mrb[0].mxu0
        %3037 = vmatprep.mubr.bf16.mxu0 0
        %3038 = vmatmul.mubr.bf16.gmra.mrb[0].mxu0 %v2867
        %v3039 = vpop.f32.mrb[0].mxu0
        %v3040 = vadd.f32 %v2899, %v3039
        %v3041 = vpop.f32.mrb[0].mxu0
        %v3042 = vpop.f32.mrb[0].mxu0
        %v3043 = vadd.f32 %v2899, %v3042
        %v3044 = vpop.f32.mrb[0].mxu0
        %3045 = vmatprep.mubr.bf16.mxu0 0
        %3046 = vmatmul.mubr.bf16.gmra.mrb[0].mxu0 %v2868
        %v3047 = vpop.f32.mrb[0].mxu0
        %v3048 = vadd.f32 %v2899, %v3047
        %v3049 = vpop.f32.mrb[0].mxu0
        %v3050 = vpop.f32.mrb[0].mxu0
        %v3051 = vadd.f32 %v2899, %v3050
        %v3052 = vpop.f32.mrb[0].mxu0
        %3053 = vmatprep.mubr.bf16.mxu0 0
        %3054 = vmatmul.mubr.bf16.gmra.mrb[0].mxu0 %v2869
        %v3055 = vpop.f32.mrb[0].mxu0
        %v3056 = vadd.f32 %v2899, %v3055
        %v3057 = vpop.f32.mrb[0].mxu0
        %v3058 = vpop.f32.mrb[0].mxu0
        %v3059 = vadd.f32 %v2899, %v3058
        %v3060 = vpop.f32.mrb[0].mxu0
        %3061 = vmatprep.mubr.bf16.mxu0 0
        %3062 = vmatmul.mubr.bf16.gmra.mrb[0].mxu0 %v2870
        %v3063 = vpop.f32.mrb[0].mxu0
        %v3064 = vadd.f32 %v2899, %v3063
        %v3065 = vpop.f32.mrb[0].mxu0
        %v3066 = vpop.f32.mrb[0].mxu0
        %v3067 = vadd.f32 %v2899, %v3066
        %v3068 = vpop.f32.mrb[0].mxu0
        %3069 = vmatprep.mubr.bf16.mxu0 0
        %3070 = vmatmul.mubr.bf16.gmra.mrb[0].mxu0 %v2871
        %v3071 = vpop.f32.mrb[0].mxu0
        %v3072 = vadd.f32 %v2899, %v3071
        %v3073 = vpop.f32.mrb[0].mxu0
        %v3074 = vpop.f32.mrb[0].mxu0
        %v3075 = vadd.f32 %v2899, %v3074
        %v3076 = vpop.f32.mrb[0].mxu0
        %3077 = vmatprep.mubr.bf16.mxu0 0
        %3078 = vmatmul.mubr.bf16.gmra.mrb[0].mxu0 %v2872
        %v3079 = vpop.f32.mrb[0].mxu0
        %v3080 = vadd.f32 %v2899, %v3079
        %v3081 = vpop.f32.mrb[0].mxu0
        %v3082 = vpop.f32.mrb[0].mxu0
        %v3083 = vadd.f32 %v2899, %v3082
        %v3084 = vpop.f32.mrb[0].mxu0
        %3085 = vmatprep.mubr.bf16.mxu0 0
        %3086 = vmatmul.mubr.bf16.gmra.mrb[0].mxu0 %v2873
        %v3087 = vpop.f32.mrb[0].mxu0
        %v3088 = vadd.f32 %v2899, %v3087
        %v3089 = vpop.f32.mrb[0].mxu0
        %v3090 = vpop.f32.mrb[0].mxu0
        %v3091 = vadd.f32 %v2899, %v3090
        %v3092 = vpop.f32.mrb[0].mxu0
        %3093 = vmatprep.mubr.bf16.mxu0 0
        %3094 = vmatmul.mubr.bf16.gmra.mrb[0].mxu0 %v2874
        %v3095 = vpop.f32.mrb[0].mxu0
        %v3096 = vadd.f32 %v2899, %v3095
        %v3097 = vpop.f32.mrb[0].mxu0
        %v3098 = vpop.f32.mrb[0].mxu0
        %v3099 = vadd.f32 %v2899, %v3098
        %v3100 = vpop.f32.mrb[0].mxu0
        %3101 = vmatprep.mubr.bf16.mxu0 0
        %3102 = vmatmul.mubr.bf16.gmra.mrb[0].mxu0 %v2875
        %v3103 = vpop.f32.mrb[0].mxu0
        %v3104 = vadd.f32 %v2899, %v3103
        %v3105 = vpop.f32.mrb[0].mxu0
        %v3106 = vpop.f32.mrb[0].mxu0
        %v3107 = vadd.f32 %v2899, %v3106
        %v3108 = vpop.f32.mrb[0].mxu0
        %3109 = vdwg.mxu0
        %v3110 = vmax.f32 %v2984, 0.0
        %v3111 = vmax.f32 %v2987, 0.0
        %v3112 = vmax.f32 %v2992, 0.0
        %v3113 = vmax.f32 %v2995, 0.0
        %v3114 = vmax.f32 %v3000, 0.0
        %v3115 = vmax.f32 %v3003, 0.0
        %v3116 = vmax.f32 %v3008, 0.0
        %v3117 = vmax.f32 %v3011, 0.0
        %v3118 = vmax.f32 %v3016, 0.0
        %v3119 = vmax.f32 %v3019, 0.0
        %v3120 = vmax.f32 %v3024, 0.0
        %v3121 = vmax.f32 %v3027, 0.0
        %v3122 = vmax.f32 %v3032, 0.0
        %v3123 = vmax.f32 %v3035, 0.0
        %v3124 = vmax.f32 %v3040, 0.0
        %v3125 = vmax.f32 %v3043, 0.0
        %v3126 = vmax.f32 %v3048, 0.0
        %v3127 = vmax.f32 %v3051, 0.0
        %v3128 = vmax.f32 %v3056, 0.0
        %v3129 = vmax.f32 %v3059, 0.0
        %v3130 = vmax.f32 %v3064, 0.0
        %v3131 = vmax.f32 %v3067, 0.0
        %v3132 = vmax.f32 %v3072, 0.0
        %v3133 = vmax.f32 %v3075, 0.0
        %v3134 = vmax.f32 %v3080, 0.0
        %v3135 = vmax.f32 %v3083, 0.0
        %v3136 = vmax.f32 %v3088, 0.0
        %v3137 = vmax.f32 %v3091, 0.0
        %v3138 = vmax.f32 %v3096, 0.0
        %v3139 = vmax.f32 %v3099, 0.0
        %v3140 = vmax.f32 %v3104, 0.0
        %v3141 = vmax.f32 %v3107, 0.0
        %v3142 = vpack.c.bf16 %v3111, %v3110
        %v3143 = vpack.c.bf16 %v3113, %v3112
        %v3144 = vpack.c.bf16 %v3115, %v3114
        %v3145 = vpack.c.bf16 %v3117, %v3116
        %v3146 = vpack.c.bf16 %v3119, %v3118
        %v3147 = vpack.c.bf16 %v3121, %v3120
        %v3148 = vpack.c.bf16 %v3123, %v3122
        %v3149 = vpack.c.bf16 %v3125, %v3124
        %v3150 = vpack.c.bf16 %v3127, %v3126
        %v3151 = vpack.c.bf16 %v3129, %v3128
        %v3152 = vpack.c.bf16 %v3131, %v3130
        %v3153 = vpack.c.bf16 %v3133, %v3132
        %v3154 = vpack.c.bf16 %v3135, %v3134
        %v3155 = vpack.c.bf16 %v3137, %v3136
        %v3156 = vpack.c.bf16 %v3139, %v3138
        %v3157 = vpack.c.bf16 %v3141, %v3140
        %s3158 = scalar_lea.vmem [#allocation5], 448
        %v3159 = vld [vmem:[%s3158] sm:$0xf]
        %v3160 = vld [vmem:[%s3158 + $0x4] sm:$0xf]
        %v3161 = vld [vmem:[%s3158 + $0x8] sm:$0xf]
        %v3162 = vld [vmem:[%s3158 + $0xc] sm:$0xf]
        %v3163 = vld [vmem:[%s3158 + $0x10] sm:$0xf]
        %v3164 = vld [vmem:[%s3158 + $0x14] sm:$0xf]
        %v3165 = vld [vmem:[%s3158 + $0x18] sm:$0xf]
        %v3166 = vld [vmem:[%s3158 + $0x1c] sm:$0xf]
        %v3167 = vld [vmem:[%s3158 + $0x20] sm:$0xf]
        %v3168 = vld [vmem:[%s3158 + $0x24] sm:$0xf]
        %v3169 = vld [vmem:[%s3158 + $0x28] sm:$0xf]
        %v3170 = vld [vmem:[%s3158 + $0x2c] sm:$0xf]
        %v3171 = vld [vmem:[%s3158 + $0x30] sm:$0xf]
        %v3172 = vld [vmem:[%s3158 + $0x34] sm:$0xf]
        %v3173 = vld [vmem:[%s3158 + $0x38] sm:$0xf]
        %v3174 = vld [vmem:[%s3158 + $0x3c] sm:$0xf]
        %s3175 = scalar_lea.vmem [#allocation7], 7
        %v3176 = vld [vmem:[%s3175] sm:$0x1]
        %v3178 = vlaneseq
        %v3179 = vshrl.u32 %v3178, 7
        %v3180 = vsub.s32 0, %v3179
        %v3181 = vrot.slane %v3176, %v3180
        %v3199 = vunpack.c.l.b16 %v3159
        %v3200 = vunpack.c.l.b16 %v3160
        %v3201 = vunpack.c.l.b16 %v3161
        %v3202 = vunpack.c.l.b16 %v3162
        %v3203 = vunpack.c.l.b16 %v3163
        %v3204 = vunpack.c.l.b16 %v3164
        %v3205 = vunpack.c.l.b16 %v3165
        %v3206 = vunpack.c.l.b16 %v3166
        %v3207 = vunpack.c.l.b16 %v3167
        %v3208 = vunpack.c.l.b16 %v3168
        %v3209 = vunpack.c.l.b16 %v3169
        %v3210 = vunpack.c.l.b16 %v3170
        %v3211 = vunpack.c.l.b16 %v3171
        %v3212 = vunpack.c.l.b16 %v3172
        %v3213 = vunpack.c.l.b16 %v3173
        %v3214 = vunpack.c.l.b16 %v3174
        %v3215 = vpack.c.b16 %v3200, %v3199
        %v3216 = vpack.c.b16 %v3202, %v3201
        %v3217 = vpack.c.b16 %v3204, %v3203
        %v3218 = vpack.c.b16 %v3206, %v3205
        %v3219 = vpack.c.b16 %v3208, %v3207
        %v3220 = vpack.c.b16 %v3210, %v3209
        %v3221 = vpack.c.b16 %v3212, %v3211
        %v3222 = vpack.c.b16 %v3214, %v3213
        %3231 = vmatprep.subr.bf16.mxu0 0
        %3232 = vmatpush1.bf16.msra.mxu0 %v3215
        %3233 = vmatprep.subr.bf16.mxu0 0
        %3234 = vmatpush1.bf16.msra.mxu0 %v3216
        %3235 = vmatprep.subr.bf16.mxu0 0
        %3236 = vmatpush1.bf16.msra.mxu0 %v3217
        %3237 = vmatprep.subr.bf16.mxu0 0
        %3238 = vmatpush1.bf16.msra.mxu0 %v3218
        %3239 = vmatprep.subr.bf16.mxu0 0
        %3240 = vmatpush1.bf16.msra.mxu0 %v3219
        %3241 = vmatprep.subr.bf16.mxu0 0
        %3242 = vmatpush1.bf16.msra.mxu0 %v3220
        %3243 = vmatprep.subr.bf16.mxu0 0
        %3244 = vmatpush1.bf16.msra.mxu0 %v3221
        %3245 = vmatprep.subr.bf16.mxu0 0
        %3246 = vmatpush1.bf16.msra.mxu0 %v3222
        %3247 = vmatprep.subr.bf16.mxu0 0
        %3248 = vmatpush1.bf16.msra.mxu0 0
        %3249 = vmatprep.subr.bf16.mxu0 0
        %3250 = vmatpush1.bf16.msra.mxu0 0
        %3251 = vmatprep.subr.bf16.mxu0 0
        %3252 = vmatpush1.bf16.msra.mxu0 0
        %3253 = vmatprep.subr.bf16.mxu0 0
        %3254 = vmatpush1.bf16.msra.mxu0 0
        %3255 = vmatprep.subr.bf16.mxu0 0
        %3256 = vmatpush1.bf16.msra.mxu0 0
        %3257 = vmatprep.subr.bf16.mxu0 0
        %3258 = vmatpush1.bf16.msra.mxu0 0
        %3259 = vmatprep.subr.bf16.mxu0 0
        %3260 = vmatpush1.bf16.msra.mxu0 0
        %3261 = vmatprep.subr.bf16.mxu0 0
        %3262 = vmatpush1.bf16.msra.mxu0 0
        %3263 = vmatprep.mubr.bf16.mxu0 0
        %3264 = vmatmul.mubr.bf16.gmra.mrb[0].mxu0 %v3142
        %v3265 = vpop.f32.mrb[0].mxu0
        %v3266 = vadd.f32 %v3181, %v3265
        %v3267 = vpop.f32.mrb[0].mxu0
        %v3268 = vpop.f32.mrb[0].mxu0
        %v3269 = vadd.f32 %v3181, %v3268
        %v3270 = vpop.f32.mrb[0].mxu0
        %3271 = vmatprep.mubr.bf16.mxu0 0
        %3272 = vmatmul.mubr.bf16.gmra.mrb[0].mxu0 %v3143
        %v3273 = vpop.f32.mrb[0].mxu0
        %v3274 = vadd.f32 %v3181, %v3273
        %v3275 = vpop.f32.mrb[0].mxu0
        %v3276 = vpop.f32.mrb[0].mxu0
        %v3277 = vadd.f32 %v3181, %v3276
        %v3278 = vpop.f32.mrb[0].mxu0
        %3279 = vmatprep.mubr.bf16.mxu0 0
        %3280 = vmatmul.mubr.bf16.gmra.mrb[0].mxu0 %v3144
        %v3281 = vpop.f32.mrb[0].mxu0
        %v3282 = vadd.f32 %v3181, %v3281
        %v3283 = vpop.f32.mrb[0].mxu0
        %v3284 = vpop.f32.mrb[0].mxu0
        %v3285 = vadd.f32 %v3181, %v3284
        %v3286 = vpop.f32.mrb[0].mxu0
        %3287 = vmatprep.mubr.bf16.mxu0 0
        %3288 = vmatmul.mubr.bf16.gmra.mrb[0].mxu0 %v3145
        %v3289 = vpop.f32.mrb[0].mxu0
        %v3290 = vadd.f32 %v3181, %v3289
        %v3291 = vpop.f32.mrb[0].mxu0
        %v3292 = vpop.f32.mrb[0].mxu0
        %v3293 = vadd.f32 %v3181, %v3292
        %v3294 = vpop.f32.mrb[0].mxu0
        %3295 = vmatprep.mubr.bf16.mxu0 0
        %3296 = vmatmul.mubr.bf16.gmra.mrb[0].mxu0 %v3146
        %v3297 = vpop.f32.mrb[0].mxu0
        %v3298 = vadd.f32 %v3181, %v3297
        %v3299 = vpop.f32.mrb[0].mxu0
        %v3300 = vpop.f32.mrb[0].mxu0
        %v3301 = vadd.f32 %v3181, %v3300
        %v3302 = vpop.f32.mrb[0].mxu0
        %3303 = vmatprep.mubr.bf16.mxu0 0
        %3304 = vmatmul.mubr.bf16.gmra.mrb[0].mxu0 %v3147
        %v3305 = vpop.f32.mrb[0].mxu0
        %v3306 = vadd.f32 %v3181, %v3305
        %v3307 = vpop.f32.mrb[0].mxu0
        %v3308 = vpop.f32.mrb[0].mxu0
        %v3309 = vadd.f32 %v3181, %v3308
        %v3310 = vpop.f32.mrb[0].mxu0
        %3311 = vmatprep.mubr.bf16.mxu0 0
        %3312 = vmatmul.mubr.bf16.gmra.mrb[0].mxu0 %v3148
        %v3313 = vpop.f32.mrb[0].mxu0
        %v3314 = vadd.f32 %v3181, %v3313
        %v3315 = vpop.f32.mrb[0].mxu0
        %v3316 = vpop.f32.mrb[0].mxu0
        %v3317 = vadd.f32 %v3181, %v3316
        %v3318 = vpop.f32.mrb[0].mxu0
        %3319 = vmatprep.mubr.bf16.mxu0 0
        %3320 = vmatmul.mubr.bf16.gmra.mrb[0].mxu0 %v3149
        %v3321 = vpop.f32.mrb[0].mxu0
        %v3322 = vadd.f32 %v3181, %v3321
        %v3323 = vpop.f32.mrb[0].mxu0
        %v3324 = vpop.f32.mrb[0].mxu0
        %v3325 = vadd.f32 %v3181, %v3324
        %v3326 = vpop.f32.mrb[0].mxu0
        %3327 = vmatprep.mubr.bf16.mxu0 0
        %3328 = vmatmul.mubr.bf16.gmra.mrb[0].mxu0 %v3150
        %v3329 = vpop.f32.mrb[0].mxu0
        %v3330 = vadd.f32 %v3181, %v3329
        %v3331 = vpop.f32.mrb[0].mxu0
        %v3332 = vpop.f32.mrb[0].mxu0
        %v3333 = vadd.f32 %v3181, %v3332
        %v3334 = vpop.f32.mrb[0].mxu0
        %3335 = vmatprep.mubr.bf16.mxu0 0
        %3336 = vmatmul.mubr.bf16.gmra.mrb[0].mxu0 %v3151
        %v3337 = vpop.f32.mrb[0].mxu0
        %v3338 = vadd.f32 %v3181, %v3337
        %v3339 = vpop.f32.mrb[0].mxu0
        %v3340 = vpop.f32.mrb[0].mxu0
        %v3341 = vadd.f32 %v3181, %v3340
        %v3342 = vpop.f32.mrb[0].mxu0
        %3343 = vmatprep.mubr.bf16.mxu0 0
        %3344 = vmatmul.mubr.bf16.gmra.mrb[0].mxu0 %v3152
        %v3345 = vpop.f32.mrb[0].mxu0
        %v3346 = vadd.f32 %v3181, %v3345
        %v3347 = vpop.f32.mrb[0].mxu0
        %v3348 = vpop.f32.mrb[0].mxu0
        %v3349 = vadd.f32 %v3181, %v3348
        %v3350 = vpop.f32.mrb[0].mxu0
        %3351 = vmatprep.mubr.bf16.mxu0 0
        %3352 = vmatmul.mubr.bf16.gmra.mrb[0].mxu0 %v3153
        %v3353 = vpop.f32.mrb[0].mxu0
        %v3354 = vadd.f32 %v3181, %v3353
        %v3355 = vpop.f32.mrb[0].mxu0
        %v3356 = vpop.f32.mrb[0].mxu0
        %v3357 = vadd.f32 %v3181, %v3356
        %v3358 = vpop.f32.mrb[0].mxu0
        %3359 = vmatprep.mubr.bf16.mxu0 0
        %3360 = vmatmul.mubr.bf16.gmra.mrb[0].mxu0 %v3154
        %v3361 = vpop.f32.mrb[0].mxu0
        %v3362 = vadd.f32 %v3181, %v3361
        %v3363 = vpop.f32.mrb[0].mxu0
        %v3364 = vpop.f32.mrb[0].mxu0
        %v3365 = vadd.f32 %v3181, %v3364
        %v3366 = vpop.f32.mrb[0].mxu0
        %3367 = vmatprep.mubr.bf16.mxu0 0
        %3368 = vmatmul.mubr.bf16.gmra.mrb[0].mxu0 %v3155
        %v3369 = vpop.f32.mrb[0].mxu0
        %v3370 = vadd.f32 %v3181, %v3369
        %v3371 = vpop.f32.mrb[0].mxu0
        %v3372 = vpop.f32.mrb[0].mxu0
        %v3373 = vadd.f32 %v3181, %v3372
        %v3374 = vpop.f32.mrb[0].mxu0
        %3375 = vmatprep.mubr.bf16.mxu0 0
        %3376 = vmatmul.mubr.bf16.gmra.mrb[0].mxu0 %v3156
        %v3377 = vpop.f32.mrb[0].mxu0
        %v3378 = vadd.f32 %v3181, %v3377
        %v3379 = vpop.f32.mrb[0].mxu0
        %v3380 = vpop.f32.mrb[0].mxu0
        %v3381 = vadd.f32 %v3181, %v3380
        %v3382 = vpop.f32.mrb[0].mxu0
        %3383 = vmatprep.mubr.bf16.mxu0 0
        %3384 = vmatmul.mubr.bf16.gmra.mrb[0].mxu0 %v3157
        %v3385 = vpop.f32.mrb[0].mxu0
        %v3386 = vadd.f32 %v3181, %v3385
        %v3387 = vpop.f32.mrb[0].mxu0
        %v3388 = vpop.f32.mrb[0].mxu0
        %v3389 = vadd.f32 %v3181, %v3388
        %v3390 = vpop.f32.mrb[0].mxu0
        %3391 = vdwg.mxu0
        %v3392 = vmax.f32 %v3266, 0.0
        %v3393 = vmax.f32 %v3269, 0.0
        %v3394 = vmax.f32 %v3274, 0.0
        %v3395 = vmax.f32 %v3277, 0.0
        %v3396 = vmax.f32 %v3282, 0.0
        %v3397 = vmax.f32 %v3285, 0.0
        %v3398 = vmax.f32 %v3290, 0.0
        %v3399 = vmax.f32 %v3293, 0.0
        %v3400 = vmax.f32 %v3298, 0.0
        %v3401 = vmax.f32 %v3301, 0.0
        %v3402 = vmax.f32 %v3306, 0.0
        %v3403 = vmax.f32 %v3309, 0.0
        %v3404 = vmax.f32 %v3314, 0.0
        %v3405 = vmax.f32 %v3317, 0.0
        %v3406 = vmax.f32 %v3322, 0.0
        %v3407 = vmax.f32 %v3325, 0.0
        %v3408 = vmax.f32 %v3330, 0.0
        %v3409 = vmax.f32 %v3333, 0.0
        %v3410 = vmax.f32 %v3338, 0.0
        %v3411 = vmax.f32 %v3341, 0.0
        %v3412 = vmax.f32 %v3346, 0.0
        %v3413 = vmax.f32 %v3349, 0.0
        %v3414 = vmax.f32 %v3354, 0.0
        %v3415 = vmax.f32 %v3357, 0.0
        %v3416 = vmax.f32 %v3362, 0.0
        %v3417 = vmax.f32 %v3365, 0.0
        %v3418 = vmax.f32 %v3370, 0.0
        %v3419 = vmax.f32 %v3373, 0.0
        %v3420 = vmax.f32 %v3378, 0.0
        %v3421 = vmax.f32 %v3381, 0.0
        %v3422 = vmax.f32 %v3386, 0.0
        %v3423 = vmax.f32 %v3389, 0.0
        %v3424 = vpack.c.bf16 %v3393, %v3392
        %v3425 = vpack.c.bf16 %v3395, %v3394
        %v3426 = vpack.c.bf16 %v3397, %v3396
        %v3427 = vpack.c.bf16 %v3399, %v3398
        %v3428 = vpack.c.bf16 %v3401, %v3400
        %v3429 = vpack.c.bf16 %v3403, %v3402
        %v3430 = vpack.c.bf16 %v3405, %v3404
        %v3431 = vpack.c.bf16 %v3407, %v3406
        %v3432 = vpack.c.bf16 %v3409, %v3408
        %v3433 = vpack.c.bf16 %v3411, %v3410
        %v3434 = vpack.c.bf16 %v3413, %v3412
        %v3435 = vpack.c.bf16 %v3415, %v3414
        %v3436 = vpack.c.bf16 %v3417, %v3416
        %v3437 = vpack.c.bf16 %v3419, %v3418
        %v3438 = vpack.c.bf16 %v3421, %v3420
        %v3439 = vpack.c.bf16 %v3423, %v3422
        %s3440 = scalar_lea.vmem [#allocation5], 512
        %v3441 = vld [vmem:[%s3440] sm:$0xf]
        %v3442 = vld [vmem:[%s3440 + $0x4] sm:$0xf]
        %v3443 = vld [vmem:[%s3440 + $0x8] sm:$0xf]
        %v3444 = vld [vmem:[%s3440 + $0xc] sm:$0xf]
        %v3445 = vld [vmem:[%s3440 + $0x10] sm:$0xf]
        %v3446 = vld [vmem:[%s3440 + $0x14] sm:$0xf]
        %v3447 = vld [vmem:[%s3440 + $0x18] sm:$0xf]
        %v3448 = vld [vmem:[%s3440 + $0x1c] sm:$0xf]
        %v3449 = vld [vmem:[%s3440 + $0x20] sm:$0xf]
        %v3450 = vld [vmem:[%s3440 + $0x24] sm:$0xf]
        %v3451 = vld [vmem:[%s3440 + $0x28] sm:$0xf]
        %v3452 = vld [vmem:[%s3440 + $0x2c] sm:$0xf]
        %v3453 = vld [vmem:[%s3440 + $0x30] sm:$0xf]
        %v3454 = vld [vmem:[%s3440 + $0x34] sm:$0xf]
        %v3455 = vld [vmem:[%s3440 + $0x38] sm:$0xf]
        %v3456 = vld [vmem:[%s3440 + $0x3c] sm:$0xf]
        %s3457 = scalar_lea.vmem [#allocation7], 8
        %v3458 = vld [vmem:[%s3457] sm:$0x1]
        %v3460 = vlaneseq
        %v3461 = vshrl.u32 %v3460, 7
        %v3462 = vsub.s32 0, %v3461
        %v3463 = vrot.slane %v3458, %v3462
        %v3481 = vunpack.c.l.b16 %v3441
        %v3482 = vunpack.c.l.b16 %v3442
        %v3483 = vunpack.c.l.b16 %v3443
        %v3484 = vunpack.c.l.b16 %v3444
        %v3485 = vunpack.c.l.b16 %v3445
        %v3486 = vunpack.c.l.b16 %v3446
        %v3487 = vunpack.c.l.b16 %v3447
        %v3488 = vunpack.c.l.b16 %v3448
        %v3489 = vunpack.c.l.b16 %v3449
        %v3490 = vunpack.c.l.b16 %v3450
        %v3491 = vunpack.c.l.b16 %v3451
        %v3492 = vunpack.c.l.b16 %v3452
        %v3493 = vunpack.c.l.b16 %v3453
        %v3494 = vunpack.c.l.b16 %v3454
        %v3495 = vunpack.c.l.b16 %v3455
        %v3496 = vunpack.c.l.b16 %v3456
        %v3497 = vpack.c.b16 %v3482, %v3481
        %v3498 = vpack.c.b16 %v3484, %v3483
        %v3499 = vpack.c.b16 %v3486, %v3485
        %v3500 = vpack.c.b16 %v3488, %v3487
        %v3501 = vpack.c.b16 %v3490, %v3489
        %v3502 = vpack.c.b16 %v3492, %v3491
        %v3503 = vpack.c.b16 %v3494, %v3493
        %v3504 = vpack.c.b16 %v3496, %v3495
        %3513 = vmatprep.subr.bf16.mxu0 0
        %3514 = vmatpush1.bf16.msra.mxu0 %v3497
        %3515 = vmatprep.subr.bf16.mxu0 0
        %3516 = vmatpush1.bf16.msra.mxu0 %v3498
        %3517 = vmatprep.subr.bf16.mxu0 0
        %3518 = vmatpush1.bf16.msra.mxu0 %v3499
        %3519 = vmatprep.subr.bf16.mxu0 0
        %3520 = vmatpush1.bf16.msra.mxu0 %v3500
        %3521 = vmatprep.subr.bf16.mxu0 0
        %3522 = vmatpush1.bf16.msra.mxu0 %v3501
        %3523 = vmatprep.subr.bf16.mxu0 0
        %3524 = vmatpush1.bf16.msra.mxu0 %v3502
        %3525 = vmatprep.subr.bf16.mxu0 0
        %3526 = vmatpush1.bf16.msra.mxu0 %v3503
        %3527 = vmatprep.subr.bf16.mxu0 0
        %3528 = vmatpush1.bf16.msra.mxu0 %v3504
        %3529 = vmatprep.subr.bf16.mxu0 0
        %3530 = vmatpush1.bf16.msra.mxu0 0
        %3531 = vmatprep.subr.bf16.mxu0 0
        %3532 = vmatpush1.bf16.msra.mxu0 0
        %3533 = vmatprep.subr.bf16.mxu0 0
        %3534 = vmatpush1.bf16.msra.mxu0 0
        %3535 = vmatprep.subr.bf16.mxu0 0
        %3536 = vmatpush1.bf16.msra.mxu0 0
        %3537 = vmatprep.subr.bf16.mxu0 0
        %3538 = vmatpush1.bf16.msra.mxu0 0
        %3539 = vmatprep.subr.bf16.mxu0 0
        %3540 = vmatpush1.bf16.msra.mxu0 0
        %3541 = vmatprep.subr.bf16.mxu0 0
        %3542 = vmatpush1.bf16.msra.mxu0 0
        %3543 = vmatprep.subr.bf16.mxu0 0
        %3544 = vmatpush1.bf16.msra.mxu0 0
        %3545 = vmatprep.mubr.bf16.mxu0 0
        %3546 = vmatmul.mubr.bf16.gmra.mrb[0].mxu0 %v3424
        %v3547 = vpop.f32.mrb[0].mxu0
        %v3548 = vadd.f32 %v3463, %v3547
        %v3549 = vpop.f32.mrb[0].mxu0
        %v3550 = vpop.f32.mrb[0].mxu0
        %v3551 = vadd.f32 %v3463, %v3550
        %v3552 = vpop.f32.mrb[0].mxu0
        %3553 = vmatprep.mubr.bf16.mxu0 0
        %3554 = vmatmul.mubr.bf16.gmra.mrb[0].mxu0 %v3425
        %v3555 = vpop.f32.mrb[0].mxu0
        %v3556 = vadd.f32 %v3463, %v3555
        %v3557 = vpop.f32.mrb[0].mxu0
        %v3558 = vpop.f32.mrb[0].mxu0
        %v3559 = vadd.f32 %v3463, %v3558
        %v3560 = vpop.f32.mrb[0].mxu0
        %3561 = vmatprep.mubr.bf16.mxu0 0
        %3562 = vmatmul.mubr.bf16.gmra.mrb[0].mxu0 %v3426
        %v3563 = vpop.f32.mrb[0].mxu0
        %v3564 = vadd.f32 %v3463, %v3563
        %v3565 = vpop.f32.mrb[0].mxu0
        %v3566 = vpop.f32.mrb[0].mxu0
        %v3567 = vadd.f32 %v3463, %v3566
        %v3568 = vpop.f32.mrb[0].mxu0
        %3569 = vmatprep.mubr.bf16.mxu0 0
        %3570 = vmatmul.mubr.bf16.gmra.mrb[0].mxu0 %v3427
        %v3571 = vpop.f32.mrb[0].mxu0
        %v3572 = vadd.f32 %v3463, %v3571
        %v3573 = vpop.f32.mrb[0].mxu0
        %v3574 = vpop.f32.mrb[0].mxu0
        %v3575 = vadd.f32 %v3463, %v3574
        %v3576 = vpop.f32.mrb[0].mxu0
        %3577 = vmatprep.mubr.bf16.mxu0 0
        %3578 = vmatmul.mubr.bf16.gmra.mrb[0].mxu0 %v3428
        %v3579 = vpop.f32.mrb[0].mxu0
        %v3580 = vadd.f32 %v3463, %v3579
        %v3581 = vpop.f32.mrb[0].mxu0
        %v3582 = vpop.f32.mrb[0].mxu0
        %v3583 = vadd.f32 %v3463, %v3582
        %v3584 = vpop.f32.mrb[0].mxu0
        %3585 = vmatprep.mubr.bf16.mxu0 0
        %3586 = vmatmul.mubr.bf16.gmra.mrb[0].mxu0 %v3429
        %v3587 = vpop.f32.mrb[0].mxu0
        %v3588 = vadd.f32 %v3463, %v3587
        %v3589 = vpop.f32.mrb[0].mxu0
        %v3590 = vpop.f32.mrb[0].mxu0
        %v3591 = vadd.f32 %v3463, %v3590
        %v3592 = vpop.f32.mrb[0].mxu0
        %3593 = vmatprep.mubr.bf16.mxu0 0
        %3594 = vmatmul.mubr.bf16.gmra.mrb[0].mxu0 %v3430
        %v3595 = vpop.f32.mrb[0].mxu0
        %v3596 = vadd.f32 %v3463, %v3595
        %v3597 = vpop.f32.mrb[0].mxu0
        %v3598 = vpop.f32.mrb[0].mxu0
        %v3599 = vadd.f32 %v3463, %v3598
        %v3600 = vpop.f32.mrb[0].mxu0
        %3601 = vmatprep.mubr.bf16.mxu0 0
        %3602 = vmatmul.mubr.bf16.gmra.mrb[0].mxu0 %v3431
        %v3603 = vpop.f32.mrb[0].mxu0
        %v3604 = vadd.f32 %v3463, %v3603
        %v3605 = vpop.f32.mrb[0].mxu0
        %v3606 = vpop.f32.mrb[0].mxu0
        %v3607 = vadd.f32 %v3463, %v3606
        %v3608 = vpop.f32.mrb[0].mxu0
        %3609 = vmatprep.mubr.bf16.mxu0 0
        %3610 = vmatmul.mubr.bf16.gmra.mrb[0].mxu0 %v3432
        %v3611 = vpop.f32.mrb[0].mxu0
        %v3612 = vadd.f32 %v3463, %v3611
        %v3613 = vpop.f32.mrb[0].mxu0
        %v3614 = vpop.f32.mrb[0].mxu0
        %v3615 = vadd.f32 %v3463, %v3614
        %v3616 = vpop.f32.mrb[0].mxu0
        %3617 = vmatprep.mubr.bf16.mxu0 0
        %3618 = vmatmul.mubr.bf16.gmra.mrb[0].mxu0 %v3433
        %v3619 = vpop.f32.mrb[0].mxu0
        %v3620 = vadd.f32 %v3463, %v3619
        %v3621 = vpop.f32.mrb[0].mxu0
        %v3622 = vpop.f32.mrb[0].mxu0
        %v3623 = vadd.f32 %v3463, %v3622
        %v3624 = vpop.f32.mrb[0].mxu0
        %3625 = vmatprep.mubr.bf16.mxu0 0
        %3626 = vmatmul.mubr.bf16.gmra.mrb[0].mxu0 %v3434
        %v3627 = vpop.f32.mrb[0].mxu0
        %v3628 = vadd.f32 %v3463, %v3627
        %v3629 = vpop.f32.mrb[0].mxu0
        %v3630 = vpop.f32.mrb[0].mxu0
        %v3631 = vadd.f32 %v3463, %v3630
        %v3632 = vpop.f32.mrb[0].mxu0
        %3633 = vmatprep.mubr.bf16.mxu0 0
        %3634 = vmatmul.mubr.bf16.gmra.mrb[0].mxu0 %v3435
        %v3635 = vpop.f32.mrb[0].mxu0
        %v3636 = vadd.f32 %v3463, %v3635
        %v3637 = vpop.f32.mrb[0].mxu0
        %v3638 = vpop.f32.mrb[0].mxu0
        %v3639 = vadd.f32 %v3463, %v3638
        %v3640 = vpop.f32.mrb[0].mxu0
        %3641 = vmatprep.mubr.bf16.mxu0 0
        %3642 = vmatmul.mubr.bf16.gmra.mrb[0].mxu0 %v3436
        %v3643 = vpop.f32.mrb[0].mxu0
        %v3644 = vadd.f32 %v3463, %v3643
        %v3645 = vpop.f32.mrb[0].mxu0
        %v3646 = vpop.f32.mrb[0].mxu0
        %v3647 = vadd.f32 %v3463, %v3646
        %v3648 = vpop.f32.mrb[0].mxu0
        %3649 = vmatprep.mubr.bf16.mxu0 0
        %3650 = vmatmul.mubr.bf16.gmra.mrb[0].mxu0 %v3437
        %v3651 = vpop.f32.mrb[0].mxu0
        %v3652 = vadd.f32 %v3463, %v3651
        %v3653 = vpop.f32.mrb[0].mxu0
        %v3654 = vpop.f32.mrb[0].mxu0
        %v3655 = vadd.f32 %v3463, %v3654
        %v3656 = vpop.f32.mrb[0].mxu0
        %3657 = vmatprep.mubr.bf16.mxu0 0
        %3658 = vmatmul.mubr.bf16.gmra.mrb[0].mxu0 %v3438
        %v3659 = vpop.f32.mrb[0].mxu0
        %v3660 = vadd.f32 %v3463, %v3659
        %v3661 = vpop.f32.mrb[0].mxu0
        %v3662 = vpop.f32.mrb[0].mxu0
        %v3663 = vadd.f32 %v3463, %v3662
        %v3664 = vpop.f32.mrb[0].mxu0
        %3665 = vmatprep.mubr.bf16.mxu0 0
        %3666 = vmatmul.mubr.bf16.gmra.mrb[0].mxu0 %v3439
        %v3667 = vpop.f32.mrb[0].mxu0
        %v3668 = vadd.f32 %v3463, %v3667
        %v3669 = vpop.f32.mrb[0].mxu0
        %v3670 = vpop.f32.mrb[0].mxu0
        %v3671 = vadd.f32 %v3463, %v3670
        %v3672 = vpop.f32.mrb[0].mxu0
        %3673 = vdwg.mxu0
        %v3674 = vadd.f32 %v3548, %v2828
        %v3675 = vadd.f32 %v3551, %v2829
        %v3676 = vadd.f32 %v3556, %v2830
        %v3677 = vadd.f32 %v3559, %v2831
        %v3678 = vadd.f32 %v3564, %v2832
        %v3679 = vadd.f32 %v3567, %v2833
        %v3680 = vadd.f32 %v3572, %v2834
        %v3681 = vadd.f32 %v3575, %v2835
        %v3682 = vadd.f32 %v3580, %v2836
        %v3683 = vadd.f32 %v3583, %v2837
        %v3684 = vadd.f32 %v3588, %v2838
        %v3685 = vadd.f32 %v3591, %v2839
        %v3686 = vadd.f32 %v3596, %v2840
        %v3687 = vadd.f32 %v3599, %v2841
        %v3688 = vadd.f32 %v3604, %v2842
        %v3689 = vadd.f32 %v3607, %v2843
        %v3690 = vadd.f32 %v3612, %v2844
        %v3691 = vadd.f32 %v3615, %v2845
        %v3692 = vadd.f32 %v3620, %v2846
        %v3693 = vadd.f32 %v3623, %v2847
        %v3694 = vadd.f32 %v3628, %v2848
        %v3695 = vadd.f32 %v3631, %v2849
        %v3696 = vadd.f32 %v3636, %v2850
        %v3697 = vadd.f32 %v3639, %v2851
        %v3698 = vadd.f32 %v3644, %v2852
        %v3699 = vadd.f32 %v3647, %v2853
        %v3700 = vadd.f32 %v3652, %v2854
        %v3701 = vadd.f32 %v3655, %v2855
        %v3702 = vadd.f32 %v3660, %v2856
        %v3703 = vadd.f32 %v3663, %v2857
        %v3704 = vadd.f32 %v3668, %v2858
        %v3705 = vadd.f32 %v3671, %v2859
        %s3706 = scalar_lea.vmem %s3, 2
        %v3707 = vld [vmem:[%s3706] sm:$0x1]
        %s3708 = scalar_lea.vmem %s4, 2
        %v3709 = vld [vmem:[%s3708] sm:$0x1]
        %3710 = vadd.xlane.f32.xlu0 %v3674
        %v3711 = vpop.xlane.xlu0 %3710
        %3712 = vadd.xlane.f32.xlu0 %v3675
        %v3713 = vpop.xlane.xlu0 %3712
        %3714 = vadd.xlane.f32.xlu0 %v3676
        %v3715 = vpop.xlane.xlu0 %3714
        %3716 = vadd.xlane.f32.xlu0 %v3677
        %v3717 = vpop.xlane.xlu0 %3716
        %3718 = vadd.xlane.f32.xlu0 %v3678
        %v3719 = vpop.xlane.xlu0 %3718
        %3720 = vadd.xlane.f32.xlu0 %v3679
        %v3721 = vpop.xlane.xlu0 %3720
        %3722 = vadd.xlane.f32.xlu0 %v3680
        %v3723 = vpop.xlane.xlu0 %3722
        %3724 = vadd.xlane.f32.xlu0 %v3681
        %v3725 = vpop.xlane.xlu0 %3724
        %3726 = vadd.xlane.f32.xlu0 %v3682
        %v3727 = vpop.xlane.xlu0 %3726
        %3728 = vadd.xlane.f32.xlu0 %v3683
        %v3729 = vpop.xlane.xlu0 %3728
        %3730 = vadd.xlane.f32.xlu0 %v3684
        %v3731 = vpop.xlane.xlu0 %3730
        %3732 = vadd.xlane.f32.xlu0 %v3685
        %v3733 = vpop.xlane.xlu0 %3732
        %3734 = vadd.xlane.f32.xlu0 %v3686
        %v3735 = vpop.xlane.xlu0 %3734
        %3736 = vadd.xlane.f32.xlu0 %v3687
        %v3737 = vpop.xlane.xlu0 %3736
        %3738 = vadd.xlane.f32.xlu0 %v3688
        %v3739 = vpop.xlane.xlu0 %3738
        %3740 = vadd.xlane.f32.xlu0 %v3689
        %v3741 = vpop.xlane.xlu0 %3740
        %3742 = vadd.xlane.f32.xlu0 %v3690
        %v3743 = vpop.xlane.xlu0 %3742
        %3744 = vadd.xlane.f32.xlu0 %v3691
        %v3745 = vpop.xlane.xlu0 %3744
        %3746 = vadd.xlane.f32.xlu0 %v3692
        %v3747 = vpop.xlane.xlu0 %3746
        %3748 = vadd.xlane.f32.xlu0 %v3693
        %v3749 = vpop.xlane.xlu0 %3748
        %3750 = vadd.xlane.f32.xlu0 %v3694
        %v3751 = vpop.xlane.xlu0 %3750
        %3752 = vadd.xlane.f32.xlu0 %v3695
        %v3753 = vpop.xlane.xlu0 %3752
        %3754 = vadd.xlane.f32.xlu0 %v3696
        %v3755 = vpop.xlane.xlu0 %3754
        %3756 = vadd.xlane.f32.xlu0 %v3697
        %v3757 = vpop.xlane.xlu0 %3756
        %3758 = vadd.xlane.f32.xlu0 %v3698
        %v3759 = vpop.xlane.xlu0 %3758
        %3760 = vadd.xlane.f32.xlu0 %v3699
        %v3761 = vpop.xlane.xlu0 %3760
        %3762 = vadd.xlane.f32.xlu0 %v3700
        %v3763 = vpop.xlane.xlu0 %3762
        %3764 = vadd.xlane.f32.xlu0 %v3701
        %v3765 = vpop.xlane.xlu0 %3764
        %3766 = vadd.xlane.f32.xlu0 %v3702
        %v3767 = vpop.xlane.xlu0 %3766
        %3768 = vadd.xlane.f32.xlu0 %v3703
        %v3769 = vpop.xlane.xlu0 %3768
        %3770 = vadd.xlane.f32.xlu0 %v3704
        %v3771 = vpop.xlane.xlu0 %3770
        %3772 = vadd.xlane.f32.xlu0 %v3705
        %v3773 = vpop.xlane.xlu0 %3772
        %v3774 = vmul.f32 %v3711, %v1217
        %v3775 = vmul.f32 %v3713, %v1217
        %v3776 = vmul.f32 %v3715, %v1217
        %v3777 = vmul.f32 %v3717, %v1217
        %v3778 = vmul.f32 %v3719, %v1217
        %v3779 = vmul.f32 %v3721, %v1217
        %v3780 = vmul.f32 %v3723, %v1217
        %v3781 = vmul.f32 %v3725, %v1217
        %v3782 = vmul.f32 %v3727, %v1217
        %v3783 = vmul.f32 %v3729, %v1217
        %v3784 = vmul.f32 %v3731, %v1217
        %v3785 = vmul.f32 %v3733, %v1217
        %v3786 = vmul.f32 %v3735, %v1217
        %v3787 = vmul.f32 %v3737, %v1217
        %v3788 = vmul.f32 %v3739, %v1217
        %v3789 = vmul.f32 %v3741, %v1217
        %v3790 = vmul.f32 %v3743, %v1217
        %v3791 = vmul.f32 %v3745, %v1217
        %v3792 = vmul.f32 %v3747, %v1217
        %v3793 = vmul.f32 %v3749, %v1217
        %v3794 = vmul.f32 %v3751, %v1217
        %v3795 = vmul.f32 %v3753, %v1217
        %v3796 = vmul.f32 %v3755, %v1217
        %v3797 = vmul.f32 %v3757, %v1217
        %v3798 = vmul.f32 %v3759, %v1217
        %v3799 = vmul.f32 %v3761, %v1217
        %v3800 = vmul.f32 %v3763, %v1217
        %v3801 = vmul.f32 %v3765, %v1217
        %v3802 = vmul.f32 %v3767, %v1217
        %v3803 = vmul.f32 %v3769, %v1217
        %v3804 = vmul.f32 %v3771, %v1217
        %v3805 = vmul.f32 %v3773, %v1217
        %v3806 = vsub.f32 %v3674, %v3774
        %v3807 = vsub.f32 %v3675, %v3775
        %v3808 = vsub.f32 %v3676, %v3776
        %v3809 = vsub.f32 %v3677, %v3777
        %v3810 = vsub.f32 %v3678, %v3778
        %v3811 = vsub.f32 %v3679, %v3779
        %v3812 = vsub.f32 %v3680, %v3780
        %v3813 = vsub.f32 %v3681, %v3781
        %v3814 = vsub.f32 %v3682, %v3782
        %v3815 = vsub.f32 %v3683, %v3783
        %v3816 = vsub.f32 %v3684, %v3784
        %v3817 = vsub.f32 %v3685, %v3785
        %v3818 = vsub.f32 %v3686, %v3786
        %v3819 = vsub.f32 %v3687, %v3787
        %v3820 = vsub.f32 %v3688, %v3788
        %v3821 = vsub.f32 %v3689, %v3789
        %v3822 = vsub.f32 %v3690, %v3790
        %v3823 = vsub.f32 %v3691, %v3791
        %v3824 = vsub.f32 %v3692, %v3792
        %v3825 = vsub.f32 %v3693, %v3793
        %v3826 = vsub.f32 %v3694, %v3794
        %v3827 = vsub.f32 %v3695, %v3795
        %v3828 = vsub.f32 %v3696, %v3796
        %v3829 = vsub.f32 %v3697, %v3797
        %v3830 = vsub.f32 %v3698, %v3798
        %v3831 = vsub.f32 %v3699, %v3799
        %v3832 = vsub.f32 %v3700, %v3800
        %v3833 = vsub.f32 %v3701, %v3801
        %v3834 = vsub.f32 %v3702, %v3802
        %v3835 = vsub.f32 %v3703, %v3803
        %v3836 = vsub.f32 %v3704, %v3804
        %v3837 = vsub.f32 %v3705, %v3805
        %v3838 = vmul.f32 %v3806, %v3806
        %v3839 = vmul.f32 %v3807, %v3807
        %v3840 = vmul.f32 %v3808, %v3808
        %v3841 = vmul.f32 %v3809, %v3809
        %v3842 = vmul.f32 %v3810, %v3810
        %v3843 = vmul.f32 %v3811, %v3811
        %v3844 = vmul.f32 %v3812, %v3812
        %v3845 = vmul.f32 %v3813, %v3813
        %v3846 = vmul.f32 %v3814, %v3814
        %v3847 = vmul.f32 %v3815, %v3815
        %v3848 = vmul.f32 %v3816, %v3816
        %v3849 = vmul.f32 %v3817, %v3817
        %v3850 = vmul.f32 %v3818, %v3818
        %v3851 = vmul.f32 %v3819, %v3819
        %v3852 = vmul.f32 %v3820, %v3820
        %v3853 = vmul.f32 %v3821, %v3821
        %v3854 = vmul.f32 %v3822, %v3822
        %v3855 = vmul.f32 %v3823, %v3823
        %v3856 = vmul.f32 %v3824, %v3824
        %v3857 = vmul.f32 %v3825, %v3825
        %v3858 = vmul.f32 %v3826, %v3826
        %v3859 = vmul.f32 %v3827, %v3827
        %v3860 = vmul.f32 %v3828, %v3828
        %v3861 = vmul.f32 %v3829, %v3829
        %v3862 = vmul.f32 %v3830, %v3830
        %v3863 = vmul.f32 %v3831, %v3831
        %v3864 = vmul.f32 %v3832, %v3832
        %v3865 = vmul.f32 %v3833, %v3833
        %v3866 = vmul.f32 %v3834, %v3834
        %v3867 = vmul.f32 %v3835, %v3835
        %v3868 = vmul.f32 %v3836, %v3836
        %v3869 = vmul.f32 %v3837, %v3837
        %3870 = vadd.xlane.f32.xlu0 %v3838
        %v3871 = vpop.xlane.xlu0 %3870
        %3872 = vadd.xlane.f32.xlu0 %v3839
        %v3873 = vpop.xlane.xlu0 %3872
        %3874 = vadd.xlane.f32.xlu0 %v3840
        %v3875 = vpop.xlane.xlu0 %3874
        %3876 = vadd.xlane.f32.xlu0 %v3841
        %v3877 = vpop.xlane.xlu0 %3876
        %3878 = vadd.xlane.f32.xlu0 %v3842
        %v3879 = vpop.xlane.xlu0 %3878
        %3880 = vadd.xlane.f32.xlu0 %v3843
        %v3881 = vpop.xlane.xlu0 %3880
        %3882 = vadd.xlane.f32.xlu0 %v3844
        %v3883 = vpop.xlane.xlu0 %3882
        %3884 = vadd.xlane.f32.xlu0 %v3845
        %v3885 = vpop.xlane.xlu0 %3884
        %3886 = vadd.xlane.f32.xlu0 %v3846
        %v3887 = vpop.xlane.xlu0 %3886
        %3888 = vadd.xlane.f32.xlu0 %v3847
        %v3889 = vpop.xlane.xlu0 %3888
        %3890 = vadd.xlane.f32.xlu0 %v3848
        %v3891 = vpop.xlane.xlu0 %3890
        %3892 = vadd.xlane.f32.xlu0 %v3849
        %v3893 = vpop.xlane.xlu0 %3892
        %3894 = vadd.xlane.f32.xlu0 %v3850
        %v3895 = vpop.xlane.xlu0 %3894
        %3896 = vadd.xlane.f32.xlu0 %v3851
        %v3897 = vpop.xlane.xlu0 %3896
        %3898 = vadd.xlane.f32.xlu0 %v3852
        %v3899 = vpop.xlane.xlu0 %3898
        %3900 = vadd.xlane.f32.xlu0 %v3853
        %v3901 = vpop.xlane.xlu0 %3900
        %3902 = vadd.xlane.f32.xlu0 %v3854
        %v3903 = vpop.xlane.xlu0 %3902
        %3904 = vadd.xlane.f32.xlu0 %v3855
        %v3905 = vpop.xlane.xlu0 %3904
        %3906 = vadd.xlane.f32.xlu0 %v3856
        %v3907 = vpop.xlane.xlu0 %3906
        %3908 = vadd.xlane.f32.xlu0 %v3857
        %v3909 = vpop.xlane.xlu0 %3908
        %3910 = vadd.xlane.f32.xlu0 %v3858
        %v3911 = vpop.xlane.xlu0 %3910
        %3912 = vadd.xlane.f32.xlu0 %v3859
        %v3913 = vpop.xlane.xlu0 %3912
        %3914 = vadd.xlane.f32.xlu0 %v3860
        %v3915 = vpop.xlane.xlu0 %3914
        %3916 = vadd.xlane.f32.xlu0 %v3861
        %v3917 = vpop.xlane.xlu0 %3916
        %3918 = vadd.xlane.f32.xlu0 %v3862
        %v3919 = vpop.xlane.xlu0 %3918
        %3920 = vadd.xlane.f32.xlu0 %v3863
        %v3921 = vpop.xlane.xlu0 %3920
        %3922 = vadd.xlane.f32.xlu0 %v3864
        %v3923 = vpop.xlane.xlu0 %3922
        %3924 = vadd.xlane.f32.xlu0 %v3865
        %v3925 = vpop.xlane.xlu0 %3924
        %3926 = vadd.xlane.f32.xlu0 %v3866
        %v3927 = vpop.xlane.xlu0 %3926
        %3928 = vadd.xlane.f32.xlu0 %v3867
        %v3929 = vpop.xlane.xlu0 %3928
        %3930 = vadd.xlane.f32.xlu0 %v3868
        %v3931 = vpop.xlane.xlu0 %3930
        %3932 = vadd.xlane.f32.xlu0 %v3869
        %v3933 = vpop.xlane.xlu0 %3932
        %v3934 = vmul.f32 %v3871, %v1217
        %v3935 = vmul.f32 %v3873, %v1217
        %v3936 = vmul.f32 %v3875, %v1217
        %v3937 = vmul.f32 %v3877, %v1217
        %v3938 = vmul.f32 %v3879, %v1217
        %v3939 = vmul.f32 %v3881, %v1217
        %v3940 = vmul.f32 %v3883, %v1217
        %v3941 = vmul.f32 %v3885, %v1217
        %v3942 = vmul.f32 %v3887, %v1217
        %v3943 = vmul.f32 %v3889, %v1217
        %v3944 = vmul.f32 %v3891, %v1217
        %v3945 = vmul.f32 %v3893, %v1217
        %v3946 = vmul.f32 %v3895, %v1217
        %v3947 = vmul.f32 %v3897, %v1217
        %v3948 = vmul.f32 %v3899, %v1217
        %v3949 = vmul.f32 %v3901, %v1217
        %v3950 = vmul.f32 %v3903, %v1217
        %v3951 = vmul.f32 %v3905, %v1217
        %v3952 = vmul.f32 %v3907, %v1217
        %v3953 = vmul.f32 %v3909, %v1217
        %v3954 = vmul.f32 %v3911, %v1217
        %v3955 = vmul.f32 %v3913, %v1217
        %v3956 = vmul.f32 %v3915, %v1217
        %v3957 = vmul.f32 %v3917, %v1217
        %v3958 = vmul.f32 %v3919, %v1217
        %v3959 = vmul.f32 %v3921, %v1217
        %v3960 = vmul.f32 %v3923, %v1217
        %v3961 = vmul.f32 %v3925, %v1217
        %v3962 = vmul.f32 %v3927, %v1217
        %v3963 = vmul.f32 %v3929, %v1217
        %v3964 = vmul.f32 %v3931, %v1217
        %v3965 = vmul.f32 %v3933, %v1217
        %v3966 = vadd.f32 %v3934, 1e-05
        %v3967 = vadd.f32 %v3935, 1e-05
        %v3968 = vadd.f32 %v3936, 1e-05
        %v3969 = vadd.f32 %v3937, 1e-05
        %v3970 = vadd.f32 %v3938, 1e-05
        %v3971 = vadd.f32 %v3939, 1e-05
        %v3972 = vadd.f32 %v3940, 1e-05
        %v3973 = vadd.f32 %v3941, 1e-05
        %v3974 = vadd.f32 %v3942, 1e-05
        %v3975 = vadd.f32 %v3943, 1e-05
        %v3976 = vadd.f32 %v3944, 1e-05
        %v3977 = vadd.f32 %v3945, 1e-05
        %v3978 = vadd.f32 %v3946, 1e-05
        %v3979 = vadd.f32 %v3947, 1e-05
        %v3980 = vadd.f32 %v3948, 1e-05
        %v3981 = vadd.f32 %v3949, 1e-05
        %v3982 = vadd.f32 %v3950, 1e-05
        %v3983 = vadd.f32 %v3951, 1e-05
        %v3984 = vadd.f32 %v3952, 1e-05
        %v3985 = vadd.f32 %v3953, 1e-05
        %v3986 = vadd.f32 %v3954, 1e-05
        %v3987 = vadd.f32 %v3955, 1e-05
        %v3988 = vadd.f32 %v3956, 1e-05
        %v3989 = vadd.f32 %v3957, 1e-05
        %v3990 = vadd.f32 %v3958, 1e-05
        %v3991 = vadd.f32 %v3959, 1e-05
        %v3992 = vadd.f32 %v3960, 1e-05
        %v3993 = vadd.f32 %v3961, 1e-05
        %v3994 = vadd.f32 %v3962, 1e-05
        %v3995 = vadd.f32 %v3963, 1e-05
        %v3996 = vadd.f32 %v3964, 1e-05
        %v3997 = vadd.f32 %v3965, 1e-05
        %v3998 = vrsqrt.pop %v3966
        %v3999 = vrsqrt.pop %v3967
        %v4000 = vrsqrt.pop %v3968
        %v4001 = vrsqrt.pop %v3969
        %v4002 = vrsqrt.pop %v3970
        %v4003 = vrsqrt.pop %v3971
        %v4004 = vrsqrt.pop %v3972
        %v4005 = vrsqrt.pop %v3973
        %v4006 = vrsqrt.pop %v3974
        %v4007 = vrsqrt.pop %v3975
        %v4008 = vrsqrt.pop %v3976
        %v4009 = vrsqrt.pop %v3977
        %v4010 = vrsqrt.pop %v3978
        %v4011 = vrsqrt.pop %v3979
        %v4012 = vrsqrt.pop %v3980
        %v4013 = vrsqrt.pop %v3981
        %v4014 = vrsqrt.pop %v3982
        %v4015 = vrsqrt.pop %v3983
        %v4016 = vrsqrt.pop %v3984
        %v4017 = vrsqrt.pop %v3985
        %v4018 = vrsqrt.pop %v3986
        %v4019 = vrsqrt.pop %v3987
        %v4020 = vrsqrt.pop %v3988
        %v4021 = vrsqrt.pop %v3989
        %v4022 = vrsqrt.pop %v3990
        %v4023 = vrsqrt.pop %v3991
        %v4024 = vrsqrt.pop %v3992
        %v4025 = vrsqrt.pop %v3993
        %v4026 = vrsqrt.pop %v3994
        %v4027 = vrsqrt.pop %v3995
        %v4028 = vrsqrt.pop %v3996
        %v4029 = vrsqrt.pop %v3997
        %v4030 = vmul.f32 %v3806, %v3998
        %v4031 = vmul.f32 %v3807, %v3999
        %v4032 = vmul.f32 %v3808, %v4000
        %v4033 = vmul.f32 %v3809, %v4001
        %v4034 = vmul.f32 %v3810, %v4002
        %v4035 = vmul.f32 %v3811, %v4003
        %v4036 = vmul.f32 %v3812, %v4004
        %v4037 = vmul.f32 %v3813, %v4005
        %v4038 = vmul.f32 %v3814, %v4006
        %v4039 = vmul.f32 %v3815, %v4007
        %v4040 = vmul.f32 %v3816, %v4008
        %v4041 = vmul.f32 %v3817, %v4009
        %v4042 = vmul.f32 %v3818, %v4010
        %v4043 = vmul.f32 %v3819, %v4011
        %v4044 = vmul.f32 %v3820, %v4012
        %v4045 = vmul.f32 %v3821, %v4013
        %v4046 = vmul.f32 %v3822, %v4014
        %v4047 = vmul.f32 %v3823, %v4015
        %v4048 = vmul.f32 %v3824, %v4016
        %v4049 = vmul.f32 %v3825, %v4017
        %v4050 = vmul.f32 %v3826, %v4018
        %v4051 = vmul.f32 %v3827, %v4019
        %v4052 = vmul.f32 %v3828, %v4020
        %v4053 = vmul.f32 %v3829, %v4021
        %v4054 = vmul.f32 %v3830, %v4022
        %v4055 = vmul.f32 %v3831, %v4023
        %v4056 = vmul.f32 %v3832, %v4024
        %v4057 = vmul.f32 %v3833, %v4025
        %v4058 = vmul.f32 %v3834, %v4026
        %v4059 = vmul.f32 %v3835, %v4027
        %v4060 = vmul.f32 %v3836, %v4028
        %v4061 = vmul.f32 %v3837, %v4029
        %v4063 = vlaneseq
        %v4064 = vshrl.u32 %v4063, 7
        %v4065 = vsub.s32 0, %v4064
        %v4066 = vrot.slane %v3707, %v4065
        %v4068 = vmul.f32 %v4030, %v4066
        %v4069 = vmul.f32 %v4031, %v4066
        %v4070 = vmul.f32 %v4032, %v4066
        %v4071 = vmul.f32 %v4033, %v4066
        %v4072 = vmul.f32 %v4034, %v4066
        %v4073 = vmul.f32 %v4035, %v4066
        %v4074 = vmul.f32 %v4036, %v4066
        %v4075 = vmul.f32 %v4037, %v4066
        %v4076 = vmul.f32 %v4038, %v4066
        %v4077 = vmul.f32 %v4039, %v4066
        %v4078 = vmul.f32 %v4040, %v4066
        %v4079 = vmul.f32 %v4041, %v4066
        %v4080 = vmul.f32 %v4042, %v4066
        %v4081 = vmul.f32 %v4043, %v4066
        %v4082 = vmul.f32 %v4044, %v4066
        %v4083 = vmul.f32 %v4045, %v4066
        %v4084 = vmul.f32 %v4046, %v4066
        %v4085 = vmul.f32 %v4047, %v4066
        %v4086 = vmul.f32 %v4048, %v4066
        %v4087 = vmul.f32 %v4049, %v4066
        %v4088 = vmul.f32 %v4050, %v4066
        %v4089 = vmul.f32 %v4051, %v4066
        %v4090 = vmul.f32 %v4052, %v4066
        %v4091 = vmul.f32 %v4053, %v4066
        %v4092 = vmul.f32 %v4054, %v4066
        %v4093 = vmul.f32 %v4055, %v4066
        %v4094 = vmul.f32 %v4056, %v4066
        %v4095 = vmul.f32 %v4057, %v4066
        %v4096 = vmul.f32 %v4058, %v4066
        %v4097 = vmul.f32 %v4059, %v4066
        %v4098 = vmul.f32 %v4060, %v4066
        %v4099 = vmul.f32 %v4061, %v4066
        %v4101 = vlaneseq
        %v4102 = vshrl.u32 %v4101, 7
        %v4103 = vsub.s32 0, %v4102
        %v4104 = vrot.slane %v3709, %v4103
        %v4106 = vadd.f32 %v4068, %v4104
        %v4107 = vadd.f32 %v4069, %v4104
        %v4108 = vadd.f32 %v4070, %v4104
        %v4109 = vadd.f32 %v4071, %v4104
        %v4110 = vadd.f32 %v4072, %v4104
        %v4111 = vadd.f32 %v4073, %v4104
        %v4112 = vadd.f32 %v4074, %v4104
        %v4113 = vadd.f32 %v4075, %v4104
        %v4114 = vadd.f32 %v4076, %v4104
        %v4115 = vadd.f32 %v4077, %v4104
        %v4116 = vadd.f32 %v4078, %v4104
        %v4117 = vadd.f32 %v4079, %v4104
        %v4118 = vadd.f32 %v4080, %v4104
        %v4119 = vadd.f32 %v4081, %v4104
        %v4120 = vadd.f32 %v4082, %v4104
        %v4121 = vadd.f32 %v4083, %v4104
        %v4122 = vadd.f32 %v4084, %v4104
        %v4123 = vadd.f32 %v4085, %v4104
        %v4124 = vadd.f32 %v4086, %v4104
        %v4125 = vadd.f32 %v4087, %v4104
        %v4126 = vadd.f32 %v4088, %v4104
        %v4127 = vadd.f32 %v4089, %v4104
        %v4128 = vadd.f32 %v4090, %v4104
        %v4129 = vadd.f32 %v4091, %v4104
        %v4130 = vadd.f32 %v4092, %v4104
        %v4131 = vadd.f32 %v4093, %v4104
        %v4132 = vadd.f32 %v4094, %v4104
        %v4133 = vadd.f32 %v4095, %v4104
        %v4134 = vadd.f32 %v4096, %v4104
        %v4135 = vadd.f32 %v4097, %v4104
        %v4136 = vadd.f32 %v4098, %v4104
        %v4137 = vadd.f32 %v4099, %v4104
        %v4138 = vpack.c.bf16 %v4107, %v4106
        %v4139 = vpack.c.bf16 %v4109, %v4108
        %v4140 = vpack.c.bf16 %v4111, %v4110
        %v4141 = vpack.c.bf16 %v4113, %v4112
        %v4142 = vpack.c.bf16 %v4115, %v4114
        %v4143 = vpack.c.bf16 %v4117, %v4116
        %v4144 = vpack.c.bf16 %v4119, %v4118
        %v4145 = vpack.c.bf16 %v4121, %v4120
        %v4146 = vpack.c.bf16 %v4123, %v4122
        %v4147 = vpack.c.bf16 %v4125, %v4124
        %v4148 = vpack.c.bf16 %v4127, %v4126
        %v4149 = vpack.c.bf16 %v4129, %v4128
        %v4150 = vpack.c.bf16 %v4131, %v4130
        %v4151 = vpack.c.bf16 %v4133, %v4132
        %v4152 = vpack.c.bf16 %v4135, %v4134
        %v4153 = vpack.c.bf16 %v4137, %v4136
        %s4154 = scalar_lea.vmem [#allocation5], 576
        %v4155 = vld [vmem:[%s4154] sm:$0xf]
        %v4156 = vld [vmem:[%s4154 + $0x4] sm:$0xf]
        %v4157 = vld [vmem:[%s4154 + $0x8] sm:$0xf]
        %v4158 = vld [vmem:[%s4154 + $0xc] sm:$0xf]
        %v4159 = vld [vmem:[%s4154 + $0x10] sm:$0xf]
        %v4160 = vld [vmem:[%s4154 + $0x14] sm:$0xf]
        %v4161 = vld [vmem:[%s4154 + $0x18] sm:$0xf]
        %v4162 = vld [vmem:[%s4154 + $0x1c] sm:$0xf]
        %v4163 = vld [vmem:[%s4154 + $0x20] sm:$0xf]
        %v4164 = vld [vmem:[%s4154 + $0x24] sm:$0xf]
        %v4165 = vld [vmem:[%s4154 + $0x28] sm:$0xf]
        %v4166 = vld [vmem:[%s4154 + $0x2c] sm:$0xf]
        %v4167 = vld [vmem:[%s4154 + $0x30] sm:$0xf]
        %v4168 = vld [vmem:[%s4154 + $0x34] sm:$0xf]
        %v4169 = vld [vmem:[%s4154 + $0x38] sm:$0xf]
        %v4170 = vld [vmem:[%s4154 + $0x3c] sm:$0xf]
        %s4171 = scalar_lea.vmem [#allocation7], 9
        %v4172 = vld [vmem:[%s4171] sm:$0x1]
        %v4174 = vlaneseq
        %v4175 = vshrl.u32 %v4174, 7
        %v4176 = vsub.s32 0, %v4175
        %v4177 = vrot.slane %v4172, %v4176
        %v4195 = vunpack.c.l.b16 %v4155
        %v4196 = vunpack.c.l.b16 %v4156
        %v4197 = vunpack.c.l.b16 %v4157
        %v4198 = vunpack.c.l.b16 %v4158
        %v4199 = vunpack.c.l.b16 %v4159
        %v4200 = vunpack.c.l.b16 %v4160
        %v4201 = vunpack.c.l.b16 %v4161
        %v4202 = vunpack.c.l.b16 %v4162
        %v4203 = vunpack.c.l.b16 %v4163
        %v4204 = vunpack.c.l.b16 %v4164
        %v4205 = vunpack.c.l.b16 %v4165
        %v4206 = vunpack.c.l.b16 %v4166
        %v4207 = vunpack.c.l.b16 %v4167
        %v4208 = vunpack.c.l.b16 %v4168
        %v4209 = vunpack.c.l.b16 %v4169
        %v4210 = vunpack.c.l.b16 %v4170
        %v4211 = vpack.c.b16 %v4196, %v4195
        %v4212 = vpack.c.b16 %v4198, %v4197
        %v4213 = vpack.c.b16 %v4200, %v4199
        %v4214 = vpack.c.b16 %v4202, %v4201
        %v4215 = vpack.c.b16 %v4204, %v4203
        %v4216 = vpack.c.b16 %v4206, %v4205
        %v4217 = vpack.c.b16 %v4208, %v4207
        %v4218 = vpack.c.b16 %v4210, %v4209
        %4227 = vmatprep.subr.bf16.mxu0 0
        %4228 = vmatpush1.bf16.msra.mxu0 %v4211
        %4229 = vmatprep.subr.bf16.mxu0 0
        %4230 = vmatpush1.bf16.msra.mxu0 %v4212
        %4231 = vmatprep.subr.bf16.mxu0 0
        %4232 = vmatpush1.bf16.msra.mxu0 %v4213
        %4233 = vmatprep.subr.bf16.mxu0 0
        %4234 = vmatpush1.bf16.msra.mxu0 %v4214
        %4235 = vmatprep.subr.bf16.mxu0 0
        %4236 = vmatpush1.bf16.msra.mxu0 %v4215
        %4237 = vmatprep.subr.bf16.mxu0 0
        %4238 = vmatpush1.bf16.msra.mxu0 %v4216
        %4239 = vmatprep.subr.bf16.mxu0 0
        %4240 = vmatpush1.bf16.msra.mxu0 %v4217
        %4241 = vmatprep.subr.bf16.mxu0 0
        %4242 = vmatpush1.bf16.msra.mxu0 %v4218
        %4243 = vmatprep.subr.bf16.mxu0 0
        %4244 = vmatpush1.bf16.msra.mxu0 0
        %4245 = vmatprep.subr.bf16.mxu0 0
        %4246 = vmatpush1.bf16.msra.mxu0 0
        %4247 = vmatprep.subr.bf16.mxu0 0
        %4248 = vmatpush1.bf16.msra.mxu0 0
        %4249 = vmatprep.subr.bf16.mxu0 0
        %4250 = vmatpush1.bf16.msra.mxu0 0
        %4251 = vmatprep.subr.bf16.mxu0 0
        %4252 = vmatpush1.bf16.msra.mxu0 0
        %4253 = vmatprep.subr.bf16.mxu0 0
        %4254 = vmatpush1.bf16.msra.mxu0 0
        %4255 = vmatprep.subr.bf16.mxu0 0
        %4256 = vmatpush1.bf16.msra.mxu0 0
        %4257 = vmatprep.subr.bf16.mxu0 0
        %4258 = vmatpush1.bf16.msra.mxu0 0
        %4259 = vmatprep.mubr.bf16.mxu0 0
        %4260 = vmatmul.mubr.bf16.gmra.mrb[0].mxu0 %v4138
        %v4261 = vpop.f32.mrb[0].mxu0
        %v4262 = vadd.f32 %v4177, %v4261
        %v4263 = vpop.f32.mrb[0].mxu0
        %v4264 = vpop.f32.mrb[0].mxu0
        %v4265 = vadd.f32 %v4177, %v4264
        %v4266 = vpop.f32.mrb[0].mxu0
        %4267 = vmatprep.mubr.bf16.mxu0 0
        %4268 = vmatmul.mubr.bf16.gmra.mrb[0].mxu0 %v4139
        %v4269 = vpop.f32.mrb[0].mxu0
        %v4270 = vadd.f32 %v4177, %v4269
        %v4271 = vpop.f32.mrb[0].mxu0
        %v4272 = vpop.f32.mrb[0].mxu0
        %v4273 = vadd.f32 %v4177, %v4272
        %v4274 = vpop.f32.mrb[0].mxu0
        %4275 = vmatprep.mubr.bf16.mxu0 0
        %4276 = vmatmul.mubr.bf16.gmra.mrb[0].mxu0 %v4140
        %v4277 = vpop.f32.mrb[0].mxu0
        %v4278 = vadd.f32 %v4177, %v4277
        %v4279 = vpop.f32.mrb[0].mxu0
        %v4280 = vpop.f32.mrb[0].mxu0
        %v4281 = vadd.f32 %v4177, %v4280
        %v4282 = vpop.f32.mrb[0].mxu0
        %4283 = vmatprep.mubr.bf16.mxu0 0
        %4284 = vmatmul.mubr.bf16.gmra.mrb[0].mxu0 %v4141
        %v4285 = vpop.f32.mrb[0].mxu0
        %v4286 = vadd.f32 %v4177, %v4285
        %v4287 = vpop.f32.mrb[0].mxu0
        %v4288 = vpop.f32.mrb[0].mxu0
        %v4289 = vadd.f32 %v4177, %v4288
        %v4290 = vpop.f32.mrb[0].mxu0
        %4291 = vmatprep.mubr.bf16.mxu0 0
        %4292 = vmatmul.mubr.bf16.gmra.mrb[0].mxu0 %v4142
        %v4293 = vpop.f32.mrb[0].mxu0
        %v4294 = vadd.f32 %v4177, %v4293
        %v4295 = vpop.f32.mrb[0].mxu0
        %v4296 = vpop.f32.mrb[0].mxu0
        %v4297 = vadd.f32 %v4177, %v4296
        %v4298 = vpop.f32.mrb[0].mxu0
        %4299 = vmatprep.mubr.bf16.mxu0 0
        %4300 = vmatmul.mubr.bf16.gmra.mrb[0].mxu0 %v4143
        %v4301 = vpop.f32.mrb[0].mxu0
        %v4302 = vadd.f32 %v4177, %v4301
        %v4303 = vpop.f32.mrb[0].mxu0
        %v4304 = vpop.f32.mrb[0].mxu0
        %v4305 = vadd.f32 %v4177, %v4304
        %v4306 = vpop.f32.mrb[0].mxu0
        %4307 = vmatprep.mubr.bf16.mxu0 0
        %4308 = vmatmul.mubr.bf16.gmra.mrb[0].mxu0 %v4144
        %v4309 = vpop.f32.mrb[0].mxu0
        %v4310 = vadd.f32 %v4177, %v4309
        %v4311 = vpop.f32.mrb[0].mxu0
        %v4312 = vpop.f32.mrb[0].mxu0
        %v4313 = vadd.f32 %v4177, %v4312
        %v4314 = vpop.f32.mrb[0].mxu0
        %4315 = vmatprep.mubr.bf16.mxu0 0
        %4316 = vmatmul.mubr.bf16.gmra.mrb[0].mxu0 %v4145
        %v4317 = vpop.f32.mrb[0].mxu0
        %v4318 = vadd.f32 %v4177, %v4317
        %v4319 = vpop.f32.mrb[0].mxu0
        %v4320 = vpop.f32.mrb[0].mxu0
        %v4321 = vadd.f32 %v4177, %v4320
        %v4322 = vpop.f32.mrb[0].mxu0
        %4323 = vmatprep.mubr.bf16.mxu0 0
        %4324 = vmatmul.mubr.bf16.gmra.mrb[0].mxu0 %v4146
        %v4325 = vpop.f32.mrb[0].mxu0
        %v4326 = vadd.f32 %v4177, %v4325
        %v4327 = vpop.f32.mrb[0].mxu0
        %v4328 = vpop.f32.mrb[0].mxu0
        %v4329 = vadd.f32 %v4177, %v4328
        %v4330 = vpop.f32.mrb[0].mxu0
        %4331 = vmatprep.mubr.bf16.mxu0 0
        %4332 = vmatmul.mubr.bf16.gmra.mrb[0].mxu0 %v4147
        %v4333 = vpop.f32.mrb[0].mxu0
        %v4334 = vadd.f32 %v4177, %v4333
        %v4335 = vpop.f32.mrb[0].mxu0
        %v4336 = vpop.f32.mrb[0].mxu0
        %v4337 = vadd.f32 %v4177, %v4336
        %v4338 = vpop.f32.mrb[0].mxu0
        %4339 = vmatprep.mubr.bf16.mxu0 0
        %4340 = vmatmul.mubr.bf16.gmra.mrb[0].mxu0 %v4148
        %v4341 = vpop.f32.mrb[0].mxu0
        %v4342 = vadd.f32 %v4177, %v4341
        %v4343 = vpop.f32.mrb[0].mxu0
        %v4344 = vpop.f32.mrb[0].mxu0
        %v4345 = vadd.f32 %v4177, %v4344
        %v4346 = vpop.f32.mrb[0].mxu0
        %4347 = vmatprep.mubr.bf16.mxu0 0
        %4348 = vmatmul.mubr.bf16.gmra.mrb[0].mxu0 %v4149
        %v4349 = vpop.f32.mrb[0].mxu0
        %v4350 = vadd.f32 %v4177, %v4349
        %v4351 = vpop.f32.mrb[0].mxu0
        %v4352 = vpop.f32.mrb[0].mxu0
        %v4353 = vadd.f32 %v4177, %v4352
        %v4354 = vpop.f32.mrb[0].mxu0
        %4355 = vmatprep.mubr.bf16.mxu0 0
        %4356 = vmatmul.mubr.bf16.gmra.mrb[0].mxu0 %v4150
        %v4357 = vpop.f32.mrb[0].mxu0
        %v4358 = vadd.f32 %v4177, %v4357
        %v4359 = vpop.f32.mrb[0].mxu0
        %v4360 = vpop.f32.mrb[0].mxu0
        %v4361 = vadd.f32 %v4177, %v4360
        %v4362 = vpop.f32.mrb[0].mxu0
        %4363 = vmatprep.mubr.bf16.mxu0 0
        %4364 = vmatmul.mubr.bf16.gmra.mrb[0].mxu0 %v4151
        %v4365 = vpop.f32.mrb[0].mxu0
        %v4366 = vadd.f32 %v4177, %v4365
        %v4367 = vpop.f32.mrb[0].mxu0
        %v4368 = vpop.f32.mrb[0].mxu0
        %v4369 = vadd.f32 %v4177, %v4368
        %v4370 = vpop.f32.mrb[0].mxu0
        %4371 = vmatprep.mubr.bf16.mxu0 0
        %4372 = vmatmul.mubr.bf16.gmra.mrb[0].mxu0 %v4152
        %v4373 = vpop.f32.mrb[0].mxu0
        %v4374 = vadd.f32 %v4177, %v4373
        %v4375 = vpop.f32.mrb[0].mxu0
        %v4376 = vpop.f32.mrb[0].mxu0
        %v4377 = vadd.f32 %v4177, %v4376
        %v4378 = vpop.f32.mrb[0].mxu0
        %4379 = vmatprep.mubr.bf16.mxu0 0
        %4380 = vmatmul.mubr.bf16.gmra.mrb[0].mxu0 %v4153
        %v4381 = vpop.f32.mrb[0].mxu0
        %v4382 = vadd.f32 %v4177, %v4381
        %v4383 = vpop.f32.mrb[0].mxu0
        %v4384 = vpop.f32.mrb[0].mxu0
        %v4385 = vadd.f32 %v4177, %v4384
        %v4386 = vpop.f32.mrb[0].mxu0
        %4387 = vdwg.mxu0
        %v4388 = vmax.f32 %v4262, 0.0
        %v4389 = vmax.f32 %v4265, 0.0
        %v4390 = vmax.f32 %v4270, 0.0
        %v4391 = vmax.f32 %v4273, 0.0
        %v4392 = vmax.f32 %v4278, 0.0
        %v4393 = vmax.f32 %v4281, 0.0
        %v4394 = vmax.f32 %v4286, 0.0
        %v4395 = vmax.f32 %v4289, 0.0
        %v4396 = vmax.f32 %v4294, 0.0
        %v4397 = vmax.f32 %v4297, 0.0
        %v4398 = vmax.f32 %v4302, 0.0
        %v4399 = vmax.f32 %v4305, 0.0
        %v4400 = vmax.f32 %v4310, 0.0
        %v4401 = vmax.f32 %v4313, 0.0
        %v4402 = vmax.f32 %v4318, 0.0
        %v4403 = vmax.f32 %v4321, 0.0
        %v4404 = vmax.f32 %v4326, 0.0
        %v4405 = vmax.f32 %v4329, 0.0
        %v4406 = vmax.f32 %v4334, 0.0
        %v4407 = vmax.f32 %v4337, 0.0
        %v4408 = vmax.f32 %v4342, 0.0
        %v4409 = vmax.f32 %v4345, 0.0
        %v4410 = vmax.f32 %v4350, 0.0
        %v4411 = vmax.f32 %v4353, 0.0
        %v4412 = vmax.f32 %v4358, 0.0
        %v4413 = vmax.f32 %v4361, 0.0
        %v4414 = vmax.f32 %v4366, 0.0
        %v4415 = vmax.f32 %v4369, 0.0
        %v4416 = vmax.f32 %v4374, 0.0
        %v4417 = vmax.f32 %v4377, 0.0
        %v4418 = vmax.f32 %v4382, 0.0
        %v4419 = vmax.f32 %v4385, 0.0
        %v4420 = vpack.c.bf16 %v4389, %v4388
        %v4421 = vpack.c.bf16 %v4391, %v4390
        %v4422 = vpack.c.bf16 %v4393, %v4392
        %v4423 = vpack.c.bf16 %v4395, %v4394
        %v4424 = vpack.c.bf16 %v4397, %v4396
        %v4425 = vpack.c.bf16 %v4399, %v4398
        %v4426 = vpack.c.bf16 %v4401, %v4400
        %v4427 = vpack.c.bf16 %v4403, %v4402
        %v4428 = vpack.c.bf16 %v4405, %v4404
        %v4429 = vpack.c.bf16 %v4407, %v4406
        %v4430 = vpack.c.bf16 %v4409, %v4408
        %v4431 = vpack.c.bf16 %v4411, %v4410
        %v4432 = vpack.c.bf16 %v4413, %v4412
        %v4433 = vpack.c.bf16 %v4415, %v4414
        %v4434 = vpack.c.bf16 %v4417, %v4416
        %v4435 = vpack.c.bf16 %v4419, %v4418
        %s4436 = scalar_lea.vmem [#allocation5], 640
        %v4437 = vld [vmem:[%s4436] sm:$0xf]
        %v4438 = vld [vmem:[%s4436 + $0x4] sm:$0xf]
        %v4439 = vld [vmem:[%s4436 + $0x8] sm:$0xf]
        %v4440 = vld [vmem:[%s4436 + $0xc] sm:$0xf]
        %v4441 = vld [vmem:[%s4436 + $0x10] sm:$0xf]
        %v4442 = vld [vmem:[%s4436 + $0x14] sm:$0xf]
        %v4443 = vld [vmem:[%s4436 + $0x18] sm:$0xf]
        %v4444 = vld [vmem:[%s4436 + $0x1c] sm:$0xf]
        %v4445 = vld [vmem:[%s4436 + $0x20] sm:$0xf]
        %v4446 = vld [vmem:[%s4436 + $0x24] sm:$0xf]
        %v4447 = vld [vmem:[%s4436 + $0x28] sm:$0xf]
        %v4448 = vld [vmem:[%s4436 + $0x2c] sm:$0xf]
        %v4449 = vld [vmem:[%s4436 + $0x30] sm:$0xf]
        %v4450 = vld [vmem:[%s4436 + $0x34] sm:$0xf]
        %v4451 = vld [vmem:[%s4436 + $0x38] sm:$0xf]
        %v4452 = vld [vmem:[%s4436 + $0x3c] sm:$0xf]
        %s4453 = scalar_lea.vmem [#allocation7], 10
        %v4454 = vld [vmem:[%s4453] sm:$0x1]
        %v4456 = vlaneseq
        %v4457 = vshrl.u32 %v4456, 7
        %v4458 = vsub.s32 0, %v4457
        %v4459 = vrot.slane %v4454, %v4458
        %v4477 = vunpack.c.l.b16 %v4437
        %v4478 = vunpack.c.l.b16 %v4438
        %v4479 = vunpack.c.l.b16 %v4439
        %v4480 = vunpack.c.l.b16 %v4440
        %v4481 = vunpack.c.l.b16 %v4441
        %v4482 = vunpack.c.l.b16 %v4442
        %v4483 = vunpack.c.l.b16 %v4443
        %v4484 = vunpack.c.l.b16 %v4444
        %v4485 = vunpack.c.l.b16 %v4445
        %v4486 = vunpack.c.l.b16 %v4446
        %v4487 = vunpack.c.l.b16 %v4447
        %v4488 = vunpack.c.l.b16 %v4448
        %v4489 = vunpack.c.l.b16 %v4449
        %v4490 = vunpack.c.l.b16 %v4450
        %v4491 = vunpack.c.l.b16 %v4451
        %v4492 = vunpack.c.l.b16 %v4452
        %v4493 = vpack.c.b16 %v4478, %v4477
        %v4494 = vpack.c.b16 %v4480, %v4479
        %v4495 = vpack.c.b16 %v4482, %v4481
        %v4496 = vpack.c.b16 %v4484, %v4483
        %v4497 = vpack.c.b16 %v4486, %v4485
        %v4498 = vpack.c.b16 %v4488, %v4487
        %v4499 = vpack.c.b16 %v4490, %v4489
        %v4500 = vpack.c.b16 %v4492, %v4491
        %4509 = vmatprep.subr.bf16.mxu0 0
        %4510 = vmatpush1.bf16.msra.mxu0 %v4493
        %4511 = vmatprep.subr.bf16.mxu0 0
        %4512 = vmatpush1.bf16.msra.mxu0 %v4494
        %4513 = vmatprep.subr.bf16.mxu0 0
        %4514 = vmatpush1.bf16.msra.mxu0 %v4495
        %4515 = vmatprep.subr.bf16.mxu0 0
        %4516 = vmatpush1.bf16.msra.mxu0 %v4496
        %4517 = vmatprep.subr.bf16.mxu0 0
        %4518 = vmatpush1.bf16.msra.mxu0 %v4497
        %4519 = vmatprep.subr.bf16.mxu0 0
        %4520 = vmatpush1.bf16.msra.mxu0 %v4498
        %4521 = vmatprep.subr.bf16.mxu0 0
        %4522 = vmatpush1.bf16.msra.mxu0 %v4499
        %4523 = vmatprep.subr.bf16.mxu0 0
        %4524 = vmatpush1.bf16.msra.mxu0 %v4500
        %4525 = vmatprep.subr.bf16.mxu0 0
        %4526 = vmatpush1.bf16.msra.mxu0 0
        %4527 = vmatprep.subr.bf16.mxu0 0
        %4528 = vmatpush1.bf16.msra.mxu0 0
        %4529 = vmatprep.subr.bf16.mxu0 0
        %4530 = vmatpush1.bf16.msra.mxu0 0
        %4531 = vmatprep.subr.bf16.mxu0 0
        %4532 = vmatpush1.bf16.msra.mxu0 0
        %4533 = vmatprep.subr.bf16.mxu0 0
        %4534 = vmatpush1.bf16.msra.mxu0 0
        %4535 = vmatprep.subr.bf16.mxu0 0
        %4536 = vmatpush1.bf16.msra.mxu0 0
        %4537 = vmatprep.subr.bf16.mxu0 0
        %4538 = vmatpush1.bf16.msra.mxu0 0
        %4539 = vmatprep.subr.bf16.mxu0 0
        %4540 = vmatpush1.bf16.msra.mxu0 0
        %4541 = vmatprep.mubr.bf16.mxu0 0
        %4542 = vmatmul.mubr.bf16.gmra.mrb[0].mxu0 %v4420
        %v4543 = vpop.f32.mrb[0].mxu0
        %v4544 = vadd.f32 %v4459, %v4543
        %v4545 = vpop.f32.mrb[0].mxu0
        %v4546 = vpop.f32.mrb[0].mxu0
        %v4547 = vadd.f32 %v4459, %v4546
        %v4548 = vpop.f32.mrb[0].mxu0
        %4549 = vmatprep.mubr.bf16.mxu0 0
        %4550 = vmatmul.mubr.bf16.gmra.mrb[0].mxu0 %v4421
        %v4551 = vpop.f32.mrb[0].mxu0
        %v4552 = vadd.f32 %v4459, %v4551
        %v4553 = vpop.f32.mrb[0].mxu0
        %v4554 = vpop.f32.mrb[0].mxu0
        %v4555 = vadd.f32 %v4459, %v4554
        %v4556 = vpop.f32.mrb[0].mxu0
        %4557 = vmatprep.mubr.bf16.mxu0 0
        %4558 = vmatmul.mubr.bf16.gmra.mrb[0].mxu0 %v4422
        %v4559 = vpop.f32.mrb[0].mxu0
        %v4560 = vadd.f32 %v4459, %v4559
        %v4561 = vpop.f32.mrb[0].mxu0
        %v4562 = vpop.f32.mrb[0].mxu0
        %v4563 = vadd.f32 %v4459, %v4562
        %v4564 = vpop.f32.mrb[0].mxu0
        %4565 = vmatprep.mubr.bf16.mxu0 0
        %4566 = vmatmul.mubr.bf16.gmra.mrb[0].mxu0 %v4423
        %v4567 = vpop.f32.mrb[0].mxu0
        %v4568 = vadd.f32 %v4459, %v4567
        %v4569 = vpop.f32.mrb[0].mxu0
        %v4570 = vpop.f32.mrb[0].mxu0
        %v4571 = vadd.f32 %v4459, %v4570
        %v4572 = vpop.f32.mrb[0].mxu0
        %4573 = vmatprep.mubr.bf16.mxu0 0
        %4574 = vmatmul.mubr.bf16.gmra.mrb[0].mxu0 %v4424
        %v4575 = vpop.f32.mrb[0].mxu0
        %v4576 = vadd.f32 %v4459, %v4575
        %v4577 = vpop.f32.mrb[0].mxu0
        %v4578 = vpop.f32.mrb[0].mxu0
        %v4579 = vadd.f32 %v4459, %v4578
        %v4580 = vpop.f32.mrb[0].mxu0
        %4581 = vmatprep.mubr.bf16.mxu0 0
        %4582 = vmatmul.mubr.bf16.gmra.mrb[0].mxu0 %v4425
        %v4583 = vpop.f32.mrb[0].mxu0
        %v4584 = vadd.f32 %v4459, %v4583
        %v4585 = vpop.f32.mrb[0].mxu0
        %v4586 = vpop.f32.mrb[0].mxu0
        %v4587 = vadd.f32 %v4459, %v4586
        %v4588 = vpop.f32.mrb[0].mxu0
        %4589 = vmatprep.mubr.bf16.mxu0 0
        %4590 = vmatmul.mubr.bf16.gmra.mrb[0].mxu0 %v4426
        %v4591 = vpop.f32.mrb[0].mxu0
        %v4592 = vadd.f32 %v4459, %v4591
        %v4593 = vpop.f32.mrb[0].mxu0
        %v4594 = vpop.f32.mrb[0].mxu0
        %v4595 = vadd.f32 %v4459, %v4594
        %v4596 = vpop.f32.mrb[0].mxu0
        %4597 = vmatprep.mubr.bf16.mxu0 0
        %4598 = vmatmul.mubr.bf16.gmra.mrb[0].mxu0 %v4427
        %v4599 = vpop.f32.mrb[0].mxu0
        %v4600 = vadd.f32 %v4459, %v4599
        %v4601 = vpop.f32.mrb[0].mxu0
        %v4602 = vpop.f32.mrb[0].mxu0
        %v4603 = vadd.f32 %v4459, %v4602
        %v4604 = vpop.f32.mrb[0].mxu0
        %4605 = vmatprep.mubr.bf16.mxu0 0
        %4606 = vmatmul.mubr.bf16.gmra.mrb[0].mxu0 %v4428
        %v4607 = vpop.f32.mrb[0].mxu0
        %v4608 = vadd.f32 %v4459, %v4607
        %v4609 = vpop.f32.mrb[0].mxu0
        %v4610 = vpop.f32.mrb[0].mxu0
        %v4611 = vadd.f32 %v4459, %v4610
        %v4612 = vpop.f32.mrb[0].mxu0
        %4613 = vmatprep.mubr.bf16.mxu0 0
        %4614 = vmatmul.mubr.bf16.gmra.mrb[0].mxu0 %v4429
        %v4615 = vpop.f32.mrb[0].mxu0
        %v4616 = vadd.f32 %v4459, %v4615
        %v4617 = vpop.f32.mrb[0].mxu0
        %v4618 = vpop.f32.mrb[0].mxu0
        %v4619 = vadd.f32 %v4459, %v4618
        %v4620 = vpop.f32.mrb[0].mxu0
        %4621 = vmatprep.mubr.bf16.mxu0 0
        %4622 = vmatmul.mubr.bf16.gmra.mrb[0].mxu0 %v4430
        %v4623 = vpop.f32.mrb[0].mxu0
        %v4624 = vadd.f32 %v4459, %v4623
        %v4625 = vpop.f32.mrb[0].mxu0
        %v4626 = vpop.f32.mrb[0].mxu0
        %v4627 = vadd.f32 %v4459, %v4626
        %v4628 = vpop.f32.mrb[0].mxu0
        %4629 = vmatprep.mubr.bf16.mxu0 0
        %4630 = vmatmul.mubr.bf16.gmra.mrb[0].mxu0 %v4431
        %v4631 = vpop.f32.mrb[0].mxu0
        %v4632 = vadd.f32 %v4459, %v4631
        %v4633 = vpop.f32.mrb[0].mxu0
        %v4634 = vpop.f32.mrb[0].mxu0
        %v4635 = vadd.f32 %v4459, %v4634
        %v4636 = vpop.f32.mrb[0].mxu0
        %4637 = vmatprep.mubr.bf16.mxu0 0
        %4638 = vmatmul.mubr.bf16.gmra.mrb[0].mxu0 %v4432
        %v4639 = vpop.f32.mrb[0].mxu0
        %v4640 = vadd.f32 %v4459, %v4639
        %v4641 = vpop.f32.mrb[0].mxu0
        %v4642 = vpop.f32.mrb[0].mxu0
        %v4643 = vadd.f32 %v4459, %v4642
        %v4644 = vpop.f32.mrb[0].mxu0
        %4645 = vmatprep.mubr.bf16.mxu0 0
        %4646 = vmatmul.mubr.bf16.gmra.mrb[0].mxu0 %v4433
        %v4647 = vpop.f32.mrb[0].mxu0
        %v4648 = vadd.f32 %v4459, %v4647
        %v4649 = vpop.f32.mrb[0].mxu0
        %v4650 = vpop.f32.mrb[0].mxu0
        %v4651 = vadd.f32 %v4459, %v4650
        %v4652 = vpop.f32.mrb[0].mxu0
        %4653 = vmatprep.mubr.bf16.mxu0 0
        %4654 = vmatmul.mubr.bf16.gmra.mrb[0].mxu0 %v4434
        %v4655 = vpop.f32.mrb[0].mxu0
        %v4656 = vadd.f32 %v4459, %v4655
        %v4657 = vpop.f32.mrb[0].mxu0
        %v4658 = vpop.f32.mrb[0].mxu0
        %v4659 = vadd.f32 %v4459, %v4658
        %v4660 = vpop.f32.mrb[0].mxu0
        %4661 = vmatprep.mubr.bf16.mxu0 0
        %4662 = vmatmul.mubr.bf16.gmra.mrb[0].mxu0 %v4435
        %v4663 = vpop.f32.mrb[0].mxu0
        %v4664 = vadd.f32 %v4459, %v4663
        %v4665 = vpop.f32.mrb[0].mxu0
        %v4666 = vpop.f32.mrb[0].mxu0
        %v4667 = vadd.f32 %v4459, %v4666
        %v4668 = vpop.f32.mrb[0].mxu0
        %4669 = vdwg.mxu0
        %v4670 = vmax.f32 %v4544, 0.0
        %v4671 = vmax.f32 %v4547, 0.0
        %v4672 = vmax.f32 %v4552, 0.0
        %v4673 = vmax.f32 %v4555, 0.0
        %v4674 = vmax.f32 %v4560, 0.0
        %v4675 = vmax.f32 %v4563, 0.0
        %v4676 = vmax.f32 %v4568, 0.0
        %v4677 = vmax.f32 %v4571, 0.0
        %v4678 = vmax.f32 %v4576, 0.0
        %v4679 = vmax.f32 %v4579, 0.0
        %v4680 = vmax.f32 %v4584, 0.0
        %v4681 = vmax.f32 %v4587, 0.0
        %v4682 = vmax.f32 %v4592, 0.0
        %v4683 = vmax.f32 %v4595, 0.0
        %v4684 = vmax.f32 %v4600, 0.0
        %v4685 = vmax.f32 %v4603, 0.0
        %v4686 = vmax.f32 %v4608, 0.0
        %v4687 = vmax.f32 %v4611, 0.0
        %v4688 = vmax.f32 %v4616, 0.0
        %v4689 = vmax.f32 %v4619, 0.0
        %v4690 = vmax.f32 %v4624, 0.0
        %v4691 = vmax.f32 %v4627, 0.0
        %v4692 = vmax.f32 %v4632, 0.0
        %v4693 = vmax.f32 %v4635, 0.0
        %v4694 = vmax.f32 %v4640, 0.0
        %v4695 = vmax.f32 %v4643, 0.0
        %v4696 = vmax.f32 %v4648, 0.0
        %v4697 = vmax.f32 %v4651, 0.0
        %v4698 = vmax.f32 %v4656, 0.0
        %v4699 = vmax.f32 %v4659, 0.0
        %v4700 = vmax.f32 %v4664, 0.0
        %v4701 = vmax.f32 %v4667, 0.0
        %v4702 = vpack.c.bf16 %v4671, %v4670
        %v4703 = vpack.c.bf16 %v4673, %v4672
        %v4704 = vpack.c.bf16 %v4675, %v4674
        %v4705 = vpack.c.bf16 %v4677, %v4676
        %v4706 = vpack.c.bf16 %v4679, %v4678
        %v4707 = vpack.c.bf16 %v4681, %v4680
        %v4708 = vpack.c.bf16 %v4683, %v4682
        %v4709 = vpack.c.bf16 %v4685, %v4684
        %v4710 = vpack.c.bf16 %v4687, %v4686
        %v4711 = vpack.c.bf16 %v4689, %v4688
        %v4712 = vpack.c.bf16 %v4691, %v4690
        %v4713 = vpack.c.bf16 %v4693, %v4692
        %v4714 = vpack.c.bf16 %v4695, %v4694
        %v4715 = vpack.c.bf16 %v4697, %v4696
        %v4716 = vpack.c.bf16 %v4699, %v4698
        %v4717 = vpack.c.bf16 %v4701, %v4700
        %s4718 = scalar_lea.vmem [#allocation5], 704
        %v4719 = vld [vmem:[%s4718] sm:$0xf]
        %v4720 = vld [vmem:[%s4718 + $0x4] sm:$0xf]
        %v4721 = vld [vmem:[%s4718 + $0x8] sm:$0xf]
        %v4722 = vld [vmem:[%s4718 + $0xc] sm:$0xf]
        %v4723 = vld [vmem:[%s4718 + $0x10] sm:$0xf]
        %v4724 = vld [vmem:[%s4718 + $0x14] sm:$0xf]
        %v4725 = vld [vmem:[%s4718 + $0x18] sm:$0xf]
        %v4726 = vld [vmem:[%s4718 + $0x1c] sm:$0xf]
        %v4727 = vld [vmem:[%s4718 + $0x20] sm:$0xf]
        %v4728 = vld [vmem:[%s4718 + $0x24] sm:$0xf]
        %v4729 = vld [vmem:[%s4718 + $0x28] sm:$0xf]
        %v4730 = vld [vmem:[%s4718 + $0x2c] sm:$0xf]
        %v4731 = vld [vmem:[%s4718 + $0x30] sm:$0xf]
        %v4732 = vld [vmem:[%s4718 + $0x34] sm:$0xf]
        %v4733 = vld [vmem:[%s4718 + $0x38] sm:$0xf]
        %v4734 = vld [vmem:[%s4718 + $0x3c] sm:$0xf]
        %s4735 = scalar_lea.vmem [#allocation7], 11
        %v4736 = vld [vmem:[%s4735] sm:$0x1]
        %v4738 = vlaneseq
        %v4739 = vshrl.u32 %v4738, 7
        %v4740 = vsub.s32 0, %v4739
        %v4741 = vrot.slane %v4736, %v4740
        %v4759 = vunpack.c.l.b16 %v4719
        %v4760 = vunpack.c.l.b16 %v4720
        %v4761 = vunpack.c.l.b16 %v4721
        %v4762 = vunpack.c.l.b16 %v4722
        %v4763 = vunpack.c.l.b16 %v4723
        %v4764 = vunpack.c.l.b16 %v4724
        %v4765 = vunpack.c.l.b16 %v4725
        %v4766 = vunpack.c.l.b16 %v4726
        %v4767 = vunpack.c.l.b16 %v4727
        %v4768 = vunpack.c.l.b16 %v4728
        %v4769 = vunpack.c.l.b16 %v4729
        %v4770 = vunpack.c.l.b16 %v4730
        %v4771 = vunpack.c.l.b16 %v4731
        %v4772 = vunpack.c.l.b16 %v4732
        %v4773 = vunpack.c.l.b16 %v4733
        %v4774 = vunpack.c.l.b16 %v4734
        %v4775 = vpack.c.b16 %v4760, %v4759
        %v4776 = vpack.c.b16 %v4762, %v4761
        %v4777 = vpack.c.b16 %v4764, %v4763
        %v4778 = vpack.c.b16 %v4766, %v4765
        %v4779 = vpack.c.b16 %v4768, %v4767
        %v4780 = vpack.c.b16 %v4770, %v4769
        %v4781 = vpack.c.b16 %v4772, %v4771
        %v4782 = vpack.c.b16 %v4774, %v4773
        %4791 = vmatprep.subr.bf16.mxu0 0
        %4792 = vmatpush1.bf16.msra.mxu0 %v4775
        %4793 = vmatprep.subr.bf16.mxu0 0
        %4794 = vmatpush1.bf16.msra.mxu0 %v4776
        %4795 = vmatprep.subr.bf16.mxu0 0
        %4796 = vmatpush1.bf16.msra.mxu0 %v4777
        %4797 = vmatprep.subr.bf16.mxu0 0
        %4798 = vmatpush1.bf16.msra.mxu0 %v4778
        %4799 = vmatprep.subr.bf16.mxu0 0
        %4800 = vmatpush1.bf16.msra.mxu0 %v4779
        %4801 = vmatprep.subr.bf16.mxu0 0
        %4802 = vmatpush1.bf16.msra.mxu0 %v4780
        %4803 = vmatprep.subr.bf16.mxu0 0
        %4804 = vmatpush1.bf16.msra.mxu0 %v4781
        %4805 = vmatprep.subr.bf16.mxu0 0
        %4806 = vmatpush1.bf16.msra.mxu0 %v4782
        %4807 = vmatprep.subr.bf16.mxu0 0
        %4808 = vmatpush1.bf16.msra.mxu0 0
        %4809 = vmatprep.subr.bf16.mxu0 0
        %4810 = vmatpush1.bf16.msra.mxu0 0
        %4811 = vmatprep.subr.bf16.mxu0 0
        %4812 = vmatpush1.bf16.msra.mxu0 0
        %4813 = vmatprep.subr.bf16.mxu0 0
        %4814 = vmatpush1.bf16.msra.mxu0 0
        %4815 = vmatprep.subr.bf16.mxu0 0
        %4816 = vmatpush1.bf16.msra.mxu0 0
        %4817 = vmatprep.subr.bf16.mxu0 0
        %4818 = vmatpush1.bf16.msra.mxu0 0
        %4819 = vmatprep.subr.bf16.mxu0 0
        %4820 = vmatpush1.bf16.msra.mxu0 0
        %4821 = vmatprep.subr.bf16.mxu0 0
        %4822 = vmatpush1.bf16.msra.mxu0 0
        %4823 = vmatprep.mubr.bf16.mxu0 0
        %4824 = vmatmul.mubr.bf16.gmra.mrb[0].mxu0 %v4702
        %v4825 = vpop.f32.mrb[0].mxu0
        %v4826 = vadd.f32 %v4741, %v4825
        %v4827 = vpop.f32.mrb[0].mxu0
        %v4828 = vpop.f32.mrb[0].mxu0
        %v4829 = vadd.f32 %v4741, %v4828
        %v4830 = vpop.f32.mrb[0].mxu0
        %4831 = vmatprep.mubr.bf16.mxu0 0
        %4832 = vmatmul.mubr.bf16.gmra.mrb[0].mxu0 %v4703
        %v4833 = vpop.f32.mrb[0].mxu0
        %v4834 = vadd.f32 %v4741, %v4833
        %v4835 = vpop.f32.mrb[0].mxu0
        %v4836 = vpop.f32.mrb[0].mxu0
        %v4837 = vadd.f32 %v4741, %v4836
        %v4838 = vpop.f32.mrb[0].mxu0
        %4839 = vmatprep.mubr.bf16.mxu0 0
        %4840 = vmatmul.mubr.bf16.gmra.mrb[0].mxu0 %v4704
        %v4841 = vpop.f32.mrb[0].mxu0
        %v4842 = vadd.f32 %v4741, %v4841
        %v4843 = vpop.f32.mrb[0].mxu0
        %v4844 = vpop.f32.mrb[0].mxu0
        %v4845 = vadd.f32 %v4741, %v4844
        %v4846 = vpop.f32.mrb[0].mxu0
        %4847 = vmatprep.mubr.bf16.mxu0 0
        %4848 = vmatmul.mubr.bf16.gmra.mrb[0].mxu0 %v4705
        %v4849 = vpop.f32.mrb[0].mxu0
        %v4850 = vadd.f32 %v4741, %v4849
        %v4851 = vpop.f32.mrb[0].mxu0
        %v4852 = vpop.f32.mrb[0].mxu0
        %v4853 = vadd.f32 %v4741, %v4852
        %v4854 = vpop.f32.mrb[0].mxu0
        %4855 = vmatprep.mubr.bf16.mxu0 0
        %4856 = vmatmul.mubr.bf16.gmra.mrb[0].mxu0 %v4706
        %v4857 = vpop.f32.mrb[0].mxu0
        %v4858 = vadd.f32 %v4741, %v4857
        %v4859 = vpop.f32.mrb[0].mxu0
        %v4860 = vpop.f32.mrb[0].mxu0
        %v4861 = vadd.f32 %v4741, %v4860
        %v4862 = vpop.f32.mrb[0].mxu0
        %4863 = vmatprep.mubr.bf16.mxu0 0
        %4864 = vmatmul.mubr.bf16.gmra.mrb[0].mxu0 %v4707
        %v4865 = vpop.f32.mrb[0].mxu0
        %v4866 = vadd.f32 %v4741, %v4865
        %v4867 = vpop.f32.mrb[0].mxu0
        %v4868 = vpop.f32.mrb[0].mxu0
        %v4869 = vadd.f32 %v4741, %v4868
        %v4870 = vpop.f32.mrb[0].mxu0
        %4871 = vmatprep.mubr.bf16.mxu0 0
        %4872 = vmatmul.mubr.bf16.gmra.mrb[0].mxu0 %v4708
        %v4873 = vpop.f32.mrb[0].mxu0
        %v4874 = vadd.f32 %v4741, %v4873
        %v4875 = vpop.f32.mrb[0].mxu0
        %v4876 = vpop.f32.mrb[0].mxu0
        %v4877 = vadd.f32 %v4741, %v4876
        %v4878 = vpop.f32.mrb[0].mxu0
        %4879 = vmatprep.mubr.bf16.mxu0 0
        %4880 = vmatmul.mubr.bf16.gmra.mrb[0].mxu0 %v4709
        %v4881 = vpop.f32.mrb[0].mxu0
        %v4882 = vadd.f32 %v4741, %v4881
        %v4883 = vpop.f32.mrb[0].mxu0
        %v4884 = vpop.f32.mrb[0].mxu0
        %v4885 = vadd.f32 %v4741, %v4884
        %v4886 = vpop.f32.mrb[0].mxu0
        %4887 = vmatprep.mubr.bf16.mxu0 0
        %4888 = vmatmul.mubr.bf16.gmra.mrb[0].mxu0 %v4710
        %v4889 = vpop.f32.mrb[0].mxu0
        %v4890 = vadd.f32 %v4741, %v4889
        %v4891 = vpop.f32.mrb[0].mxu0
        %v4892 = vpop.f32.mrb[0].mxu0
        %v4893 = vadd.f32 %v4741, %v4892
        %v4894 = vpop.f32.mrb[0].mxu0
        %4895 = vmatprep.mubr.bf16.mxu0 0
        %4896 = vmatmul.mubr.bf16.gmra.mrb[0].mxu0 %v4711
        %v4897 = vpop.f32.mrb[0].mxu0
        %v4898 = vadd.f32 %v4741, %v4897
        %v4899 = vpop.f32.mrb[0].mxu0
        %v4900 = vpop.f32.mrb[0].mxu0
        %v4901 = vadd.f32 %v4741, %v4900
        %v4902 = vpop.f32.mrb[0].mxu0
        %4903 = vmatprep.mubr.bf16.mxu0 0
        %4904 = vmatmul.mubr.bf16.gmra.mrb[0].mxu0 %v4712
        %v4905 = vpop.f32.mrb[0].mxu0
        %v4906 = vadd.f32 %v4741, %v4905
        %v4907 = vpop.f32.mrb[0].mxu0
        %v4908 = vpop.f32.mrb[0].mxu0
        %v4909 = vadd.f32 %v4741, %v4908
        %v4910 = vpop.f32.mrb[0].mxu0
        %4911 = vmatprep.mubr.bf16.mxu0 0
        %4912 = vmatmul.mubr.bf16.gmra.mrb[0].mxu0 %v4713
        %v4913 = vpop.f32.mrb[0].mxu0
        %v4914 = vadd.f32 %v4741, %v4913
        %v4915 = vpop.f32.mrb[0].mxu0
        %v4916 = vpop.f32.mrb[0].mxu0
        %v4917 = vadd.f32 %v4741, %v4916
        %v4918 = vpop.f32.mrb[0].mxu0
        %4919 = vmatprep.mubr.bf16.mxu0 0
        %4920 = vmatmul.mubr.bf16.gmra.mrb[0].mxu0 %v4714
        %v4921 = vpop.f32.mrb[0].mxu0
        %v4922 = vadd.f32 %v4741, %v4921
        %v4923 = vpop.f32.mrb[0].mxu0
        %v4924 = vpop.f32.mrb[0].mxu0
        %v4925 = vadd.f32 %v4741, %v4924
        %v4926 = vpop.f32.mrb[0].mxu0
        %4927 = vmatprep.mubr.bf16.mxu0 0
        %4928 = vmatmul.mubr.bf16.gmra.mrb[0].mxu0 %v4715
        %v4929 = vpop.f32.mrb[0].mxu0
        %v4930 = vadd.f32 %v4741, %v4929
        %v4931 = vpop.f32.mrb[0].mxu0
        %v4932 = vpop.f32.mrb[0].mxu0
        %v4933 = vadd.f32 %v4741, %v4932
        %v4934 = vpop.f32.mrb[0].mxu0
        %4935 = vmatprep.mubr.bf16.mxu0 0
        %4936 = vmatmul.mubr.bf16.gmra.mrb[0].mxu0 %v4716
        %v4937 = vpop.f32.mrb[0].mxu0
        %v4938 = vadd.f32 %v4741, %v4937
        %v4939 = vpop.f32.mrb[0].mxu0
        %v4940 = vpop.f32.mrb[0].mxu0
        %v4941 = vadd.f32 %v4741, %v4940
        %v4942 = vpop.f32.mrb[0].mxu0
        %4943 = vmatprep.mubr.bf16.mxu0 0
        %4944 = vmatmul.mubr.bf16.gmra.mrb[0].mxu0 %v4717
        %v4945 = vpop.f32.mrb[0].mxu0
        %v4946 = vadd.f32 %v4741, %v4945
        %v4947 = vpop.f32.mrb[0].mxu0
        %v4948 = vpop.f32.mrb[0].mxu0
        %v4949 = vadd.f32 %v4741, %v4948
        %v4950 = vpop.f32.mrb[0].mxu0
        %4951 = vdwg.mxu0
        %v4952 = vadd.f32 %v4826, %v4106
        %v4953 = vadd.f32 %v4829, %v4107
        %v4954 = vadd.f32 %v4834, %v4108
        %v4955 = vadd.f32 %v4837, %v4109
        %v4956 = vadd.f32 %v4842, %v4110
        %v4957 = vadd.f32 %v4845, %v4111
        %v4958 = vadd.f32 %v4850, %v4112
        %v4959 = vadd.f32 %v4853, %v4113
        %v4960 = vadd.f32 %v4858, %v4114
        %v4961 = vadd.f32 %v4861, %v4115
        %v4962 = vadd.f32 %v4866, %v4116
        %v4963 = vadd.f32 %v4869, %v4117
        %v4964 = vadd.f32 %v4874, %v4118
        %v4965 = vadd.f32 %v4877, %v4119
        %v4966 = vadd.f32 %v4882, %v4120
        %v4967 = vadd.f32 %v4885, %v4121
        %v4968 = vadd.f32 %v4890, %v4122
        %v4969 = vadd.f32 %v4893, %v4123
        %v4970 = vadd.f32 %v4898, %v4124
        %v4971 = vadd.f32 %v4901, %v4125
        %v4972 = vadd.f32 %v4906, %v4126
        %v4973 = vadd.f32 %v4909, %v4127
        %v4974 = vadd.f32 %v4914, %v4128
        %v4975 = vadd.f32 %v4917, %v4129
        %v4976 = vadd.f32 %v4922, %v4130
        %v4977 = vadd.f32 %v4925, %v4131
        %v4978 = vadd.f32 %v4930, %v4132
        %v4979 = vadd.f32 %v4933, %v4133
        %v4980 = vadd.f32 %v4938, %v4134
        %v4981 = vadd.f32 %v4941, %v4135
        %v4982 = vadd.f32 %v4946, %v4136
        %v4983 = vadd.f32 %v4949, %v4137
        %s4984 = scalar_lea.vmem %s3, 3
        %v4985 = vld [vmem:[%s4984] sm:$0x1]
        %s4986 = scalar_lea.vmem %s4, 3
        %v4987 = vld [vmem:[%s4986] sm:$0x1]
        %4988 = vadd.xlane.f32.xlu0 %v4952
        %v4989 = vpop.xlane.xlu0 %4988
        %4990 = vadd.xlane.f32.xlu0 %v4953
        %v4991 = vpop.xlane.xlu0 %4990
        %4992 = vadd.xlane.f32.xlu0 %v4954
        %v4993 = vpop.xlane.xlu0 %4992
        %4994 = vadd.xlane.f32.xlu0 %v4955
        %v4995 = vpop.xlane.xlu0 %4994
        %4996 = vadd.xlane.f32.xlu0 %v4956
        %v4997 = vpop.xlane.xlu0 %4996
        %4998 = vadd.xlane.f32.xlu0 %v4957
        %v4999 = vpop.xlane.xlu0 %4998
        %5000 = vadd.xlane.f32.xlu0 %v4958
        %v5001 = vpop.xlane.xlu0 %5000
        %5002 = vadd.xlane.f32.xlu0 %v4959
        %v5003 = vpop.xlane.xlu0 %5002
        %5004 = vadd.xlane.f32.xlu0 %v4960
        %v5005 = vpop.xlane.xlu0 %5004
        %5006 = vadd.xlane.f32.xlu0 %v4961
        %v5007 = vpop.xlane.xlu0 %5006
        %5008 = vadd.xlane.f32.xlu0 %v4962
        %v5009 = vpop.xlane.xlu0 %5008
        %5010 = vadd.xlane.f32.xlu0 %v4963
        %v5011 = vpop.xlane.xlu0 %5010
        %5012 = vadd.xlane.f32.xlu0 %v4964
        %v5013 = vpop.xlane.xlu0 %5012
        %5014 = vadd.xlane.f32.xlu0 %v4965
        %v5015 = vpop.xlane.xlu0 %5014
        %5016 = vadd.xlane.f32.xlu0 %v4966
        %v5017 = vpop.xlane.xlu0 %5016
        %5018 = vadd.xlane.f32.xlu0 %v4967
        %v5019 = vpop.xlane.xlu0 %5018
        %5020 = vadd.xlane.f32.xlu0 %v4968
        %v5021 = vpop.xlane.xlu0 %5020
        %5022 = vadd.xlane.f32.xlu0 %v4969
        %v5023 = vpop.xlane.xlu0 %5022
        %5024 = vadd.xlane.f32.xlu0 %v4970
        %v5025 = vpop.xlane.xlu0 %5024
        %5026 = vadd.xlane.f32.xlu0 %v4971
        %v5027 = vpop.xlane.xlu0 %5026
        %5028 = vadd.xlane.f32.xlu0 %v4972
        %v5029 = vpop.xlane.xlu0 %5028
        %5030 = vadd.xlane.f32.xlu0 %v4973
        %v5031 = vpop.xlane.xlu0 %5030
        %5032 = vadd.xlane.f32.xlu0 %v4974
        %v5033 = vpop.xlane.xlu0 %5032
        %5034 = vadd.xlane.f32.xlu0 %v4975
        %v5035 = vpop.xlane.xlu0 %5034
        %5036 = vadd.xlane.f32.xlu0 %v4976
        %v5037 = vpop.xlane.xlu0 %5036
        %5038 = vadd.xlane.f32.xlu0 %v4977
        %v5039 = vpop.xlane.xlu0 %5038
        %5040 = vadd.xlane.f32.xlu0 %v4978
        %v5041 = vpop.xlane.xlu0 %5040
        %5042 = vadd.xlane.f32.xlu0 %v4979
        %v5043 = vpop.xlane.xlu0 %5042
        %5044 = vadd.xlane.f32.xlu0 %v4980
        %v5045 = vpop.xlane.xlu0 %5044
        %5046 = vadd.xlane.f32.xlu0 %v4981
        %v5047 = vpop.xlane.xlu0 %5046
        %5048 = vadd.xlane.f32.xlu0 %v4982
        %v5049 = vpop.xlane.xlu0 %5048
        %5050 = vadd.xlane.f32.xlu0 %v4983
        %v5051 = vpop.xlane.xlu0 %5050
        %v5052 = vmul.f32 %v4989, %v1217
        %v5053 = vmul.f32 %v4991, %v1217
        %v5054 = vmul.f32 %v4993, %v1217
        %v5055 = vmul.f32 %v4995, %v1217
        %v5056 = vmul.f32 %v4997, %v1217
        %v5057 = vmul.f32 %v4999, %v1217
        %v5058 = vmul.f32 %v5001, %v1217
        %v5059 = vmul.f32 %v5003, %v1217
        %v5060 = vmul.f32 %v5005, %v1217
        %v5061 = vmul.f32 %v5007, %v1217
        %v5062 = vmul.f32 %v5009, %v1217
        %v5063 = vmul.f32 %v5011, %v1217
        %v5064 = vmul.f32 %v5013, %v1217
        %v5065 = vmul.f32 %v5015, %v1217
        %v5066 = vmul.f32 %v5017, %v1217
        %v5067 = vmul.f32 %v5019, %v1217
        %v5068 = vmul.f32 %v5021, %v1217
        %v5069 = vmul.f32 %v5023, %v1217
        %v5070 = vmul.f32 %v5025, %v1217
        %v5071 = vmul.f32 %v5027, %v1217
        %v5072 = vmul.f32 %v5029, %v1217
        %v5073 = vmul.f32 %v5031, %v1217
        %v5074 = vmul.f32 %v5033, %v1217
        %v5075 = vmul.f32 %v5035, %v1217
        %v5076 = vmul.f32 %v5037, %v1217
        %v5077 = vmul.f32 %v5039, %v1217
        %v5078 = vmul.f32 %v5041, %v1217
        %v5079 = vmul.f32 %v5043, %v1217
        %v5080 = vmul.f32 %v5045, %v1217
        %v5081 = vmul.f32 %v5047, %v1217
        %v5082 = vmul.f32 %v5049, %v1217
        %v5083 = vmul.f32 %v5051, %v1217
        %v5084 = vsub.f32 %v4952, %v5052
        %v5085 = vsub.f32 %v4953, %v5053
        %v5086 = vsub.f32 %v4954, %v5054
        %v5087 = vsub.f32 %v4955, %v5055
        %v5088 = vsub.f32 %v4956, %v5056
        %v5089 = vsub.f32 %v4957, %v5057
        %v5090 = vsub.f32 %v4958, %v5058
        %v5091 = vsub.f32 %v4959, %v5059
        %v5092 = vsub.f32 %v4960, %v5060
        %v5093 = vsub.f32 %v4961, %v5061
        %v5094 = vsub.f32 %v4962, %v5062
        %v5095 = vsub.f32 %v4963, %v5063
        %v5096 = vsub.f32 %v4964, %v5064
        %v5097 = vsub.f32 %v4965, %v5065
        %v5098 = vsub.f32 %v4966, %v5066
        %v5099 = vsub.f32 %v4967, %v5067
        %v5100 = vsub.f32 %v4968, %v5068
        %v5101 = vsub.f32 %v4969, %v5069
        %v5102 = vsub.f32 %v4970, %v5070
        %v5103 = vsub.f32 %v4971, %v5071
        %v5104 = vsub.f32 %v4972, %v5072
        %v5105 = vsub.f32 %v4973, %v5073
        %v5106 = vsub.f32 %v4974, %v5074
        %v5107 = vsub.f32 %v4975, %v5075
        %v5108 = vsub.f32 %v4976, %v5076
        %v5109 = vsub.f32 %v4977, %v5077
        %v5110 = vsub.f32 %v4978, %v5078
        %v5111 = vsub.f32 %v4979, %v5079
        %v5112 = vsub.f32 %v4980, %v5080
        %v5113 = vsub.f32 %v4981, %v5081
        %v5114 = vsub.f32 %v4982, %v5082
        %v5115 = vsub.f32 %v4983, %v5083
        %v5116 = vmul.f32 %v5084, %v5084
        %v5117 = vmul.f32 %v5085, %v5085
        %v5118 = vmul.f32 %v5086, %v5086
        %v5119 = vmul.f32 %v5087, %v5087
        %v5120 = vmul.f32 %v5088, %v5088
        %v5121 = vmul.f32 %v5089, %v5089
        %v5122 = vmul.f32 %v5090, %v5090
        %v5123 = vmul.f32 %v5091, %v5091
        %v5124 = vmul.f32 %v5092, %v5092
        %v5125 = vmul.f32 %v5093, %v5093
        %v5126 = vmul.f32 %v5094, %v5094
        %v5127 = vmul.f32 %v5095, %v5095
        %v5128 = vmul.f32 %v5096, %v5096
        %v5129 = vmul.f32 %v5097, %v5097
        %v5130 = vmul.f32 %v5098, %v5098
        %v5131 = vmul.f32 %v5099, %v5099
        %v5132 = vmul.f32 %v5100, %v5100
        %v5133 = vmul.f32 %v5101, %v5101
        %v5134 = vmul.f32 %v5102, %v5102
        %v5135 = vmul.f32 %v5103, %v5103
        %v5136 = vmul.f32 %v5104, %v5104
        %v5137 = vmul.f32 %v5105, %v5105
        %v5138 = vmul.f32 %v5106, %v5106
        %v5139 = vmul.f32 %v5107, %v5107
        %v5140 = vmul.f32 %v5108, %v5108
        %v5141 = vmul.f32 %v5109, %v5109
        %v5142 = vmul.f32 %v5110, %v5110
        %v5143 = vmul.f32 %v5111, %v5111
        %v5144 = vmul.f32 %v5112, %v5112
        %v5145 = vmul.f32 %v5113, %v5113
        %v5146 = vmul.f32 %v5114, %v5114
        %v5147 = vmul.f32 %v5115, %v5115
        %5148 = vadd.xlane.f32.xlu0 %v5116
        %v5149 = vpop.xlane.xlu0 %5148
        %5150 = vadd.xlane.f32.xlu0 %v5117
        %v5151 = vpop.xlane.xlu0 %5150
        %5152 = vadd.xlane.f32.xlu0 %v5118
        %v5153 = vpop.xlane.xlu0 %5152
        %5154 = vadd.xlane.f32.xlu0 %v5119
        %v5155 = vpop.xlane.xlu0 %5154
        %5156 = vadd.xlane.f32.xlu0 %v5120
        %v5157 = vpop.xlane.xlu0 %5156
        %5158 = vadd.xlane.f32.xlu0 %v5121
        %v5159 = vpop.xlane.xlu0 %5158
        %5160 = vadd.xlane.f32.xlu0 %v5122
        %v5161 = vpop.xlane.xlu0 %5160
        %5162 = vadd.xlane.f32.xlu0 %v5123
        %v5163 = vpop.xlane.xlu0 %5162
        %5164 = vadd.xlane.f32.xlu0 %v5124
        %v5165 = vpop.xlane.xlu0 %5164
        %5166 = vadd.xlane.f32.xlu0 %v5125
        %v5167 = vpop.xlane.xlu0 %5166
        %5168 = vadd.xlane.f32.xlu0 %v5126
        %v5169 = vpop.xlane.xlu0 %5168
        %5170 = vadd.xlane.f32.xlu0 %v5127
        %v5171 = vpop.xlane.xlu0 %5170
        %5172 = vadd.xlane.f32.xlu0 %v5128
        %v5173 = vpop.xlane.xlu0 %5172
        %5174 = vadd.xlane.f32.xlu0 %v5129
        %v5175 = vpop.xlane.xlu0 %5174
        %5176 = vadd.xlane.f32.xlu0 %v5130
        %v5177 = vpop.xlane.xlu0 %5176
        %5178 = vadd.xlane.f32.xlu0 %v5131
        %v5179 = vpop.xlane.xlu0 %5178
        %5180 = vadd.xlane.f32.xlu0 %v5132
        %v5181 = vpop.xlane.xlu0 %5180
        %5182 = vadd.xlane.f32.xlu0 %v5133
        %v5183 = vpop.xlane.xlu0 %5182
        %5184 = vadd.xlane.f32.xlu0 %v5134
        %v5185 = vpop.xlane.xlu0 %5184
        %5186 = vadd.xlane.f32.xlu0 %v5135
        %v5187 = vpop.xlane.xlu0 %5186
        %5188 = vadd.xlane.f32.xlu0 %v5136
        %v5189 = vpop.xlane.xlu0 %5188
        %5190 = vadd.xlane.f32.xlu0 %v5137
        %v5191 = vpop.xlane.xlu0 %5190
        %5192 = vadd.xlane.f32.xlu0 %v5138
        %v5193 = vpop.xlane.xlu0 %5192
        %5194 = vadd.xlane.f32.xlu0 %v5139
        %v5195 = vpop.xlane.xlu0 %5194
        %5196 = vadd.xlane.f32.xlu0 %v5140
        %v5197 = vpop.xlane.xlu0 %5196
        %5198 = vadd.xlane.f32.xlu0 %v5141
        %v5199 = vpop.xlane.xlu0 %5198
        %5200 = vadd.xlane.f32.xlu0 %v5142
        %v5201 = vpop.xlane.xlu0 %5200
        %5202 = vadd.xlane.f32.xlu0 %v5143
        %v5203 = vpop.xlane.xlu0 %5202
        %5204 = vadd.xlane.f32.xlu0 %v5144
        %v5205 = vpop.xlane.xlu0 %5204
        %5206 = vadd.xlane.f32.xlu0 %v5145
        %v5207 = vpop.xlane.xlu0 %5206
        %5208 = vadd.xlane.f32.xlu0 %v5146
        %v5209 = vpop.xlane.xlu0 %5208
        %5210 = vadd.xlane.f32.xlu0 %v5147
        %v5211 = vpop.xlane.xlu0 %5210
        %v5212 = vmul.f32 %v5149, %v1217
        %v5213 = vmul.f32 %v5151, %v1217
        %v5214 = vmul.f32 %v5153, %v1217
        %v5215 = vmul.f32 %v5155, %v1217
        %v5216 = vmul.f32 %v5157, %v1217
        %v5217 = vmul.f32 %v5159, %v1217
        %v5218 = vmul.f32 %v5161, %v1217
        %v5219 = vmul.f32 %v5163, %v1217
        %v5220 = vmul.f32 %v5165, %v1217
        %v5221 = vmul.f32 %v5167, %v1217
        %v5222 = vmul.f32 %v5169, %v1217
        %v5223 = vmul.f32 %v5171, %v1217
        %v5224 = vmul.f32 %v5173, %v1217
        %v5225 = vmul.f32 %v5175, %v1217
        %v5226 = vmul.f32 %v5177, %v1217
        %v5227 = vmul.f32 %v5179, %v1217
        %v5228 = vmul.f32 %v5181, %v1217
        %v5229 = vmul.f32 %v5183, %v1217
        %v5230 = vmul.f32 %v5185, %v1217
        %v5231 = vmul.f32 %v5187, %v1217
        %v5232 = vmul.f32 %v5189, %v1217
        %v5233 = vmul.f32 %v5191, %v1217
        %v5234 = vmul.f32 %v5193, %v1217
        %v5235 = vmul.f32 %v5195, %v1217
        %v5236 = vmul.f32 %v5197, %v1217
        %v5237 = vmul.f32 %v5199, %v1217
        %v5238 = vmul.f32 %v5201, %v1217
        %v5239 = vmul.f32 %v5203, %v1217
        %v5240 = vmul.f32 %v5205, %v1217
        %v5241 = vmul.f32 %v5207, %v1217
        %v5242 = vmul.f32 %v5209, %v1217
        %v5243 = vmul.f32 %v5211, %v1217
        %v5244 = vadd.f32 %v5212, 1e-05
        %v5245 = vadd.f32 %v5213, 1e-05
        %v5246 = vadd.f32 %v5214, 1e-05
        %v5247 = vadd.f32 %v5215, 1e-05
        %v5248 = vadd.f32 %v5216, 1e-05
        %v5249 = vadd.f32 %v5217, 1e-05
        %v5250 = vadd.f32 %v5218, 1e-05
        %v5251 = vadd.f32 %v5219, 1e-05
        %v5252 = vadd.f32 %v5220, 1e-05
        %v5253 = vadd.f32 %v5221, 1e-05
        %v5254 = vadd.f32 %v5222, 1e-05
        %v5255 = vadd.f32 %v5223, 1e-05
        %v5256 = vadd.f32 %v5224, 1e-05
        %v5257 = vadd.f32 %v5225, 1e-05
        %v5258 = vadd.f32 %v5226, 1e-05
        %v5259 = vadd.f32 %v5227, 1e-05
        %v5260 = vadd.f32 %v5228, 1e-05
        %v5261 = vadd.f32 %v5229, 1e-05
        %v5262 = vadd.f32 %v5230, 1e-05
        %v5263 = vadd.f32 %v5231, 1e-05
        %v5264 = vadd.f32 %v5232, 1e-05
        %v5265 = vadd.f32 %v5233, 1e-05
        %v5266 = vadd.f32 %v5234, 1e-05
        %v5267 = vadd.f32 %v5235, 1e-05
        %v5268 = vadd.f32 %v5236, 1e-05
        %v5269 = vadd.f32 %v5237, 1e-05
        %v5270 = vadd.f32 %v5238, 1e-05
        %v5271 = vadd.f32 %v5239, 1e-05
        %v5272 = vadd.f32 %v5240, 1e-05
        %v5273 = vadd.f32 %v5241, 1e-05
        %v5274 = vadd.f32 %v5242, 1e-05
        %v5275 = vadd.f32 %v5243, 1e-05
        %v5276 = vrsqrt.pop %v5244
        %v5277 = vrsqrt.pop %v5245
        %v5278 = vrsqrt.pop %v5246
        %v5279 = vrsqrt.pop %v5247
        %v5280 = vrsqrt.pop %v5248
        %v5281 = vrsqrt.pop %v5249
        %v5282 = vrsqrt.pop %v5250
        %v5283 = vrsqrt.pop %v5251
        %v5284 = vrsqrt.pop %v5252
        %v5285 = vrsqrt.pop %v5253
        %v5286 = vrsqrt.pop %v5254
        %v5287 = vrsqrt.pop %v5255
        %v5288 = vrsqrt.pop %v5256
        %v5289 = vrsqrt.pop %v5257
        %v5290 = vrsqrt.pop %v5258
        %v5291 = vrsqrt.pop %v5259
        %v5292 = vrsqrt.pop %v5260
        %v5293 = vrsqrt.pop %v5261
        %v5294 = vrsqrt.pop %v5262
        %v5295 = vrsqrt.pop %v5263
        %v5296 = vrsqrt.pop %v5264
        %v5297 = vrsqrt.pop %v5265
        %v5298 = vrsqrt.pop %v5266
        %v5299 = vrsqrt.pop %v5267
        %v5300 = vrsqrt.pop %v5268
        %v5301 = vrsqrt.pop %v5269
        %v5302 = vrsqrt.pop %v5270
        %v5303 = vrsqrt.pop %v5271
        %v5304 = vrsqrt.pop %v5272
        %v5305 = vrsqrt.pop %v5273
        %v5306 = vrsqrt.pop %v5274
        %v5307 = vrsqrt.pop %v5275
        %v5308 = vmul.f32 %v5084, %v5276
        %v5309 = vmul.f32 %v5085, %v5277
        %v5310 = vmul.f32 %v5086, %v5278
        %v5311 = vmul.f32 %v5087, %v5279
        %v5312 = vmul.f32 %v5088, %v5280
        %v5313 = vmul.f32 %v5089, %v5281
        %v5314 = vmul.f32 %v5090, %v5282
        %v5315 = vmul.f32 %v5091, %v5283
        %v5316 = vmul.f32 %v5092, %v5284
        %v5317 = vmul.f32 %v5093, %v5285
        %v5318 = vmul.f32 %v5094, %v5286
        %v5319 = vmul.f32 %v5095, %v5287
        %v5320 = vmul.f32 %v5096, %v5288
        %v5321 = vmul.f32 %v5097, %v5289
        %v5322 = vmul.f32 %v5098, %v5290
        %v5323 = vmul.f32 %v5099, %v5291
        %v5324 = vmul.f32 %v5100, %v5292
        %v5325 = vmul.f32 %v5101, %v5293
        %v5326 = vmul.f32 %v5102, %v5294
        %v5327 = vmul.f32 %v5103, %v5295
        %v5328 = vmul.f32 %v5104, %v5296
        %v5329 = vmul.f32 %v5105, %v5297
        %v5330 = vmul.f32 %v5106, %v5298
        %v5331 = vmul.f32 %v5107, %v5299
        %v5332 = vmul.f32 %v5108, %v5300
        %v5333 = vmul.f32 %v5109, %v5301
        %v5334 = vmul.f32 %v5110, %v5302
        %v5335 = vmul.f32 %v5111, %v5303
        %v5336 = vmul.f32 %v5112, %v5304
        %v5337 = vmul.f32 %v5113, %v5305
        %v5338 = vmul.f32 %v5114, %v5306
        %v5339 = vmul.f32 %v5115, %v5307
        %v5341 = vlaneseq
        %v5342 = vshrl.u32 %v5341, 7
        %v5343 = vsub.s32 0, %v5342
        %v5344 = vrot.slane %v4985, %v5343
        %v5346 = vmul.f32 %v5308, %v5344
        %v5347 = vmul.f32 %v5309, %v5344
        %v5348 = vmul.f32 %v5310, %v5344
        %v5349 = vmul.f32 %v5311, %v5344
        %v5350 = vmul.f32 %v5312, %v5344
        %v5351 = vmul.f32 %v5313, %v5344
        %v5352 = vmul.f32 %v5314, %v5344
        %v5353 = vmul.f32 %v5315, %v5344
        %v5354 = vmul.f32 %v5316, %v5344
        %v5355 = vmul.f32 %v5317, %v5344
        %v5356 = vmul.f32 %v5318, %v5344
        %v5357 = vmul.f32 %v5319, %v5344
        %v5358 = vmul.f32 %v5320, %v5344
        %v5359 = vmul.f32 %v5321, %v5344
        %v5360 = vmul.f32 %v5322, %v5344
        %v5361 = vmul.f32 %v5323, %v5344
        %v5362 = vmul.f32 %v5324, %v5344
        %v5363 = vmul.f32 %v5325, %v5344
        %v5364 = vmul.f32 %v5326, %v5344
        %v5365 = vmul.f32 %v5327, %v5344
        %v5366 = vmul.f32 %v5328, %v5344
        %v5367 = vmul.f32 %v5329, %v5344
        %v5368 = vmul.f32 %v5330, %v5344
        %v5369 = vmul.f32 %v5331, %v5344
        %v5370 = vmul.f32 %v5332, %v5344
        %v5371 = vmul.f32 %v5333, %v5344
        %v5372 = vmul.f32 %v5334, %v5344
        %v5373 = vmul.f32 %v5335, %v5344
        %v5374 = vmul.f32 %v5336, %v5344
        %v5375 = vmul.f32 %v5337, %v5344
        %v5376 = vmul.f32 %v5338, %v5344
        %v5377 = vmul.f32 %v5339, %v5344
        %v5379 = vlaneseq
        %v5380 = vshrl.u32 %v5379, 7
        %v5381 = vsub.s32 0, %v5380
        %v5382 = vrot.slane %v4987, %v5381
        %v5384 = vadd.f32 %v5346, %v5382
        %v5385 = vadd.f32 %v5347, %v5382
        %v5386 = vadd.f32 %v5348, %v5382
        %v5387 = vadd.f32 %v5349, %v5382
        %v5388 = vadd.f32 %v5350, %v5382
        %v5389 = vadd.f32 %v5351, %v5382
        %v5390 = vadd.f32 %v5352, %v5382
        %v5391 = vadd.f32 %v5353, %v5382
        %v5392 = vadd.f32 %v5354, %v5382
        %v5393 = vadd.f32 %v5355, %v5382
        %v5394 = vadd.f32 %v5356, %v5382
        %v5395 = vadd.f32 %v5357, %v5382
        %v5396 = vadd.f32 %v5358, %v5382
        %v5397 = vadd.f32 %v5359, %v5382
        %v5398 = vadd.f32 %v5360, %v5382
        %v5399 = vadd.f32 %v5361, %v5382
        %v5400 = vadd.f32 %v5362, %v5382
        %v5401 = vadd.f32 %v5363, %v5382
        %v5402 = vadd.f32 %v5364, %v5382
        %v5403 = vadd.f32 %v5365, %v5382
        %v5404 = vadd.f32 %v5366, %v5382
        %v5405 = vadd.f32 %v5367, %v5382
        %v5406 = vadd.f32 %v5368, %v5382
        %v5407 = vadd.f32 %v5369, %v5382
        %v5408 = vadd.f32 %v5370, %v5382
        %v5409 = vadd.f32 %v5371, %v5382
        %v5410 = vadd.f32 %v5372, %v5382
        %v5411 = vadd.f32 %v5373, %v5382
        %v5412 = vadd.f32 %v5374, %v5382
        %v5413 = vadd.f32 %v5375, %v5382
        %v5414 = vadd.f32 %v5376, %v5382
        %v5415 = vadd.f32 %v5377, %v5382
        %v5416 = vpack.c.bf16 %v5385, %v5384
        %v5417 = vpack.c.bf16 %v5387, %v5386
        %v5418 = vpack.c.bf16 %v5389, %v5388
        %v5419 = vpack.c.bf16 %v5391, %v5390
        %v5420 = vpack.c.bf16 %v5393, %v5392
        %v5421 = vpack.c.bf16 %v5395, %v5394
        %v5422 = vpack.c.bf16 %v5397, %v5396
        %v5423 = vpack.c.bf16 %v5399, %v5398
        %v5424 = vpack.c.bf16 %v5401, %v5400
        %v5425 = vpack.c.bf16 %v5403, %v5402
        %v5426 = vpack.c.bf16 %v5405, %v5404
        %v5427 = vpack.c.bf16 %v5407, %v5406
        %v5428 = vpack.c.bf16 %v5409, %v5408
        %v5429 = vpack.c.bf16 %v5411, %v5410
        %v5430 = vpack.c.bf16 %v5413, %v5412
        %v5431 = vpack.c.bf16 %v5415, %v5414
        %s5432 = scalar_lea.vmem [#allocation5], 768
        %v5433 = vld [vmem:[%s5432] sm:$0xf]
        %v5434 = vld [vmem:[%s5432 + $0x4] sm:$0xf]
        %v5435 = vld [vmem:[%s5432 + $0x8] sm:$0xf]
        %v5436 = vld [vmem:[%s5432 + $0xc] sm:$0xf]
        %v5437 = vld [vmem:[%s5432 + $0x10] sm:$0xf]
        %v5438 = vld [vmem:[%s5432 + $0x14] sm:$0xf]
        %v5439 = vld [vmem:[%s5432 + $0x18] sm:$0xf]
        %v5440 = vld [vmem:[%s5432 + $0x1c] sm:$0xf]
        %v5441 = vld [vmem:[%s5432 + $0x20] sm:$0xf]
        %v5442 = vld [vmem:[%s5432 + $0x24] sm:$0xf]
        %v5443 = vld [vmem:[%s5432 + $0x28] sm:$0xf]
        %v5444 = vld [vmem:[%s5432 + $0x2c] sm:$0xf]
        %v5445 = vld [vmem:[%s5432 + $0x30] sm:$0xf]
        %v5446 = vld [vmem:[%s5432 + $0x34] sm:$0xf]
        %v5447 = vld [vmem:[%s5432 + $0x38] sm:$0xf]
        %v5448 = vld [vmem:[%s5432 + $0x3c] sm:$0xf]
        %s5449 = scalar_lea.vmem [#allocation7], 12
        %v5450 = vld [vmem:[%s5449] sm:$0x1]
        %v5452 = vlaneseq
        %v5453 = vshrl.u32 %v5452, 7
        %v5454 = vsub.s32 0, %v5453
        %v5455 = vrot.slane %v5450, %v5454
        %v5473 = vunpack.c.l.b16 %v5433
        %v5474 = vunpack.c.l.b16 %v5434
        %v5475 = vunpack.c.l.b16 %v5435
        %v5476 = vunpack.c.l.b16 %v5436
        %v5477 = vunpack.c.l.b16 %v5437
        %v5478 = vunpack.c.l.b16 %v5438
        %v5479 = vunpack.c.l.b16 %v5439
        %v5480 = vunpack.c.l.b16 %v5440
        %v5481 = vunpack.c.l.b16 %v5441
        %v5482 = vunpack.c.l.b16 %v5442
        %v5483 = vunpack.c.l.b16 %v5443
        %v5484 = vunpack.c.l.b16 %v5444
        %v5485 = vunpack.c.l.b16 %v5445
        %v5486 = vunpack.c.l.b16 %v5446
        %v5487 = vunpack.c.l.b16 %v5447
        %v5488 = vunpack.c.l.b16 %v5448
        %v5489 = vpack.c.b16 %v5474, %v5473
        %v5490 = vpack.c.b16 %v5476, %v5475
        %v5491 = vpack.c.b16 %v5478, %v5477
        %v5492 = vpack.c.b16 %v5480, %v5479
        %v5493 = vpack.c.b16 %v5482, %v5481
        %v5494 = vpack.c.b16 %v5484, %v5483
        %v5495 = vpack.c.b16 %v5486, %v5485
        %v5496 = vpack.c.b16 %v5488, %v5487
        %5505 = vmatprep.subr.bf16.mxu0 0
        %5506 = vmatpush1.bf16.msra.mxu0 %v5489
        %5507 = vmatprep.subr.bf16.mxu0 0
        %5508 = vmatpush1.bf16.msra.mxu0 %v5490
        %5509 = vmatprep.subr.bf16.mxu0 0
        %5510 = vmatpush1.bf16.msra.mxu0 %v5491
        %5511 = vmatprep.subr.bf16.mxu0 0
        %5512 = vmatpush1.bf16.msra.mxu0 %v5492
        %5513 = vmatprep.subr.bf16.mxu0 0
        %5514 = vmatpush1.bf16.msra.mxu0 %v5493
        %5515 = vmatprep.subr.bf16.mxu0 0
        %5516 = vmatpush1.bf16.msra.mxu0 %v5494
        %5517 = vmatprep.subr.bf16.mxu0 0
        %5518 = vmatpush1.bf16.msra.mxu0 %v5495
        %5519 = vmatprep.subr.bf16.mxu0 0
        %5520 = vmatpush1.bf16.msra.mxu0 %v5496
        %5521 = vmatprep.subr.bf16.mxu0 0
        %5522 = vmatpush1.bf16.msra.mxu0 0
        %5523 = vmatprep.subr.bf16.mxu0 0
        %5524 = vmatpush1.bf16.msra.mxu0 0
        %5525 = vmatprep.subr.bf16.mxu0 0
        %5526 = vmatpush1.bf16.msra.mxu0 0
        %5527 = vmatprep.subr.bf16.mxu0 0
        %5528 = vmatpush1.bf16.msra.mxu0 0
        %5529 = vmatprep.subr.bf16.mxu0 0
        %5530 = vmatpush1.bf16.msra.mxu0 0
        %5531 = vmatprep.subr.bf16.mxu0 0
        %5532 = vmatpush1.bf16.msra.mxu0 0
        %5533 = vmatprep.subr.bf16.mxu0 0
        %5534 = vmatpush1.bf16.msra.mxu0 0
        %5535 = vmatprep.subr.bf16.mxu0 0
        %5536 = vmatpush1.bf16.msra.mxu0 0
        %5537 = vmatprep.mubr.bf16.mxu0 0
        %5538 = vmatmul.mubr.bf16.gmra.mrb[0].mxu0 %v5416
        %v5539 = vpop.f32.mrb[0].mxu0
        %v5540 = vadd.f32 %v5455, %v5539
        %v5541 = vpop.f32.mrb[0].mxu0
        %v5542 = vpop.f32.mrb[0].mxu0
        %v5543 = vadd.f32 %v5455, %v5542
        %v5544 = vpop.f32.mrb[0].mxu0
        %5545 = vmatprep.mubr.bf16.mxu0 0
        %5546 = vmatmul.mubr.bf16.gmra.mrb[0].mxu0 %v5417
        %v5547 = vpop.f32.mrb[0].mxu0
        %v5548 = vadd.f32 %v5455, %v5547
        %v5549 = vpop.f32.mrb[0].mxu0
        %v5550 = vpop.f32.mrb[0].mxu0
        %v5551 = vadd.f32 %v5455, %v5550
        %v5552 = vpop.f32.mrb[0].mxu0
        %5553 = vmatprep.mubr.bf16.mxu0 0
        %5554 = vmatmul.mubr.bf16.gmra.mrb[0].mxu0 %v5418
        %v5555 = vpop.f32.mrb[0].mxu0
        %v5556 = vadd.f32 %v5455, %v5555
        %v5557 = vpop.f32.mrb[0].mxu0
        %v5558 = vpop.f32.mrb[0].mxu0
        %v5559 = vadd.f32 %v5455, %v5558
        %v5560 = vpop.f32.mrb[0].mxu0
        %5561 = vmatprep.mubr.bf16.mxu0 0
        %5562 = vmatmul.mubr.bf16.gmra.mrb[0].mxu0 %v5419
        %v5563 = vpop.f32.mrb[0].mxu0
        %v5564 = vadd.f32 %v5455, %v5563
        %v5565 = vpop.f32.mrb[0].mxu0
        %v5566 = vpop.f32.mrb[0].mxu0
        %v5567 = vadd.f32 %v5455, %v5566
        %v5568 = vpop.f32.mrb[0].mxu0
        %5569 = vmatprep.mubr.bf16.mxu0 0
        %5570 = vmatmul.mubr.bf16.gmra.mrb[0].mxu0 %v5420
        %v5571 = vpop.f32.mrb[0].mxu0
        %v5572 = vadd.f32 %v5455, %v5571
        %v5573 = vpop.f32.mrb[0].mxu0
        %v5574 = vpop.f32.mrb[0].mxu0
        %v5575 = vadd.f32 %v5455, %v5574
        %v5576 = vpop.f32.mrb[0].mxu0
        %5577 = vmatprep.mubr.bf16.mxu0 0
        %5578 = vmatmul.mubr.bf16.gmra.mrb[0].mxu0 %v5421
        %v5579 = vpop.f32.mrb[0].mxu0
        %v5580 = vadd.f32 %v5455, %v5579
        %v5581 = vpop.f32.mrb[0].mxu0
        %v5582 = vpop.f32.mrb[0].mxu0
        %v5583 = vadd.f32 %v5455, %v5582
        %v5584 = vpop.f32.mrb[0].mxu0
        %5585 = vmatprep.mubr.bf16.mxu0 0
        %5586 = vmatmul.mubr.bf16.gmra.mrb[0].mxu0 %v5422
        %v5587 = vpop.f32.mrb[0].mxu0
        %v5588 = vadd.f32 %v5455, %v5587
        %v5589 = vpop.f32.mrb[0].mxu0
        %v5590 = vpop.f32.mrb[0].mxu0
        %v5591 = vadd.f32 %v5455, %v5590
        %v5592 = vpop.f32.mrb[0].mxu0
        %5593 = vmatprep.mubr.bf16.mxu0 0
        %5594 = vmatmul.mubr.bf16.gmra.mrb[0].mxu0 %v5423
        %v5595 = vpop.f32.mrb[0].mxu0
        %v5596 = vadd.f32 %v5455, %v5595
        %v5597 = vpop.f32.mrb[0].mxu0
        %v5598 = vpop.f32.mrb[0].mxu0
        %v5599 = vadd.f32 %v5455, %v5598
        %v5600 = vpop.f32.mrb[0].mxu0
        %5601 = vmatprep.mubr.bf16.mxu0 0
        %5602 = vmatmul.mubr.bf16.gmra.mrb[0].mxu0 %v5424
        %v5603 = vpop.f32.mrb[0].mxu0
        %v5604 = vadd.f32 %v5455, %v5603
        %v5605 = vpop.f32.mrb[0].mxu0
        %v5606 = vpop.f32.mrb[0].mxu0
        %v5607 = vadd.f32 %v5455, %v5606
        %v5608 = vpop.f32.mrb[0].mxu0
        %5609 = vmatprep.mubr.bf16.mxu0 0
        %5610 = vmatmul.mubr.bf16.gmra.mrb[0].mxu0 %v5425
        %v5611 = vpop.f32.mrb[0].mxu0
        %v5612 = vadd.f32 %v5455, %v5611
        %v5613 = vpop.f32.mrb[0].mxu0
        %v5614 = vpop.f32.mrb[0].mxu0
        %v5615 = vadd.f32 %v5455, %v5614
        %v5616 = vpop.f32.mrb[0].mxu0
        %5617 = vmatprep.mubr.bf16.mxu0 0
        %5618 = vmatmul.mubr.bf16.gmra.mrb[0].mxu0 %v5426
        %v5619 = vpop.f32.mrb[0].mxu0
        %v5620 = vadd.f32 %v5455, %v5619
        %v5621 = vpop.f32.mrb[0].mxu0
        %v5622 = vpop.f32.mrb[0].mxu0
        %v5623 = vadd.f32 %v5455, %v5622
        %v5624 = vpop.f32.mrb[0].mxu0
        %5625 = vmatprep.mubr.bf16.mxu0 0
        %5626 = vmatmul.mubr.bf16.gmra.mrb[0].mxu0 %v5427
        %v5627 = vpop.f32.mrb[0].mxu0
        %v5628 = vadd.f32 %v5455, %v5627
        %v5629 = vpop.f32.mrb[0].mxu0
        %v5630 = vpop.f32.mrb[0].mxu0
        %v5631 = vadd.f32 %v5455, %v5630
        %v5632 = vpop.f32.mrb[0].mxu0
        %5633 = vmatprep.mubr.bf16.mxu0 0
        %5634 = vmatmul.mubr.bf16.gmra.mrb[0].mxu0 %v5428
        %v5635 = vpop.f32.mrb[0].mxu0
        %v5636 = vadd.f32 %v5455, %v5635
        %v5637 = vpop.f32.mrb[0].mxu0
        %v5638 = vpop.f32.mrb[0].mxu0
        %v5639 = vadd.f32 %v5455, %v5638
        %v5640 = vpop.f32.mrb[0].mxu0
        %5641 = vmatprep.mubr.bf16.mxu0 0
        %5642 = vmatmul.mubr.bf16.gmra.mrb[0].mxu0 %v5429
        %v5643 = vpop.f32.mrb[0].mxu0
        %v5644 = vadd.f32 %v5455, %v5643
        %v5645 = vpop.f32.mrb[0].mxu0
        %v5646 = vpop.f32.mrb[0].mxu0
        %v5647 = vadd.f32 %v5455, %v5646
        %v5648 = vpop.f32.mrb[0].mxu0
        %5649 = vmatprep.mubr.bf16.mxu0 0
        %5650 = vmatmul.mubr.bf16.gmra.mrb[0].mxu0 %v5430
        %v5651 = vpop.f32.mrb[0].mxu0
        %v5652 = vadd.f32 %v5455, %v5651
        %v5653 = vpop.f32.mrb[0].mxu0
        %v5654 = vpop.f32.mrb[0].mxu0
        %v5655 = vadd.f32 %v5455, %v5654
        %v5656 = vpop.f32.mrb[0].mxu0
        %5657 = vmatprep.mubr.bf16.mxu0 0
        %5658 = vmatmul.mubr.bf16.gmra.mrb[0].mxu0 %v5431
        %v5659 = vpop.f32.mrb[0].mxu0
        %v5660 = vadd.f32 %v5455, %v5659
        %v5661 = vpop.f32.mrb[0].mxu0
        %v5662 = vpop.f32.mrb[0].mxu0
        %v5663 = vadd.f32 %v5455, %v5662
        %v5664 = vpop.f32.mrb[0].mxu0
        %5665 = vdwg.mxu0
        %v5666 = vmax.f32 %v5540, 0.0
        %v5667 = vmax.f32 %v5543, 0.0
        %v5668 = vmax.f32 %v5548, 0.0
        %v5669 = vmax.f32 %v5551, 0.0
        %v5670 = vmax.f32 %v5556, 0.0
        %v5671 = vmax.f32 %v5559, 0.0
        %v5672 = vmax.f32 %v5564, 0.0
        %v5673 = vmax.f32 %v5567, 0.0
        %v5674 = vmax.f32 %v5572, 0.0
        %v5675 = vmax.f32 %v5575, 0.0
        %v5676 = vmax.f32 %v5580, 0.0
        %v5677 = vmax.f32 %v5583, 0.0
        %v5678 = vmax.f32 %v5588, 0.0
        %v5679 = vmax.f32 %v5591, 0.0
        %v5680 = vmax.f32 %v5596, 0.0
        %v5681 = vmax.f32 %v5599, 0.0
        %v5682 = vmax.f32 %v5604, 0.0
        %v5683 = vmax.f32 %v5607, 0.0
        %v5684 = vmax.f32 %v5612, 0.0
        %v5685 = vmax.f32 %v5615, 0.0
        %v5686 = vmax.f32 %v5620, 0.0
        %v5687 = vmax.f32 %v5623, 0.0
        %v5688 = vmax.f32 %v5628, 0.0
        %v5689 = vmax.f32 %v5631, 0.0
        %v5690 = vmax.f32 %v5636, 0.0
        %v5691 = vmax.f32 %v5639, 0.0
        %v5692 = vmax.f32 %v5644, 0.0
        %v5693 = vmax.f32 %v5647, 0.0
        %v5694 = vmax.f32 %v5652, 0.0
        %v5695 = vmax.f32 %v5655, 0.0
        %v5696 = vmax.f32 %v5660, 0.0
        %v5697 = vmax.f32 %v5663, 0.0
        %v5698 = vpack.c.bf16 %v5667, %v5666
        %v5699 = vpack.c.bf16 %v5669, %v5668
        %v5700 = vpack.c.bf16 %v5671, %v5670
        %v5701 = vpack.c.bf16 %v5673, %v5672
        %v5702 = vpack.c.bf16 %v5675, %v5674
        %v5703 = vpack.c.bf16 %v5677, %v5676
        %v5704 = vpack.c.bf16 %v5679, %v5678
        %v5705 = vpack.c.bf16 %v5681, %v5680
        %v5706 = vpack.c.bf16 %v5683, %v5682
        %v5707 = vpack.c.bf16 %v5685, %v5684
        %v5708 = vpack.c.bf16 %v5687, %v5686
        %v5709 = vpack.c.bf16 %v5689, %v5688
        %v5710 = vpack.c.bf16 %v5691, %v5690
        %v5711 = vpack.c.bf16 %v5693, %v5692
        %v5712 = vpack.c.bf16 %v5695, %v5694
        %v5713 = vpack.c.bf16 %v5697, %v5696
        %s5714 = scalar_lea.vmem [#allocation5], 832
        %v5715 = vld [vmem:[%s5714] sm:$0xf]
        %v5716 = vld [vmem:[%s5714 + $0x4] sm:$0xf]
        %v5717 = vld [vmem:[%s5714 + $0x8] sm:$0xf]
        %v5718 = vld [vmem:[%s5714 + $0xc] sm:$0xf]
        %v5719 = vld [vmem:[%s5714 + $0x10] sm:$0xf]
        %v5720 = vld [vmem:[%s5714 + $0x14] sm:$0xf]
        %v5721 = vld [vmem:[%s5714 + $0x18] sm:$0xf]
        %v5722 = vld [vmem:[%s5714 + $0x1c] sm:$0xf]
        %v5723 = vld [vmem:[%s5714 + $0x20] sm:$0xf]
        %v5724 = vld [vmem:[%s5714 + $0x24] sm:$0xf]
        %v5725 = vld [vmem:[%s5714 + $0x28] sm:$0xf]
        %v5726 = vld [vmem:[%s5714 + $0x2c] sm:$0xf]
        %v5727 = vld [vmem:[%s5714 + $0x30] sm:$0xf]
        %v5728 = vld [vmem:[%s5714 + $0x34] sm:$0xf]
        %v5729 = vld [vmem:[%s5714 + $0x38] sm:$0xf]
        %v5730 = vld [vmem:[%s5714 + $0x3c] sm:$0xf]
        %s5731 = scalar_lea.vmem [#allocation7], 13
        %v5732 = vld [vmem:[%s5731] sm:$0x1]
        %v5734 = vlaneseq
        %v5735 = vshrl.u32 %v5734, 7
        %v5736 = vsub.s32 0, %v5735
        %v5737 = vrot.slane %v5732, %v5736
        %v5755 = vunpack.c.l.b16 %v5715
        %v5756 = vunpack.c.l.b16 %v5716
        %v5757 = vunpack.c.l.b16 %v5717
        %v5758 = vunpack.c.l.b16 %v5718
        %v5759 = vunpack.c.l.b16 %v5719
        %v5760 = vunpack.c.l.b16 %v5720
        %v5761 = vunpack.c.l.b16 %v5721
        %v5762 = vunpack.c.l.b16 %v5722
        %v5763 = vunpack.c.l.b16 %v5723
        %v5764 = vunpack.c.l.b16 %v5724
        %v5765 = vunpack.c.l.b16 %v5725
        %v5766 = vunpack.c.l.b16 %v5726
        %v5767 = vunpack.c.l.b16 %v5727
        %v5768 = vunpack.c.l.b16 %v5728
        %v5769 = vunpack.c.l.b16 %v5729
        %v5770 = vunpack.c.l.b16 %v5730
        %v5771 = vpack.c.b16 %v5756, %v5755
        %v5772 = vpack.c.b16 %v5758, %v5757
        %v5773 = vpack.c.b16 %v5760, %v5759
        %v5774 = vpack.c.b16 %v5762, %v5761
        %v5775 = vpack.c.b16 %v5764, %v5763
        %v5776 = vpack.c.b16 %v5766, %v5765
        %v5777 = vpack.c.b16 %v5768, %v5767
        %v5778 = vpack.c.b16 %v5770, %v5769
        %5787 = vmatprep.subr.bf16.mxu0 0
        %5788 = vmatpush1.bf16.msra.mxu0 %v5771
        %5789 = vmatprep.subr.bf16.mxu0 0
        %5790 = vmatpush1.bf16.msra.mxu0 %v5772
        %5791 = vmatprep.subr.bf16.mxu0 0
        %5792 = vmatpush1.bf16.msra.mxu0 %v5773
        %5793 = vmatprep.subr.bf16.mxu0 0
        %5794 = vmatpush1.bf16.msra.mxu0 %v5774
        %5795 = vmatprep.subr.bf16.mxu0 0
        %5796 = vmatpush1.bf16.msra.mxu0 %v5775
        %5797 = vmatprep.subr.bf16.mxu0 0
        %5798 = vmatpush1.bf16.msra.mxu0 %v5776
        %5799 = vmatprep.subr.bf16.mxu0 0
        %5800 = vmatpush1.bf16.msra.mxu0 %v5777
        %5801 = vmatprep.subr.bf16.mxu0 0
        %5802 = vmatpush1.bf16.msra.mxu0 %v5778
        %5803 = vmatprep.subr.bf16.mxu0 0
        %5804 = vmatpush1.bf16.msra.mxu0 0
        %5805 = vmatprep.subr.bf16.mxu0 0
        %5806 = vmatpush1.bf16.msra.mxu0 0
        %5807 = vmatprep.subr.bf16.mxu0 0
        %5808 = vmatpush1.bf16.msra.mxu0 0
        %5809 = vmatprep.subr.bf16.mxu0 0
        %5810 = vmatpush1.bf16.msra.mxu0 0
        %5811 = vmatprep.subr.bf16.mxu0 0
        %5812 = vmatpush1.bf16.msra.mxu0 0
        %5813 = vmatprep.subr.bf16.mxu0 0
        %5814 = vmatpush1.bf16.msra.mxu0 0
        %5815 = vmatprep.subr.bf16.mxu0 0
        %5816 = vmatpush1.bf16.msra.mxu0 0
        %5817 = vmatprep.subr.bf16.mxu0 0
        %5818 = vmatpush1.bf16.msra.mxu0 0
        %5819 = vmatprep.mubr.bf16.mxu0 0
        %5820 = vmatmul.mubr.bf16.gmra.mrb[0].mxu0 %v5698
        %v5821 = vpop.f32.mrb[0].mxu0
        %v5822 = vadd.f32 %v5737, %v5821
        %v5823 = vpop.f32.mrb[0].mxu0
        %v5824 = vpop.f32.mrb[0].mxu0
        %v5825 = vadd.f32 %v5737, %v5824
        %v5826 = vpop.f32.mrb[0].mxu0
        %5827 = vmatprep.mubr.bf16.mxu0 0
        %5828 = vmatmul.mubr.bf16.gmra.mrb[0].mxu0 %v5699
        %v5829 = vpop.f32.mrb[0].mxu0
        %v5830 = vadd.f32 %v5737, %v5829
        %v5831 = vpop.f32.mrb[0].mxu0
        %v5832 = vpop.f32.mrb[0].mxu0
        %v5833 = vadd.f32 %v5737, %v5832
        %v5834 = vpop.f32.mrb[0].mxu0
        %5835 = vmatprep.mubr.bf16.mxu0 0
        %5836 = vmatmul.mubr.bf16.gmra.mrb[0].mxu0 %v5700
        %v5837 = vpop.f32.mrb[0].mxu0
        %v5838 = vadd.f32 %v5737, %v5837
        %v5839 = vpop.f32.mrb[0].mxu0
        %v5840 = vpop.f32.mrb[0].mxu0
        %v5841 = vadd.f32 %v5737, %v5840
        %v5842 = vpop.f32.mrb[0].mxu0
        %5843 = vmatprep.mubr.bf16.mxu0 0
        %5844 = vmatmul.mubr.bf16.gmra.mrb[0].mxu0 %v5701
        %v5845 = vpop.f32.mrb[0].mxu0
        %v5846 = vadd.f32 %v5737, %v5845
        %v5847 = vpop.f32.mrb[0].mxu0
        %v5848 = vpop.f32.mrb[0].mxu0
        %v5849 = vadd.f32 %v5737, %v5848
        %v5850 = vpop.f32.mrb[0].mxu0
        %5851 = vmatprep.mubr.bf16.mxu0 0
        %5852 = vmatmul.mubr.bf16.gmra.mrb[0].mxu0 %v5702
        %v5853 = vpop.f32.mrb[0].mxu0
        %v5854 = vadd.f32 %v5737, %v5853
        %v5855 = vpop.f32.mrb[0].mxu0
        %v5856 = vpop.f32.mrb[0].mxu0
        %v5857 = vadd.f32 %v5737, %v5856
        %v5858 = vpop.f32.mrb[0].mxu0
        %5859 = vmatprep.mubr.bf16.mxu0 0
        %5860 = vmatmul.mubr.bf16.gmra.mrb[0].mxu0 %v5703
        %v5861 = vpop.f32.mrb[0].mxu0
        %v5862 = vadd.f32 %v5737, %v5861
        %v5863 = vpop.f32.mrb[0].mxu0
        %v5864 = vpop.f32.mrb[0].mxu0
        %v5865 = vadd.f32 %v5737, %v5864
        %v5866 = vpop.f32.mrb[0].mxu0
        %5867 = vmatprep.mubr.bf16.mxu0 0
        %5868 = vmatmul.mubr.bf16.gmra.mrb[0].mxu0 %v5704
        %v5869 = vpop.f32.mrb[0].mxu0
        %v5870 = vadd.f32 %v5737, %v5869
        %v5871 = vpop.f32.mrb[0].mxu0
        %v5872 = vpop.f32.mrb[0].mxu0
        %v5873 = vadd.f32 %v5737, %v5872
        %v5874 = vpop.f32.mrb[0].mxu0
        %5875 = vmatprep.mubr.bf16.mxu0 0
        %5876 = vmatmul.mubr.bf16.gmra.mrb[0].mxu0 %v5705
        %v5877 = vpop.f32.mrb[0].mxu0
        %v5878 = vadd.f32 %v5737, %v5877
        %v5879 = vpop.f32.mrb[0].mxu0
        %v5880 = vpop.f32.mrb[0].mxu0
        %v5881 = vadd.f32 %v5737, %v5880
        %v5882 = vpop.f32.mrb[0].mxu0
        %5883 = vmatprep.mubr.bf16.mxu0 0
        %5884 = vmatmul.mubr.bf16.gmra.mrb[0].mxu0 %v5706
        %v5885 = vpop.f32.mrb[0].mxu0
        %v5886 = vadd.f32 %v5737, %v5885
        %v5887 = vpop.f32.mrb[0].mxu0
        %v5888 = vpop.f32.mrb[0].mxu0
        %v5889 = vadd.f32 %v5737, %v5888
        %v5890 = vpop.f32.mrb[0].mxu0
        %5891 = vmatprep.mubr.bf16.mxu0 0
        %5892 = vmatmul.mubr.bf16.gmra.mrb[0].mxu0 %v5707
        %v5893 = vpop.f32.mrb[0].mxu0
        %v5894 = vadd.f32 %v5737, %v5893
        %v5895 = vpop.f32.mrb[0].mxu0
        %v5896 = vpop.f32.mrb[0].mxu0
        %v5897 = vadd.f32 %v5737, %v5896
        %v5898 = vpop.f32.mrb[0].mxu0
        %5899 = vmatprep.mubr.bf16.mxu0 0
        %5900 = vmatmul.mubr.bf16.gmra.mrb[0].mxu0 %v5708
        %v5901 = vpop.f32.mrb[0].mxu0
        %v5902 = vadd.f32 %v5737, %v5901
        %v5903 = vpop.f32.mrb[0].mxu0
        %v5904 = vpop.f32.mrb[0].mxu0
        %v5905 = vadd.f32 %v5737, %v5904
        %v5906 = vpop.f32.mrb[0].mxu0
        %5907 = vmatprep.mubr.bf16.mxu0 0
        %5908 = vmatmul.mubr.bf16.gmra.mrb[0].mxu0 %v5709
        %v5909 = vpop.f32.mrb[0].mxu0
        %v5910 = vadd.f32 %v5737, %v5909
        %v5911 = vpop.f32.mrb[0].mxu0
        %v5912 = vpop.f32.mrb[0].mxu0
        %v5913 = vadd.f32 %v5737, %v5912
        %v5914 = vpop.f32.mrb[0].mxu0
        %5915 = vmatprep.mubr.bf16.mxu0 0
        %5916 = vmatmul.mubr.bf16.gmra.mrb[0].mxu0 %v5710
        %v5917 = vpop.f32.mrb[0].mxu0
        %v5918 = vadd.f32 %v5737, %v5917
        %v5919 = vpop.f32.mrb[0].mxu0
        %v5920 = vpop.f32.mrb[0].mxu0
        %v5921 = vadd.f32 %v5737, %v5920
        %v5922 = vpop.f32.mrb[0].mxu0
        %5923 = vmatprep.mubr.bf16.mxu0 0
        %5924 = vmatmul.mubr.bf16.gmra.mrb[0].mxu0 %v5711
        %v5925 = vpop.f32.mrb[0].mxu0
        %v5926 = vadd.f32 %v5737, %v5925
        %v5927 = vpop.f32.mrb[0].mxu0
        %v5928 = vpop.f32.mrb[0].mxu0
        %v5929 = vadd.f32 %v5737, %v5928
        %v5930 = vpop.f32.mrb[0].mxu0
        %5931 = vmatprep.mubr.bf16.mxu0 0
        %5932 = vmatmul.mubr.bf16.gmra.mrb[0].mxu0 %v5712
        %v5933 = vpop.f32.mrb[0].mxu0
        %v5934 = vadd.f32 %v5737, %v5933
        %v5935 = vpop.f32.mrb[0].mxu0
        %v5936 = vpop.f32.mrb[0].mxu0
        %v5937 = vadd.f32 %v5737, %v5936
        %v5938 = vpop.f32.mrb[0].mxu0
        %5939 = vmatprep.mubr.bf16.mxu0 0
        %5940 = vmatmul.mubr.bf16.gmra.mrb[0].mxu0 %v5713
        %v5941 = vpop.f32.mrb[0].mxu0
        %v5942 = vadd.f32 %v5737, %v5941
        %v5943 = vpop.f32.mrb[0].mxu0
        %v5944 = vpop.f32.mrb[0].mxu0
        %v5945 = vadd.f32 %v5737, %v5944
        %v5946 = vpop.f32.mrb[0].mxu0
        %5947 = vdwg.mxu0
        %v5948 = vmax.f32 %v5822, 0.0
        %v5949 = vmax.f32 %v5825, 0.0
        %v5950 = vmax.f32 %v5830, 0.0
        %v5951 = vmax.f32 %v5833, 0.0
        %v5952 = vmax.f32 %v5838, 0.0
        %v5953 = vmax.f32 %v5841, 0.0
        %v5954 = vmax.f32 %v5846, 0.0
        %v5955 = vmax.f32 %v5849, 0.0
        %v5956 = vmax.f32 %v5854, 0.0
        %v5957 = vmax.f32 %v5857, 0.0
        %v5958 = vmax.f32 %v5862, 0.0
        %v5959 = vmax.f32 %v5865, 0.0
        %v5960 = vmax.f32 %v5870, 0.0
        %v5961 = vmax.f32 %v5873, 0.0
        %v5962 = vmax.f32 %v5878, 0.0
        %v5963 = vmax.f32 %v5881, 0.0
        %v5964 = vmax.f32 %v5886, 0.0
        %v5965 = vmax.f32 %v5889, 0.0
        %v5966 = vmax.f32 %v5894, 0.0
        %v5967 = vmax.f32 %v5897, 0.0
        %v5968 = vmax.f32 %v5902, 0.0
        %v5969 = vmax.f32 %v5905, 0.0
        %v5970 = vmax.f32 %v5910, 0.0
        %v5971 = vmax.f32 %v5913, 0.0
        %v5972 = vmax.f32 %v5918, 0.0
        %v5973 = vmax.f32 %v5921, 0.0
        %v5974 = vmax.f32 %v5926, 0.0
        %v5975 = vmax.f32 %v5929, 0.0
        %v5976 = vmax.f32 %v5934, 0.0
        %v5977 = vmax.f32 %v5937, 0.0
        %v5978 = vmax.f32 %v5942, 0.0
        %v5979 = vmax.f32 %v5945, 0.0
        %v5980 = vpack.c.bf16 %v5949, %v5948
        %v5981 = vpack.c.bf16 %v5951, %v5950
        %v5982 = vpack.c.bf16 %v5953, %v5952
        %v5983 = vpack.c.bf16 %v5955, %v5954
        %v5984 = vpack.c.bf16 %v5957, %v5956
        %v5985 = vpack.c.bf16 %v5959, %v5958
        %v5986 = vpack.c.bf16 %v5961, %v5960
        %v5987 = vpack.c.bf16 %v5963, %v5962
        %v5988 = vpack.c.bf16 %v5965, %v5964
        %v5989 = vpack.c.bf16 %v5967, %v5966
        %v5990 = vpack.c.bf16 %v5969, %v5968
        %v5991 = vpack.c.bf16 %v5971, %v5970
        %v5992 = vpack.c.bf16 %v5973, %v5972
        %v5993 = vpack.c.bf16 %v5975, %v5974
        %v5994 = vpack.c.bf16 %v5977, %v5976
        %v5995 = vpack.c.bf16 %v5979, %v5978
        %s5996 = scalar_lea.vmem [#allocation5], 896
        %v5997 = vld [vmem:[%s5996] sm:$0xf]
        %v5998 = vld [vmem:[%s5996 + $0x4] sm:$0xf]
        %v5999 = vld [vmem:[%s5996 + $0x8] sm:$0xf]
        %v6000 = vld [vmem:[%s5996 + $0xc] sm:$0xf]
        %v6001 = vld [vmem:[%s5996 + $0x10] sm:$0xf]
        %v6002 = vld [vmem:[%s5996 + $0x14] sm:$0xf]
        %v6003 = vld [vmem:[%s5996 + $0x18] sm:$0xf]
        %v6004 = vld [vmem:[%s5996 + $0x1c] sm:$0xf]
        %v6005 = vld [vmem:[%s5996 + $0x20] sm:$0xf]
        %v6006 = vld [vmem:[%s5996 + $0x24] sm:$0xf]
        %v6007 = vld [vmem:[%s5996 + $0x28] sm:$0xf]
        %v6008 = vld [vmem:[%s5996 + $0x2c] sm:$0xf]
        %v6009 = vld [vmem:[%s5996 + $0x30] sm:$0xf]
        %v6010 = vld [vmem:[%s5996 + $0x34] sm:$0xf]
        %v6011 = vld [vmem:[%s5996 + $0x38] sm:$0xf]
        %v6012 = vld [vmem:[%s5996 + $0x3c] sm:$0xf]
        %s6013 = scalar_lea.vmem [#allocation7], 14
        %v6014 = vld [vmem:[%s6013] sm:$0x1]
        %v6016 = vlaneseq
        %v6017 = vshrl.u32 %v6016, 7
        %v6018 = vsub.s32 0, %v6017
        %v6019 = vrot.slane %v6014, %v6018
        %v6037 = vunpack.c.l.b16 %v5997
        %v6038 = vunpack.c.l.b16 %v5998
        %v6039 = vunpack.c.l.b16 %v5999
        %v6040 = vunpack.c.l.b16 %v6000
        %v6041 = vunpack.c.l.b16 %v6001
        %v6042 = vunpack.c.l.b16 %v6002
        %v6043 = vunpack.c.l.b16 %v6003
        %v6044 = vunpack.c.l.b16 %v6004
        %v6045 = vunpack.c.l.b16 %v6005
        %v6046 = vunpack.c.l.b16 %v6006
        %v6047 = vunpack.c.l.b16 %v6007
        %v6048 = vunpack.c.l.b16 %v6008
        %v6049 = vunpack.c.l.b16 %v6009
        %v6050 = vunpack.c.l.b16 %v6010
        %v6051 = vunpack.c.l.b16 %v6011
        %v6052 = vunpack.c.l.b16 %v6012
        %v6053 = vpack.c.b16 %v6038, %v6037
        %v6054 = vpack.c.b16 %v6040, %v6039
        %v6055 = vpack.c.b16 %v6042, %v6041
        %v6056 = vpack.c.b16 %v6044, %v6043
        %v6057 = vpack.c.b16 %v6046, %v6045
        %v6058 = vpack.c.b16 %v6048, %v6047
        %v6059 = vpack.c.b16 %v6050, %v6049
        %v6060 = vpack.c.b16 %v6052, %v6051
        %6069 = vmatprep.subr.bf16.mxu0 0
        %6070 = vmatpush1.bf16.msra.mxu0 %v6053
        %6071 = vmatprep.subr.bf16.mxu0 0
        %6072 = vmatpush1.bf16.msra.mxu0 %v6054
        %6073 = vmatprep.subr.bf16.mxu0 0
        %6074 = vmatpush1.bf16.msra.mxu0 %v6055
        %6075 = vmatprep.subr.bf16.mxu0 0
        %6076 = vmatpush1.bf16.msra.mxu0 %v6056
        %6077 = vmatprep.subr.bf16.mxu0 0
        %6078 = vmatpush1.bf16.msra.mxu0 %v6057
        %6079 = vmatprep.subr.bf16.mxu0 0
        %6080 = vmatpush1.bf16.msra.mxu0 %v6058
        %6081 = vmatprep.subr.bf16.mxu0 0
        %6082 = vmatpush1.bf16.msra.mxu0 %v6059
        %6083 = vmatprep.subr.bf16.mxu0 0
        %6084 = vmatpush1.bf16.msra.mxu0 %v6060
        %6085 = vmatprep.subr.bf16.mxu0 0
        %6086 = vmatpush1.bf16.msra.mxu0 0
        %6087 = vmatprep.subr.bf16.mxu0 0
        %6088 = vmatpush1.bf16.msra.mxu0 0
        %6089 = vmatprep.subr.bf16.mxu0 0
        %6090 = vmatpush1.bf16.msra.mxu0 0
        %6091 = vmatprep.subr.bf16.mxu0 0
        %6092 = vmatpush1.bf16.msra.mxu0 0
        %6093 = vmatprep.subr.bf16.mxu0 0
        %6094 = vmatpush1.bf16.msra.mxu0 0
        %6095 = vmatprep.subr.bf16.mxu0 0
        %6096 = vmatpush1.bf16.msra.mxu0 0
        %6097 = vmatprep.subr.bf16.mxu0 0
        %6098 = vmatpush1.bf16.msra.mxu0 0
        %6099 = vmatprep.subr.bf16.mxu0 0
        %6100 = vmatpush1.bf16.msra.mxu0 0
        %6101 = vmatprep.mubr.bf16.mxu0 0
        %6102 = vmatmul.mubr.bf16.gmra.mrb[0].mxu0 %v5980
        %v6103 = vpop.f32.mrb[0].mxu0
        %v6104 = vadd.f32 %v6019, %v6103
        %v6105 = vpop.f32.mrb[0].mxu0
        %v6106 = vpop.f32.mrb[0].mxu0
        %v6107 = vadd.f32 %v6019, %v6106
        %v6108 = vpop.f32.mrb[0].mxu0
        %6109 = vmatprep.mubr.bf16.mxu0 0
        %6110 = vmatmul.mubr.bf16.gmra.mrb[0].mxu0 %v5981
        %v6111 = vpop.f32.mrb[0].mxu0
        %v6112 = vadd.f32 %v6019, %v6111
        %v6113 = vpop.f32.mrb[0].mxu0
        %v6114 = vpop.f32.mrb[0].mxu0
        %v6115 = vadd.f32 %v6019, %v6114
        %v6116 = vpop.f32.mrb[0].mxu0
        %6117 = vmatprep.mubr.bf16.mxu0 0
        %6118 = vmatmul.mubr.bf16.gmra.mrb[0].mxu0 %v5982
        %v6119 = vpop.f32.mrb[0].mxu0
        %v6120 = vadd.f32 %v6019, %v6119
        %v6121 = vpop.f32.mrb[0].mxu0
        %v6122 = vpop.f32.mrb[0].mxu0
        %v6123 = vadd.f32 %v6019, %v6122
        %v6124 = vpop.f32.mrb[0].mxu0
        %6125 = vmatprep.mubr.bf16.mxu0 0
        %6126 = vmatmul.mubr.bf16.gmra.mrb[0].mxu0 %v5983
        %v6127 = vpop.f32.mrb[0].mxu0
        %v6128 = vadd.f32 %v6019, %v6127
        %v6129 = vpop.f32.mrb[0].mxu0
        %v6130 = vpop.f32.mrb[0].mxu0
        %v6131 = vadd.f32 %v6019, %v6130
        %v6132 = vpop.f32.mrb[0].mxu0
        %6133 = vmatprep.mubr.bf16.mxu0 0
        %6134 = vmatmul.mubr.bf16.gmra.mrb[0].mxu0 %v5984
        %v6135 = vpop.f32.mrb[0].mxu0
        %v6136 = vadd.f32 %v6019, %v6135
        %v6137 = vpop.f32.mrb[0].mxu0
        %v6138 = vpop.f32.mrb[0].mxu0
        %v6139 = vadd.f32 %v6019, %v6138
        %v6140 = vpop.f32.mrb[0].mxu0
        %6141 = vmatprep.mubr.bf16.mxu0 0
        %6142 = vmatmul.mubr.bf16.gmra.mrb[0].mxu0 %v5985
        %v6143 = vpop.f32.mrb[0].mxu0
        %v6144 = vadd.f32 %v6019, %v6143
        %v6145 = vpop.f32.mrb[0].mxu0
        %v6146 = vpop.f32.mrb[0].mxu0
        %v6147 = vadd.f32 %v6019, %v6146
        %v6148 = vpop.f32.mrb[0].mxu0
        %6149 = vmatprep.mubr.bf16.mxu0 0
        %6150 = vmatmul.mubr.bf16.gmra.mrb[0].mxu0 %v5986
        %v6151 = vpop.f32.mrb[0].mxu0
        %v6152 = vadd.f32 %v6019, %v6151
        %v6153 = vpop.f32.mrb[0].mxu0
        %v6154 = vpop.f32.mrb[0].mxu0
        %v6155 = vadd.f32 %v6019, %v6154
        %v6156 = vpop.f32.mrb[0].mxu0
        %6157 = vmatprep.mubr.bf16.mxu0 0
        %6158 = vmatmul.mubr.bf16.gmra.mrb[0].mxu0 %v5987
        %v6159 = vpop.f32.mrb[0].mxu0
        %v6160 = vadd.f32 %v6019, %v6159
        %v6161 = vpop.f32.mrb[0].mxu0
        %v6162 = vpop.f32.mrb[0].mxu0
        %v6163 = vadd.f32 %v6019, %v6162
        %v6164 = vpop.f32.mrb[0].mxu0
        %6165 = vmatprep.mubr.bf16.mxu0 0
        %6166 = vmatmul.mubr.bf16.gmra.mrb[0].mxu0 %v5988
        %v6167 = vpop.f32.mrb[0].mxu0
        %v6168 = vadd.f32 %v6019, %v6167
        %v6169 = vpop.f32.mrb[0].mxu0
        %v6170 = vpop.f32.mrb[0].mxu0
        %v6171 = vadd.f32 %v6019, %v6170
        %v6172 = vpop.f32.mrb[0].mxu0
        %6173 = vmatprep.mubr.bf16.mxu0 0
        %6174 = vmatmul.mubr.bf16.gmra.mrb[0].mxu0 %v5989
        %v6175 = vpop.f32.mrb[0].mxu0
        %v6176 = vadd.f32 %v6019, %v6175
        %v6177 = vpop.f32.mrb[0].mxu0
        %v6178 = vpop.f32.mrb[0].mxu0
        %v6179 = vadd.f32 %v6019, %v6178
        %v6180 = vpop.f32.mrb[0].mxu0
        %6181 = vmatprep.mubr.bf16.mxu0 0
        %6182 = vmatmul.mubr.bf16.gmra.mrb[0].mxu0 %v5990
        %v6183 = vpop.f32.mrb[0].mxu0
        %v6184 = vadd.f32 %v6019, %v6183
        %v6185 = vpop.f32.mrb[0].mxu0
        %v6186 = vpop.f32.mrb[0].mxu0
        %v6187 = vadd.f32 %v6019, %v6186
        %v6188 = vpop.f32.mrb[0].mxu0
        %6189 = vmatprep.mubr.bf16.mxu0 0
        %6190 = vmatmul.mubr.bf16.gmra.mrb[0].mxu0 %v5991
        %v6191 = vpop.f32.mrb[0].mxu0
        %v6192 = vadd.f32 %v6019, %v6191
        %v6193 = vpop.f32.mrb[0].mxu0
        %v6194 = vpop.f32.mrb[0].mxu0
        %v6195 = vadd.f32 %v6019, %v6194
        %v6196 = vpop.f32.mrb[0].mxu0
        %6197 = vmatprep.mubr.bf16.mxu0 0
        %6198 = vmatmul.mubr.bf16.gmra.mrb[0].mxu0 %v5992
        %v6199 = vpop.f32.mrb[0].mxu0
        %v6200 = vadd.f32 %v6019, %v6199
        %v6201 = vpop.f32.mrb[0].mxu0
        %v6202 = vpop.f32.mrb[0].mxu0
        %v6203 = vadd.f32 %v6019, %v6202
        %v6204 = vpop.f32.mrb[0].mxu0
        %6205 = vmatprep.mubr.bf16.mxu0 0
        %6206 = vmatmul.mubr.bf16.gmra.mrb[0].mxu0 %v5993
        %v6207 = vpop.f32.mrb[0].mxu0
        %v6208 = vadd.f32 %v6019, %v6207
        %v6209 = vpop.f32.mrb[0].mxu0
        %v6210 = vpop.f32.mrb[0].mxu0
        %v6211 = vadd.f32 %v6019, %v6210
        %v6212 = vpop.f32.mrb[0].mxu0
        %6213 = vmatprep.mubr.bf16.mxu0 0
        %6214 = vmatmul.mubr.bf16.gmra.mrb[0].mxu0 %v5994
        %v6215 = vpop.f32.mrb[0].mxu0
        %v6216 = vadd.f32 %v6019, %v6215
        %v6217 = vpop.f32.mrb[0].mxu0
        %v6218 = vpop.f32.mrb[0].mxu0
        %v6219 = vadd.f32 %v6019, %v6218
        %v6220 = vpop.f32.mrb[0].mxu0
        %6221 = vmatprep.mubr.bf16.mxu0 0
        %6222 = vmatmul.mubr.bf16.gmra.mrb[0].mxu0 %v5995
        %v6223 = vpop.f32.mrb[0].mxu0
        %v6224 = vadd.f32 %v6019, %v6223
        %v6225 = vpop.f32.mrb[0].mxu0
        %v6226 = vpop.f32.mrb[0].mxu0
        %v6227 = vadd.f32 %v6019, %v6226
        %v6228 = vpop.f32.mrb[0].mxu0
        %6229 = vdwg.mxu0
        %v6230 = vadd.f32 %v6104, %v5384
        %v6231 = vadd.f32 %v6107, %v5385
        %v6232 = vadd.f32 %v6112, %v5386
        %v6233 = vadd.f32 %v6115, %v5387
        %v6234 = vadd.f32 %v6120, %v5388
        %v6235 = vadd.f32 %v6123, %v5389
        %v6236 = vadd.f32 %v6128, %v5390
        %v6237 = vadd.f32 %v6131, %v5391
        %v6238 = vadd.f32 %v6136, %v5392
        %v6239 = vadd.f32 %v6139, %v5393
        %v6240 = vadd.f32 %v6144, %v5394
        %v6241 = vadd.f32 %v6147, %v5395
        %v6242 = vadd.f32 %v6152, %v5396
        %v6243 = vadd.f32 %v6155, %v5397
        %v6244 = vadd.f32 %v6160, %v5398
        %v6245 = vadd.f32 %v6163, %v5399
        %v6246 = vadd.f32 %v6168, %v5400
        %v6247 = vadd.f32 %v6171, %v5401
        %v6248 = vadd.f32 %v6176, %v5402
        %v6249 = vadd.f32 %v6179, %v5403
        %v6250 = vadd.f32 %v6184, %v5404
        %v6251 = vadd.f32 %v6187, %v5405
        %v6252 = vadd.f32 %v6192, %v5406
        %v6253 = vadd.f32 %v6195, %v5407
        %v6254 = vadd.f32 %v6200, %v5408
        %v6255 = vadd.f32 %v6203, %v5409
        %v6256 = vadd.f32 %v6208, %v5410
        %v6257 = vadd.f32 %v6211, %v5411
        %v6258 = vadd.f32 %v6216, %v5412
        %v6259 = vadd.f32 %v6219, %v5413
        %v6260 = vadd.f32 %v6224, %v5414
        %v6261 = vadd.f32 %v6227, %v5415
        %s6262 = scalar_lea.vmem %s3, 4
        %v6263 = vld [vmem:[%s6262] sm:$0x1]
        %s6264 = scalar_lea.vmem %s4, 4
        %v6265 = vld [vmem:[%s6264] sm:$0x1]
        %6266 = vadd.xlane.f32.xlu0 %v6230
        %v6267 = vpop.xlane.xlu0 %6266
        %6268 = vadd.xlane.f32.xlu0 %v6231
        %v6269 = vpop.xlane.xlu0 %6268
        %6270 = vadd.xlane.f32.xlu0 %v6232
        %v6271 = vpop.xlane.xlu0 %6270
        %6272 = vadd.xlane.f32.xlu0 %v6233
        %v6273 = vpop.xlane.xlu0 %6272
        %6274 = vadd.xlane.f32.xlu0 %v6234
        %v6275 = vpop.xlane.xlu0 %6274
        %6276 = vadd.xlane.f32.xlu0 %v6235
        %v6277 = vpop.xlane.xlu0 %6276
        %6278 = vadd.xlane.f32.xlu0 %v6236
        %v6279 = vpop.xlane.xlu0 %6278
        %6280 = vadd.xlane.f32.xlu0 %v6237
        %v6281 = vpop.xlane.xlu0 %6280
        %6282 = vadd.xlane.f32.xlu0 %v6238
        %v6283 = vpop.xlane.xlu0 %6282
        %6284 = vadd.xlane.f32.xlu0 %v6239
        %v6285 = vpop.xlane.xlu0 %6284
        %6286 = vadd.xlane.f32.xlu0 %v6240
        %v6287 = vpop.xlane.xlu0 %6286
        %6288 = vadd.xlane.f32.xlu0 %v6241
        %v6289 = vpop.xlane.xlu0 %6288
        %6290 = vadd.xlane.f32.xlu0 %v6242
        %v6291 = vpop.xlane.xlu0 %6290
        %6292 = vadd.xlane.f32.xlu0 %v6243
        %v6293 = vpop.xlane.xlu0 %6292
        %6294 = vadd.xlane.f32.xlu0 %v6244
        %v6295 = vpop.xlane.xlu0 %6294
        %6296 = vadd.xlane.f32.xlu0 %v6245
        %v6297 = vpop.xlane.xlu0 %6296
        %6298 = vadd.xlane.f32.xlu0 %v6246
        %v6299 = vpop.xlane.xlu0 %6298
        %6300 = vadd.xlane.f32.xlu0 %v6247
        %v6301 = vpop.xlane.xlu0 %6300
        %6302 = vadd.xlane.f32.xlu0 %v6248
        %v6303 = vpop.xlane.xlu0 %6302
        %6304 = vadd.xlane.f32.xlu0 %v6249
        %v6305 = vpop.xlane.xlu0 %6304
        %6306 = vadd.xlane.f32.xlu0 %v6250
        %v6307 = vpop.xlane.xlu0 %6306
        %6308 = vadd.xlane.f32.xlu0 %v6251
        %v6309 = vpop.xlane.xlu0 %6308
        %6310 = vadd.xlane.f32.xlu0 %v6252
        %v6311 = vpop.xlane.xlu0 %6310
        %6312 = vadd.xlane.f32.xlu0 %v6253
        %v6313 = vpop.xlane.xlu0 %6312
        %6314 = vadd.xlane.f32.xlu0 %v6254
        %v6315 = vpop.xlane.xlu0 %6314
        %6316 = vadd.xlane.f32.xlu0 %v6255
        %v6317 = vpop.xlane.xlu0 %6316
        %6318 = vadd.xlane.f32.xlu0 %v6256
        %v6319 = vpop.xlane.xlu0 %6318
        %6320 = vadd.xlane.f32.xlu0 %v6257
        %v6321 = vpop.xlane.xlu0 %6320
        %6322 = vadd.xlane.f32.xlu0 %v6258
        %v6323 = vpop.xlane.xlu0 %6322
        %6324 = vadd.xlane.f32.xlu0 %v6259
        %v6325 = vpop.xlane.xlu0 %6324
        %6326 = vadd.xlane.f32.xlu0 %v6260
        %v6327 = vpop.xlane.xlu0 %6326
        %6328 = vadd.xlane.f32.xlu0 %v6261
        %v6329 = vpop.xlane.xlu0 %6328
        %v6330 = vmul.f32 %v6267, %v1217
        %v6331 = vmul.f32 %v6269, %v1217
        %v6332 = vmul.f32 %v6271, %v1217
        %v6333 = vmul.f32 %v6273, %v1217
        %v6334 = vmul.f32 %v6275, %v1217
        %v6335 = vmul.f32 %v6277, %v1217
        %v6336 = vmul.f32 %v6279, %v1217
        %v6337 = vmul.f32 %v6281, %v1217
        %v6338 = vmul.f32 %v6283, %v1217
        %v6339 = vmul.f32 %v6285, %v1217
        %v6340 = vmul.f32 %v6287, %v1217
        %v6341 = vmul.f32 %v6289, %v1217
        %v6342 = vmul.f32 %v6291, %v1217
        %v6343 = vmul.f32 %v6293, %v1217
        %v6344 = vmul.f32 %v6295, %v1217
        %v6345 = vmul.f32 %v6297, %v1217
        %v6346 = vmul.f32 %v6299, %v1217
        %v6347 = vmul.f32 %v6301, %v1217
        %v6348 = vmul.f32 %v6303, %v1217
        %v6349 = vmul.f32 %v6305, %v1217
        %v6350 = vmul.f32 %v6307, %v1217
        %v6351 = vmul.f32 %v6309, %v1217
        %v6352 = vmul.f32 %v6311, %v1217
        %v6353 = vmul.f32 %v6313, %v1217
        %v6354 = vmul.f32 %v6315, %v1217
        %v6355 = vmul.f32 %v6317, %v1217
        %v6356 = vmul.f32 %v6319, %v1217
        %v6357 = vmul.f32 %v6321, %v1217
        %v6358 = vmul.f32 %v6323, %v1217
        %v6359 = vmul.f32 %v6325, %v1217
        %v6360 = vmul.f32 %v6327, %v1217
        %v6361 = vmul.f32 %v6329, %v1217
        %v6362 = vsub.f32 %v6230, %v6330
        %v6363 = vsub.f32 %v6231, %v6331
        %v6364 = vsub.f32 %v6232, %v6332
        %v6365 = vsub.f32 %v6233, %v6333
        %v6366 = vsub.f32 %v6234, %v6334
        %v6367 = vsub.f32 %v6235, %v6335
        %v6368 = vsub.f32 %v6236, %v6336
        %v6369 = vsub.f32 %v6237, %v6337
        %v6370 = vsub.f32 %v6238, %v6338
        %v6371 = vsub.f32 %v6239, %v6339
        %v6372 = vsub.f32 %v6240, %v6340
        %v6373 = vsub.f32 %v6241, %v6341
        %v6374 = vsub.f32 %v6242, %v6342
        %v6375 = vsub.f32 %v6243, %v6343
        %v6376 = vsub.f32 %v6244, %v6344
        %v6377 = vsub.f32 %v6245, %v6345
        %v6378 = vsub.f32 %v6246, %v6346
        %v6379 = vsub.f32 %v6247, %v6347
        %v6380 = vsub.f32 %v6248, %v6348
        %v6381 = vsub.f32 %v6249, %v6349
        %v6382 = vsub.f32 %v6250, %v6350
        %v6383 = vsub.f32 %v6251, %v6351
        %v6384 = vsub.f32 %v6252, %v6352
        %v6385 = vsub.f32 %v6253, %v6353
        %v6386 = vsub.f32 %v6254, %v6354
        %v6387 = vsub.f32 %v6255, %v6355
        %v6388 = vsub.f32 %v6256, %v6356
        %v6389 = vsub.f32 %v6257, %v6357
        %v6390 = vsub.f32 %v6258, %v6358
        %v6391 = vsub.f32 %v6259, %v6359
        %v6392 = vsub.f32 %v6260, %v6360
        %v6393 = vsub.f32 %v6261, %v6361
        %v6394 = vmul.f32 %v6362, %v6362
        %v6395 = vmul.f32 %v6363, %v6363
        %v6396 = vmul.f32 %v6364, %v6364
        %v6397 = vmul.f32 %v6365, %v6365
        %v6398 = vmul.f32 %v6366, %v6366
        %v6399 = vmul.f32 %v6367, %v6367
        %v6400 = vmul.f32 %v6368, %v6368
        %v6401 = vmul.f32 %v6369, %v6369
        %v6402 = vmul.f32 %v6370, %v6370
        %v6403 = vmul.f32 %v6371, %v6371
        %v6404 = vmul.f32 %v6372, %v6372
        %v6405 = vmul.f32 %v6373, %v6373
        %v6406 = vmul.f32 %v6374, %v6374
        %v6407 = vmul.f32 %v6375, %v6375
        %v6408 = vmul.f32 %v6376, %v6376
        %v6409 = vmul.f32 %v6377, %v6377
        %v6410 = vmul.f32 %v6378, %v6378
        %v6411 = vmul.f32 %v6379, %v6379
        %v6412 = vmul.f32 %v6380, %v6380
        %v6413 = vmul.f32 %v6381, %v6381
        %v6414 = vmul.f32 %v6382, %v6382
        %v6415 = vmul.f32 %v6383, %v6383
        %v6416 = vmul.f32 %v6384, %v6384
        %v6417 = vmul.f32 %v6385, %v6385
        %v6418 = vmul.f32 %v6386, %v6386
        %v6419 = vmul.f32 %v6387, %v6387
        %v6420 = vmul.f32 %v6388, %v6388
        %v6421 = vmul.f32 %v6389, %v6389
        %v6422 = vmul.f32 %v6390, %v6390
        %v6423 = vmul.f32 %v6391, %v6391
        %v6424 = vmul.f32 %v6392, %v6392
        %v6425 = vmul.f32 %v6393, %v6393
        %6426 = vadd.xlane.f32.xlu0 %v6394
        %v6427 = vpop.xlane.xlu0 %6426
        %6428 = vadd.xlane.f32.xlu0 %v6395
        %v6429 = vpop.xlane.xlu0 %6428
        %6430 = vadd.xlane.f32.xlu0 %v6396
        %v6431 = vpop.xlane.xlu0 %6430
        %6432 = vadd.xlane.f32.xlu0 %v6397
        %v6433 = vpop.xlane.xlu0 %6432
        %6434 = vadd.xlane.f32.xlu0 %v6398
        %v6435 = vpop.xlane.xlu0 %6434
        %6436 = vadd.xlane.f32.xlu0 %v6399
        %v6437 = vpop.xlane.xlu0 %6436
        %6438 = vadd.xlane.f32.xlu0 %v6400
        %v6439 = vpop.xlane.xlu0 %6438
        %6440 = vadd.xlane.f32.xlu0 %v6401
        %v6441 = vpop.xlane.xlu0 %6440
        %6442 = vadd.xlane.f32.xlu0 %v6402
        %v6443 = vpop.xlane.xlu0 %6442
        %6444 = vadd.xlane.f32.xlu0 %v6403
        %v6445 = vpop.xlane.xlu0 %6444
        %6446 = vadd.xlane.f32.xlu0 %v6404
        %v6447 = vpop.xlane.xlu0 %6446
        %6448 = vadd.xlane.f32.xlu0 %v6405
        %v6449 = vpop.xlane.xlu0 %6448
        %6450 = vadd.xlane.f32.xlu0 %v6406
        %v6451 = vpop.xlane.xlu0 %6450
        %6452 = vadd.xlane.f32.xlu0 %v6407
        %v6453 = vpop.xlane.xlu0 %6452
        %6454 = vadd.xlane.f32.xlu0 %v6408
        %v6455 = vpop.xlane.xlu0 %6454
        %6456 = vadd.xlane.f32.xlu0 %v6409
        %v6457 = vpop.xlane.xlu0 %6456
        %6458 = vadd.xlane.f32.xlu0 %v6410
        %v6459 = vpop.xlane.xlu0 %6458
        %6460 = vadd.xlane.f32.xlu0 %v6411
        %v6461 = vpop.xlane.xlu0 %6460
        %6462 = vadd.xlane.f32.xlu0 %v6412
        %v6463 = vpop.xlane.xlu0 %6462
        %6464 = vadd.xlane.f32.xlu0 %v6413
        %v6465 = vpop.xlane.xlu0 %6464
        %6466 = vadd.xlane.f32.xlu0 %v6414
        %v6467 = vpop.xlane.xlu0 %6466
        %6468 = vadd.xlane.f32.xlu0 %v6415
        %v6469 = vpop.xlane.xlu0 %6468
        %6470 = vadd.xlane.f32.xlu0 %v6416
        %v6471 = vpop.xlane.xlu0 %6470
        %6472 = vadd.xlane.f32.xlu0 %v6417
        %v6473 = vpop.xlane.xlu0 %6472
        %6474 = vadd.xlane.f32.xlu0 %v6418
        %v6475 = vpop.xlane.xlu0 %6474
        %6476 = vadd.xlane.f32.xlu0 %v6419
        %v6477 = vpop.xlane.xlu0 %6476
        %6478 = vadd.xlane.f32.xlu0 %v6420
        %v6479 = vpop.xlane.xlu0 %6478
        %6480 = vadd.xlane.f32.xlu0 %v6421
        %v6481 = vpop.xlane.xlu0 %6480
        %6482 = vadd.xlane.f32.xlu0 %v6422
        %v6483 = vpop.xlane.xlu0 %6482
        %6484 = vadd.xlane.f32.xlu0 %v6423
        %v6485 = vpop.xlane.xlu0 %6484
        %6486 = vadd.xlane.f32.xlu0 %v6424
        %v6487 = vpop.xlane.xlu0 %6486
        %6488 = vadd.xlane.f32.xlu0 %v6425
        %v6489 = vpop.xlane.xlu0 %6488
        %v6490 = vmul.f32 %v6427, %v1217
        %v6491 = vmul.f32 %v6429, %v1217
        %v6492 = vmul.f32 %v6431, %v1217
        %v6493 = vmul.f32 %v6433, %v1217
        %v6494 = vmul.f32 %v6435, %v1217
        %v6495 = vmul.f32 %v6437, %v1217
        %v6496 = vmul.f32 %v6439, %v1217
        %v6497 = vmul.f32 %v6441, %v1217
        %v6498 = vmul.f32 %v6443, %v1217
        %v6499 = vmul.f32 %v6445, %v1217
        %v6500 = vmul.f32 %v6447, %v1217
        %v6501 = vmul.f32 %v6449, %v1217
        %v6502 = vmul.f32 %v6451, %v1217
        %v6503 = vmul.f32 %v6453, %v1217
        %v6504 = vmul.f32 %v6455, %v1217
        %v6505 = vmul.f32 %v6457, %v1217
        %v6506 = vmul.f32 %v6459, %v1217
        %v6507 = vmul.f32 %v6461, %v1217
        %v6508 = vmul.f32 %v6463, %v1217
        %v6509 = vmul.f32 %v6465, %v1217
        %v6510 = vmul.f32 %v6467, %v1217
        %v6511 = vmul.f32 %v6469, %v1217
        %v6512 = vmul.f32 %v6471, %v1217
        %v6513 = vmul.f32 %v6473, %v1217
        %v6514 = vmul.f32 %v6475, %v1217
        %v6515 = vmul.f32 %v6477, %v1217
        %v6516 = vmul.f32 %v6479, %v1217
        %v6517 = vmul.f32 %v6481, %v1217
        %v6518 = vmul.f32 %v6483, %v1217
        %v6519 = vmul.f32 %v6485, %v1217
        %v6520 = vmul.f32 %v6487, %v1217
        %v6521 = vmul.f32 %v6489, %v1217
        %v6522 = vadd.f32 %v6490, 1e-05
        %v6523 = vadd.f32 %v6491, 1e-05
        %v6524 = vadd.f32 %v6492, 1e-05
        %v6525 = vadd.f32 %v6493, 1e-05
        %v6526 = vadd.f32 %v6494, 1e-05
        %v6527 = vadd.f32 %v6495, 1e-05
        %v6528 = vadd.f32 %v6496, 1e-05
        %v6529 = vadd.f32 %v6497, 1e-05
        %v6530 = vadd.f32 %v6498, 1e-05
        %v6531 = vadd.f32 %v6499, 1e-05
        %v6532 = vadd.f32 %v6500, 1e-05
        %v6533 = vadd.f32 %v6501, 1e-05
        %v6534 = vadd.f32 %v6502, 1e-05
        %v6535 = vadd.f32 %v6503, 1e-05
        %v6536 = vadd.f32 %v6504, 1e-05
        %v6537 = vadd.f32 %v6505, 1e-05
        %v6538 = vadd.f32 %v6506, 1e-05
        %v6539 = vadd.f32 %v6507, 1e-05
        %v6540 = vadd.f32 %v6508, 1e-05
        %v6541 = vadd.f32 %v6509, 1e-05
        %v6542 = vadd.f32 %v6510, 1e-05
        %v6543 = vadd.f32 %v6511, 1e-05
        %v6544 = vadd.f32 %v6512, 1e-05
        %v6545 = vadd.f32 %v6513, 1e-05
        %v6546 = vadd.f32 %v6514, 1e-05
        %v6547 = vadd.f32 %v6515, 1e-05
        %v6548 = vadd.f32 %v6516, 1e-05
        %v6549 = vadd.f32 %v6517, 1e-05
        %v6550 = vadd.f32 %v6518, 1e-05
        %v6551 = vadd.f32 %v6519, 1e-05
        %v6552 = vadd.f32 %v6520, 1e-05
        %v6553 = vadd.f32 %v6521, 1e-05
        %v6554 = vrsqrt.pop %v6522
        %v6555 = vrsqrt.pop %v6523
        %v6556 = vrsqrt.pop %v6524
        %v6557 = vrsqrt.pop %v6525
        %v6558 = vrsqrt.pop %v6526
        %v6559 = vrsqrt.pop %v6527
        %v6560 = vrsqrt.pop %v6528
        %v6561 = vrsqrt.pop %v6529
        %v6562 = vrsqrt.pop %v6530
        %v6563 = vrsqrt.pop %v6531
        %v6564 = vrsqrt.pop %v6532
        %v6565 = vrsqrt.pop %v6533
        %v6566 = vrsqrt.pop %v6534
        %v6567 = vrsqrt.pop %v6535
        %v6568 = vrsqrt.pop %v6536
        %v6569 = vrsqrt.pop %v6537
        %v6570 = vrsqrt.pop %v6538
        %v6571 = vrsqrt.pop %v6539
        %v6572 = vrsqrt.pop %v6540
        %v6573 = vrsqrt.pop %v6541
        %v6574 = vrsqrt.pop %v6542
        %v6575 = vrsqrt.pop %v6543
        %v6576 = vrsqrt.pop %v6544
        %v6577 = vrsqrt.pop %v6545
        %v6578 = vrsqrt.pop %v6546
        %v6579 = vrsqrt.pop %v6547
        %v6580 = vrsqrt.pop %v6548
        %v6581 = vrsqrt.pop %v6549
        %v6582 = vrsqrt.pop %v6550
        %v6583 = vrsqrt.pop %v6551
        %v6584 = vrsqrt.pop %v6552
        %v6585 = vrsqrt.pop %v6553
        %v6586 = vmul.f32 %v6362, %v6554
        %v6587 = vmul.f32 %v6363, %v6555
        %v6588 = vmul.f32 %v6364, %v6556
        %v6589 = vmul.f32 %v6365, %v6557
        %v6590 = vmul.f32 %v6366, %v6558
        %v6591 = vmul.f32 %v6367, %v6559
        %v6592 = vmul.f32 %v6368, %v6560
        %v6593 = vmul.f32 %v6369, %v6561
        %v6594 = vmul.f32 %v6370, %v6562
        %v6595 = vmul.f32 %v6371, %v6563
        %v6596 = vmul.f32 %v6372, %v6564
        %v6597 = vmul.f32 %v6373, %v6565
        %v6598 = vmul.f32 %v6374, %v6566
        %v6599 = vmul.f32 %v6375, %v6567
        %v6600 = vmul.f32 %v6376, %v6568
        %v6601 = vmul.f32 %v6377, %v6569
        %v6602 = vmul.f32 %v6378, %v6570
        %v6603 = vmul.f32 %v6379, %v6571
        %v6604 = vmul.f32 %v6380, %v6572
        %v6605 = vmul.f32 %v6381, %v6573
        %v6606 = vmul.f32 %v6382, %v6574
        %v6607 = vmul.f32 %v6383, %v6575
        %v6608 = vmul.f32 %v6384, %v6576
        %v6609 = vmul.f32 %v6385, %v6577
        %v6610 = vmul.f32 %v6386, %v6578
        %v6611 = vmul.f32 %v6387, %v6579
        %v6612 = vmul.f32 %v6388, %v6580
        %v6613 = vmul.f32 %v6389, %v6581
        %v6614 = vmul.f32 %v6390, %v6582
        %v6615 = vmul.f32 %v6391, %v6583
        %v6616 = vmul.f32 %v6392, %v6584
        %v6617 = vmul.f32 %v6393, %v6585
        %v6619 = vlaneseq
        %v6620 = vshrl.u32 %v6619, 7
        %v6621 = vsub.s32 0, %v6620
        %v6622 = vrot.slane %v6263, %v6621
        %v6624 = vmul.f32 %v6586, %v6622
        %v6625 = vmul.f32 %v6587, %v6622
        %v6626 = vmul.f32 %v6588, %v6622
        %v6627 = vmul.f32 %v6589, %v6622
        %v6628 = vmul.f32 %v6590, %v6622
        %v6629 = vmul.f32 %v6591, %v6622
        %v6630 = vmul.f32 %v6592, %v6622
        %v6631 = vmul.f32 %v6593, %v6622
        %v6632 = vmul.f32 %v6594, %v6622
        %v6633 = vmul.f32 %v6595, %v6622
        %v6634 = vmul.f32 %v6596, %v6622
        %v6635 = vmul.f32 %v6597, %v6622
        %v6636 = vmul.f32 %v6598, %v6622
        %v6637 = vmul.f32 %v6599, %v6622
        %v6638 = vmul.f32 %v6600, %v6622
        %v6639 = vmul.f32 %v6601, %v6622
        %v6640 = vmul.f32 %v6602, %v6622
        %v6641 = vmul.f32 %v6603, %v6622
        %v6642 = vmul.f32 %v6604, %v6622
        %v6643 = vmul.f32 %v6605, %v6622
        %v6644 = vmul.f32 %v6606, %v6622
        %v6645 = vmul.f32 %v6607, %v6622
        %v6646 = vmul.f32 %v6608, %v6622
        %v6647 = vmul.f32 %v6609, %v6622
        %v6648 = vmul.f32 %v6610, %v6622
        %v6649 = vmul.f32 %v6611, %v6622
        %v6650 = vmul.f32 %v6612, %v6622
        %v6651 = vmul.f32 %v6613, %v6622
        %v6652 = vmul.f32 %v6614, %v6622
        %v6653 = vmul.f32 %v6615, %v6622
        %v6654 = vmul.f32 %v6616, %v6622
        %v6655 = vmul.f32 %v6617, %v6622
        %v6657 = vlaneseq
        %v6658 = vshrl.u32 %v6657, 7
        %v6659 = vsub.s32 0, %v6658
        %v6660 = vrot.slane %v6265, %v6659
        %v6662 = vadd.f32 %v6624, %v6660
        %v6663 = vadd.f32 %v6625, %v6660
        %v6664 = vadd.f32 %v6626, %v6660
        %v6665 = vadd.f32 %v6627, %v6660
        %v6666 = vadd.f32 %v6628, %v6660
        %v6667 = vadd.f32 %v6629, %v6660
        %v6668 = vadd.f32 %v6630, %v6660
        %v6669 = vadd.f32 %v6631, %v6660
        %v6670 = vadd.f32 %v6632, %v6660
        %v6671 = vadd.f32 %v6633, %v6660
        %v6672 = vadd.f32 %v6634, %v6660
        %v6673 = vadd.f32 %v6635, %v6660
        %v6674 = vadd.f32 %v6636, %v6660
        %v6675 = vadd.f32 %v6637, %v6660
        %v6676 = vadd.f32 %v6638, %v6660
        %v6677 = vadd.f32 %v6639, %v6660
        %v6678 = vadd.f32 %v6640, %v6660
        %v6679 = vadd.f32 %v6641, %v6660
        %v6680 = vadd.f32 %v6642, %v6660
        %v6681 = vadd.f32 %v6643, %v6660
        %v6682 = vadd.f32 %v6644, %v6660
        %v6683 = vadd.f32 %v6645, %v6660
        %v6684 = vadd.f32 %v6646, %v6660
        %v6685 = vadd.f32 %v6647, %v6660
        %v6686 = vadd.f32 %v6648, %v6660
        %v6687 = vadd.f32 %v6649, %v6660
        %v6688 = vadd.f32 %v6650, %v6660
        %v6689 = vadd.f32 %v6651, %v6660
        %v6690 = vadd.f32 %v6652, %v6660
        %v6691 = vadd.f32 %v6653, %v6660
        %v6692 = vadd.f32 %v6654, %v6660
        %v6693 = vadd.f32 %v6655, %v6660
        %v6694 = vpack.c.bf16 %v6663, %v6662
        %v6695 = vpack.c.bf16 %v6665, %v6664
        %v6696 = vpack.c.bf16 %v6667, %v6666
        %v6697 = vpack.c.bf16 %v6669, %v6668
        %v6698 = vpack.c.bf16 %v6671, %v6670
        %v6699 = vpack.c.bf16 %v6673, %v6672
        %v6700 = vpack.c.bf16 %v6675, %v6674
        %v6701 = vpack.c.bf16 %v6677, %v6676
        %v6702 = vpack.c.bf16 %v6679, %v6678
        %v6703 = vpack.c.bf16 %v6681, %v6680
        %v6704 = vpack.c.bf16 %v6683, %v6682
        %v6705 = vpack.c.bf16 %v6685, %v6684
        %v6706 = vpack.c.bf16 %v6687, %v6686
        %v6707 = vpack.c.bf16 %v6689, %v6688
        %v6708 = vpack.c.bf16 %v6691, %v6690
        %v6709 = vpack.c.bf16 %v6693, %v6692
        %s6710 = scalar_lea.vmem [#allocation5], 960
        %v6711 = vld [vmem:[%s6710] sm:$0xf]
        %v6712 = vld [vmem:[%s6710 + $0x4] sm:$0xf]
        %v6713 = vld [vmem:[%s6710 + $0x8] sm:$0xf]
        %v6714 = vld [vmem:[%s6710 + $0xc] sm:$0xf]
        %v6715 = vld [vmem:[%s6710 + $0x10] sm:$0xf]
        %v6716 = vld [vmem:[%s6710 + $0x14] sm:$0xf]
        %v6717 = vld [vmem:[%s6710 + $0x18] sm:$0xf]
        %v6718 = vld [vmem:[%s6710 + $0x1c] sm:$0xf]
        %v6719 = vld [vmem:[%s6710 + $0x20] sm:$0xf]
        %v6720 = vld [vmem:[%s6710 + $0x24] sm:$0xf]
        %v6721 = vld [vmem:[%s6710 + $0x28] sm:$0xf]
        %v6722 = vld [vmem:[%s6710 + $0x2c] sm:$0xf]
        %v6723 = vld [vmem:[%s6710 + $0x30] sm:$0xf]
        %v6724 = vld [vmem:[%s6710 + $0x34] sm:$0xf]
        %v6725 = vld [vmem:[%s6710 + $0x38] sm:$0xf]
        %v6726 = vld [vmem:[%s6710 + $0x3c] sm:$0xf]
        %s6727 = scalar_lea.vmem [#allocation7], 15
        %v6728 = vld [vmem:[%s6727] sm:$0x1]
        %v6730 = vlaneseq
        %v6731 = vshrl.u32 %v6730, 7
        %v6732 = vsub.s32 0, %v6731
        %v6733 = vrot.slane %v6728, %v6732
        %v6751 = vunpack.c.l.b16 %v6711
        %v6752 = vunpack.c.l.b16 %v6712
        %v6753 = vunpack.c.l.b16 %v6713
        %v6754 = vunpack.c.l.b16 %v6714
        %v6755 = vunpack.c.l.b16 %v6715
        %v6756 = vunpack.c.l.b16 %v6716
        %v6757 = vunpack.c.l.b16 %v6717
        %v6758 = vunpack.c.l.b16 %v6718
        %v6759 = vunpack.c.l.b16 %v6719
        %v6760 = vunpack.c.l.b16 %v6720
        %v6761 = vunpack.c.l.b16 %v6721
        %v6762 = vunpack.c.l.b16 %v6722
        %v6763 = vunpack.c.l.b16 %v6723
        %v6764 = vunpack.c.l.b16 %v6724
        %v6765 = vunpack.c.l.b16 %v6725
        %v6766 = vunpack.c.l.b16 %v6726
        %v6767 = vpack.c.b16 %v6752, %v6751
        %v6768 = vpack.c.b16 %v6754, %v6753
        %v6769 = vpack.c.b16 %v6756, %v6755
        %v6770 = vpack.c.b16 %v6758, %v6757
        %v6771 = vpack.c.b16 %v6760, %v6759
        %v6772 = vpack.c.b16 %v6762, %v6761
        %v6773 = vpack.c.b16 %v6764, %v6763
        %v6774 = vpack.c.b16 %v6766, %v6765
        %6783 = vmatprep.subr.bf16.mxu0 0
        %6784 = vmatpush1.bf16.msra.mxu0 %v6767
        %6785 = vmatprep.subr.bf16.mxu0 0
        %6786 = vmatpush1.bf16.msra.mxu0 %v6768
        %6787 = vmatprep.subr.bf16.mxu0 0
        %6788 = vmatpush1.bf16.msra.mxu0 %v6769
        %6789 = vmatprep.subr.bf16.mxu0 0
        %6790 = vmatpush1.bf16.msra.mxu0 %v6770
        %6791 = vmatprep.subr.bf16.mxu0 0
        %6792 = vmatpush1.bf16.msra.mxu0 %v6771
        %6793 = vmatprep.subr.bf16.mxu0 0
        %6794 = vmatpush1.bf16.msra.mxu0 %v6772
        %6795 = vmatprep.subr.bf16.mxu0 0
        %6796 = vmatpush1.bf16.msra.mxu0 %v6773
        %6797 = vmatprep.subr.bf16.mxu0 0
        %6798 = vmatpush1.bf16.msra.mxu0 %v6774
        %6799 = vmatprep.subr.bf16.mxu0 0
        %6800 = vmatpush1.bf16.msra.mxu0 0
        %6801 = vmatprep.subr.bf16.mxu0 0
        %6802 = vmatpush1.bf16.msra.mxu0 0
        %6803 = vmatprep.subr.bf16.mxu0 0
        %6804 = vmatpush1.bf16.msra.mxu0 0
        %6805 = vmatprep.subr.bf16.mxu0 0
        %6806 = vmatpush1.bf16.msra.mxu0 0
        %6807 = vmatprep.subr.bf16.mxu0 0
        %6808 = vmatpush1.bf16.msra.mxu0 0
        %6809 = vmatprep.subr.bf16.mxu0 0
        %6810 = vmatpush1.bf16.msra.mxu0 0
        %6811 = vmatprep.subr.bf16.mxu0 0
        %6812 = vmatpush1.bf16.msra.mxu0 0
        %6813 = vmatprep.subr.bf16.mxu0 0
        %6814 = vmatpush1.bf16.msra.mxu0 0
        %6815 = vmatprep.mubr.bf16.mxu0 0
        %6816 = vmatmul.mubr.bf16.gmra.mrb[0].mxu0 %v6694
        %v6817 = vpop.f32.mrb[0].mxu0
        %v6818 = vadd.f32 %v6733, %v6817
        %v6819 = vpop.f32.mrb[0].mxu0
        %v6820 = vpop.f32.mrb[0].mxu0
        %v6821 = vadd.f32 %v6733, %v6820
        %v6822 = vpop.f32.mrb[0].mxu0
        %6823 = vmatprep.mubr.bf16.mxu0 0
        %6824 = vmatmul.mubr.bf16.gmra.mrb[0].mxu0 %v6695
        %v6825 = vpop.f32.mrb[0].mxu0
        %v6826 = vadd.f32 %v6733, %v6825
        %v6827 = vpop.f32.mrb[0].mxu0
        %v6828 = vpop.f32.mrb[0].mxu0
        %v6829 = vadd.f32 %v6733, %v6828
        %v6830 = vpop.f32.mrb[0].mxu0
        %6831 = vmatprep.mubr.bf16.mxu0 0
        %6832 = vmatmul.mubr.bf16.gmra.mrb[0].mxu0 %v6696
        %v6833 = vpop.f32.mrb[0].mxu0
        %v6834 = vadd.f32 %v6733, %v6833
        %v6835 = vpop.f32.mrb[0].mxu0
        %v6836 = vpop.f32.mrb[0].mxu0
        %v6837 = vadd.f32 %v6733, %v6836
        %v6838 = vpop.f32.mrb[0].mxu0
        %6839 = vmatprep.mubr.bf16.mxu0 0
        %6840 = vmatmul.mubr.bf16.gmra.mrb[0].mxu0 %v6697
        %v6841 = vpop.f32.mrb[0].mxu0
        %v6842 = vadd.f32 %v6733, %v6841
        %v6843 = vpop.f32.mrb[0].mxu0
        %v6844 = vpop.f32.mrb[0].mxu0
        %v6845 = vadd.f32 %v6733, %v6844
        %v6846 = vpop.f32.mrb[0].mxu0
        %6847 = vmatprep.mubr.bf16.mxu0 0
        %6848 = vmatmul.mubr.bf16.gmra.mrb[0].mxu0 %v6698
        %v6849 = vpop.f32.mrb[0].mxu0
        %v6850 = vadd.f32 %v6733, %v6849
        %v6851 = vpop.f32.mrb[0].mxu0
        %v6852 = vpop.f32.mrb[0].mxu0
        %v6853 = vadd.f32 %v6733, %v6852
        %v6854 = vpop.f32.mrb[0].mxu0
        %6855 = vmatprep.mubr.bf16.mxu0 0
        %6856 = vmatmul.mubr.bf16.gmra.mrb[0].mxu0 %v6699
        %v6857 = vpop.f32.mrb[0].mxu0
        %v6858 = vadd.f32 %v6733, %v6857
        %v6859 = vpop.f32.mrb[0].mxu0
        %v6860 = vpop.f32.mrb[0].mxu0
        %v6861 = vadd.f32 %v6733, %v6860
        %v6862 = vpop.f32.mrb[0].mxu0
        %6863 = vmatprep.mubr.bf16.mxu0 0
        %6864 = vmatmul.mubr.bf16.gmra.mrb[0].mxu0 %v6700
        %v6865 = vpop.f32.mrb[0].mxu0
        %v6866 = vadd.f32 %v6733, %v6865
        %v6867 = vpop.f32.mrb[0].mxu0
        %v6868 = vpop.f32.mrb[0].mxu0
        %v6869 = vadd.f32 %v6733, %v6868
        %v6870 = vpop.f32.mrb[0].mxu0
        %6871 = vmatprep.mubr.bf16.mxu0 0
        %6872 = vmatmul.mubr.bf16.gmra.mrb[0].mxu0 %v6701
        %v6873 = vpop.f32.mrb[0].mxu0
        %v6874 = vadd.f32 %v6733, %v6873
        %v6875 = vpop.f32.mrb[0].mxu0
        %v6876 = vpop.f32.mrb[0].mxu0
        %v6877 = vadd.f32 %v6733, %v6876
        %v6878 = vpop.f32.mrb[0].mxu0
        %6879 = vmatprep.mubr.bf16.mxu0 0
        %6880 = vmatmul.mubr.bf16.gmra.mrb[0].mxu0 %v6702
        %v6881 = vpop.f32.mrb[0].mxu0
        %v6882 = vadd.f32 %v6733, %v6881
        %v6883 = vpop.f32.mrb[0].mxu0
        %v6884 = vpop.f32.mrb[0].mxu0
        %v6885 = vadd.f32 %v6733, %v6884
        %v6886 = vpop.f32.mrb[0].mxu0
        %6887 = vmatprep.mubr.bf16.mxu0 0
        %6888 = vmatmul.mubr.bf16.gmra.mrb[0].mxu0 %v6703
        %v6889 = vpop.f32.mrb[0].mxu0
        %v6890 = vadd.f32 %v6733, %v6889
        %v6891 = vpop.f32.mrb[0].mxu0
        %v6892 = vpop.f32.mrb[0].mxu0
        %v6893 = vadd.f32 %v6733, %v6892
        %v6894 = vpop.f32.mrb[0].mxu0
        %6895 = vmatprep.mubr.bf16.mxu0 0
        %6896 = vmatmul.mubr.bf16.gmra.mrb[0].mxu0 %v6704
        %v6897 = vpop.f32.mrb[0].mxu0
        %v6898 = vadd.f32 %v6733, %v6897
        %v6899 = vpop.f32.mrb[0].mxu0
        %v6900 = vpop.f32.mrb[0].mxu0
        %v6901 = vadd.f32 %v6733, %v6900
        %v6902 = vpop.f32.mrb[0].mxu0
        %6903 = vmatprep.mubr.bf16.mxu0 0
        %6904 = vmatmul.mubr.bf16.gmra.mrb[0].mxu0 %v6705
        %v6905 = vpop.f32.mrb[0].mxu0
        %v6906 = vadd.f32 %v6733, %v6905
        %v6907 = vpop.f32.mrb[0].mxu0
        %v6908 = vpop.f32.mrb[0].mxu0
        %v6909 = vadd.f32 %v6733, %v6908
        %v6910 = vpop.f32.mrb[0].mxu0
        %6911 = vmatprep.mubr.bf16.mxu0 0
        %6912 = vmatmul.mubr.bf16.gmra.mrb[0].mxu0 %v6706
        %v6913 = vpop.f32.mrb[0].mxu0
        %v6914 = vadd.f32 %v6733, %v6913
        %v6915 = vpop.f32.mrb[0].mxu0
        %v6916 = vpop.f32.mrb[0].mxu0
        %v6917 = vadd.f32 %v6733, %v6916
        %v6918 = vpop.f32.mrb[0].mxu0
        %6919 = vmatprep.mubr.bf16.mxu0 0
        %6920 = vmatmul.mubr.bf16.gmra.mrb[0].mxu0 %v6707
        %v6921 = vpop.f32.mrb[0].mxu0
        %v6922 = vadd.f32 %v6733, %v6921
        %v6923 = vpop.f32.mrb[0].mxu0
        %v6924 = vpop.f32.mrb[0].mxu0
        %v6925 = vadd.f32 %v6733, %v6924
        %v6926 = vpop.f32.mrb[0].mxu0
        %6927 = vmatprep.mubr.bf16.mxu0 0
        %6928 = vmatmul.mubr.bf16.gmra.mrb[0].mxu0 %v6708
        %v6929 = vpop.f32.mrb[0].mxu0
        %v6930 = vadd.f32 %v6733, %v6929
        %v6931 = vpop.f32.mrb[0].mxu0
        %v6932 = vpop.f32.mrb[0].mxu0
        %v6933 = vadd.f32 %v6733, %v6932
        %v6934 = vpop.f32.mrb[0].mxu0
        %6935 = vmatprep.mubr.bf16.mxu0 0
        %6936 = vmatmul.mubr.bf16.gmra.mrb[0].mxu0 %v6709
        %v6937 = vpop.f32.mrb[0].mxu0
        %v6938 = vadd.f32 %v6733, %v6937
        %v6939 = vpop.f32.mrb[0].mxu0
        %v6940 = vpop.f32.mrb[0].mxu0
        %v6941 = vadd.f32 %v6733, %v6940
        %v6942 = vpop.f32.mrb[0].mxu0
        %6943 = vdwg.mxu0
        %v6944 = vmax.f32 %v6818, 0.0
        %v6945 = vmax.f32 %v6821, 0.0
        %v6946 = vmax.f32 %v6826, 0.0
        %v6947 = vmax.f32 %v6829, 0.0
        %v6948 = vmax.f32 %v6834, 0.0
        %v6949 = vmax.f32 %v6837, 0.0
        %v6950 = vmax.f32 %v6842, 0.0
        %v6951 = vmax.f32 %v6845, 0.0
        %v6952 = vmax.f32 %v6850, 0.0
        %v6953 = vmax.f32 %v6853, 0.0
        %v6954 = vmax.f32 %v6858, 0.0
        %v6955 = vmax.f32 %v6861, 0.0
        %v6956 = vmax.f32 %v6866, 0.0
        %v6957 = vmax.f32 %v6869, 0.0
        %v6958 = vmax.f32 %v6874, 0.0
        %v6959 = vmax.f32 %v6877, 0.0
        %v6960 = vmax.f32 %v6882, 0.0
        %v6961 = vmax.f32 %v6885, 0.0
        %v6962 = vmax.f32 %v6890, 0.0
        %v6963 = vmax.f32 %v6893, 0.0
        %v6964 = vmax.f32 %v6898, 0.0
        %v6965 = vmax.f32 %v6901, 0.0
        %v6966 = vmax.f32 %v6906, 0.0
        %v6967 = vmax.f32 %v6909, 0.0
        %v6968 = vmax.f32 %v6914, 0.0
        %v6969 = vmax.f32 %v6917, 0.0
        %v6970 = vmax.f32 %v6922, 0.0
        %v6971 = vmax.f32 %v6925, 0.0
        %v6972 = vmax.f32 %v6930, 0.0
        %v6973 = vmax.f32 %v6933, 0.0
        %v6974 = vmax.f32 %v6938, 0.0
        %v6975 = vmax.f32 %v6941, 0.0
        %v6976 = vpack.c.bf16 %v6945, %v6944
        %v6977 = vpack.c.bf16 %v6947, %v6946
        %v6978 = vpack.c.bf16 %v6949, %v6948
        %v6979 = vpack.c.bf16 %v6951, %v6950
        %v6980 = vpack.c.bf16 %v6953, %v6952
        %v6981 = vpack.c.bf16 %v6955, %v6954
        %v6982 = vpack.c.bf16 %v6957, %v6956
        %v6983 = vpack.c.bf16 %v6959, %v6958
        %v6984 = vpack.c.bf16 %v6961, %v6960
        %v6985 = vpack.c.bf16 %v6963, %v6962
        %v6986 = vpack.c.bf16 %v6965, %v6964
        %v6987 = vpack.c.bf16 %v6967, %v6966
        %v6988 = vpack.c.bf16 %v6969, %v6968
        %v6989 = vpack.c.bf16 %v6971, %v6970
        %v6990 = vpack.c.bf16 %v6973, %v6972
        %v6991 = vpack.c.bf16 %v6975, %v6974
        %s6992 = scalar_lea.vmem [#allocation5], 1024
        %v6993 = vld [vmem:[%s6992] sm:$0xf]
        %v6994 = vld [vmem:[%s6992 + $0x4] sm:$0xf]
        %v6995 = vld [vmem:[%s6992 + $0x8] sm:$0xf]
        %v6996 = vld [vmem:[%s6992 + $0xc] sm:$0xf]
        %v6997 = vld [vmem:[%s6992 + $0x10] sm:$0xf]
        %v6998 = vld [vmem:[%s6992 + $0x14] sm:$0xf]
        %v6999 = vld [vmem:[%s6992 + $0x18] sm:$0xf]
        %v7000 = vld [vmem:[%s6992 + $0x1c] sm:$0xf]
        %v7001 = vld [vmem:[%s6992 + $0x20] sm:$0xf]
        %v7002 = vld [vmem:[%s6992 + $0x24] sm:$0xf]
        %v7003 = vld [vmem:[%s6992 + $0x28] sm:$0xf]
        %v7004 = vld [vmem:[%s6992 + $0x2c] sm:$0xf]
        %v7005 = vld [vmem:[%s6992 + $0x30] sm:$0xf]
        %v7006 = vld [vmem:[%s6992 + $0x34] sm:$0xf]
        %v7007 = vld [vmem:[%s6992 + $0x38] sm:$0xf]
        %v7008 = vld [vmem:[%s6992 + $0x3c] sm:$0xf]
        %s7009 = scalar_lea.vmem [#allocation7], 16
        %v7010 = vld [vmem:[%s7009] sm:$0x1]
        %v7012 = vlaneseq
        %v7013 = vshrl.u32 %v7012, 7
        %v7014 = vsub.s32 0, %v7013
        %v7015 = vrot.slane %v7010, %v7014
        %v7033 = vunpack.c.l.b16 %v6993
        %v7034 = vunpack.c.l.b16 %v6994
        %v7035 = vunpack.c.l.b16 %v6995
        %v7036 = vunpack.c.l.b16 %v6996
        %v7037 = vunpack.c.l.b16 %v6997
        %v7038 = vunpack.c.l.b16 %v6998
        %v7039 = vunpack.c.l.b16 %v6999
        %v7040 = vunpack.c.l.b16 %v7000
        %v7041 = vunpack.c.l.b16 %v7001
        %v7042 = vunpack.c.l.b16 %v7002
        %v7043 = vunpack.c.l.b16 %v7003
        %v7044 = vunpack.c.l.b16 %v7004
        %v7045 = vunpack.c.l.b16 %v7005
        %v7046 = vunpack.c.l.b16 %v7006
        %v7047 = vunpack.c.l.b16 %v7007
        %v7048 = vunpack.c.l.b16 %v7008
        %v7049 = vpack.c.b16 %v7034, %v7033
        %v7050 = vpack.c.b16 %v7036, %v7035
        %v7051 = vpack.c.b16 %v7038, %v7037
        %v7052 = vpack.c.b16 %v7040, %v7039
        %v7053 = vpack.c.b16 %v7042, %v7041
        %v7054 = vpack.c.b16 %v7044, %v7043
        %v7055 = vpack.c.b16 %v7046, %v7045
        %v7056 = vpack.c.b16 %v7048, %v7047
        %7065 = vmatprep.subr.bf16.mxu0 0
        %7066 = vmatpush1.bf16.msra.mxu0 %v7049
        %7067 = vmatprep.subr.bf16.mxu0 0
        %7068 = vmatpush1.bf16.msra.mxu0 %v7050
        %7069 = vmatprep.subr.bf16.mxu0 0
        %7070 = vmatpush1.bf16.msra.mxu0 %v7051
        %7071 = vmatprep.subr.bf16.mxu0 0
        %7072 = vmatpush1.bf16.msra.mxu0 %v7052
        %7073 = vmatprep.subr.bf16.mxu0 0
        %7074 = vmatpush1.bf16.msra.mxu0 %v7053
        %7075 = vmatprep.subr.bf16.mxu0 0
        %7076 = vmatpush1.bf16.msra.mxu0 %v7054
        %7077 = vmatprep.subr.bf16.mxu0 0
        %7078 = vmatpush1.bf16.msra.mxu0 %v7055
        %7079 = vmatprep.subr.bf16.mxu0 0
        %7080 = vmatpush1.bf16.msra.mxu0 %v7056
        %7081 = vmatprep.subr.bf16.mxu0 0
        %7082 = vmatpush1.bf16.msra.mxu0 0
        %7083 = vmatprep.subr.bf16.mxu0 0
        %7084 = vmatpush1.bf16.msra.mxu0 0
        %7085 = vmatprep.subr.bf16.mxu0 0
        %7086 = vmatpush1.bf16.msra.mxu0 0
        %7087 = vmatprep.subr.bf16.mxu0 0
        %7088 = vmatpush1.bf16.msra.mxu0 0
        %7089 = vmatprep.subr.bf16.mxu0 0
        %7090 = vmatpush1.bf16.msra.mxu0 0
        %7091 = vmatprep.subr.bf16.mxu0 0
        %7092 = vmatpush1.bf16.msra.mxu0 0
        %7093 = vmatprep.subr.bf16.mxu0 0
        %7094 = vmatpush1.bf16.msra.mxu0 0
        %7095 = vmatprep.subr.bf16.mxu0 0
        %7096 = vmatpush1.bf16.msra.mxu0 0
        %7097 = vmatprep.mubr.bf16.mxu0 0
        %7098 = vmatmul.mubr.bf16.gmra.mrb[0].mxu0 %v6976
        %v7099 = vpop.f32.mrb[0].mxu0
        %v7100 = vadd.f32 %v7015, %v7099
        %v7101 = vpop.f32.mrb[0].mxu0
        %v7102 = vpop.f32.mrb[0].mxu0
        %v7103 = vadd.f32 %v7015, %v7102
        %v7104 = vpop.f32.mrb[0].mxu0
        %7105 = vmatprep.mubr.bf16.mxu0 0
        %7106 = vmatmul.mubr.bf16.gmra.mrb[0].mxu0 %v6977
        %v7107 = vpop.f32.mrb[0].mxu0
        %v7108 = vadd.f32 %v7015, %v7107
        %v7109 = vpop.f32.mrb[0].mxu0
        %v7110 = vpop.f32.mrb[0].mxu0
        %v7111 = vadd.f32 %v7015, %v7110
        %v7112 = vpop.f32.mrb[0].mxu0
        %7113 = vmatprep.mubr.bf16.mxu0 0
        %7114 = vmatmul.mubr.bf16.gmra.mrb[0].mxu0 %v6978
        %v7115 = vpop.f32.mrb[0].mxu0
        %v7116 = vadd.f32 %v7015, %v7115
        %v7117 = vpop.f32.mrb[0].mxu0
        %v7118 = vpop.f32.mrb[0].mxu0
        %v7119 = vadd.f32 %v7015, %v7118
        %v7120 = vpop.f32.mrb[0].mxu0
        %7121 = vmatprep.mubr.bf16.mxu0 0
        %7122 = vmatmul.mubr.bf16.gmra.mrb[0].mxu0 %v6979
        %v7123 = vpop.f32.mrb[0].mxu0
        %v7124 = vadd.f32 %v7015, %v7123
        %v7125 = vpop.f32.mrb[0].mxu0
        %v7126 = vpop.f32.mrb[0].mxu0
        %v7127 = vadd.f32 %v7015, %v7126
        %v7128 = vpop.f32.mrb[0].mxu0
        %7129 = vmatprep.mubr.bf16.mxu0 0
        %7130 = vmatmul.mubr.bf16.gmra.mrb[0].mxu0 %v6980
        %v7131 = vpop.f32.mrb[0].mxu0
        %v7132 = vadd.f32 %v7015, %v7131
        %v7133 = vpop.f32.mrb[0].mxu0
        %v7134 = vpop.f32.mrb[0].mxu0
        %v7135 = vadd.f32 %v7015, %v7134
        %v7136 = vpop.f32.mrb[0].mxu0
        %7137 = vmatprep.mubr.bf16.mxu0 0
        %7138 = vmatmul.mubr.bf16.gmra.mrb[0].mxu0 %v6981
        %v7139 = vpop.f32.mrb[0].mxu0
        %v7140 = vadd.f32 %v7015, %v7139
        %v7141 = vpop.f32.mrb[0].mxu0
        %v7142 = vpop.f32.mrb[0].mxu0
        %v7143 = vadd.f32 %v7015, %v7142
        %v7144 = vpop.f32.mrb[0].mxu0
        %7145 = vmatprep.mubr.bf16.mxu0 0
        %7146 = vmatmul.mubr.bf16.gmra.mrb[0].mxu0 %v6982
        %v7147 = vpop.f32.mrb[0].mxu0
        %v7148 = vadd.f32 %v7015, %v7147
        %v7149 = vpop.f32.mrb[0].mxu0
        %v7150 = vpop.f32.mrb[0].mxu0
        %v7151 = vadd.f32 %v7015, %v7150
        %v7152 = vpop.f32.mrb[0].mxu0
        %7153 = vmatprep.mubr.bf16.mxu0 0
        %7154 = vmatmul.mubr.bf16.gmra.mrb[0].mxu0 %v6983
        %v7155 = vpop.f32.mrb[0].mxu0
        %v7156 = vadd.f32 %v7015, %v7155
        %v7157 = vpop.f32.mrb[0].mxu0
        %v7158 = vpop.f32.mrb[0].mxu0
        %v7159 = vadd.f32 %v7015, %v7158
        %v7160 = vpop.f32.mrb[0].mxu0
        %7161 = vmatprep.mubr.bf16.mxu0 0
        %7162 = vmatmul.mubr.bf16.gmra.mrb[0].mxu0 %v6984
        %v7163 = vpop.f32.mrb[0].mxu0
        %v7164 = vadd.f32 %v7015, %v7163
        %v7165 = vpop.f32.mrb[0].mxu0
        %v7166 = vpop.f32.mrb[0].mxu0
        %v7167 = vadd.f32 %v7015, %v7166
        %v7168 = vpop.f32.mrb[0].mxu0
        %7169 = vmatprep.mubr.bf16.mxu0 0
        %7170 = vmatmul.mubr.bf16.gmra.mrb[0].mxu0 %v6985
        %v7171 = vpop.f32.mrb[0].mxu0
        %v7172 = vadd.f32 %v7015, %v7171
        %v7173 = vpop.f32.mrb[0].mxu0
        %v7174 = vpop.f32.mrb[0].mxu0
        %v7175 = vadd.f32 %v7015, %v7174
        %v7176 = vpop.f32.mrb[0].mxu0
        %7177 = vmatprep.mubr.bf16.mxu0 0
        %7178 = vmatmul.mubr.bf16.gmra.mrb[0].mxu0 %v6986
        %v7179 = vpop.f32.mrb[0].mxu0
        %v7180 = vadd.f32 %v7015, %v7179
        %v7181 = vpop.f32.mrb[0].mxu0
        %v7182 = vpop.f32.mrb[0].mxu0
        %v7183 = vadd.f32 %v7015, %v7182
        %v7184 = vpop.f32.mrb[0].mxu0
        %7185 = vmatprep.mubr.bf16.mxu0 0
        %7186 = vmatmul.mubr.bf16.gmra.mrb[0].mxu0 %v6987
        %v7187 = vpop.f32.mrb[0].mxu0
        %v7188 = vadd.f32 %v7015, %v7187
        %v7189 = vpop.f32.mrb[0].mxu0
        %v7190 = vpop.f32.mrb[0].mxu0
        %v7191 = vadd.f32 %v7015, %v7190
        %v7192 = vpop.f32.mrb[0].mxu0
        %7193 = vmatprep.mubr.bf16.mxu0 0
        %7194 = vmatmul.mubr.bf16.gmra.mrb[0].mxu0 %v6988
        %v7195 = vpop.f32.mrb[0].mxu0
        %v7196 = vadd.f32 %v7015, %v7195
        %v7197 = vpop.f32.mrb[0].mxu0
        %v7198 = vpop.f32.mrb[0].mxu0
        %v7199 = vadd.f32 %v7015, %v7198
        %v7200 = vpop.f32.mrb[0].mxu0
        %7201 = vmatprep.mubr.bf16.mxu0 0
        %7202 = vmatmul.mubr.bf16.gmra.mrb[0].mxu0 %v6989
        %v7203 = vpop.f32.mrb[0].mxu0
        %v7204 = vadd.f32 %v7015, %v7203
        %v7205 = vpop.f32.mrb[0].mxu0
        %v7206 = vpop.f32.mrb[0].mxu0
        %v7207 = vadd.f32 %v7015, %v7206
        %v7208 = vpop.f32.mrb[0].mxu0
        %7209 = vmatprep.mubr.bf16.mxu0 0
        %7210 = vmatmul.mubr.bf16.gmra.mrb[0].mxu0 %v6990
        %v7211 = vpop.f32.mrb[0].mxu0
        %v7212 = vadd.f32 %v7015, %v7211
        %v7213 = vpop.f32.mrb[0].mxu0
        %v7214 = vpop.f32.mrb[0].mxu0
        %v7215 = vadd.f32 %v7015, %v7214
        %v7216 = vpop.f32.mrb[0].mxu0
        %7217 = vmatprep.mubr.bf16.mxu0 0
        %7218 = vmatmul.mubr.bf16.gmra.mrb[0].mxu0 %v6991
        %v7219 = vpop.f32.mrb[0].mxu0
        %v7220 = vadd.f32 %v7015, %v7219
        %v7221 = vpop.f32.mrb[0].mxu0
        %v7222 = vpop.f32.mrb[0].mxu0
        %v7223 = vadd.f32 %v7015, %v7222
        %v7224 = vpop.f32.mrb[0].mxu0
        %7225 = vdwg.mxu0
        %v7226 = vmax.f32 %v7100, 0.0
        %v7227 = vmax.f32 %v7103, 0.0
        %v7228 = vmax.f32 %v7108, 0.0
        %v7229 = vmax.f32 %v7111, 0.0
        %v7230 = vmax.f32 %v7116, 0.0
        %v7231 = vmax.f32 %v7119, 0.0
        %v7232 = vmax.f32 %v7124, 0.0
        %v7233 = vmax.f32 %v7127, 0.0
        %v7234 = vmax.f32 %v7132, 0.0
        %v7235 = vmax.f32 %v7135, 0.0
        %v7236 = vmax.f32 %v7140, 0.0
        %v7237 = vmax.f32 %v7143, 0.0
        %v7238 = vmax.f32 %v7148, 0.0
        %v7239 = vmax.f32 %v7151, 0.0
        %v7240 = vmax.f32 %v7156, 0.0
        %v7241 = vmax.f32 %v7159, 0.0
        %v7242 = vmax.f32 %v7164, 0.0
        %v7243 = vmax.f32 %v7167, 0.0
        %v7244 = vmax.f32 %v7172, 0.0
        %v7245 = vmax.f32 %v7175, 0.0
        %v7246 = vmax.f32 %v7180, 0.0
        %v7247 = vmax.f32 %v7183, 0.0
        %v7248 = vmax.f32 %v7188, 0.0
        %v7249 = vmax.f32 %v7191, 0.0
        %v7250 = vmax.f32 %v7196, 0.0
        %v7251 = vmax.f32 %v7199, 0.0
        %v7252 = vmax.f32 %v7204, 0.0
        %v7253 = vmax.f32 %v7207, 0.0
        %v7254 = vmax.f32 %v7212, 0.0
        %v7255 = vmax.f32 %v7215, 0.0
        %v7256 = vmax.f32 %v7220, 0.0
        %v7257 = vmax.f32 %v7223, 0.0
        %v7258 = vpack.c.bf16 %v7227, %v7226
        %v7259 = vpack.c.bf16 %v7229, %v7228
        %v7260 = vpack.c.bf16 %v7231, %v7230
        %v7261 = vpack.c.bf16 %v7233, %v7232
        %v7262 = vpack.c.bf16 %v7235, %v7234
        %v7263 = vpack.c.bf16 %v7237, %v7236
        %v7264 = vpack.c.bf16 %v7239, %v7238
        %v7265 = vpack.c.bf16 %v7241, %v7240
        %v7266 = vpack.c.bf16 %v7243, %v7242
        %v7267 = vpack.c.bf16 %v7245, %v7244
        %v7268 = vpack.c.bf16 %v7247, %v7246
        %v7269 = vpack.c.bf16 %v7249, %v7248
        %v7270 = vpack.c.bf16 %v7251, %v7250
        %v7271 = vpack.c.bf16 %v7253, %v7252
        %v7272 = vpack.c.bf16 %v7255, %v7254
        %v7273 = vpack.c.bf16 %v7257, %v7256
        %s7274 = scalar_lea.vmem [#allocation5], 1088
        %v7275 = vld [vmem:[%s7274] sm:$0xf]
        %v7276 = vld [vmem:[%s7274 + $0x4] sm:$0xf]
        %v7277 = vld [vmem:[%s7274 + $0x8] sm:$0xf]
        %v7278 = vld [vmem:[%s7274 + $0xc] sm:$0xf]
        %v7279 = vld [vmem:[%s7274 + $0x10] sm:$0xf]
        %v7280 = vld [vmem:[%s7274 + $0x14] sm:$0xf]
        %v7281 = vld [vmem:[%s7274 + $0x18] sm:$0xf]
        %v7282 = vld [vmem:[%s7274 + $0x1c] sm:$0xf]
        %v7283 = vld [vmem:[%s7274 + $0x20] sm:$0xf]
        %v7284 = vld [vmem:[%s7274 + $0x24] sm:$0xf]
        %v7285 = vld [vmem:[%s7274 + $0x28] sm:$0xf]
        %v7286 = vld [vmem:[%s7274 + $0x2c] sm:$0xf]
        %v7287 = vld [vmem:[%s7274 + $0x30] sm:$0xf]
        %v7288 = vld [vmem:[%s7274 + $0x34] sm:$0xf]
        %v7289 = vld [vmem:[%s7274 + $0x38] sm:$0xf]
        %v7290 = vld [vmem:[%s7274 + $0x3c] sm:$0xf]
        %s7291 = scalar_lea.vmem [#allocation7], 17
        %v7292 = vld [vmem:[%s7291] sm:$0x1]
        %v7294 = vlaneseq
        %v7295 = vshrl.u32 %v7294, 7
        %v7296 = vsub.s32 0, %v7295
        %v7297 = vrot.slane %v7292, %v7296
        %v7315 = vunpack.c.l.b16 %v7275
        %v7316 = vunpack.c.l.b16 %v7276
        %v7317 = vunpack.c.l.b16 %v7277
        %v7318 = vunpack.c.l.b16 %v7278
        %v7319 = vunpack.c.l.b16 %v7279
        %v7320 = vunpack.c.l.b16 %v7280
        %v7321 = vunpack.c.l.b16 %v7281
        %v7322 = vunpack.c.l.b16 %v7282
        %v7323 = vunpack.c.l.b16 %v7283
        %v7324 = vunpack.c.l.b16 %v7284
        %v7325 = vunpack.c.l.b16 %v7285
        %v7326 = vunpack.c.l.b16 %v7286
        %v7327 = vunpack.c.l.b16 %v7287
        %v7328 = vunpack.c.l.b16 %v7288
        %v7329 = vunpack.c.l.b16 %v7289
        %v7330 = vunpack.c.l.b16 %v7290
        %v7331 = vpack.c.b16 %v7316, %v7315
        %v7332 = vpack.c.b16 %v7318, %v7317
        %v7333 = vpack.c.b16 %v7320, %v7319
        %v7334 = vpack.c.b16 %v7322, %v7321
        %v7335 = vpack.c.b16 %v7324, %v7323
        %v7336 = vpack.c.b16 %v7326, %v7325
        %v7337 = vpack.c.b16 %v7328, %v7327
        %v7338 = vpack.c.b16 %v7330, %v7329
        %7347 = vmatprep.subr.bf16.mxu0 0
        %7348 = vmatpush1.bf16.msra.mxu0 %v7331
        %7349 = vmatprep.subr.bf16.mxu0 0
        %7350 = vmatpush1.bf16.msra.mxu0 %v7332
        %7351 = vmatprep.subr.bf16.mxu0 0
        %7352 = vmatpush1.bf16.msra.mxu0 %v7333
        %7353 = vmatprep.subr.bf16.mxu0 0
        %7354 = vmatpush1.bf16.msra.mxu0 %v7334
        %7355 = vmatprep.subr.bf16.mxu0 0
        %7356 = vmatpush1.bf16.msra.mxu0 %v7335
        %7357 = vmatprep.subr.bf16.mxu0 0
        %7358 = vmatpush1.bf16.msra.mxu0 %v7336
        %7359 = vmatprep.subr.bf16.mxu0 0
        %7360 = vmatpush1.bf16.msra.mxu0 %v7337
        %7361 = vmatprep.subr.bf16.mxu0 0
        %7362 = vmatpush1.bf16.msra.mxu0 %v7338
        %7363 = vmatprep.subr.bf16.mxu0 0
        %7364 = vmatpush1.bf16.msra.mxu0 0
        %7365 = vmatprep.subr.bf16.mxu0 0
        %7366 = vmatpush1.bf16.msra.mxu0 0
        %7367 = vmatprep.subr.bf16.mxu0 0
        %7368 = vmatpush1.bf16.msra.mxu0 0
        %7369 = vmatprep.subr.bf16.mxu0 0
        %7370 = vmatpush1.bf16.msra.mxu0 0
        %7371 = vmatprep.subr.bf16.mxu0 0
        %7372 = vmatpush1.bf16.msra.mxu0 0
        %7373 = vmatprep.subr.bf16.mxu0 0
        %7374 = vmatpush1.bf16.msra.mxu0 0
        %7375 = vmatprep.subr.bf16.mxu0 0
        %7376 = vmatpush1.bf16.msra.mxu0 0
        %7377 = vmatprep.subr.bf16.mxu0 0
        %7378 = vmatpush1.bf16.msra.mxu0 0
        %7379 = vmatprep.mubr.bf16.mxu0 0
        %7380 = vmatmul.mubr.bf16.gmra.mrb[0].mxu0 %v7258
        %v7381 = vpop.f32.mrb[0].mxu0
        %v7382 = vadd.f32 %v7297, %v7381
        %v7383 = vpop.f32.mrb[0].mxu0
        %v7384 = vpop.f32.mrb[0].mxu0
        %v7385 = vadd.f32 %v7297, %v7384
        %v7386 = vpop.f32.mrb[0].mxu0
        %7387 = vmatprep.mubr.bf16.mxu0 0
        %7388 = vmatmul.mubr.bf16.gmra.mrb[0].mxu0 %v7259
        %v7389 = vpop.f32.mrb[0].mxu0
        %v7390 = vadd.f32 %v7297, %v7389
        %v7391 = vpop.f32.mrb[0].mxu0
        %v7392 = vpop.f32.mrb[0].mxu0
        %v7393 = vadd.f32 %v7297, %v7392
        %v7394 = vpop.f32.mrb[0].mxu0
        %7395 = vmatprep.mubr.bf16.mxu0 0
        %7396 = vmatmul.mubr.bf16.gmra.mrb[0].mxu0 %v7260
        %v7397 = vpop.f32.mrb[0].mxu0
        %v7398 = vadd.f32 %v7297, %v7397
        %v7399 = vpop.f32.mrb[0].mxu0
        %v7400 = vpop.f32.mrb[0].mxu0
        %v7401 = vadd.f32 %v7297, %v7400
        %v7402 = vpop.f32.mrb[0].mxu0
        %7403 = vmatprep.mubr.bf16.mxu0 0
        %7404 = vmatmul.mubr.bf16.gmra.mrb[0].mxu0 %v7261
        %v7405 = vpop.f32.mrb[0].mxu0
        %v7406 = vadd.f32 %v7297, %v7405
        %v7407 = vpop.f32.mrb[0].mxu0
        %v7408 = vpop.f32.mrb[0].mxu0
        %v7409 = vadd.f32 %v7297, %v7408
        %v7410 = vpop.f32.mrb[0].mxu0
        %7411 = vmatprep.mubr.bf16.mxu0 0
        %7412 = vmatmul.mubr.bf16.gmra.mrb[0].mxu0 %v7262
        %v7413 = vpop.f32.mrb[0].mxu0
        %v7414 = vadd.f32 %v7297, %v7413
        %v7415 = vpop.f32.mrb[0].mxu0
        %v7416 = vpop.f32.mrb[0].mxu0
        %v7417 = vadd.f32 %v7297, %v7416
        %v7418 = vpop.f32.mrb[0].mxu0
        %7419 = vmatprep.mubr.bf16.mxu0 0
        %7420 = vmatmul.mubr.bf16.gmra.mrb[0].mxu0 %v7263
        %v7421 = vpop.f32.mrb[0].mxu0
        %v7422 = vadd.f32 %v7297, %v7421
        %v7423 = vpop.f32.mrb[0].mxu0
        %v7424 = vpop.f32.mrb[0].mxu0
        %v7425 = vadd.f32 %v7297, %v7424
        %v7426 = vpop.f32.mrb[0].mxu0
        %7427 = vmatprep.mubr.bf16.mxu0 0
        %7428 = vmatmul.mubr.bf16.gmra.mrb[0].mxu0 %v7264
        %v7429 = vpop.f32.mrb[0].mxu0
        %v7430 = vadd.f32 %v7297, %v7429
        %v7431 = vpop.f32.mrb[0].mxu0
        %v7432 = vpop.f32.mrb[0].mxu0
        %v7433 = vadd.f32 %v7297, %v7432
        %v7434 = vpop.f32.mrb[0].mxu0
        %7435 = vmatprep.mubr.bf16.mxu0 0
        %7436 = vmatmul.mubr.bf16.gmra.mrb[0].mxu0 %v7265
        %v7437 = vpop.f32.mrb[0].mxu0
        %v7438 = vadd.f32 %v7297, %v7437
        %v7439 = vpop.f32.mrb[0].mxu0
        %v7440 = vpop.f32.mrb[0].mxu0
        %v7441 = vadd.f32 %v7297, %v7440
        %v7442 = vpop.f32.mrb[0].mxu0
        %7443 = vmatprep.mubr.bf16.mxu0 0
        %7444 = vmatmul.mubr.bf16.gmra.mrb[0].mxu0 %v7266
        %v7445 = vpop.f32.mrb[0].mxu0
        %v7446 = vadd.f32 %v7297, %v7445
        %v7447 = vpop.f32.mrb[0].mxu0
        %v7448 = vpop.f32.mrb[0].mxu0
        %v7449 = vadd.f32 %v7297, %v7448
        %v7450 = vpop.f32.mrb[0].mxu0
        %7451 = vmatprep.mubr.bf16.mxu0 0
        %7452 = vmatmul.mubr.bf16.gmra.mrb[0].mxu0 %v7267
        %v7453 = vpop.f32.mrb[0].mxu0
        %v7454 = vadd.f32 %v7297, %v7453
        %v7455 = vpop.f32.mrb[0].mxu0
        %v7456 = vpop.f32.mrb[0].mxu0
        %v7457 = vadd.f32 %v7297, %v7456
        %v7458 = vpop.f32.mrb[0].mxu0
        %7459 = vmatprep.mubr.bf16.mxu0 0
        %7460 = vmatmul.mubr.bf16.gmra.mrb[0].mxu0 %v7268
        %v7461 = vpop.f32.mrb[0].mxu0
        %v7462 = vadd.f32 %v7297, %v7461
        %v7463 = vpop.f32.mrb[0].mxu0
        %v7464 = vpop.f32.mrb[0].mxu0
        %v7465 = vadd.f32 %v7297, %v7464
        %v7466 = vpop.f32.mrb[0].mxu0
        %7467 = vmatprep.mubr.bf16.mxu0 0
        %7468 = vmatmul.mubr.bf16.gmra.mrb[0].mxu0 %v7269
        %v7469 = vpop.f32.mrb[0].mxu0
        %v7470 = vadd.f32 %v7297, %v7469
        %v7471 = vpop.f32.mrb[0].mxu0
        %v7472 = vpop.f32.mrb[0].mxu0
        %v7473 = vadd.f32 %v7297, %v7472
        %v7474 = vpop.f32.mrb[0].mxu0
        %7475 = vmatprep.mubr.bf16.mxu0 0
        %7476 = vmatmul.mubr.bf16.gmra.mrb[0].mxu0 %v7270
        %v7477 = vpop.f32.mrb[0].mxu0
        %v7478 = vadd.f32 %v7297, %v7477
        %v7479 = vpop.f32.mrb[0].mxu0
        %v7480 = vpop.f32.mrb[0].mxu0
        %v7481 = vadd.f32 %v7297, %v7480
        %v7482 = vpop.f32.mrb[0].mxu0
        %7483 = vmatprep.mubr.bf16.mxu0 0
        %7484 = vmatmul.mubr.bf16.gmra.mrb[0].mxu0 %v7271
        %v7485 = vpop.f32.mrb[0].mxu0
        %v7486 = vadd.f32 %v7297, %v7485
        %v7487 = vpop.f32.mrb[0].mxu0
        %v7488 = vpop.f32.mrb[0].mxu0
        %v7489 = vadd.f32 %v7297, %v7488
        %v7490 = vpop.f32.mrb[0].mxu0
        %7491 = vmatprep.mubr.bf16.mxu0 0
        %7492 = vmatmul.mubr.bf16.gmra.mrb[0].mxu0 %v7272
        %v7493 = vpop.f32.mrb[0].mxu0
        %v7494 = vadd.f32 %v7297, %v7493
        %v7495 = vpop.f32.mrb[0].mxu0
        %v7496 = vpop.f32.mrb[0].mxu0
        %v7497 = vadd.f32 %v7297, %v7496
        %v7498 = vpop.f32.mrb[0].mxu0
        %7499 = vmatprep.mubr.bf16.mxu0 0
        %7500 = vmatmul.mubr.bf16.gmra.mrb[0].mxu0 %v7273
        %v7501 = vpop.f32.mrb[0].mxu0
        %v7502 = vadd.f32 %v7297, %v7501
        %v7503 = vpop.f32.mrb[0].mxu0
        %v7504 = vpop.f32.mrb[0].mxu0
        %v7505 = vadd.f32 %v7297, %v7504
        %v7506 = vpop.f32.mrb[0].mxu0
        %7507 = vdwg.mxu0
        %v7508 = vadd.f32 %v7382, %v6662
        %v7509 = vadd.f32 %v7385, %v6663
        %v7510 = vadd.f32 %v7390, %v6664
        %v7511 = vadd.f32 %v7393, %v6665
        %v7512 = vadd.f32 %v7398, %v6666
        %v7513 = vadd.f32 %v7401, %v6667
        %v7514 = vadd.f32 %v7406, %v6668
        %v7515 = vadd.f32 %v7409, %v6669
        %v7516 = vadd.f32 %v7414, %v6670
        %v7517 = vadd.f32 %v7417, %v6671
        %v7518 = vadd.f32 %v7422, %v6672
        %v7519 = vadd.f32 %v7425, %v6673
        %v7520 = vadd.f32 %v7430, %v6674
        %v7521 = vadd.f32 %v7433, %v6675
        %v7522 = vadd.f32 %v7438, %v6676
        %v7523 = vadd.f32 %v7441, %v6677
        %v7524 = vadd.f32 %v7446, %v6678
        %v7525 = vadd.f32 %v7449, %v6679
        %v7526 = vadd.f32 %v7454, %v6680
        %v7527 = vadd.f32 %v7457, %v6681
        %v7528 = vadd.f32 %v7462, %v6682
        %v7529 = vadd.f32 %v7465, %v6683
        %v7530 = vadd.f32 %v7470, %v6684
        %v7531 = vadd.f32 %v7473, %v6685
        %v7532 = vadd.f32 %v7478, %v6686
        %v7533 = vadd.f32 %v7481, %v6687
        %v7534 = vadd.f32 %v7486, %v6688
        %v7535 = vadd.f32 %v7489, %v6689
        %v7536 = vadd.f32 %v7494, %v6690
        %v7537 = vadd.f32 %v7497, %v6691
        %v7538 = vadd.f32 %v7502, %v6692
        %v7539 = vadd.f32 %v7505, %v6693
        %7540 = vst [vmem:[%s271] sm:$0xff] %v7508
        %7541 = vst [vmem:[%s271 + $0x8] sm:$0xff] %v7509
        %7542 = vst [vmem:[%s271 + $0x10] sm:$0xff] %v7510
        %7543 = vst [vmem:[%s271 + $0x18] sm:$0xff] %v7511
        %7544 = vst [vmem:[%s271 + $0x20] sm:$0xff] %v7512
        %7545 = vst [vmem:[%s271 + $0x28] sm:$0xff] %v7513
        %7546 = vst [vmem:[%s271 + $0x30] sm:$0xff] %v7514
        %7547 = vst [vmem:[%s271 + $0x38] sm:$0xff] %v7515
        %7548 = vst [vmem:[%s271 + $0x40] sm:$0xff] %v7516
        %7549 = vst [vmem:[%s271 + $0x48] sm:$0xff] %v7517
        %7550 = vst [vmem:[%s271 + $0x50] sm:$0xff] %v7518
        %7551 = vst [vmem:[%s271 + $0x58] sm:$0xff] %v7519
        %7552 = vst [vmem:[%s271 + $0x60] sm:$0xff] %v7520
        %7553 = vst [vmem:[%s271 + $0x68] sm:$0xff] %v7521
        %7554 = vst [vmem:[%s271 + $0x70] sm:$0xff] %v7522
        %7555 = vst [vmem:[%s271 + $0x78] sm:$0xff] %v7523
        %7556 = vst [vmem:[%s271 + $0x80] sm:$0xff] %v7524
        %7557 = vst [vmem:[%s271 + $0x88] sm:$0xff] %v7525
        %7558 = vst [vmem:[%s271 + $0x90] sm:$0xff] %v7526
        %7559 = vst [vmem:[%s271 + $0x98] sm:$0xff] %v7527
        %7560 = vst [vmem:[%s271 + $0xa0] sm:$0xff] %v7528
        %7561 = vst [vmem:[%s271 + $0xa8] sm:$0xff] %v7529
        %7562 = vst [vmem:[%s271 + $0xb0] sm:$0xff] %v7530
        %7563 = vst [vmem:[%s271 + $0xb8] sm:$0xff] %v7531
        %7564 = vst [vmem:[%s271 + $0xc0] sm:$0xff] %v7532
        %7565 = vst [vmem:[%s271 + $0xc8] sm:$0xff] %v7533
        %7566 = vst [vmem:[%s271 + $0xd0] sm:$0xff] %v7534
        %7567 = vst [vmem:[%s271 + $0xd8] sm:$0xff] %v7535
        %7568 = vst [vmem:[%s271 + $0xe0] sm:$0xff] %v7536
        %7569 = vst [vmem:[%s271 + $0xe8] sm:$0xff] %v7537
        %7570 = vst [vmem:[%s271 + $0xf0] sm:$0xff] %v7538
        %7571 = vst [vmem:[%s271 + $0xf8] sm:$0xff] %v7539
        %s7572 = sand.u32 %s141, 1
        %s7573 = scalar_lea.sflag [#allocation4], %s7572
        %s7574 = sand.u32 %s141, 1
        %s7575 = smul.addr %s7574, 256
        %s7576 = scalar_lea.vmem [#allocation8], %s7575
        // Predicated region
        $region53: #{tpu_custom_call.1} parent=39 // pred_check
          %p7577 = pneg %p151
        $region54: #{tpu_custom_call.1} parent=39 // pred_check_branch
          %7579 = sbr.rel (%p7577) target = $region56
        $region55: #{tpu_custom_call.1} parent=39 // pred_region
          %s7580 = smul.u32 32, %s23
          %s7582 = ssub.s32 4096, 4096
          %7583 = vsyncadd %s7573, %s7582
          %s7584 = smul.addr %s7580, 128
          %s7585 = scalar_lea.hbm %s5, %s7584
          %s7586 = sshll.u32 %s7576, 4
          %s7587 = int_to_ptr.vmem [resolvable:$true] %s7586
          %7592 = dma.vmem_to_hbm [thread:$0]  %s7587, 4096, %s7585, %s7573, 128, 128, 8
        $region56: #{tpu_custom_call.1} parent=39 // pred_fallthru
          _
      $region40: #{tpu_custom_call.1} parent=5 // pred_fallthru
        _
      %p7593 = scmp.le.s32.totalorder 2, %s18
      // Predicated region
      $region57: #{tpu_custom_call.1} parent=5 // pred_check
        %p7594 = pneg %p7593
      $region58: #{tpu_custom_call.1} parent=5 // pred_check_branch
        %7596 = sbr.rel (%p7594) target = $region60
      $region59: #{tpu_custom_call.1} parent=5 // pred_region
        %s7597 = ssub.s32 %s18, 2
        // Predicated region
        $region61: #{tpu_custom_call.1} parent=59 // pred_check
          %p7598 = pneg %p157
        $region62: #{tpu_custom_call.1} parent=59 // pred_check_branch
          %7600 = sbr.rel (%p7598) target = $region64
        $region63: #{tpu_custom_call.1} parent=59 // pred_region
          %s7601 = sand.u32 %s142, 1
          %s7602 = scalar_lea.sflag [#allocation4], %s7601
          %s7603 = sand.u32 %s142, 1
          %s7604 = smul.addr %s7603, 256
          %s7605 = scalar_lea.vmem [#allocation8], %s7604
          %7606 = dma.done %s7602, 4096
        $region64: #{tpu_custom_call.1} parent=59 // pred_fallthru
          _
      $region60: #{tpu_custom_call.1} parent=5 // pred_fallthru
        _
    $region6: #{tpu_custom_call.1} parent=1 // loop_footer
      %s22 = sadd.s32 1, %s18
    $region7: #{tpu_custom_call.1} parent=1 // loop_footer_branch
      %17 = sbr.rel target = $region3
    $region8: #{tpu_custom_call.1} parent=1 // loop_exit
      _
    %7607 = vsyncpa [#allocation3], 1
    %s7608 = scalar_lea.sflag [#allocation3], 1
    %7609 = vsyncpa %s7608, 1
    %7610 = vsyncpa [#allocation6], 1
    %7611 = vsyncpa [#allocation4], 1
    %s7612 = scalar_lea.sflag [#allocation4], 1
    %7613 = vsyncpa %s7612, 1

</llo_original>
